<compile_context>
chip_gen: v5e
topology: v5e:2x2
jax: 0.10.0
libtpu: 0.0.40
codegen_flags: <defaults>
</compile_context>

<pallas_src>
import jax
import jax.numpy as jnp
from jax.experimental import pallas as pl
from jax.experimental.pallas import tpu as pltpu

# ----- small synthetic sizes (PyTorch defaults: FEAT=1024, DIM=128, K=65536) --
N = 2            # batch
C = 3            # image channels
H = W = 16       # spatial
S = H * W        # 256 -> lane-dense spatial axis
FEAT = 256       # backbone feature channels (stand-in for 1024), 128-multiple
DIM = 128        # MoCo projection dim (lane-dense)
K_QUEUE = 1024   # queue size (128-multiple; real model: 65536)
TK = 512         # queue tile width (>=256 for the 256-wide MXU on v6e/v7x)
NP = 8           # padded batch rows for the head kernel (one sublane)
M_MOM = 0.999    # key-encoder momentum
TEMP = 0.07      # softmax temperature


def _vmem():
    return pl.BlockSpec(memory_space=pltpu.MemorySpace.VMEM)


# ---------------------------------------------------------------------------
# Kernel 1: encoder = (avgpool o 1x1-conv backbone) fused + Proj MLP
# ---------------------------------------------------------------------------
def encode_kernel(x_ref, wb_ref, w1_ref, b1_ref, w2_ref, b2_ref, w3_ref, b3_ref,
                  proj_ref):
    # x_ref: (B, C, S).  AdaptiveAvgPool2d((1,1)) and the pointwise conv are
    # both linear, so pool first (lane reduce) then mix channels.
    inv_s = jnp.float32(1.0 / S)
    pooled = jnp.sum(x_ref[...], axis=-1) * inv_s                   # (B, C)

    # Channel mix as C broadcast-FMAs on the VPU (contraction depth 3 would
    # waste the MXU).
    wb = wb_ref[...]                                                 # (C, FEAT)
    feat = pooled[:, 0:1] * wb[0:1, :]
    for c in range(1, C):
        feat = feat + pooled[:, c:c + 1] * wb[c:c + 1, :]            # (B, FEAT)

    # Proj (mlp=True): Linear+ReLU (mlp_kept), Linear+ReLU, Linear (mlp_drop)
    # bf16 MXU operands, f32 accumulation; bias add / ReLU stay f32.
    h1 = jnp.maximum(
        jnp.dot(feat.astype(jnp.bfloat16), w1_ref[...].astype(jnp.bfloat16),
                preferred_element_type=jnp.float32) + b1_ref[...], 0.0)
    h2 = jnp.maximum(
        jnp.dot(h1.astype(jnp.bfloat16), w2_ref[...].astype(jnp.bfloat16),
                preferred_element_type=jnp.float32) + b2_ref[...], 0.0)
    proj_ref[...] = jnp.dot(h2.astype(jnp.bfloat16),
                            w3_ref[...].astype(jnp.bfloat16),
                            preferred_element_type=jnp.float32) + b3_ref[...]


def encode(x_ncs, backbone_w, proj_params):
    w1, b1, w2, b2, w3, b3 = proj_params
    B = x_ncs.shape[0]
    return pl.pallas_call(
        encode_kernel,
        out_shape=jax.ShapeDtypeStruct((B, DIM), jnp.float32),
        in_specs=[_vmem()] * 8,
        out_specs=_vmem(),
    )(x_ncs, backbone_w, w1, b1, w2, b2, w3, b3)


# ---------------------------------------------------------------------------
# Kernel 2: fused MoCo head — normalize q/k, fold 1/T into q, l_pos, then
#           stream the bf16 queue in TK-wide tiles for l_neg.  q is cast to
#           bf16 ONCE into VMEM scratch and stays resident across queue tiles.
# ---------------------------------------------------------------------------
def head_kernel(q_ref, k_ref, queue_ref, lpos_ref, kn_ref, lneg_ref, qn_sc):
    j = pl.program_id(0)

    @pl.when(j == 0)
    def _():
        q = q_ref[...]
        k = k_ref[...]
        # F.normalize(x, dim=1): x / max(||x||, 1e-12) == x * rsqrt(max(ss,1e-24))
        qn = q * jax.lax.rsqrt(
            jnp.maximum(jnp.sum(q * q, axis=1, keepdims=True), 1e-24))
        kn = k * jax.lax.rsqrt(
            jnp.maximum(jnp.sum(k * k, axis=1, keepdims=True), 1e-24))
        qs = qn * jnp.float32(1.0 / TEMP)                  # fold temperature once
        lpos_ref[...] = jnp.sum(qs * kn, axis=1, keepdims=True)   # (NP, 1)
        kn_ref[...] = kn
        qn_sc[...] = qs.astype(jnp.bfloat16)               # resident bf16 LHS

    lneg_ref[...] = jnp.dot(qn_sc[...], queue_ref[...],
                            preferred_element_type=jnp.float32)


def moco_head(q_proj, k_proj, queue_bf16):
    n = q_proj.shape[0]
    pad = NP - n
    qp = jnp.pad(q_proj, ((0, pad), (0, 0)))
    kp = jnp.pad(k_proj, ((0, pad), (0, 0)))

    l_pos, kn, l_neg = pl.pallas_call(
        head_kernel,
        out_shape=(jax.ShapeDtypeStruct((NP, 1), jnp.float32),
                   jax.ShapeDtypeStruct((NP, DIM), jnp.float32),
                   jax.ShapeDtypeStruct((NP, K_QUEUE), jnp.float32)),
        grid=(K_QUEUE // TK,),
        in_specs=[pl.BlockSpec((NP, DIM), lambda j: (0, 0)),
                  pl.BlockSpec((NP, DIM), lambda j: (0, 0)),
                  pl.BlockSpec((DIM, TK), lambda j: (0, j))],
        out_specs=(pl.BlockSpec((NP, 1), lambda j: (0, 0)),
                   pl.BlockSpec((NP, DIM), lambda j: (0, 0)),
                   pl.BlockSpec((NP, TK), lambda j: (0, j))),
        scratch_shapes=[pltpu.VMEM((NP, DIM), jnp.bfloat16)],
        compiler_params=pltpu.CompilerParams(
            dimension_semantics=("arbitrary",)),   # l_pos/kn resident over axis
    )(qp, kp, queue_bf16)

    # concat [l_pos | l_neg] in the wrapper (kernel stores stay lane-0 aligned)
    logits = jnp.concatenate([l_pos[:n], l_neg[:n]], axis=1)   # already / T
    return logits, kn[:n]


# ---------------------------------------------------------------------------
# Kernel 3: momentum update — ONE pallas_call over the actual parameter
#           leaves; every output aliases its params_k input (no copies, no
#           flatten/pad/reshape), and params_k is donated at the jit boundary.
# ---------------------------------------------------------------------------
def _momentum_kernel_for(n_leaves):
    def momentum_kernel(*refs):
        pq = refs[:n_leaves]
        pk = refs[n_leaves:2 * n_leaves]
        out = refs[2 * n_leaves:]
        for q_r, k_r, o_r in zip(pq, pk, out):
            o_r[...] = k_r[...] * M_MOM + q_r[...] * (1.0 - M_MOM)
    return momentum_kernel


def momentum_update(params_q, params_k):
    leaves_q, treedef = jax.tree_util.tree_flatten(params_q)
    leaves_k, _ = jax.tree_util.tree_flatten(params_k)
    n = len(leaves_k)
    new_leaves = pl.pallas_call(
        _momentum_kernel_for(n),
        out_shape=tuple(jax.ShapeDtypeStruct(l.shape, l.dtype) for l in leaves_k),
        in_specs=[_vmem()] * (2 * n),
        out_specs=tuple(_vmem() for _ in range(n)),
        input_output_aliases={n + i: i for i in range(n)},   # out_i <- params_k_i
    )(*leaves_q, *leaves_k)
    return jax.tree_util.tree_unflatten(treedef, list(new_leaves))


# ---------------------------------------------------------------------------
# MoCo forward logic (glue in plain JAX)
# ---------------------------------------------------------------------------
def key_encode(im_k, params_q, params_k, shuffle_key):
    # DDP batch shuffle with world_size == 1 -> in-batch permutation.
    idx_shuffle = jax.random.permutation(shuffle_key, N)
    idx_unshuffle = jnp.argsort(idx_shuffle)
    im_k_shuf = im_k[idx_shuffle]
    # Reference quirk: encoder_k backbone + encoder_q projector for k.
    k_proj = encode(im_k_shuf.reshape(N, C, S), params_k['wb'], params_q['proj'])
    return k_proj[idx_unshuffle]


def forward_train(q_proj, im_k, params_q, params_k, queue, shuffle_key):
    # no_grad block (reference): momentum update, batch shuffle, key path
    params_k = momentum_update(params_q, params_k)
    k_proj = key_encode(im_k, params_q, params_k, shuffle_key)
    logits, k = moco_head(q_proj, k_proj, queue)      # logits already / T
    return logits, k, params_k


def moco_forward(im_q1, im_q2, im_k, params_q, params_k, queue, queue_ptr, key):
    key1, key2, key3 = jax.random.split(key, 3)

    # encoder_q is constant through forward: encode both query crops in one
    # batched (2N)-row call and reuse q1's projection for the final call.
    q_all = jnp.concatenate([im_q1, im_q2], axis=0).reshape(2 * N, C, S)
    q_proj_all = encode(q_all, params_q['wb'], params_q['proj'])
    q1_proj, q2_proj = q_proj_all[:N], q_proj_all[N:]

    # Reference forward() discards logits of the first two forward_train calls;
    # only k1/k2 and the momentum side effects survive (XLA DCEs the rest).
    _l1, k1, params_k = forward_train(q1_proj, im_k, params_q, params_k, queue, key1)
    _l2, k2, params_k = forward_train(q2_proj, im_k, params_q, params_k, queue, key2)

    # _dequeue_and_enqueue (world_size == 1: all_gather is identity).
    keys = jnp.concatenate([k1, k2], axis=0)                  # (2N, DIM) f32
    bs = keys.shape[0]
    assert K_QUEUE % bs == 0
    queue = jax.lax.dynamic_update_slice(
        queue, keys.T.astype(queue.dtype), (0, queue_ptr))    # in-place (donated)
    queue_ptr = (queue_ptr + bs) % K_QUEUE

    logits, k, params_k = forward_train(q1_proj, im_k, params_q, params_k, queue, key3)
    return (logits, k), params_k, queue, queue_ptr


# ---------------------------------------------------------------------------
# Deterministic parameter init
# ---------------------------------------------------------------------------
def init_params(key):
    ks = jax.random.split(key, 4)
    wb = jax.random.normal(ks[0], (C, FEAT), jnp.float32) * 0.1

    def linear(k, fin, fout):
        kw, kb = jax.random.split(k)
        lim = 1.0 / float(fin) ** 0.5
        w = jax.random.uniform(kw, (fin, fout), jnp.float32, -lim, lim)
        b = jax.random.uniform(kb, (1, fout), jnp.float32, -lim, lim)
        return w, b

    w1, b1 = linear(ks[1], FEAT, DIM)   # mlp_kept
    w2, b2 = linear(ks[2], DIM, DIM)    # mlp_drop[0]
    w3, b3 = linear(ks[3], DIM, DIM)    # mlp_drop[2]
    return {'wb': wb, 'proj': (w1, b1, w2, b2, w3, b3)}


if __name__ == "__main__":
    root = jax.random.PRNGKey(0)
    k_q1, k_q2, k_k, k_par, k_queue, k_shuf = jax.random.split(root, 6)

    im_q1 = jax.random.normal(k_q1, (N, C, H, W), jnp.float32)
    im_q2 = jax.random.normal(k_q2, (N, C, H, W), jnp.float32)
    im_k = jax.random.normal(k_k, (N, C, H, W), jnp.float32)

    params_q = init_params(k_par)
    # encoder_k initialized as a copy of encoder_q (distinct buffers so
    # donating params_k never touches params_q).
    params_k = jax.tree_util.tree_map(lambda p: p + 0.0, params_q)

    queue = jax.random.normal(k_queue, (DIM, K_QUEUE), jnp.float32)
    queue = queue * jax.lax.rsqrt(
        jnp.maximum(jnp.sum(queue * queue, axis=0, keepdims=True), 1e-24))
    queue = queue.astype(jnp.bfloat16)          # queue lives in bf16 in HBM

    # Donate params_k (idx 4) and queue (idx 5): momentum update and enqueue
    # become true in-place buffer updates.
    fwd = jax.jit(moco_forward, donate_argnums=(4, 5))
    (logits, k), params_k, queue, queue_ptr = fwd(
        im_q1, im_q2, im_k, params_q, params_k, queue, 0, k_shuf)

    jax.block_until_ready((logits, k, queue, queue_ptr))
    assert logits.shape == (N, 1 + K_QUEUE)
    assert k.shape == (N, DIM)
    assert int(queue_ptr) == (2 * N) % K_QUEUE
    assert bool(jnp.all(jnp.isfinite(logits)))
    print("KERNEL_OK")
</pallas_src>

<mosaic_0001>
module attributes {stable_mosaic.version = 11 : i64} {
  func.func @momentum_kernel(%arg0: memref<256x128xf32, #tpu.memory_space<vmem>>, %arg1: memref<1x128xf32, #tpu.memory_space<vmem>>, %arg2: memref<128x128xf32, #tpu.memory_space<vmem>>, %arg3: memref<1x128xf32, #tpu.memory_space<vmem>>, %arg4: memref<128x128xf32, #tpu.memory_space<vmem>>, %arg5: memref<1x128xf32, #tpu.memory_space<vmem>>, %arg6: memref<3x256xf32, #tpu.memory_space<vmem>>, %arg7: memref<256x128xf32, #tpu.memory_space<vmem>>, %arg8: memref<1x128xf32, #tpu.memory_space<vmem>>, %arg9: memref<128x128xf32, #tpu.memory_space<vmem>>, %arg10: memref<1x128xf32, #tpu.memory_space<vmem>>, %arg11: memref<128x128xf32, #tpu.memory_space<vmem>>, %arg12: memref<1x128xf32, #tpu.memory_space<vmem>>, %arg13: memref<3x256xf32, #tpu.memory_space<vmem>>, %arg14: memref<256x128xf32, #tpu.memory_space<vmem>>, %arg15: memref<1x128xf32, #tpu.memory_space<vmem>>, %arg16: memref<128x128xf32, #tpu.memory_space<vmem>>, %arg17: memref<1x128xf32, #tpu.memory_space<vmem>>, %arg18: memref<128x128xf32, #tpu.memory_space<vmem>>, %arg19: memref<1x128xf32, #tpu.memory_space<vmem>>, %arg20: memref<3x256xf32, #tpu.memory_space<vmem>>) attributes {dimension_semantics = [], scalar_prefetch = 0 : i64, scratch_operands = 0 : i64, tpu.core_type = #tpu.core_type<tc>} {
    %c0 = arith.constant 0 : index
    %c0_0 = arith.constant 0 : index
    %0 = vector.load %arg7[%c0, %c0_0] : memref<256x128xf32, #tpu.memory_space<vmem>>, vector<256x128xf32>
    %cst = arith.constant 9.990000e-01 : f32
    %1 = vector.broadcast %cst : f32 to vector<256x128xf32>
    %2 = arith.mulf %0, %1 : vector<256x128xf32>
    %c0_1 = arith.constant 0 : index
    %c0_2 = arith.constant 0 : index
    %3 = vector.load %arg0[%c0_1, %c0_2] : memref<256x128xf32, #tpu.memory_space<vmem>>, vector<256x128xf32>
    %cst_3 = arith.constant 1.000000e-03 : f32
    %4 = vector.broadcast %cst_3 : f32 to vector<256x128xf32>
    %5 = arith.mulf %3, %4 : vector<256x128xf32>
    %6 = arith.addf %2, %5 : vector<256x128xf32>
    %c0_4 = arith.constant 0 : index
    %c0_5 = arith.constant 0 : index
    %7 = vector.load %arg14[%c0_4, %c0_5] : memref<256x128xf32, #tpu.memory_space<vmem>>, vector<256x128xf32>
    tpu.vector_store %arg14[%c0_4, %c0_5], %6 {strides = array<i32>} : memref<256x128xf32, #tpu.memory_space<vmem>>, vector<256x128xf32>,
    %c0_6 = arith.constant 0 : index
    %c0_7 = arith.constant 0 : index
    %8 = vector.load %arg8[%c0_6, %c0_7] : memref<1x128xf32, #tpu.memory_space<vmem>>, vector<1x128xf32>
    %cst_8 = arith.constant 9.990000e-01 : f32
    %9 = vector.broadcast %cst_8 : f32 to vector<1x128xf32>
    %10 = arith.mulf %8, %9 : vector<1x128xf32>
    %c0_9 = arith.constant 0 : index
    %c0_10 = arith.constant 0 : index
    %11 = vector.load %arg1[%c0_9, %c0_10] : memref<1x128xf32, #tpu.memory_space<vmem>>, vector<1x128xf32>
    %cst_11 = arith.constant 1.000000e-03 : f32
    %12 = vector.broadcast %cst_11 : f32 to vector<1x128xf32>
    %13 = arith.mulf %11, %12 : vector<1x128xf32>
    %14 = arith.addf %10, %13 : vector<1x128xf32>
    %c0_12 = arith.constant 0 : index
    %c0_13 = arith.constant 0 : index
    %15 = vector.load %arg15[%c0_12, %c0_13] : memref<1x128xf32, #tpu.memory_space<vmem>>, vector<1x128xf32>
    tpu.vector_store %arg15[%c0_12, %c0_13], %14 {strides = array<i32>} : memref<1x128xf32, #tpu.memory_space<vmem>>, vector<1x128xf32>,
    %c0_14 = arith.constant 0 : index
    %c0_15 = arith.constant 0 : index
    %16 = vector.load %arg9[%c0_14, %c0_15] : memref<128x128xf32, #tpu.memory_space<vmem>>, vector<128x128xf32>
    %cst_16 = arith.constant 9.990000e-01 : f32
    %17 = vector.broadcast %cst_16 : f32 to vector<128x128xf32>
    %18 = arith.mulf %16, %17 : vector<128x128xf32>
    %c0_17 = arith.constant 0 : index
    %c0_18 = arith.constant 0 : index
    %19 = vector.load %arg2[%c0_17, %c0_18] : memref<128x128xf32, #tpu.memory_space<vmem>>, vector<128x128xf32>
    %cst_19 = arith.constant 1.000000e-03 : f32
    %20 = vector.broadcast %cst_19 : f32 to vector<128x128xf32>
    %21 = arith.mulf %19, %20 : vector<128x128xf32>
    %22 = arith.addf %18, %21 : vector<128x128xf32>
    %c0_20 = arith.constant 0 : index
    %c0_21 = arith.constant 0 : index
    %23 = vector.load %arg16[%c0_20, %c0_21] : memref<128x128xf32, #tpu.memory_space<vmem>>, vector<128x128xf32>
    tpu.vector_store %arg16[%c0_20, %c0_21], %22 {strides = array<i32>} : memref<128x128xf32, #tpu.memory_space<vmem>>, vector<128x128xf32>,
    %c0_22 = arith.constant 0 : index
    %c0_23 = arith.constant 0 : index
    %24 = vector.load %arg10[%c0_22, %c0_23] : memref<1x128xf32, #tpu.memory_space<vmem>>, vector<1x128xf32>
    %cst_24 = arith.constant 9.990000e-01 : f32
    %25 = vector.broadcast %cst_24 : f32 to vector<1x128xf32>
    %26 = arith.mulf %24, %25 : vector<1x128xf32>
    %c0_25 = arith.constant 0 : index
    %c0_26 = arith.constant 0 : index
    %27 = vector.load %arg3[%c0_25, %c0_26] : memref<1x128xf32, #tpu.memory_space<vmem>>, vector<1x128xf32>
    %cst_27 = arith.constant 1.000000e-03 : f32
    %28 = vector.broadcast %cst_27 : f32 to vector<1x128xf32>
    %29 = arith.mulf %27, %28 : vector<1x128xf32>
    %30 = arith.addf %26, %29 : vector<1x128xf32>
    %c0_28 = arith.constant 0 : index
    %c0_29 = arith.constant 0 : index
    %31 = vector.load %arg17[%c0_28, %c0_29] : memref<1x128xf32, #tpu.memory_space<vmem>>, vector<1x128xf32>
    tpu.vector_store %arg17[%c0_28, %c0_29], %30 {strides = array<i32>} : memref<1x128xf32, #tpu.memory_space<vmem>>, vector<1x128xf32>,
    %c0_30 = arith.constant 0 : index
    %c0_31 = arith.constant 0 : index
    %32 = vector.load %arg11[%c0_30, %c0_31] : memref<128x128xf32, #tpu.memory_space<vmem>>, vector<128x128xf32>
    %cst_32 = arith.constant 9.990000e-01 : f32
    %33 = vector.broadcast %cst_32 : f32 to vector<128x128xf32>
    %34 = arith.mulf %32, %33 : vector<128x128xf32>
    %c0_33 = arith.constant 0 : index
    %c0_34 = arith.constant 0 : index
    %35 = vector.load %arg4[%c0_33, %c0_34] : memref<128x128xf32, #tpu.memory_space<vmem>>, vector<128x128xf32>
    %cst_35 = arith.constant 1.000000e-03 : f32
    %36 = vector.broadcast %cst_35 : f32 to vector<128x128xf32>
    %37 = arith.mulf %35, %36 : vector<128x128xf32>
    %38 = arith.addf %34, %37 : vector<128x128xf32>
    %c0_36 = arith.constant 0 : index
    %c0_37 = arith.constant 0 : index
    %39 = vector.load %arg18[%c0_36, %c0_37] : memref<128x128xf32, #tpu.memory_space<vmem>>, vector<128x128xf32>
    tpu.vector_store %arg18[%c0_36, %c0_37], %38 {strides = array<i32>} : memref<128x128xf32, #tpu.memory_space<vmem>>, vector<128x128xf32>,
    %c0_38 = arith.constant 0 : index
    %c0_39 = arith.constant 0 : index
    %40 = vector.load %arg12[%c0_38, %c0_39] : memref<1x128xf32, #tpu.memory_space<vmem>>, vector<1x128xf32>
    %cst_40 = arith.constant 9.990000e-01 : f32
    %41 = vector.broadcast %cst_40 : f32 to vector<1x128xf32>
    %42 = arith.mulf %40, %41 : vector<1x128xf32>
    %c0_41 = arith.constant 0 : index
    %c0_42 = arith.constant 0 : index
    %43 = vector.load %arg5[%c0_41, %c0_42] : memref<1x128xf32, #tpu.memory_space<vmem>>, vector<1x128xf32>
    %cst_43 = arith.constant 1.000000e-03 : f32
    %44 = vector.broadcast %cst_43 : f32 to vector<1x128xf32>
    %45 = arith.mulf %43, %44 : vector<1x128xf32>
    %46 = arith.addf %42, %45 : vector<1x128xf32>
    %c0_44 = arith.constant 0 : index
    %c0_45 = arith.constant 0 : index
    %47 = vector.load %arg19[%c0_44, %c0_45] : memref<1x128xf32, #tpu.memory_space<vmem>>, vector<1x128xf32>
    tpu.vector_store %arg19[%c0_44, %c0_45], %46 {strides = array<i32>} : memref<1x128xf32, #tpu.memory_space<vmem>>, vector<1x128xf32>,
    %c0_46 = arith.constant 0 : index
    %c0_47 = arith.constant 0 : index
    %48 = vector.load %arg13[%c0_46, %c0_47] : memref<3x256xf32, #tpu.memory_space<vmem>>, vector<3x256xf32>
    %cst_48 = arith.constant 9.990000e-01 : f32
    %49 = vector.broadcast %cst_48 : f32 to vector<3x256xf32>
    %50 = arith.mulf %48, %49 : vector<3x256xf32>
    %c0_49 = arith.constant 0 : index
    %c0_50 = arith.constant 0 : index
    %51 = vector.load %arg6[%c0_49, %c0_50] : memref<3x256xf32, #tpu.memory_space<vmem>>, vector<3x256xf32>
    %cst_51 = arith.constant 1.000000e-03 : f32
    %52 = vector.broadcast %cst_51 : f32 to vector<3x256xf32>
    %53 = arith.mulf %51, %52 : vector<3x256xf32>
    %54 = arith.addf %50, %53 : vector<3x256xf32>
    %c0_52 = arith.constant 0 : index
    %c0_53 = arith.constant 0 : index
    %55 = vector.load %arg20[%c0_52, %c0_53] : memref<3x256xf32, #tpu.memory_space<vmem>>, vector<3x256xf32>
    tpu.vector_store %arg20[%c0_52, %c0_53], %54 {strides = array<i32>} : memref<3x256xf32, #tpu.memory_space<vmem>>, vector<3x256xf32>,
    return
  }
}

module attributes {stable_mosaic.version = 11 : i64} {
  func.func @encode_kernel(%arg0: memref<2x3x256xf32, #tpu.memory_space<vmem>>, %arg1: memref<3x256xf32, #tpu.memory_space<vmem>>, %arg2: memref<256x128xf32, #tpu.memory_space<vmem>>, %arg3: memref<1x128xf32, #tpu.memory_space<vmem>>, %arg4: memref<128x128xf32, #tpu.memory_space<vmem>>, %arg5: memref<1x128xf32, #tpu.memory_space<vmem>>, %arg6: memref<128x128xf32, #tpu.memory_space<vmem>>, %arg7: memref<1x128xf32, #tpu.memory_space<vmem>>, %arg8: memref<2x128xf32, #tpu.memory_space<vmem>>) attributes {dimension_semantics = [], scalar_prefetch = 0 : i64, scratch_operands = 0 : i64, tpu.core_type = #tpu.core_type<tc>} {
    %c0 = arith.constant 0 : index
    %c0_0 = arith.constant 0 : index
    %c0_1 = arith.constant 0 : index
    %0 = vector.load %arg0[%c0, %c0_0, %c0_1] : memref<2x3x256xf32, #tpu.memory_space<vmem>>, vector<2x3x256xf32>
    %cst = arith.constant dense<0.000000e+00> : vector<2x3xf32>
    %1 = vector.multi_reduction <add>, %0, %cst [2] : vector<2x3x256xf32> to vector<2x3xf32>
    %cst_2 = arith.constant 3.906250e-03 : f32
    %2 = vector.broadcast %cst_2 : f32 to vector<2x3xf32>
    %3 = arith.mulf %1, %2 : vector<2x3xf32>
    %c0_3 = arith.constant 0 : index
    %c0_4 = arith.constant 0 : index
    %4 = vector.load %arg1[%c0_3, %c0_4] : memref<3x256xf32, #tpu.memory_space<vmem>>, vector<3x256xf32>
    %5 = vector.extract_strided_slice %3 {offsets = [0, 0], sizes = [2, 1], strides = [1, 1]} : vector<2x3xf32> to vector<2x1xf32>
    %6 = vector.extract_strided_slice %4 {offsets = [0, 0], sizes = [1, 256], strides = [1, 1]} : vector<3x256xf32> to vector<1x256xf32>
    %7 = vector.broadcast %5 : vector<2x1xf32> to vector<2x256xf32>
    %8 = vector.broadcast %6 : vector<1x256xf32> to vector<2x256xf32>
    %9 = arith.mulf %7, %8 : vector<2x256xf32>
    %10 = vector.extract_strided_slice %3 {offsets = [0, 1], sizes = [2, 1], strides = [1, 1]} : vector<2x3xf32> to vector<2x1xf32>
    %11 = vector.extract_strided_slice %4 {offsets = [1, 0], sizes = [1, 256], strides = [1, 1]} : vector<3x256xf32> to vector<1x256xf32>
    %12 = vector.broadcast %10 : vector<2x1xf32> to vector<2x256xf32>
    %13 = vector.broadcast %11 : vector<1x256xf32> to vector<2x256xf32>
    %14 = arith.mulf %12, %13 : vector<2x256xf32>
    %15 = arith.addf %9, %14 : vector<2x256xf32>
    %16 = vector.extract_strided_slice %3 {offsets = [0, 2], sizes = [2, 1], strides = [1, 1]} : vector<2x3xf32> to vector<2x1xf32>
    %17 = vector.extract_strided_slice %4 {offsets = [2, 0], sizes = [1, 256], strides = [1, 1]} : vector<3x256xf32> to vector<1x256xf32>
    %18 = vector.broadcast %16 : vector<2x1xf32> to vector<2x256xf32>
    %19 = vector.broadcast %17 : vector<1x256xf32> to vector<2x256xf32>
    %20 = arith.mulf %18, %19 : vector<2x256xf32>
    %21 = arith.addf %15, %20 : vector<2x256xf32>
    %22 = arith.truncf %21 : vector<2x256xf32> to vector<2x256xbf16>
    %c0_5 = arith.constant 0 : index
    %c0_6 = arith.constant 0 : index
    %23 = vector.load %arg2[%c0_5, %c0_6] : memref<256x128xf32, #tpu.memory_space<vmem>>, vector<256x128xf32>
    %24 = arith.truncf %23 : vector<256x128xf32> to vector<256x128xbf16>
    %cst_7 = arith.constant dense<0.000000e+00> : vector<2x128xf32>
    %25 = tpu.matmul %22, %24, %cst_7 {dimension_numbers = #tpu.dot_dimension_numbers<[1], [0], [0], [1], [0, 0, 1, 1], [], []>} : vector<2x256xbf16>, vector<256x128xbf16>, vector<2x128xf32> -> vector<2x128xf32>
    %c0_8 = arith.constant 0 : index
    %c0_9 = arith.constant 0 : index
    %26 = vector.load %arg3[%c0_8, %c0_9] : memref<1x128xf32, #tpu.memory_space<vmem>>, vector<1x128xf32>
    %27 = vector.broadcast %26 : vector<1x128xf32> to vector<2x128xf32>
    %28 = arith.addf %25, %27 : vector<2x128xf32>
    %cst_10 = arith.constant 0.000000e+00 : f32
    %29 = vector.broadcast %cst_10 : f32 to vector<2x128xf32>
    %30 = arith.maximumf %28, %29 : vector<2x128xf32>
    %31 = arith.truncf %30 : vector<2x128xf32> to vector<2x128xbf16>
    %c0_11 = arith.constant 0 : index
    %c0_12 = arith.constant 0 : index
    %32 = vector.load %arg4[%c0_11, %c0_12] : memref<128x128xf32, #tpu.memory_space<vmem>>, vector<128x128xf32>
    %33 = arith.truncf %32 : vector<128x128xf32> to vector<128x128xbf16>
    %cst_13 = arith.constant dense<0.000000e+00> : vector<2x128xf32>
    %34 = tpu.matmul %31, %33, %cst_13 {dimension_numbers = #tpu.dot_dimension_numbers<[1], [0], [0], [1], [0, 0, 1, 1], [], []>} : vector<2x128xbf16>, vector<128x128xbf16>, vector<2x128xf32> -> vector<2x128xf32>
    %c0_14 = arith.constant 0 : index
    %c0_15 = arith.constant 0 : index
    %35 = vector.load %arg5[%c0_14, %c0_15] : memref<1x128xf32, #tpu.memory_space<vmem>>, vector<1x128xf32>
    %36 = vector.broadcast %35 : vector<1x128xf32> to vector<2x128xf32>
    %37 = arith.addf %34, %36 : vector<2x128xf32>
    %cst_16 = arith.constant 0.000000e+00 : f32
    %38 = vector.broadcast %cst_16 : f32 to vector<2x128xf32>
    %39 = arith.maximumf %37, %38 : vector<2x128xf32>
    %40 = arith.truncf %39 : vector<2x128xf32> to vector<2x128xbf16>
    %c0_17 = arith.constant 0 : index
    %c0_18 = arith.constant 0 : index
    %41 = vector.load %arg6[%c0_17, %c0_18] : memref<128x128xf32, #tpu.memory_space<vmem>>, vector<128x128xf32>
    %42 = arith.truncf %41 : vector<128x128xf32> to vector<128x128xbf16>
    %cst_19 = arith.constant dense<0.000000e+00> : vector<2x128xf32>
    %43 = tpu.matmul %40, %42, %cst_19 {dimension_numbers = #tpu.dot_dimension_numbers<[1], [0], [0], [1], [0, 0, 1, 1], [], []>} : vector<2x128xbf16>, vector<128x128xbf16>, vector<2x128xf32> -> vector<2x128xf32>
    %c0_20 = arith.constant 0 : index
    %c0_21 = arith.constant 0 : index
    %44 = vector.load %arg7[%c0_20, %c0_21] : memref<1x128xf32, #tpu.memory_space<vmem>>, vector<1x128xf32>
    %45 = vector.broadcast %44 : vector<1x128xf32> to vector<2x128xf32>
    %46 = arith.addf %43, %45 : vector<2x128xf32>
    %c0_22 = arith.constant 0 : index
    %c0_23 = arith.constant 0 : index
    %47 = vector.load %arg8[%c0_22, %c0_23] : memref<2x128xf32, #tpu.memory_space<vmem>>, vector<2x128xf32>
    tpu.vector_store %arg8[%c0_22, %c0_23], %46 {strides = array<i32>} : memref<2x128xf32, #tpu.memory_space<vmem>>, vector<2x128xf32>,
    return
  }
}

module attributes {stable_mosaic.version = 11 : i64} {
  func.func @encode_kernel(%arg0: memref<4x3x256xf32, #tpu.memory_space<vmem>>, %arg1: memref<3x256xf32, #tpu.memory_space<vmem>>, %arg2: memref<256x128xf32, #tpu.memory_space<vmem>>, %arg3: memref<1x128xf32, #tpu.memory_space<vmem>>, %arg4: memref<128x128xf32, #tpu.memory_space<vmem>>, %arg5: memref<1x128xf32, #tpu.memory_space<vmem>>, %arg6: memref<128x128xf32, #tpu.memory_space<vmem>>, %arg7: memref<1x128xf32, #tpu.memory_space<vmem>>, %arg8: memref<4x128xf32, #tpu.memory_space<vmem>>) attributes {dimension_semantics = [], scalar_prefetch = 0 : i64, scratch_operands = 0 : i64, tpu.core_type = #tpu.core_type<tc>} {
    %c0 = arith.constant 0 : index
    %c0_0 = arith.constant 0 : index
    %c0_1 = arith.constant 0 : index
    %0 = vector.load %arg0[%c0, %c0_0, %c0_1] : memref<4x3x256xf32, #tpu.memory_space<vmem>>, vector<4x3x256xf32>
    %cst = arith.constant dense<0.000000e+00> : vector<4x3xf32>
    %1 = vector.multi_reduction <add>, %0, %cst [2] : vector<4x3x256xf32> to vector<4x3xf32>
    %cst_2 = arith.constant 3.906250e-03 : f32
    %2 = vector.broadcast %cst_2 : f32 to vector<4x3xf32>
    %3 = arith.mulf %1, %2 : vector<4x3xf32>
    %c0_3 = arith.constant 0 : index
    %c0_4 = arith.constant 0 : index
    %4 = vector.load %arg1[%c0_3, %c0_4] : memref<3x256xf32, #tpu.memory_space<vmem>>, vector<3x256xf32>
    %5 = vector.extract_strided_slice %3 {offsets = [0, 0], sizes = [4, 1], strides = [1, 1]} : vector<4x3xf32> to vector<4x1xf32>
    %6 = vector.extract_strided_slice %4 {offsets = [0, 0], sizes = [1, 256], strides = [1, 1]} : vector<3x256xf32> to vector<1x256xf32>
    %7 = vector.broadcast %5 : vector<4x1xf32> to vector<4x256xf32>
    %8 = vector.broadcast %6 : vector<1x256xf32> to vector<4x256xf32>
    %9 = arith.mulf %7, %8 : vector<4x256xf32>
    %10 = vector.extract_strided_slice %3 {offsets = [0, 1], sizes = [4, 1], strides = [1, 1]} : vector<4x3xf32> to vector<4x1xf32>
    %11 = vector.extract_strided_slice %4 {offsets = [1, 0], sizes = [1, 256], strides = [1, 1]} : vector<3x256xf32> to vector<1x256xf32>
    %12 = vector.broadcast %10 : vector<4x1xf32> to vector<4x256xf32>
    %13 = vector.broadcast %11 : vector<1x256xf32> to vector<4x256xf32>
    %14 = arith.mulf %12, %13 : vector<4x256xf32>
    %15 = arith.addf %9, %14 : vector<4x256xf32>
    %16 = vector.extract_strided_slice %3 {offsets = [0, 2], sizes = [4, 1], strides = [1, 1]} : vector<4x3xf32> to vector<4x1xf32>
    %17 = vector.extract_strided_slice %4 {offsets = [2, 0], sizes = [1, 256], strides = [1, 1]} : vector<3x256xf32> to vector<1x256xf32>
    %18 = vector.broadcast %16 : vector<4x1xf32> to vector<4x256xf32>
    %19 = vector.broadcast %17 : vector<1x256xf32> to vector<4x256xf32>
    %20 = arith.mulf %18, %19 : vector<4x256xf32>
    %21 = arith.addf %15, %20 : vector<4x256xf32>
    %22 = arith.truncf %21 : vector<4x256xf32> to vector<4x256xbf16>
    %c0_5 = arith.constant 0 : index
    %c0_6 = arith.constant 0 : index
    %23 = vector.load %arg2[%c0_5, %c0_6] : memref<256x128xf32, #tpu.memory_space<vmem>>, vector<256x128xf32>
    %24 = arith.truncf %23 : vector<256x128xf32> to vector<256x128xbf16>
    %cst_7 = arith.constant dense<0.000000e+00> : vector<4x128xf32>
    %25 = tpu.matmul %22, %24, %cst_7 {dimension_numbers = #tpu.dot_dimension_numbers<[1], [0], [0], [1], [0, 0, 1, 1], [], []>} : vector<4x256xbf16>, vector<256x128xbf16>, vector<4x128xf32> -> vector<4x128xf32>
    %c0_8 = arith.constant 0 : index
    %c0_9 = arith.constant 0 : index
    %26 = vector.load %arg3[%c0_8, %c0_9] : memref<1x128xf32, #tpu.memory_space<vmem>>, vector<1x128xf32>
    %27 = vector.broadcast %26 : vector<1x128xf32> to vector<4x128xf32>
    %28 = arith.addf %25, %27 : vector<4x128xf32>
    %cst_10 = arith.constant 0.000000e+00 : f32
    %29 = vector.broadcast %cst_10 : f32 to vector<4x128xf32>
    %30 = arith.maximumf %28, %29 : vector<4x128xf32>
    %31 = arith.truncf %30 : vector<4x128xf32> to vector<4x128xbf16>
    %c0_11 = arith.constant 0 : index
    %c0_12 = arith.constant 0 : index
    %32 = vector.load %arg4[%c0_11, %c0_12] : memref<128x128xf32, #tpu.memory_space<vmem>>, vector<128x128xf32>
    %33 = arith.truncf %32 : vector<128x128xf32> to vector<128x128xbf16>
    %cst_13 = arith.constant dense<0.000000e+00> : vector<4x128xf32>
    %34 = tpu.matmul %31, %33, %cst_13 {dimension_numbers = #tpu.dot_dimension_numbers<[1], [0], [0], [1], [0, 0, 1, 1], [], []>} : vector<4x128xbf16>, vector<128x128xbf16>, vector<4x128xf32> -> vector<4x128xf32>
    %c0_14 = arith.constant 0 : index
    %c0_15 = arith.constant 0 : index
    %35 = vector.load %arg5[%c0_14, %c0_15] : memref<1x128xf32, #tpu.memory_space<vmem>>, vector<1x128xf32>
    %36 = vector.broadcast %35 : vector<1x128xf32> to vector<4x128xf32>
    %37 = arith.addf %34, %36 : vector<4x128xf32>
    %cst_16 = arith.constant 0.000000e+00 : f32
    %38 = vector.broadcast %cst_16 : f32 to vector<4x128xf32>
    %39 = arith.maximumf %37, %38 : vector<4x128xf32>
    %40 = arith.truncf %39 : vector<4x128xf32> to vector<4x128xbf16>
    %c0_17 = arith.constant 0 : index
    %c0_18 = arith.constant 0 : index
    %41 = vector.load %arg6[%c0_17, %c0_18] : memref<128x128xf32, #tpu.memory_space<vmem>>, vector<128x128xf32>
    %42 = arith.truncf %41 : vector<128x128xf32> to vector<128x128xbf16>
    %cst_19 = arith.constant dense<0.000000e+00> : vector<4x128xf32>
    %43 = tpu.matmul %40, %42, %cst_19 {dimension_numbers = #tpu.dot_dimension_numbers<[1], [0], [0], [1], [0, 0, 1, 1], [], []>} : vector<4x128xbf16>, vector<128x128xbf16>, vector<4x128xf32> -> vector<4x128xf32>
    %c0_20 = arith.constant 0 : index
    %c0_21 = arith.constant 0 : index
    %44 = vector.load %arg7[%c0_20, %c0_21] : memref<1x128xf32, #tpu.memory_space<vmem>>, vector<1x128xf32>
    %45 = vector.broadcast %44 : vector<1x128xf32> to vector<4x128xf32>
    %46 = arith.addf %43, %45 : vector<4x128xf32>
    %c0_22 = arith.constant 0 : index
    %c0_23 = arith.constant 0 : index
    %47 = vector.load %arg8[%c0_22, %c0_23] : memref<4x128xf32, #tpu.memory_space<vmem>>, vector<4x128xf32>
    tpu.vector_store %arg8[%c0_22, %c0_23], %46 {strides = array<i32>} : memref<4x128xf32, #tpu.memory_space<vmem>>, vector<4x128xf32>,
    return
  }
}

module attributes {stable_mosaic.version = 11 : i64} {
  func.func @head_kernel(%arg0: i32, %arg1: memref<8x128xf32, #tpu.memory_space<vmem>>, %arg2: memref<8x128xf32, #tpu.memory_space<vmem>>, %arg3: memref<128x512xbf16, #tpu.memory_space<vmem>>, %arg4: memref<8x1xf32, #tpu.memory_space<vmem>>, %arg5: memref<8x128xf32, #tpu.memory_space<vmem>>, %arg6: memref<8x512xf32, #tpu.memory_space<vmem>>, %arg7: memref<8x128xbf16, #tpu.memory_space<vmem>>) attributes {dimension_semantics = [#tpu.dimension_semantics<arbitrary>], iteration_bounds = array<i64: 2>, scalar_prefetch = 0 : i64, scratch_operands = 1 : i64, tpu.core_type = #tpu.core_type<tc>, window_params = [{pipeline_mode = #tpu.pipeline_mode<synchronous>, transform_indices = @transform_0, window_bounds = array<i64: 8, 128>}, {pipeline_mode = #tpu.pipeline_mode<synchronous>, transform_indices = @transform_1, window_bounds = array<i64: 8, 128>}, {transform_indices = @transform_2, window_bounds = array<i64: 128, 512>}, {pipeline_mode = #tpu.pipeline_mode<synchronous>, transform_indices = @transform_3, window_bounds = array<i64: 8, 1>}, {pipeline_mode = #tpu.pipeline_mode<synchronous>, transform_indices = @transform_4, window_bounds = array<i64: 8, 128>}, {transform_indices = @transform_5, window_bounds = array<i64: 8, 512>}]} {
    %c0_i32 = arith.constant 0 : i32
    %0 = arith.cmpi eq, %arg0, %c0_i32 : i32
    %1 = arith.extui %0 : i1 to i32
    %c0_i32_0 = arith.constant 0 : i32
    %2 = arith.cmpi ne, %1, %c0_i32_0 : i32
    scf.if %2 {
      %c0_6 = arith.constant 0 : index
      %c0_7 = arith.constant 0 : index
      %7 = vector.load %arg1[%c0_6, %c0_7] : memref<8x128xf32, #tpu.memory_space<vmem>>, vector<8x128xf32>
      %c0_8 = arith.constant 0 : index
      %c0_9 = arith.constant 0 : index
      %8 = vector.load %arg2[%c0_8, %c0_9] : memref<8x128xf32, #tpu.memory_space<vmem>>, vector<8x128xf32>
      %9 = arith.mulf %7, %7 : vector<8x128xf32>
      %cst_10 = arith.constant dense<0.000000e+00> : vector<8xf32>
      %10 = vector.multi_reduction <add>, %9, %cst_10 [1] : vector<8x128xf32> to vector<8xf32>
      %11 = vector.shape_cast %10 : vector<8xf32> to vector<8x1xf32>
      %cst_11 = arith.constant 1.000000e-24 : f32
      %12 = vector.broadcast %cst_11 : f32 to vector<8x1xf32>
      %13 = arith.maximumf %11, %12 : vector<8x1xf32>
      %14 = math.rsqrt %13 : vector<8x1xf32>
      %15 = vector.broadcast %14 : vector<8x1xf32> to vector<8x128xf32>
      %16 = arith.mulf %7, %15 : vector<8x128xf32>
      %17 = arith.mulf %8, %8 : vector<8x128xf32>
      %cst_12 = arith.constant dense<0.000000e+00> : vector<8xf32>
      %18 = vector.multi_reduction <add>, %17, %cst_12 [1] : vector<8x128xf32> to vector<8xf32>
      %19 = vector.shape_cast %18 : vector<8xf32> to vector<8x1xf32>
      %cst_13 = arith.constant 1.000000e-24 : f32
      %20 = vector.broadcast %cst_13 : f32 to vector<8x1xf32>
      %21 = arith.maximumf %19, %20 : vector<8x1xf32>
      %22 = math.rsqrt %21 : vector<8x1xf32>
      %23 = vector.broadcast %22 : vector<8x1xf32> to vector<8x128xf32>
      %24 = arith.mulf %8, %23 : vector<8x128xf32>
      %cst_14 = arith.constant 14.2857141 : f32
      %25 = vector.broadcast %cst_14 : f32 to vector<8x128xf32>
      %26 = arith.mulf %16, %25 : vector<8x128xf32>
      %27 = arith.mulf %26, %24 : vector<8x128xf32>
      %cst_15 = arith.constant dense<0.000000e+00> : vector<8xf32>
      %28 = vector.multi_reduction <add>, %27, %cst_15 [1] : vector<8x128xf32> to vector<8xf32>
      %29 = vector.shape_cast %28 : vector<8xf32> to vector<8x1xf32>
      %c0_16 = arith.constant 0 : index
      %c0_17 = arith.constant 0 : index
      %30 = vector.load %arg4[%c0_16, %c0_17] : memref<8x1xf32, #tpu.memory_space<vmem>>, vector<8x1xf32>
      tpu.vector_store %arg4[%c0_16, %c0_17], %29 {strides = array<i32>} : memref<8x1xf32, #tpu.memory_space<vmem>>, vector<8x1xf32>,
      %c0_18 = arith.constant 0 : index
      %c0_19 = arith.constant 0 : index
      %31 = vector.load %arg5[%c0_18, %c0_19] : memref<8x128xf32, #tpu.memory_space<vmem>>, vector<8x128xf32>
      tpu.vector_store %arg5[%c0_18, %c0_19], %24 {strides = array<i32>} : memref<8x128xf32, #tpu.memory_space<vmem>>, vector<8x128xf32>,
      %32 = arith.truncf %26 : vector<8x128xf32> to vector<8x128xbf16>
      %c0_20 = arith.constant 0 : index
      %c0_21 = arith.constant 0 : index
      %33 = vector.load %arg7[%c0_20, %c0_21] : memref<8x128xbf16, #tpu.memory_space<vmem>>, vector<8x128xbf16>
      tpu.vector_store %arg7[%c0_20, %c0_21], %32 {strides = array<i32>} : memref<8x128xbf16, #tpu.memory_space<vmem>>, vector<8x128xbf16>,
    } else {
    }
    %c0 = arith.constant 0 : index
    %c0_1 = arith.constant 0 : index
    %3 = vector.load %arg7[%c0, %c0_1] : memref<8x128xbf16, #tpu.memory_space<vmem>>, vector<8x128xbf16>
    %c0_2 = arith.constant 0 : index
    %c0_3 = arith.constant 0 : index
    %4 = vector.load %arg3[%c0_2, %c0_3] : memref<128x512xbf16, #tpu.memory_space<vmem>>, vector<128x512xbf16>
    %cst = arith.constant dense<0.000000e+00> : vector<8x512xf32>
    %5 = tpu.matmul %3, %4, %cst {dimension_numbers = #tpu.dot_dimension_numbers<[1], [0], [0], [1], [0, 0, 1, 1], [], []>} : vector<8x128xbf16>, vector<128x512xbf16>, vector<8x512xf32> -> vector<8x512xf32>
    %c0_4 = arith.constant 0 : index
    %c0_5 = arith.constant 0 : index
    %6 = vector.load %arg6[%c0_4, %c0_5] : memref<8x512xf32, #tpu.memory_space<vmem>>, vector<8x512xf32>
    tpu.vector_store %arg6[%c0_4, %c0_5], %5 {strides = array<i32>} : memref<8x512xf32, #tpu.memory_space<vmem>>, vector<8x512xf32>,
    return
  }
  func.func @transform_0(%arg0: i32) -> (i32, i32) {
    %c0_i32 = arith.constant 0 : i32
    %c0_i32_0 = arith.constant 0 : i32
    %c0_i32_1 = arith.constant 0 : i32
    return %c0_i32, %c0_i32_0 : i32, i32
  }
  func.func @transform_1(%arg0: i32) -> (i32, i32) {
    %c0_i32 = arith.constant 0 : i32
    %c0_i32_0 = arith.constant 0 : i32
    %c0_i32_1 = arith.constant 0 : i32
    return %c0_i32, %c0_i32_0 : i32, i32
  }
  func.func @transform_2(%arg0: i32) -> (i32, i32) {
    %c0_i32 = arith.constant 0 : i32
    %c0_i32_0 = arith.constant 0 : i32
    return %c0_i32, %arg0 : i32, i32
  }
  func.func @transform_3(%arg0: i32) -> (i32, i32) {
    %c0_i32 = arith.constant 0 : i32
    %c0_i32_0 = arith.constant 0 : i32
    %c0_i32_1 = arith.constant 0 : i32
    return %c0_i32, %c0_i32_0 : i32, i32
  }
  func.func @transform_4(%arg0: i32) -> (i32, i32) {
    %c0_i32 = arith.constant 0 : i32
    %c0_i32_0 = arith.constant 0 : i32
    %c0_i32_1 = arith.constant 0 : i32
    return %c0_i32, %c0_i32_0 : i32, i32
  }
  func.func @transform_5(%arg0: i32) -> (i32, i32) {
    %c0_i32 = arith.constant 0 : i32
    %c0_i32_0 = arith.constant 0 : i32
    return %c0_i32, %arg0 : i32, i32
  }
}

module attributes {stable_mosaic.version = 11 : i64} {
  func.func @encode_kernel(%arg0: memref<2x3x256xf32, #tpu.memory_space<vmem>>, %arg1: memref<3x256xf32, #tpu.memory_space<vmem>>, %arg2: memref<256x128xf32, #tpu.memory_space<vmem>>, %arg3: memref<1x128xf32, #tpu.memory_space<vmem>>, %arg4: memref<128x128xf32, #tpu.memory_space<vmem>>, %arg5: memref<1x128xf32, #tpu.memory_space<vmem>>, %arg6: memref<128x128xf32, #tpu.memory_space<vmem>>, %arg7: memref<1x128xf32, #tpu.memory_space<vmem>>, %arg8: memref<2x128xf32, #tpu.memory_space<vmem>>) attributes {dimension_semantics = [], scalar_prefetch = 0 : i64, scratch_operands = 0 : i64, tpu.core_type = #tpu.core_type<tc>} {
    %c0 = arith.constant 0 : index
    %c0_0 = arith.constant 0 : index
    %c0_1 = arith.constant 0 : index
    %0 = vector.load %arg0[%c0, %c0_0, %c0_1] : memref<2x3x256xf32, #tpu.memory_space<vmem>>, vector<2x3x256xf32>
    %cst = arith.constant dense<0.000000e+00> : vector<2x3xf32>
    %1 = vector.multi_reduction <add>, %0, %cst [2] : vector<2x3x256xf32> to vector<2x3xf32>
    %cst_2 = arith.constant 3.906250e-03 : f32
    %2 = vector.broadcast %cst_2 : f32 to vector<2x3xf32>
    %3 = arith.mulf %1, %2 : vector<2x3xf32>
    %c0_3 = arith.constant 0 : index
    %c0_4 = arith.constant 0 : index
    %4 = vector.load %arg1[%c0_3, %c0_4] : memref<3x256xf32, #tpu.memory_space<vmem>>, vector<3x256xf32>
    %5 = vector.extract_strided_slice %3 {offsets = [0, 0], sizes = [2, 1], strides = [1, 1]} : vector<2x3xf32> to vector<2x1xf32>
    %6 = vector.extract_strided_slice %4 {offsets = [0, 0], sizes = [1, 256], strides = [1, 1]} : vector<3x256xf32> to vector<1x256xf32>
    %7 = vector.broadcast %5 : vector<2x1xf32> to vector<2x256xf32>
    %8 = vector.broadcast %6 : vector<1x256xf32> to vector<2x256xf32>
    %9 = arith.mulf %7, %8 : vector<2x256xf32>
    %10 = vector.extract_strided_slice %3 {offsets = [0, 1], sizes = [2, 1], strides = [1, 1]} : vector<2x3xf32> to vector<2x1xf32>
    %11 = vector.extract_strided_slice %4 {offsets = [1, 0], sizes = [1, 256], strides = [1, 1]} : vector<3x256xf32> to vector<1x256xf32>
    %12 = vector.broadcast %10 : vector<2x1xf32> to vector<2x256xf32>
    %13 = vector.broadcast %11 : vector<1x256xf32> to vector<2x256xf32>
    %14 = arith.mulf %12, %13 : vector<2x256xf32>
    %15 = arith.addf %9, %14 : vector<2x256xf32>
    %16 = vector.extract_strided_slice %3 {offsets = [0, 2], sizes = [2, 1], strides = [1, 1]} : vector<2x3xf32> to vector<2x1xf32>
    %17 = vector.extract_strided_slice %4 {offsets = [2, 0], sizes = [1, 256], strides = [1, 1]} : vector<3x256xf32> to vector<1x256xf32>
    %18 = vector.broadcast %16 : vector<2x1xf32> to vector<2x256xf32>
    %19 = vector.broadcast %17 : vector<1x256xf32> to vector<2x256xf32>
    %20 = arith.mulf %18, %19 : vector<2x256xf32>
    %21 = arith.addf %15, %20 : vector<2x256xf32>
    %22 = arith.truncf %21 : vector<2x256xf32> to vector<2x256xbf16>
    %c0_5 = arith.constant 0 : index
    %c0_6 = arith.constant 0 : index
    %23 = vector.load %arg2[%c0_5, %c0_6] : memref<256x128xf32, #tpu.memory_space<vmem>>, vector<256x128xf32>
    %24 = arith.truncf %23 : vector<256x128xf32> to vector<256x128xbf16>
    %cst_7 = arith.constant dense<0.000000e+00> : vector<2x128xf32>
    %25 = tpu.matmul %22, %24, %cst_7 {dimension_numbers = #tpu.dot_dimension_numbers<[1], [0], [0], [1], [0, 0, 1, 1], [], []>} : vector<2x256xbf16>, vector<256x128xbf16>, vector<2x128xf32> -> vector<2x128xf32>
    %c0_8 = arith.constant 0 : index
    %c0_9 = arith.constant 0 : index
    %26 = vector.load %arg3[%c0_8, %c0_9] : memref<1x128xf32, #tpu.memory_space<vmem>>, vector<1x128xf32>
    %27 = vector.broadcast %26 : vector<1x128xf32> to vector<2x128xf32>
    %28 = arith.addf %25, %27 : vector<2x128xf32>
    %cst_10 = arith.constant 0.000000e+00 : f32
    %29 = vector.broadcast %cst_10 : f32 to vector<2x128xf32>
    %30 = arith.maximumf %28, %29 : vector<2x128xf32>
    %31 = arith.truncf %30 : vector<2x128xf32> to vector<2x128xbf16>
    %c0_11 = arith.constant 0 : index
    %c0_12 = arith.constant 0 : index
    %32 = vector.load %arg4[%c0_11, %c0_12] : memref<128x128xf32, #tpu.memory_space<vmem>>, vector<128x128xf32>
    %33 = arith.truncf %32 : vector<128x128xf32> to vector<128x128xbf16>
    %cst_13 = arith.constant dense<0.000000e+00> : vector<2x128xf32>
    %34 = tpu.matmul %31, %33, %cst_13 {dimension_numbers = #tpu.dot_dimension_numbers<[1], [0], [0], [1], [0, 0, 1, 1], [], []>} : vector<2x128xbf16>, vector<128x128xbf16>, vector<2x128xf32> -> vector<2x128xf32>
    %c0_14 = arith.constant 0 : index
    %c0_15 = arith.constant 0 : index
    %35 = vector.load %arg5[%c0_14, %c0_15] : memref<1x128xf32, #tpu.memory_space<vmem>>, vector<1x128xf32>
    %36 = vector.broadcast %35 : vector<1x128xf32> to vector<2x128xf32>
    %37 = arith.addf %34, %36 : vector<2x128xf32>
    %cst_16 = arith.constant 0.000000e+00 : f32
    %38 = vector.broadcast %cst_16 : f32 to vector<2x128xf32>
    %39 = arith.maximumf %37, %38 : vector<2x128xf32>
    %40 = arith.truncf %39 : vector<2x128xf32> to vector<2x128xbf16>
    %c0_17 = arith.constant 0 : index
    %c0_18 = arith.constant 0 : index
    %41 = vector.load %arg6[%c0_17, %c0_18] : memref<128x128xf32, #tpu.memory_space<vmem>>, vector<128x128xf32>
    %42 = arith.truncf %41 : vector<128x128xf32> to vector<128x128xbf16>
    %cst_19 = arith.constant dense<0.000000e+00> : vector<2x128xf32>
    %43 = tpu.matmul %40, %42, %cst_19 {dimension_numbers = #tpu.dot_dimension_numbers<[1], [0], [0], [1], [0, 0, 1, 1], [], []>} : vector<2x128xbf16>, vector<128x128xbf16>, vector<2x128xf32> -> vector<2x128xf32>
    %c0_20 = arith.constant 0 : index
    %c0_21 = arith.constant 0 : index
    %44 = vector.load %arg7[%c0_20, %c0_21] : memref<1x128xf32, #tpu.memory_space<vmem>>, vector<1x128xf32>
    %45 = vector.broadcast %44 : vector<1x128xf32> to vector<2x128xf32>
    %46 = arith.addf %43, %45 : vector<2x128xf32>
    %c0_22 = arith.constant 0 : index
    %c0_23 = arith.constant 0 : index
    %47 = vector.load %arg8[%c0_22, %c0_23] : memref<2x128xf32, #tpu.memory_space<vmem>>, vector<2x128xf32>
    tpu.vector_store %arg8[%c0_22, %c0_23], %46 {strides = array<i32>} : memref<2x128xf32, #tpu.memory_space<vmem>>, vector<2x128xf32>,
    return
  }
}

module attributes {stable_mosaic.version = 11 : i64} {
  func.func @momentum_kernel(%arg0: memref<256x128xf32, #tpu.memory_space<vmem>>, %arg1: memref<1x128xf32, #tpu.memory_space<vmem>>, %arg2: memref<128x128xf32, #tpu.memory_space<vmem>>, %arg3: memref<1x128xf32, #tpu.memory_space<vmem>>, %arg4: memref<128x128xf32, #tpu.memory_space<vmem>>, %arg5: memref<1x128xf32, #tpu.memory_space<vmem>>, %arg6: memref<3x256xf32, #tpu.memory_space<vmem>>, %arg7: memref<256x128xf32, #tpu.memory_space<vmem>>, %arg8: memref<1x128xf32, #tpu.memory_space<vmem>>, %arg9: memref<128x128xf32, #tpu.memory_space<vmem>>, %arg10: memref<1x128xf32, #tpu.memory_space<vmem>>, %arg11: memref<128x128xf32, #tpu.memory_space<vmem>>, %arg12: memref<1x128xf32, #tpu.memory_space<vmem>>, %arg13: memref<3x256xf32, #tpu.memory_space<vmem>>, %arg14: memref<256x128xf32, #tpu.memory_space<vmem>>, %arg15: memref<1x128xf32, #tpu.memory_space<vmem>>, %arg16: memref<128x128xf32, #tpu.memory_space<vmem>>, %arg17: memref<1x128xf32, #tpu.memory_space<vmem>>, %arg18: memref<128x128xf32, #tpu.memory_space<vmem>>, %arg19: memref<1x128xf32, #tpu.memory_space<vmem>>, %arg20: memref<3x256xf32, #tpu.memory_space<vmem>>) attributes {dimension_semantics = [], scalar_prefetch = 0 : i64, scratch_operands = 0 : i64, tpu.core_type = #tpu.core_type<tc>} {
    %c0 = arith.constant 0 : index
    %c0_0 = arith.constant 0 : index
    %0 = vector.load %arg7[%c0, %c0_0] : memref<256x128xf32, #tpu.memory_space<vmem>>, vector<256x128xf32>
    %cst = arith.constant 9.990000e-01 : f32
    %1 = vector.broadcast %cst : f32 to vector<256x128xf32>
    %2 = arith.mulf %0, %1 : vector<256x128xf32>
    %c0_1 = arith.constant 0 : index
    %c0_2 = arith.constant 0 : index
    %3 = vector.load %arg0[%c0_1, %c0_2] : memref<256x128xf32, #tpu.memory_space<vmem>>, vector<256x128xf32>
    %cst_3 = arith.constant 1.000000e-03 : f32
    %4 = vector.broadcast %cst_3 : f32 to vector<256x128xf32>
    %5 = arith.mulf %3, %4 : vector<256x128xf32>
    %6 = arith.addf %2, %5 : vector<256x128xf32>
    %c0_4 = arith.constant 0 : index
    %c0_5 = arith.constant 0 : index
    %7 = vector.load %arg14[%c0_4, %c0_5] : memref<256x128xf32, #tpu.memory_space<vmem>>, vector<256x128xf32>
    tpu.vector_store %arg14[%c0_4, %c0_5], %6 {strides = array<i32>} : memref<256x128xf32, #tpu.memory_space<vmem>>, vector<256x128xf32>,
    %c0_6 = arith.constant 0 : index
    %c0_7 = arith.constant 0 : index
    %8 = vector.load %arg8[%c0_6, %c0_7] : memref<1x128xf32, #tpu.memory_space<vmem>>, vector<1x128xf32>
    %cst_8 = arith.constant 9.990000e-01 : f32
    %9 = vector.broadcast %cst_8 : f32 to vector<1x128xf32>
    %10 = arith.mulf %8, %9 : vector<1x128xf32>
    %c0_9 = arith.constant 0 : index
    %c0_10 = arith.constant 0 : index
    %11 = vector.load %arg1[%c0_9, %c0_10] : memref<1x128xf32, #tpu.memory_space<vmem>>, vector<1x128xf32>
    %cst_11 = arith.constant 1.000000e-03 : f32
    %12 = vector.broadcast %cst_11 : f32 to vector<1x128xf32>
    %13 = arith.mulf %11, %12 : vector<1x128xf32>
    %14 = arith.addf %10, %13 : vector<1x128xf32>
    %c0_12 = arith.constant 0 : index
    %c0_13 = arith.constant 0 : index
    %15 = vector.load %arg15[%c0_12, %c0_13] : memref<1x128xf32, #tpu.memory_space<vmem>>, vector<1x128xf32>
    tpu.vector_store %arg15[%c0_12, %c0_13], %14 {strides = array<i32>} : memref<1x128xf32, #tpu.memory_space<vmem>>, vector<1x128xf32>,
    %c0_14 = arith.constant 0 : index
    %c0_15 = arith.constant 0 : index
    %16 = vector.load %arg9[%c0_14, %c0_15] : memref<128x128xf32, #tpu.memory_space<vmem>>, vector<128x128xf32>
    %cst_16 = arith.constant 9.990000e-01 : f32
    %17 = vector.broadcast %cst_16 : f32 to vector<128x128xf32>
    %18 = arith.mulf %16, %17 : vector<128x128xf32>
    %c0_17 = arith.constant 0 : index
    %c0_18 = arith.constant 0 : index
    %19 = vector.load %arg2[%c0_17, %c0_18] : memref<128x128xf32, #tpu.memory_space<vmem>>, vector<128x128xf32>
    %cst_19 = arith.constant 1.000000e-03 : f32
    %20 = vector.broadcast %cst_19 : f32 to vector<128x128xf32>
    %21 = arith.mulf %19, %20 : vector<128x128xf32>
    %22 = arith.addf %18, %21 : vector<128x128xf32>
    %c0_20 = arith.constant 0 : index
    %c0_21 = arith.constant 0 : index
    %23 = vector.load %arg16[%c0_20, %c0_21] : memref<128x128xf32, #tpu.memory_space<vmem>>, vector<128x128xf32>
    tpu.vector_store %arg16[%c0_20, %c0_21], %22 {strides = array<i32>} : memref<128x128xf32, #tpu.memory_space<vmem>>, vector<128x128xf32>,
    %c0_22 = arith.constant 0 : index
    %c0_23 = arith.constant 0 : index
    %24 = vector.load %arg10[%c0_22, %c0_23] : memref<1x128xf32, #tpu.memory_space<vmem>>, vector<1x128xf32>
    %cst_24 = arith.constant 9.990000e-01 : f32
    %25 = vector.broadcast %cst_24 : f32 to vector<1x128xf32>
    %26 = arith.mulf %24, %25 : vector<1x128xf32>
    %c0_25 = arith.constant 0 : index
    %c0_26 = arith.constant 0 : index
    %27 = vector.load %arg3[%c0_25, %c0_26] : memref<1x128xf32, #tpu.memory_space<vmem>>, vector<1x128xf32>
    %cst_27 = arith.constant 1.000000e-03 : f32
    %28 = vector.broadcast %cst_27 : f32 to vector<1x128xf32>
    %29 = arith.mulf %27, %28 : vector<1x128xf32>
    %30 = arith.addf %26, %29 : vector<1x128xf32>
    %c0_28 = arith.constant 0 : index
    %c0_29 = arith.constant 0 : index
    %31 = vector.load %arg17[%c0_28, %c0_29] : memref<1x128xf32, #tpu.memory_space<vmem>>, vector<1x128xf32>
    tpu.vector_store %arg17[%c0_28, %c0_29], %30 {strides = array<i32>} : memref<1x128xf32, #tpu.memory_space<vmem>>, vector<1x128xf32>,
    %c0_30 = arith.constant 0 : index
    %c0_31 = arith.constant 0 : index
    %32 = vector.load %arg11[%c0_30, %c0_31] : memref<128x128xf32, #tpu.memory_space<vmem>>, vector<128x128xf32>
    %cst_32 = arith.constant 9.990000e-01 : f32
    %33 = vector.broadcast %cst_32 : f32 to vector<128x128xf32>
    %34 = arith.mulf %32, %33 : vector<128x128xf32>
    %c0_33 = arith.constant 0 : index
    %c0_34 = arith.constant 0 : index
    %35 = vector.load %arg4[%c0_33, %c0_34] : memref<128x128xf32, #tpu.memory_space<vmem>>, vector<128x128xf32>
    %cst_35 = arith.constant 1.000000e-03 : f32
    %36 = vector.broadcast %cst_35 : f32 to vector<128x128xf32>
    %37 = arith.mulf %35, %36 : vector<128x128xf32>
    %38 = arith.addf %34, %37 : vector<128x128xf32>
    %c0_36 = arith.constant 0 : index
    %c0_37 = arith.constant 0 : index
    %39 = vector.load %arg18[%c0_36, %c0_37] : memref<128x128xf32, #tpu.memory_space<vmem>>, vector<128x128xf32>
    tpu.vector_store %arg18[%c0_36, %c0_37], %38 {strides = array<i32>} : memref<128x128xf32, #tpu.memory_space<vmem>>, vector<128x128xf32>,
    %c0_38 = arith.constant 0 : index
    %c0_39 = arith.constant 0 : index
    %40 = vector.load %arg12[%c0_38, %c0_39] : memref<1x128xf32, #tpu.memory_space<vmem>>, vector<1x128xf32>
    %cst_40 = arith.constant 9.990000e-01 : f32
    %41 = vector.broadcast %cst_40 : f32 to vector<1x128xf32>
    %42 = arith.mulf %40, %41 : vector<1x128xf32>
    %c0_41 = arith.constant 0 : index
    %c0_42 = arith.constant 0 : index
    %43 = vector.load %arg5[%c0_41, %c0_42] : memref<1x128xf32, #tpu.memory_space<vmem>>, vector<1x128xf32>
    %cst_43 = arith.constant 1.000000e-03 : f32
    %44 = vector.broadcast %cst_43 : f32 to vector<1x128xf32>
    %45 = arith.mulf %43, %44 : vector<1x128xf32>
    %46 = arith.addf %42, %45 : vector<1x128xf32>
    %c0_44 = arith.constant 0 : index
    %c0_45 = arith.constant 0 : index
    %47 = vector.load %arg19[%c0_44, %c0_45] : memref<1x128xf32, #tpu.memory_space<vmem>>, vector<1x128xf32>
    tpu.vector_store %arg19[%c0_44, %c0_45], %46 {strides = array<i32>} : memref<1x128xf32, #tpu.memory_space<vmem>>, vector<1x128xf32>,
    %c0_46 = arith.constant 0 : index
    %c0_47 = arith.constant 0 : index
    %48 = vector.load %arg13[%c0_46, %c0_47] : memref<3x256xf32, #tpu.memory_space<vmem>>, vector<3x256xf32>
    %cst_48 = arith.constant 9.990000e-01 : f32
    %49 = vector.broadcast %cst_48 : f32 to vector<3x256xf32>
    %50 = arith.mulf %48, %49 : vector<3x256xf32>
    %c0_49 = arith.constant 0 : index
    %c0_50 = arith.constant 0 : index
    %51 = vector.load %arg6[%c0_49, %c0_50] : memref<3x256xf32, #tpu.memory_space<vmem>>, vector<3x256xf32>
    %cst_51 = arith.constant 1.000000e-03 : f32
    %52 = vector.broadcast %cst_51 : f32 to vector<3x256xf32>
    %53 = arith.mulf %51, %52 : vector<3x256xf32>
    %54 = arith.addf %50, %53 : vector<3x256xf32>
    %c0_52 = arith.constant 0 : index
    %c0_53 = arith.constant 0 : index
    %55 = vector.load %arg20[%c0_52, %c0_53] : memref<3x256xf32, #tpu.memory_space<vmem>>, vector<3x256xf32>
    tpu.vector_store %arg20[%c0_52, %c0_53], %54 {strides = array<i32>} : memref<3x256xf32, #tpu.memory_space<vmem>>, vector<3x256xf32>,
    return
  }
}

module attributes {stable_mosaic.version = 11 : i64} {
  func.func @head_kernel(%arg0: i32, %arg1: memref<8x128xf32, #tpu.memory_space<vmem>>, %arg2: memref<8x128xf32, #tpu.memory_space<vmem>>, %arg3: memref<128x512xbf16, #tpu.memory_space<vmem>>, %arg4: memref<8x1xf32, #tpu.memory_space<vmem>>, %arg5: memref<8x128xf32, #tpu.memory_space<vmem>>, %arg6: memref<8x512xf32, #tpu.memory_space<vmem>>, %arg7: memref<8x128xbf16, #tpu.memory_space<vmem>>) attributes {dimension_semantics = [#tpu.dimension_semantics<arbitrary>], iteration_bounds = array<i64: 2>, scalar_prefetch = 0 : i64, scratch_operands = 1 : i64, tpu.core_type = #tpu.core_type<tc>, window_params = [{pipeline_mode = #tpu.pipeline_mode<synchronous>, transform_indices = @transform_0, window_bounds = array<i64: 8, 128>}, {pipeline_mode = #tpu.pipeline_mode<synchronous>, transform_indices = @transform_1, window_bounds = array<i64: 8, 128>}, {transform_indices = @transform_2, window_bounds = array<i64: 128, 512>}, {pipeline_mode = #tpu.pipeline_mode<synchronous>, transform_indices = @transform_3, window_bounds = array<i64: 8, 1>}, {pipeline_mode = #tpu.pipeline_mode<synchronous>, transform_indices = @transform_4, window_bounds = array<i64: 8, 128>}, {transform_indices = @transform_5, window_bounds = array<i64: 8, 512>}]} {
    %c0_i32 = arith.constant 0 : i32
    %0 = arith.cmpi eq, %arg0, %c0_i32 : i32
    %1 = arith.extui %0 : i1 to i32
    %c0_i32_0 = arith.constant 0 : i32
    %2 = arith.cmpi ne, %1, %c0_i32_0 : i32
    scf.if %2 {
      %c0_6 = arith.constant 0 : index
      %c0_7 = arith.constant 0 : index
      %7 = vector.load %arg1[%c0_6, %c0_7] : memref<8x128xf32, #tpu.memory_space<vmem>>, vector<8x128xf32>
      %c0_8 = arith.constant 0 : index
      %c0_9 = arith.constant 0 : index
      %8 = vector.load %arg2[%c0_8, %c0_9] : memref<8x128xf32, #tpu.memory_space<vmem>>, vector<8x128xf32>
      %9 = arith.mulf %7, %7 : vector<8x128xf32>
      %cst_10 = arith.constant dense<0.000000e+00> : vector<8xf32>
      %10 = vector.multi_reduction <add>, %9, %cst_10 [1] : vector<8x128xf32> to vector<8xf32>
      %11 = vector.shape_cast %10 : vector<8xf32> to vector<8x1xf32>
      %cst_11 = arith.constant 1.000000e-24 : f32
      %12 = vector.broadcast %cst_11 : f32 to vector<8x1xf32>
      %13 = arith.maximumf %11, %12 : vector<8x1xf32>
      %14 = math.rsqrt %13 : vector<8x1xf32>
      %15 = vector.broadcast %14 : vector<8x1xf32> to vector<8x128xf32>
      %16 = arith.mulf %7, %15 : vector<8x128xf32>
      %17 = arith.mulf %8, %8 : vector<8x128xf32>
      %cst_12 = arith.constant dense<0.000000e+00> : vector<8xf32>
      %18 = vector.multi_reduction <add>, %17, %cst_12 [1] : vector<8x128xf32> to vector<8xf32>
      %19 = vector.shape_cast %18 : vector<8xf32> to vector<8x1xf32>
      %cst_13 = arith.constant 1.000000e-24 : f32
      %20 = vector.broadcast %cst_13 : f32 to vector<8x1xf32>
      %21 = arith.maximumf %19, %20 : vector<8x1xf32>
      %22 = math.rsqrt %21 : vector<8x1xf32>
      %23 = vector.broadcast %22 : vector<8x1xf32> to vector<8x128xf32>
      %24 = arith.mulf %8, %23 : vector<8x128xf32>
      %cst_14 = arith.constant 14.2857141 : f32
      %25 = vector.broadcast %cst_14 : f32 to vector<8x128xf32>
      %26 = arith.mulf %16, %25 : vector<8x128xf32>
      %27 = arith.mulf %26, %24 : vector<8x128xf32>
      %cst_15 = arith.constant dense<0.000000e+00> : vector<8xf32>
      %28 = vector.multi_reduction <add>, %27, %cst_15 [1] : vector<8x128xf32> to vector<8xf32>
      %29 = vector.shape_cast %28 : vector<8xf32> to vector<8x1xf32>
      %c0_16 = arith.constant 0 : index
      %c0_17 = arith.constant 0 : index
      %30 = vector.load %arg4[%c0_16, %c0_17] : memref<8x1xf32, #tpu.memory_space<vmem>>, vector<8x1xf32>
      tpu.vector_store %arg4[%c0_16, %c0_17], %29 {strides = array<i32>} : memref<8x1xf32, #tpu.memory_space<vmem>>, vector<8x1xf32>,
      %c0_18 = arith.constant 0 : index
      %c0_19 = arith.constant 0 : index
      %31 = vector.load %arg5[%c0_18, %c0_19] : memref<8x128xf32, #tpu.memory_space<vmem>>, vector<8x128xf32>
      tpu.vector_store %arg5[%c0_18, %c0_19], %24 {strides = array<i32>} : memref<8x128xf32, #tpu.memory_space<vmem>>, vector<8x128xf32>,
      %32 = arith.truncf %26 : vector<8x128xf32> to vector<8x128xbf16>
      %c0_20 = arith.constant 0 : index
      %c0_21 = arith.constant 0 : index
      %33 = vector.load %arg7[%c0_20, %c0_21] : memref<8x128xbf16, #tpu.memory_space<vmem>>, vector<8x128xbf16>
      tpu.vector_store %arg7[%c0_20, %c0_21], %32 {strides = array<i32>} : memref<8x128xbf16, #tpu.memory_space<vmem>>, vector<8x128xbf16>,
    } else {
    }
    %c0 = arith.constant 0 : index
    %c0_1 = arith.constant 0 : index
    %3 = vector.load %arg7[%c0, %c0_1] : memref<8x128xbf16, #tpu.memory_space<vmem>>, vector<8x128xbf16>
    %c0_2 = arith.constant 0 : index
    %c0_3 = arith.constant 0 : index
    %4 = vector.load %arg3[%c0_2, %c0_3] : memref<128x512xbf16, #tpu.memory_space<vmem>>, vector<128x512xbf16>
    %cst = arith.constant dense<0.000000e+00> : vector<8x512xf32>
    %5 = tpu.matmul %3, %4, %cst {dimension_numbers = #tpu.dot_dimension_numbers<[1], [0], [0], [1], [0, 0, 1, 1], [], []>} : vector<8x128xbf16>, vector<128x512xbf16>, vector<8x512xf32> -> vector<8x512xf32>
    %c0_4 = arith.constant 0 : index
    %c0_5 = arith.constant 0 : index
    %6 = vector.load %arg6[%c0_4, %c0_5] : memref<8x512xf32, #tpu.memory_space<vmem>>, vector<8x512xf32>
    tpu.vector_store %arg6[%c0_4, %c0_5], %5 {strides = array<i32>} : memref<8x512xf32, #tpu.memory_space<vmem>>, vector<8x512xf32>,
    return
  }
  func.func @transform_0(%arg0: i32) -> (i32, i32) {
    %c0_i32 = arith.constant 0 : i32
    %c0_i32_0 = arith.constant 0 : i32
    %c0_i32_1 = arith.constant 0 : i32
    return %c0_i32, %c0_i32_0 : i32, i32
  }
  func.func @transform_1(%arg0: i32) -> (i32, i32) {
    %c0_i32 = arith.constant 0 : i32
    %c0_i32_0 = arith.constant 0 : i32
    %c0_i32_1 = arith.constant 0 : i32
    return %c0_i32, %c0_i32_0 : i32, i32
  }
  func.func @transform_2(%arg0: i32) -> (i32, i32) {
    %c0_i32 = arith.constant 0 : i32
    %c0_i32_0 = arith.constant 0 : i32
    return %c0_i32, %arg0 : i32, i32
  }
  func.func @transform_3(%arg0: i32) -> (i32, i32) {
    %c0_i32 = arith.constant 0 : i32
    %c0_i32_0 = arith.constant 0 : i32
    %c0_i32_1 = arith.constant 0 : i32
    return %c0_i32, %c0_i32_0 : i32, i32
  }
  func.func @transform_4(%arg0: i32) -> (i32, i32) {
    %c0_i32 = arith.constant 0 : i32
    %c0_i32_0 = arith.constant 0 : i32
    %c0_i32_1 = arith.constant 0 : i32
    return %c0_i32, %c0_i32_0 : i32, i32
  }
  func.func @transform_5(%arg0: i32) -> (i32, i32) {
    %c0_i32 = arith.constant 0 : i32
    %c0_i32_0 = arith.constant 0 : i32
    return %c0_i32, %arg0 : i32, i32
  }
}

</mosaic_0001>

<llo_original>
// kernel: moco_forward.13
$region0: #{moco_forward.13}
  #allocation0 [shape = 'u32[]', space=smem, size = 0x4, offset = 0x4, fixed_abs, tag = 'smem constant byte address 0x4 - core index']
  #allocation1 [shape = 'u32[72,128]{1,0:T(1,128)}', space=vmem, size = 0x9000, scoped, tag = 'internal scratch']
  %s0 = inlined_call_operand.hbm [shape: f32[256,128], index: 0, kind: input, shape index: {}]
  %s1 = inlined_call_operand.vmem [shape: f32[1,128], index: 1, kind: input, shape index: {}]
  %s2 = inlined_call_operand.hbm [shape: f32[128,128], index: 2, kind: input, shape index: {}]
  %s3 = inlined_call_operand.vmem [shape: f32[1,128], index: 3, kind: input, shape index: {}]
  %s4 = inlined_call_operand.hbm [shape: f32[128,128], index: 4, kind: input, shape index: {}]
  %s5 = inlined_call_operand.vmem [shape: f32[1,128], index: 5, kind: input, shape index: {}]
  %s6 = inlined_call_operand.vmem [shape: f32[3,256], index: 6, kind: input, shape index: {}]
  %s7 = inlined_call_operand.vmem [shape: f32[256,128], index: 7, kind: input, shape index: {}, may-alias: {7,14}]
  %s8 = inlined_call_operand.vmem [shape: f32[1,128], index: 8, kind: input, shape index: {}, may-alias: {8,15}]
  %s9 = inlined_call_operand.vmem [shape: f32[128,128], index: 9, kind: input, shape index: {}, may-alias: {9,16}]
  %s10 = inlined_call_operand.vmem [shape: f32[1,128], index: 10, kind: input, shape index: {}, may-alias: {10,17}]
  %s11 = inlined_call_operand.vmem [shape: f32[128,128], index: 11, kind: input, shape index: {}, may-alias: {11,18}]
  %s12 = inlined_call_operand.vmem [shape: f32[1,128], index: 12, kind: input, shape index: {}, may-alias: {12,19}]
  %s13 = inlined_call_operand.vmem [shape: f32[3,256], index: 13, kind: input, shape index: {}, may-alias: {13,20}]
  %s14 = inlined_call_operand.vmem [shape: f32[256,128], index: 14, kind: output, shape index: {0}, may-alias: {7,14}]
  %s15 = inlined_call_operand.vmem [shape: f32[1,128], index: 15, kind: output, shape index: {1}, may-alias: {8,15}]
  %s16 = inlined_call_operand.vmem [shape: f32[128,128], index: 16, kind: output, shape index: {2}, may-alias: {9,16}]
  %s17 = inlined_call_operand.vmem [shape: f32[1,128], index: 17, kind: output, shape index: {3}, may-alias: {10,17}]
  %s18 = inlined_call_operand.vmem [shape: f32[128,128], index: 18, kind: output, shape index: {4}, may-alias: {11,18}]
  %s19 = inlined_call_operand.vmem [shape: f32[1,128], index: 19, kind: output, shape index: {5}, may-alias: {12,19}]
  %s20 = inlined_call_operand.vmem [shape: f32[3,256], index: 20, kind: output, shape index: {6}, may-alias: {13,20}]
  %21 = xla_tuple %s14, %s15, %s16, %s17, %s18, %s19, %s20
  %s22 = sld [smem:[#allocation0]]
  $region126: #{moco_forward.13} parent=0
    _
  %s24 = ssub.s32 1, %s22
  %s25 = scalar_select 0, %s24, %s22
  $region1: #{moco_forward.13} parent=0
    #allocation2 [shape = 'u8[131072]{0}', space=vmem, size = 0x20000, scoped, tag = 'input window, operand 0, single buffered']
    #allocation3 [shape = 's32[1]{0}', space=sflag, size = 0x4, scoped, tag = 'scoped memory for moco_forward.13']
    #allocation4 [shape = 'u8[65536]{0}', space=vmem, size = 0x10000, scoped, tag = 'input window, operand 2, single buffered']
    #allocation5 [shape = 's32[1]{0}', space=sflag, size = 0x4, scoped, tag = 'scoped memory for moco_forward.13']
    #allocation6 [shape = 'u8[65536]{0}', space=vmem, size = 0x10000, scoped, tag = 'input window, operand 4, single buffered']
    %26 = vsyncpa [#allocation3], 0
    %27 = vsyncpa [#allocation5], 0
    // Predicated region
    $region2: #{moco_forward.13} parent=1 // pred_check
      _
    $region3: #{moco_forward.13} parent=1 // pred_check_branch
      %29 = sbr.rel (0) target = $region5
    $region4: #{moco_forward.13} parent=1 // pred_region
      %31 = vsyncadd [#allocation3], 0
      %s32 = sshll.u32 %s0, 4
      %s33 = int_to_ptr.hbm [resolvable:$true] %s32
      %s34 = sshll.u32 [#allocation2], 4
      %s35 = int_to_ptr.vmem [resolvable:$true] %s34
      %40 = dma.hbm_to_vmem [thread:$0]  %s33, 4096, %s35, [#allocation3], 128, 128, 8
    $region5: #{moco_forward.13} parent=1 // pred_fallthru
      _
    // Predicated region
    $region6: #{moco_forward.13} parent=1 // pred_check
      _
    $region7: #{moco_forward.13} parent=1 // pred_check_branch
      %42 = sbr.rel (0) target = $region9
    $region8: #{moco_forward.13} parent=1 // pred_region
      _
    $region9: #{moco_forward.13} parent=1 // pred_fallthru
      _
    // Predicated region
    $region10: #{moco_forward.13} parent=1 // pred_check
      _
    $region11: #{moco_forward.13} parent=1 // pred_check_branch
      %44 = sbr.rel (0) target = $region13
    $region12: #{moco_forward.13} parent=1 // pred_region
      %46 = vsyncadd [#allocation5], 0
      %s47 = sshll.u32 %s2, 4
      %s48 = int_to_ptr.hbm [resolvable:$true] %s47
      %s49 = sshll.u32 [#allocation4], 4
      %s50 = int_to_ptr.vmem [resolvable:$true] %s49
      %55 = dma.hbm_to_vmem [thread:$0]  %s48, 2048, %s50, [#allocation5], 128, 128, 8
    $region13: #{moco_forward.13} parent=1 // pred_fallthru
      _
    // Predicated region
    $region14: #{moco_forward.13} parent=1 // pred_check
      _
    $region15: #{moco_forward.13} parent=1 // pred_check_branch
      %57 = sbr.rel (0) target = $region17
    $region16: #{moco_forward.13} parent=1 // pred_region
      _
    $region17: #{moco_forward.13} parent=1 // pred_fallthru
      _
    // Predicated region
    $region18: #{moco_forward.13} parent=1 // pred_check
      _
    $region19: #{moco_forward.13} parent=1 // pred_check_branch
      %59 = sbr.rel (0) target = $region21
    $region20: #{moco_forward.13} parent=1 // pred_region
      %61 = vsyncadd [#allocation5], 0
      %s62 = sshll.u32 %s4, 4
      %s63 = int_to_ptr.hbm [resolvable:$true] %s62
      %s64 = sshll.u32 [#allocation6], 4
      %s65 = int_to_ptr.vmem [resolvable:$true] %s64
      %70 = dma.hbm_to_vmem [thread:$0]  %s63, 2048, %s65, [#allocation5], 128, 128, 8
    $region21: #{moco_forward.13} parent=1 // pred_fallthru
      _
    // Predicated region
    $region22: #{moco_forward.13} parent=1 // pred_check
      _
    $region23: #{moco_forward.13} parent=1 // pred_check_branch
      %72 = sbr.rel (0) target = $region25
    $region24: #{moco_forward.13} parent=1 // pred_region
      _
    $region25: #{moco_forward.13} parent=1 // pred_fallthru
      _
    // Predicated region
    $region26: #{moco_forward.13} parent=1 // pred_check
      _
    $region27: #{moco_forward.13} parent=1 // pred_check_branch
      %74 = sbr.rel (0) target = $region29
    $region28: #{moco_forward.13} parent=1 // pred_region
      _
    $region29: #{moco_forward.13} parent=1 // pred_fallthru
      _
    // Predicated region
    $region30: #{moco_forward.13} parent=1 // pred_check
      _
    $region31: #{moco_forward.13} parent=1 // pred_check_branch
      %76 = sbr.rel (0) target = $region33
    $region32: #{moco_forward.13} parent=1 // pred_region
      _
    $region33: #{moco_forward.13} parent=1 // pred_fallthru
      _
    // Predicated region
    $region34: #{moco_forward.13} parent=1 // pred_check
      _
    $region35: #{moco_forward.13} parent=1 // pred_check_branch
      %78 = sbr.rel (0) target = $region37
    $region36: #{moco_forward.13} parent=1 // pred_region
      _
    $region37: #{moco_forward.13} parent=1 // pred_fallthru
      _
    // Predicated region
    $region38: #{moco_forward.13} parent=1 // pred_check
      _
    $region39: #{moco_forward.13} parent=1 // pred_check_branch
      %80 = sbr.rel (0) target = $region41
    $region40: #{moco_forward.13} parent=1 // pred_region
      _
    $region41: #{moco_forward.13} parent=1 // pred_fallthru
      _
    // Predicated region
    $region42: #{moco_forward.13} parent=1 // pred_check
      _
    $region43: #{moco_forward.13} parent=1 // pred_check_branch
      %82 = sbr.rel (0) target = $region45
    $region44: #{moco_forward.13} parent=1 // pred_region
      _
    $region45: #{moco_forward.13} parent=1 // pred_fallthru
      _
    // Predicated region
    $region46: #{moco_forward.13} parent=1 // pred_check
      _
    $region47: #{moco_forward.13} parent=1 // pred_check_branch
      %84 = sbr.rel (0) target = $region49
    $region48: #{moco_forward.13} parent=1 // pred_region
      _
    $region49: #{moco_forward.13} parent=1 // pred_fallthru
      _
    // Predicated region
    $region50: #{moco_forward.13} parent=1 // pred_check
      _
    $region51: #{moco_forward.13} parent=1 // pred_check_branch
      %86 = sbr.rel (0) target = $region53
    $region52: #{moco_forward.13} parent=1 // pred_region
      _
    $region53: #{moco_forward.13} parent=1 // pred_fallthru
      _
    // Predicated region
    $region54: #{moco_forward.13} parent=1 // pred_check
      _
    $region55: #{moco_forward.13} parent=1 // pred_check_branch
      %88 = sbr.rel (0) target = $region57
    $region56: #{moco_forward.13} parent=1 // pred_region
      _
    $region57: #{moco_forward.13} parent=1 // pred_fallthru
      _
    // Predicated region
    $region58: #{moco_forward.13} parent=1 // pred_check
      _
    $region59: #{moco_forward.13} parent=1 // pred_check_branch
      %90 = sbr.rel (0) target = $region61
    $region60: #{moco_forward.13} parent=1 // pred_region
      %92 = dma.done [#allocation3], 4096
    $region61: #{moco_forward.13} parent=1 // pred_fallthru
      _
    // Predicated region
    $region62: #{moco_forward.13} parent=1 // pred_check
      _
    $region63: #{moco_forward.13} parent=1 // pred_check_branch
      %94 = sbr.rel (0) target = $region65
    $region64: #{moco_forward.13} parent=1 // pred_region
      %96 = dma.done [#allocation5], 2048
    $region65: #{moco_forward.13} parent=1 // pred_fallthru
      _
    // Predicated region
    $region66: #{moco_forward.13} parent=1 // pred_check
      _
    $region67: #{moco_forward.13} parent=1 // pred_check_branch
      %98 = sbr.rel (0) target = $region69
    $region68: #{moco_forward.13} parent=1 // pred_region
      %100 = dma.done [#allocation5], 2048
    $region69: #{moco_forward.13} parent=1 // pred_fallthru
      _
    %v101 = vld [vmem:[%s7] sm:$0xff]
    %v102 = vld [vmem:[%s7 + $0x8] sm:$0xff]
    %v103 = vld [vmem:[%s7 + $0x10] sm:$0xff]
    %v104 = vld [vmem:[%s7 + $0x18] sm:$0xff]
    %v105 = vld [vmem:[%s7 + $0x20] sm:$0xff]
    %v106 = vld [vmem:[%s7 + $0x28] sm:$0xff]
    %v107 = vld [vmem:[%s7 + $0x30] sm:$0xff]
    %v108 = vld [vmem:[%s7 + $0x38] sm:$0xff]
    %v109 = vld [vmem:[%s7 + $0x40] sm:$0xff]
    %v110 = vld [vmem:[%s7 + $0x48] sm:$0xff]
    %v111 = vld [vmem:[%s7 + $0x50] sm:$0xff]
    %v112 = vld [vmem:[%s7 + $0x58] sm:$0xff]
    %v113 = vld [vmem:[%s7 + $0x60] sm:$0xff]
    %v114 = vld [vmem:[%s7 + $0x68] sm:$0xff]
    %v115 = vld [vmem:[%s7 + $0x70] sm:$0xff]
    %v116 = vld [vmem:[%s7 + $0x78] sm:$0xff]
    %v117 = vld [vmem:[%s7 + $0x80] sm:$0xff]
    %v118 = vld [vmem:[%s7 + $0x88] sm:$0xff]
    %v119 = vld [vmem:[%s7 + $0x90] sm:$0xff]
    %v120 = vld [vmem:[%s7 + $0x98] sm:$0xff]
    %v121 = vld [vmem:[%s7 + $0xa0] sm:$0xff]
    %v122 = vld [vmem:[%s7 + $0xa8] sm:$0xff]
    %v123 = vld [vmem:[%s7 + $0xb0] sm:$0xff]
    %v124 = vld [vmem:[%s7 + $0xb8] sm:$0xff]
    %v125 = vld [vmem:[%s7 + $0xc0] sm:$0xff]
    %v126 = vld [vmem:[%s7 + $0xc8] sm:$0xff]
    %v127 = vld [vmem:[%s7 + $0xd0] sm:$0xff]
    %v128 = vld [vmem:[%s7 + $0xd8] sm:$0xff]
    %v129 = vld [vmem:[%s7 + $0xe0] sm:$0xff]
    %v130 = vld [vmem:[%s7 + $0xe8] sm:$0xff]
    %v131 = vld [vmem:[%s7 + $0xf0] sm:$0xff]
    %v132 = vld [vmem:[%s7 + $0xf8] sm:$0xff]
    %v133 = vmul.f32 %v101, 0.999
    %v134 = vmul.f32 %v102, 0.999
    %v135 = vmul.f32 %v103, 0.999
    %v136 = vmul.f32 %v104, 0.999
    %v137 = vmul.f32 %v105, 0.999
    %v138 = vmul.f32 %v106, 0.999
    %v139 = vmul.f32 %v107, 0.999
    %v140 = vmul.f32 %v108, 0.999
    %v141 = vmul.f32 %v109, 0.999
    %v142 = vmul.f32 %v110, 0.999
    %v143 = vmul.f32 %v111, 0.999
    %v144 = vmul.f32 %v112, 0.999
    %v145 = vmul.f32 %v113, 0.999
    %v146 = vmul.f32 %v114, 0.999
    %v147 = vmul.f32 %v115, 0.999
    %v148 = vmul.f32 %v116, 0.999
    %v149 = vmul.f32 %v117, 0.999
    %v150 = vmul.f32 %v118, 0.999
    %v151 = vmul.f32 %v119, 0.999
    %v152 = vmul.f32 %v120, 0.999
    %v153 = vmul.f32 %v121, 0.999
    %v154 = vmul.f32 %v122, 0.999
    %v155 = vmul.f32 %v123, 0.999
    %v156 = vmul.f32 %v124, 0.999
    %v157 = vmul.f32 %v125, 0.999
    %v158 = vmul.f32 %v126, 0.999
    %v159 = vmul.f32 %v127, 0.999
    %v160 = vmul.f32 %v128, 0.999
    %v161 = vmul.f32 %v129, 0.999
    %v162 = vmul.f32 %v130, 0.999
    %v163 = vmul.f32 %v131, 0.999
    %v164 = vmul.f32 %v132, 0.999
    %v165 = vld [vmem:[#allocation2] sm:$0xff]
    %v166 = vld [vmem:[#allocation2 + $0x8] sm:$0xff]
    %v167 = vld [vmem:[#allocation2 + $0x10] sm:$0xff]
    %v168 = vld [vmem:[#allocation2 + $0x18] sm:$0xff]
    %v169 = vld [vmem:[#allocation2 + $0x20] sm:$0xff]
    %v170 = vld [vmem:[#allocation2 + $0x28] sm:$0xff]
    %v171 = vld [vmem:[#allocation2 + $0x30] sm:$0xff]
    %v172 = vld [vmem:[#allocation2 + $0x38] sm:$0xff]
    %v173 = vld [vmem:[#allocation2 + $0x40] sm:$0xff]
    %v174 = vld [vmem:[#allocation2 + $0x48] sm:$0xff]
    %v175 = vld [vmem:[#allocation2 + $0x50] sm:$0xff]
    %v176 = vld [vmem:[#allocation2 + $0x58] sm:$0xff]
    %v177 = vld [vmem:[#allocation2 + $0x60] sm:$0xff]
    %v178 = vld [vmem:[#allocation2 + $0x68] sm:$0xff]
    %v179 = vld [vmem:[#allocation2 + $0x70] sm:$0xff]
    %v180 = vld [vmem:[#allocation2 + $0x78] sm:$0xff]
    %v181 = vld [vmem:[#allocation2 + $0x80] sm:$0xff]
    %v182 = vld [vmem:[#allocation2 + $0x88] sm:$0xff]
    %v183 = vld [vmem:[#allocation2 + $0x90] sm:$0xff]
    %v184 = vld [vmem:[#allocation2 + $0x98] sm:$0xff]
    %v185 = vld [vmem:[#allocation2 + $0xa0] sm:$0xff]
    %v186 = vld [vmem:[#allocation2 + $0xa8] sm:$0xff]
    %v187 = vld [vmem:[#allocation2 + $0xb0] sm:$0xff]
    %v188 = vld [vmem:[#allocation2 + $0xb8] sm:$0xff]
    %v189 = vld [vmem:[#allocation2 + $0xc0] sm:$0xff]
    %v190 = vld [vmem:[#allocation2 + $0xc8] sm:$0xff]
    %v191 = vld [vmem:[#allocation2 + $0xd0] sm:$0xff]
    %v192 = vld [vmem:[#allocation2 + $0xd8] sm:$0xff]
    %v193 = vld [vmem:[#allocation2 + $0xe0] sm:$0xff]
    %v194 = vld [vmem:[#allocation2 + $0xe8] sm:$0xff]
    %v195 = vld [vmem:[#allocation2 + $0xf0] sm:$0xff]
    %v196 = vld [vmem:[#allocation2 + $0xf8] sm:$0xff]
    %v197 = vmul.f32 %v165, 0.001
    %v198 = vmul.f32 %v166, 0.001
    %v199 = vmul.f32 %v167, 0.001
    %v200 = vmul.f32 %v168, 0.001
    %v201 = vmul.f32 %v169, 0.001
    %v202 = vmul.f32 %v170, 0.001
    %v203 = vmul.f32 %v171, 0.001
    %v204 = vmul.f32 %v172, 0.001
    %v205 = vmul.f32 %v173, 0.001
    %v206 = vmul.f32 %v174, 0.001
    %v207 = vmul.f32 %v175, 0.001
    %v208 = vmul.f32 %v176, 0.001
    %v209 = vmul.f32 %v177, 0.001
    %v210 = vmul.f32 %v178, 0.001
    %v211 = vmul.f32 %v179, 0.001
    %v212 = vmul.f32 %v180, 0.001
    %v213 = vmul.f32 %v181, 0.001
    %v214 = vmul.f32 %v182, 0.001
    %v215 = vmul.f32 %v183, 0.001
    %v216 = vmul.f32 %v184, 0.001
    %v217 = vmul.f32 %v185, 0.001
    %v218 = vmul.f32 %v186, 0.001
    %v219 = vmul.f32 %v187, 0.001
    %v220 = vmul.f32 %v188, 0.001
    %v221 = vmul.f32 %v189, 0.001
    %v222 = vmul.f32 %v190, 0.001
    %v223 = vmul.f32 %v191, 0.001
    %v224 = vmul.f32 %v192, 0.001
    %v225 = vmul.f32 %v193, 0.001
    %v226 = vmul.f32 %v194, 0.001
    %v227 = vmul.f32 %v195, 0.001
    %v228 = vmul.f32 %v196, 0.001
    %v229 = vadd.f32 %v133, %v197
    %v230 = vadd.f32 %v134, %v198
    %v231 = vadd.f32 %v135, %v199
    %v232 = vadd.f32 %v136, %v200
    %v233 = vadd.f32 %v137, %v201
    %v234 = vadd.f32 %v138, %v202
    %v235 = vadd.f32 %v139, %v203
    %v236 = vadd.f32 %v140, %v204
    %v237 = vadd.f32 %v141, %v205
    %v238 = vadd.f32 %v142, %v206
    %v239 = vadd.f32 %v143, %v207
    %v240 = vadd.f32 %v144, %v208
    %v241 = vadd.f32 %v145, %v209
    %v242 = vadd.f32 %v146, %v210
    %v243 = vadd.f32 %v147, %v211
    %v244 = vadd.f32 %v148, %v212
    %v245 = vadd.f32 %v149, %v213
    %v246 = vadd.f32 %v150, %v214
    %v247 = vadd.f32 %v151, %v215
    %v248 = vadd.f32 %v152, %v216
    %v249 = vadd.f32 %v153, %v217
    %v250 = vadd.f32 %v154, %v218
    %v251 = vadd.f32 %v155, %v219
    %v252 = vadd.f32 %v156, %v220
    %v253 = vadd.f32 %v157, %v221
    %v254 = vadd.f32 %v158, %v222
    %v255 = vadd.f32 %v159, %v223
    %v256 = vadd.f32 %v160, %v224
    %v257 = vadd.f32 %v161, %v225
    %v258 = vadd.f32 %v162, %v226
    %v259 = vadd.f32 %v163, %v227
    %v260 = vadd.f32 %v164, %v228
    %261 = vst [vmem:[%s14] sm:$0xff] %v229
    %262 = vst [vmem:[%s14 + $0x8] sm:$0xff] %v230
    %263 = vst [vmem:[%s14 + $0x10] sm:$0xff] %v231
    %264 = vst [vmem:[%s14 + $0x18] sm:$0xff] %v232
    %265 = vst [vmem:[%s14 + $0x20] sm:$0xff] %v233
    %266 = vst [vmem:[%s14 + $0x28] sm:$0xff] %v234
    %267 = vst [vmem:[%s14 + $0x30] sm:$0xff] %v235
    %268 = vst [vmem:[%s14 + $0x38] sm:$0xff] %v236
    %269 = vst [vmem:[%s14 + $0x40] sm:$0xff] %v237
    %270 = vst [vmem:[%s14 + $0x48] sm:$0xff] %v238
    %271 = vst [vmem:[%s14 + $0x50] sm:$0xff] %v239
    %272 = vst [vmem:[%s14 + $0x58] sm:$0xff] %v240
    %273 = vst [vmem:[%s14 + $0x60] sm:$0xff] %v241
    %274 = vst [vmem:[%s14 + $0x68] sm:$0xff] %v242
    %275 = vst [vmem:[%s14 + $0x70] sm:$0xff] %v243
    %276 = vst [vmem:[%s14 + $0x78] sm:$0xff] %v244
    %277 = vst [vmem:[%s14 + $0x80] sm:$0xff] %v245
    %278 = vst [vmem:[%s14 + $0x88] sm:$0xff] %v246
    %279 = vst [vmem:[%s14 + $0x90] sm:$0xff] %v247
    %280 = vst [vmem:[%s14 + $0x98] sm:$0xff] %v248
    %281 = vst [vmem:[%s14 + $0xa0] sm:$0xff] %v249
    %282 = vst [vmem:[%s14 + $0xa8] sm:$0xff] %v250
    %283 = vst [vmem:[%s14 + $0xb0] sm:$0xff] %v251
    %284 = vst [vmem:[%s14 + $0xb8] sm:$0xff] %v252
    %285 = vst [vmem:[%s14 + $0xc0] sm:$0xff] %v253
    %286 = vst [vmem:[%s14 + $0xc8] sm:$0xff] %v254
    %287 = vst [vmem:[%s14 + $0xd0] sm:$0xff] %v255
    %288 = vst [vmem:[%s14 + $0xd8] sm:$0xff] %v256
    %289 = vst [vmem:[%s14 + $0xe0] sm:$0xff] %v257
    %290 = vst [vmem:[%s14 + $0xe8] sm:$0xff] %v258
    %291 = vst [vmem:[%s14 + $0xf0] sm:$0xff] %v259
    %292 = vst [vmem:[%s14 + $0xf8] sm:$0xff] %v260
    %v293 = vld [vmem:[%s8] sm:$0x1]
    %v294 = vmul.f32 %v293, 0.999
    %v295 = vld [vmem:[%s1] sm:$0x1]
    %v296 = vmul.f32 %v295, 0.001
    %v297 = vadd.f32 %v294, %v296
    %298 = vst [vmem:[%s15] sm:$0x1] %v297
    %v299 = vld [vmem:[%s9] sm:$0xff]
    %v300 = vld [vmem:[%s9 + $0x8] sm:$0xff]
    %v301 = vld [vmem:[%s9 + $0x10] sm:$0xff]
    %v302 = vld [vmem:[%s9 + $0x18] sm:$0xff]
    %v303 = vld [vmem:[%s9 + $0x20] sm:$0xff]
    %v304 = vld [vmem:[%s9 + $0x28] sm:$0xff]
    %v305 = vld [vmem:[%s9 + $0x30] sm:$0xff]
    %v306 = vld [vmem:[%s9 + $0x38] sm:$0xff]
    %v307 = vld [vmem:[%s9 + $0x40] sm:$0xff]
    %v308 = vld [vmem:[%s9 + $0x48] sm:$0xff]
    %v309 = vld [vmem:[%s9 + $0x50] sm:$0xff]
    %v310 = vld [vmem:[%s9 + $0x58] sm:$0xff]
    %v311 = vld [vmem:[%s9 + $0x60] sm:$0xff]
    %v312 = vld [vmem:[%s9 + $0x68] sm:$0xff]
    %v313 = vld [vmem:[%s9 + $0x70] sm:$0xff]
    %v314 = vld [vmem:[%s9 + $0x78] sm:$0xff]
    %v315 = vmul.f32 %v299, 0.999
    %v316 = vmul.f32 %v300, 0.999
    %v317 = vmul.f32 %v301, 0.999
    %v318 = vmul.f32 %v302, 0.999
    %v319 = vmul.f32 %v303, 0.999
    %v320 = vmul.f32 %v304, 0.999
    %v321 = vmul.f32 %v305, 0.999
    %v322 = vmul.f32 %v306, 0.999
    %v323 = vmul.f32 %v307, 0.999
    %v324 = vmul.f32 %v308, 0.999
    %v325 = vmul.f32 %v309, 0.999
    %v326 = vmul.f32 %v310, 0.999
    %v327 = vmul.f32 %v311, 0.999
    %v328 = vmul.f32 %v312, 0.999
    %v329 = vmul.f32 %v313, 0.999
    %v330 = vmul.f32 %v314, 0.999
    %v331 = vld [vmem:[#allocation4] sm:$0xff]
    %v332 = vld [vmem:[#allocation4 + $0x8] sm:$0xff]
    %v333 = vld [vmem:[#allocation4 + $0x10] sm:$0xff]
    %v334 = vld [vmem:[#allocation4 + $0x18] sm:$0xff]
    %v335 = vld [vmem:[#allocation4 + $0x20] sm:$0xff]
    %v336 = vld [vmem:[#allocation4 + $0x28] sm:$0xff]
    %v337 = vld [vmem:[#allocation4 + $0x30] sm:$0xff]
    %v338 = vld [vmem:[#allocation4 + $0x38] sm:$0xff]
    %v339 = vld [vmem:[#allocation4 + $0x40] sm:$0xff]
    %v340 = vld [vmem:[#allocation4 + $0x48] sm:$0xff]
    %v341 = vld [vmem:[#allocation4 + $0x50] sm:$0xff]
    %v342 = vld [vmem:[#allocation4 + $0x58] sm:$0xff]
    %v343 = vld [vmem:[#allocation4 + $0x60] sm:$0xff]
    %v344 = vld [vmem:[#allocation4 + $0x68] sm:$0xff]
    %v345 = vld [vmem:[#allocation4 + $0x70] sm:$0xff]
    %v346 = vld [vmem:[#allocation4 + $0x78] sm:$0xff]
    %v347 = vmul.f32 %v331, 0.001
    %v348 = vmul.f32 %v332, 0.001
    %v349 = vmul.f32 %v333, 0.001
    %v350 = vmul.f32 %v334, 0.001
    %v351 = vmul.f32 %v335, 0.001
    %v352 = vmul.f32 %v336, 0.001
    %v353 = vmul.f32 %v337, 0.001
    %v354 = vmul.f32 %v338, 0.001
    %v355 = vmul.f32 %v339, 0.001
    %v356 = vmul.f32 %v340, 0.001
    %v357 = vmul.f32 %v341, 0.001
    %v358 = vmul.f32 %v342, 0.001
    %v359 = vmul.f32 %v343, 0.001
    %v360 = vmul.f32 %v344, 0.001
    %v361 = vmul.f32 %v345, 0.001
    %v362 = vmul.f32 %v346, 0.001
    %v363 = vadd.f32 %v315, %v347
    %v364 = vadd.f32 %v316, %v348
    %v365 = vadd.f32 %v317, %v349
    %v366 = vadd.f32 %v318, %v350
    %v367 = vadd.f32 %v319, %v351
    %v368 = vadd.f32 %v320, %v352
    %v369 = vadd.f32 %v321, %v353
    %v370 = vadd.f32 %v322, %v354
    %v371 = vadd.f32 %v323, %v355
    %v372 = vadd.f32 %v324, %v356
    %v373 = vadd.f32 %v325, %v357
    %v374 = vadd.f32 %v326, %v358
    %v375 = vadd.f32 %v327, %v359
    %v376 = vadd.f32 %v328, %v360
    %v377 = vadd.f32 %v329, %v361
    %v378 = vadd.f32 %v330, %v362
    %379 = vst [vmem:[%s16] sm:$0xff] %v363
    %380 = vst [vmem:[%s16 + $0x8] sm:$0xff] %v364
    %381 = vst [vmem:[%s16 + $0x10] sm:$0xff] %v365
    %382 = vst [vmem:[%s16 + $0x18] sm:$0xff] %v366
    %383 = vst [vmem:[%s16 + $0x20] sm:$0xff] %v367
    %384 = vst [vmem:[%s16 + $0x28] sm:$0xff] %v368
    %385 = vst [vmem:[%s16 + $0x30] sm:$0xff] %v369
    %386 = vst [vmem:[%s16 + $0x38] sm:$0xff] %v370
    %387 = vst [vmem:[%s16 + $0x40] sm:$0xff] %v371
    %388 = vst [vmem:[%s16 + $0x48] sm:$0xff] %v372
    %389 = vst [vmem:[%s16 + $0x50] sm:$0xff] %v373
    %390 = vst [vmem:[%s16 + $0x58] sm:$0xff] %v374
    %391 = vst [vmem:[%s16 + $0x60] sm:$0xff] %v375
    %392 = vst [vmem:[%s16 + $0x68] sm:$0xff] %v376
    %393 = vst [vmem:[%s16 + $0x70] sm:$0xff] %v377
    %394 = vst [vmem:[%s16 + $0x78] sm:$0xff] %v378
    %v395 = vld [vmem:[%s10] sm:$0x1]
    %v396 = vmul.f32 %v395, 0.999
    %v397 = vld [vmem:[%s3] sm:$0x1]
    %v398 = vmul.f32 %v397, 0.001
    %v399 = vadd.f32 %v396, %v398
    %400 = vst [vmem:[%s17] sm:$0x1] %v399
    %v401 = vld [vmem:[%s11] sm:$0xff]
    %v402 = vld [vmem:[%s11 + $0x8] sm:$0xff]
    %v403 = vld [vmem:[%s11 + $0x10] sm:$0xff]
    %v404 = vld [vmem:[%s11 + $0x18] sm:$0xff]
    %v405 = vld [vmem:[%s11 + $0x20] sm:$0xff]
    %v406 = vld [vmem:[%s11 + $0x28] sm:$0xff]
    %v407 = vld [vmem:[%s11 + $0x30] sm:$0xff]
    %v408 = vld [vmem:[%s11 + $0x38] sm:$0xff]
    %v409 = vld [vmem:[%s11 + $0x40] sm:$0xff]
    %v410 = vld [vmem:[%s11 + $0x48] sm:$0xff]
    %v411 = vld [vmem:[%s11 + $0x50] sm:$0xff]
    %v412 = vld [vmem:[%s11 + $0x58] sm:$0xff]
    %v413 = vld [vmem:[%s11 + $0x60] sm:$0xff]
    %v414 = vld [vmem:[%s11 + $0x68] sm:$0xff]
    %v415 = vld [vmem:[%s11 + $0x70] sm:$0xff]
    %v416 = vld [vmem:[%s11 + $0x78] sm:$0xff]
    %v417 = vmul.f32 %v401, 0.999
    %v418 = vmul.f32 %v402, 0.999
    %v419 = vmul.f32 %v403, 0.999
    %v420 = vmul.f32 %v404, 0.999
    %v421 = vmul.f32 %v405, 0.999
    %v422 = vmul.f32 %v406, 0.999
    %v423 = vmul.f32 %v407, 0.999
    %v424 = vmul.f32 %v408, 0.999
    %v425 = vmul.f32 %v409, 0.999
    %v426 = vmul.f32 %v410, 0.999
    %v427 = vmul.f32 %v411, 0.999
    %v428 = vmul.f32 %v412, 0.999
    %v429 = vmul.f32 %v413, 0.999
    %v430 = vmul.f32 %v414, 0.999
    %v431 = vmul.f32 %v415, 0.999
    %v432 = vmul.f32 %v416, 0.999
    %v433 = vld [vmem:[#allocation6] sm:$0xff]
    %v434 = vld [vmem:[#allocation6 + $0x8] sm:$0xff]
    %v435 = vld [vmem:[#allocation6 + $0x10] sm:$0xff]
    %v436 = vld [vmem:[#allocation6 + $0x18] sm:$0xff]
    %v437 = vld [vmem:[#allocation6 + $0x20] sm:$0xff]
    %v438 = vld [vmem:[#allocation6 + $0x28] sm:$0xff]
    %v439 = vld [vmem:[#allocation6 + $0x30] sm:$0xff]
    %v440 = vld [vmem:[#allocation6 + $0x38] sm:$0xff]
    %v441 = vld [vmem:[#allocation6 + $0x40] sm:$0xff]
    %v442 = vld [vmem:[#allocation6 + $0x48] sm:$0xff]
    %v443 = vld [vmem:[#allocation6 + $0x50] sm:$0xff]
    %v444 = vld [vmem:[#allocation6 + $0x58] sm:$0xff]
    %v445 = vld [vmem:[#allocation6 + $0x60] sm:$0xff]
    %v446 = vld [vmem:[#allocation6 + $0x68] sm:$0xff]
    %v447 = vld [vmem:[#allocation6 + $0x70] sm:$0xff]
    %v448 = vld [vmem:[#allocation6 + $0x78] sm:$0xff]
    %v449 = vmul.f32 %v433, 0.001
    %v450 = vmul.f32 %v434, 0.001
    %v451 = vmul.f32 %v435, 0.001
    %v452 = vmul.f32 %v436, 0.001
    %v453 = vmul.f32 %v437, 0.001
    %v454 = vmul.f32 %v438, 0.001
    %v455 = vmul.f32 %v439, 0.001
    %v456 = vmul.f32 %v440, 0.001
    %v457 = vmul.f32 %v441, 0.001
    %v458 = vmul.f32 %v442, 0.001
    %v459 = vmul.f32 %v443, 0.001
    %v460 = vmul.f32 %v444, 0.001
    %v461 = vmul.f32 %v445, 0.001
    %v462 = vmul.f32 %v446, 0.001
    %v463 = vmul.f32 %v447, 0.001
    %v464 = vmul.f32 %v448, 0.001
    %v465 = vadd.f32 %v417, %v449
    %v466 = vadd.f32 %v418, %v450
    %v467 = vadd.f32 %v419, %v451
    %v468 = vadd.f32 %v420, %v452
    %v469 = vadd.f32 %v421, %v453
    %v470 = vadd.f32 %v422, %v454
    %v471 = vadd.f32 %v423, %v455
    %v472 = vadd.f32 %v424, %v456
    %v473 = vadd.f32 %v425, %v457
    %v474 = vadd.f32 %v426, %v458
    %v475 = vadd.f32 %v427, %v459
    %v476 = vadd.f32 %v428, %v460
    %v477 = vadd.f32 %v429, %v461
    %v478 = vadd.f32 %v430, %v462
    %v479 = vadd.f32 %v431, %v463
    %v480 = vadd.f32 %v432, %v464
    %481 = vst [vmem:[%s18] sm:$0xff] %v465
    %482 = vst [vmem:[%s18 + $0x8] sm:$0xff] %v466
    %483 = vst [vmem:[%s18 + $0x10] sm:$0xff] %v467
    %484 = vst [vmem:[%s18 + $0x18] sm:$0xff] %v468
    %485 = vst [vmem:[%s18 + $0x20] sm:$0xff] %v469
    %486 = vst [vmem:[%s18 + $0x28] sm:$0xff] %v470
    %487 = vst [vmem:[%s18 + $0x30] sm:$0xff] %v471
    %488 = vst [vmem:[%s18 + $0x38] sm:$0xff] %v472
    %489 = vst [vmem:[%s18 + $0x40] sm:$0xff] %v473
    %490 = vst [vmem:[%s18 + $0x48] sm:$0xff] %v474
    %491 = vst [vmem:[%s18 + $0x50] sm:$0xff] %v475
    %492 = vst [vmem:[%s18 + $0x58] sm:$0xff] %v476
    %493 = vst [vmem:[%s18 + $0x60] sm:$0xff] %v477
    %494 = vst [vmem:[%s18 + $0x68] sm:$0xff] %v478
    %495 = vst [vmem:[%s18 + $0x70] sm:$0xff] %v479
    %496 = vst [vmem:[%s18 + $0x78] sm:$0xff] %v480
    %v497 = vld [vmem:[%s12] sm:$0x1]
    %v498 = vmul.f32 %v497, 0.999
    %v499 = vld [vmem:[%s5] sm:$0x1]
    %v500 = vmul.f32 %v499, 0.001
    %v501 = vadd.f32 %v498, %v500
    %502 = vst [vmem:[%s19] sm:$0x1] %v501
    %v503 = vld [vmem:[%s13] sm:$0x77]
    %v504 = vmul.f32 %v503, 0.999
    %v505 = vld [vmem:[%s6] sm:$0x77]
    %v506 = vmul.f32 %v505, 0.001
    %v507 = vadd.f32 %v504, %v506
    %508 = vst [vmem:[%s20] sm:$0x77] %v507
    // Predicated region
    $region70: #{moco_forward.13} parent=1 // pred_check
      _
    $region71: #{moco_forward.13} parent=1 // pred_check_branch
      %510 = sbr.rel (0) target = $region73
    $region72: #{moco_forward.13} parent=1 // pred_region
      _
    $region73: #{moco_forward.13} parent=1 // pred_fallthru
      _
    // Predicated region
    $region74: #{moco_forward.13} parent=1 // pred_check
      _
    $region75: #{moco_forward.13} parent=1 // pred_check_branch
      %512 = sbr.rel (0) target = $region77
    $region76: #{moco_forward.13} parent=1 // pred_region
      _
    $region77: #{moco_forward.13} parent=1 // pred_fallthru
      _
    // Predicated region
    $region78: #{moco_forward.13} parent=1 // pred_check
      _
    $region79: #{moco_forward.13} parent=1 // pred_check_branch
      %514 = sbr.rel (0) target = $region81
    $region80: #{moco_forward.13} parent=1 // pred_region
      _
    $region81: #{moco_forward.13} parent=1 // pred_fallthru
      _
    // Predicated region
    $region82: #{moco_forward.13} parent=1 // pred_check
      _
    $region83: #{moco_forward.13} parent=1 // pred_check_branch
      %516 = sbr.rel (0) target = $region85
    $region84: #{moco_forward.13} parent=1 // pred_region
      _
    $region85: #{moco_forward.13} parent=1 // pred_fallthru
      _
    // Predicated region
    $region86: #{moco_forward.13} parent=1 // pred_check
      _
    $region87: #{moco_forward.13} parent=1 // pred_check_branch
      %518 = sbr.rel (0) target = $region89
    $region88: #{moco_forward.13} parent=1 // pred_region
      _
    $region89: #{moco_forward.13} parent=1 // pred_fallthru
      _
    // Predicated region
    $region90: #{moco_forward.13} parent=1 // pred_check
      _
    $region91: #{moco_forward.13} parent=1 // pred_check_branch
      %520 = sbr.rel (0) target = $region93
    $region92: #{moco_forward.13} parent=1 // pred_region
      _
    $region93: #{moco_forward.13} parent=1 // pred_fallthru
      _
    // Predicated region
    $region94: #{moco_forward.13} parent=1 // pred_check
      _
    $region95: #{moco_forward.13} parent=1 // pred_check_branch
      %522 = sbr.rel (0) target = $region97
    $region96: #{moco_forward.13} parent=1 // pred_region
      _
    $region97: #{moco_forward.13} parent=1 // pred_fallthru
      _
    // Predicated region
    $region98: #{moco_forward.13} parent=1 // pred_check
      _
    $region99: #{moco_forward.13} parent=1 // pred_check_branch
      %524 = sbr.rel (0) target = $region101
    $region100: #{moco_forward.13} parent=1 // pred_region
      _
    $region101: #{moco_forward.13} parent=1 // pred_fallthru
      _
    // Predicated region
    $region102: #{moco_forward.13} parent=1 // pred_check
      _
    $region103: #{moco_forward.13} parent=1 // pred_check_branch
      %526 = sbr.rel (0) target = $region105
    $region104: #{moco_forward.13} parent=1 // pred_region
      _
    $region105: #{moco_forward.13} parent=1 // pred_fallthru
      _
    // Predicated region
    $region106: #{moco_forward.13} parent=1 // pred_check
      _
    $region107: #{moco_forward.13} parent=1 // pred_check_branch
      %528 = sbr.rel (0) target = $region109
    $region108: #{moco_forward.13} parent=1 // pred_region
      _
    $region109: #{moco_forward.13} parent=1 // pred_fallthru
      _
    // Predicated region
    $region110: #{moco_forward.13} parent=1 // pred_check
      _
    $region111: #{moco_forward.13} parent=1 // pred_check_branch
      %530 = sbr.rel (0) target = $region113
    $region112: #{moco_forward.13} parent=1 // pred_region
      _
    $region113: #{moco_forward.13} parent=1 // pred_fallthru
      _
    // Predicated region
    $region114: #{moco_forward.13} parent=1 // pred_check
      _
    $region115: #{moco_forward.13} parent=1 // pred_check_branch
      %532 = sbr.rel (0) target = $region117
    $region116: #{moco_forward.13} parent=1 // pred_region
      _
    $region117: #{moco_forward.13} parent=1 // pred_fallthru
      _
    // Predicated region
    $region118: #{moco_forward.13} parent=1 // pred_check
      _
    $region119: #{moco_forward.13} parent=1 // pred_check_branch
      %534 = sbr.rel (0) target = $region121
    $region120: #{moco_forward.13} parent=1 // pred_region
      _
    $region121: #{moco_forward.13} parent=1 // pred_fallthru
      _
    // Predicated region
    $region122: #{moco_forward.13} parent=1 // pred_check
      _
    $region123: #{moco_forward.13} parent=1 // pred_check_branch
      %536 = sbr.rel (0) target = $region125
    $region124: #{moco_forward.13} parent=1 // pred_region
      _
    $region125: #{moco_forward.13} parent=1 // pred_fallthru
      _
    %537 = vsyncpa [#allocation3], 1
    %538 = vsyncpa [#allocation5], 1

// kernel: moco_forward.17
$region0: #{moco_forward.17}
  #allocation0 [shape = 'u32[]', space=smem, size = 0x4, offset = 0x4, fixed_abs, tag = 'smem constant byte address 0x4 - core index']
  #allocation1 [shape = 'u32[72,128]{1,0:T(1,128)}', space=vmem, size = 0x9000, scoped, tag = 'internal scratch']
  %s0 = inlined_call_operand.vmem [shape: f32[2,3,256], index: 0, kind: input, shape index: {}]
  %s1 = inlined_call_operand.vmem [shape: f32[3,256], index: 1, kind: input, shape index: {}]
  %s2 = inlined_call_operand.hbm [shape: f32[256,128], index: 2, kind: input, shape index: {}]
  %s3 = inlined_call_operand.vmem [shape: f32[1,128], index: 3, kind: input, shape index: {}]
  %s4 = inlined_call_operand.hbm [shape: f32[128,128], index: 4, kind: input, shape index: {}]
  %s5 = inlined_call_operand.vmem [shape: f32[1,128], index: 5, kind: input, shape index: {}]
  %s6 = inlined_call_operand.hbm [shape: f32[128,128], index: 6, kind: input, shape index: {}]
  %s7 = inlined_call_operand.vmem [shape: f32[1,128], index: 7, kind: input, shape index: {}]
  %s8 = inlined_call_operand.vmem [shape: f32[2,128], index: 8, kind: output, shape index: {}]
  %s9 = sld [smem:[#allocation0]]
  $region54: #{moco_forward.17} parent=0
    _
  %s11 = ssub.s32 1, %s9
  %s12 = scalar_select 0, %s11, %s9
  $region1: #{moco_forward.17} parent=0
    #allocation2 [shape = 'u8[131072]{0}', space=vmem, size = 0x20000, scoped, tag = 'input window, operand 2, single buffered']
    #allocation3 [shape = 's32[1]{0}', space=sflag, size = 0x4, scoped, tag = 'scoped memory for moco_forward.17']
    #allocation4 [shape = 'u8[65536]{0}', space=vmem, size = 0x10000, scoped, tag = 'input window, operand 4, single buffered']
    #allocation5 [shape = 's32[1]{0}', space=sflag, size = 0x4, scoped, tag = 'scoped memory for moco_forward.17']
    #allocation6 [shape = 'u8[65536]{0}', space=vmem, size = 0x10000, scoped, tag = 'input window, operand 6, single buffered']
    %13 = vsyncpa [#allocation3], 0
    %14 = vsyncpa [#allocation5], 0
    // Predicated region
    $region2: #{moco_forward.17} parent=1 // pred_check
      _
    $region3: #{moco_forward.17} parent=1 // pred_check_branch
      %16 = sbr.rel (0) target = $region5
    $region4: #{moco_forward.17} parent=1 // pred_region
      _
    $region5: #{moco_forward.17} parent=1 // pred_fallthru
      _
    // Predicated region
    $region6: #{moco_forward.17} parent=1 // pred_check
      _
    $region7: #{moco_forward.17} parent=1 // pred_check_branch
      %18 = sbr.rel (0) target = $region9
    $region8: #{moco_forward.17} parent=1 // pred_region
      _
    $region9: #{moco_forward.17} parent=1 // pred_fallthru
      _
    // Predicated region
    $region10: #{moco_forward.17} parent=1 // pred_check
      _
    $region11: #{moco_forward.17} parent=1 // pred_check_branch
      %20 = sbr.rel (0) target = $region13
    $region12: #{moco_forward.17} parent=1 // pred_region
      %22 = vsyncadd [#allocation3], 0
      %s23 = sshll.u32 %s2, 4
      %s24 = int_to_ptr.hbm [resolvable:$true] %s23
      %s25 = sshll.u32 [#allocation2], 4
      %s26 = int_to_ptr.vmem [resolvable:$true] %s25
      %31 = dma.hbm_to_vmem [thread:$0]  %s24, 4096, %s26, [#allocation3], 128, 128, 8
    $region13: #{moco_forward.17} parent=1 // pred_fallthru
      _
    // Predicated region
    $region14: #{moco_forward.17} parent=1 // pred_check
      _
    $region15: #{moco_forward.17} parent=1 // pred_check_branch
      %33 = sbr.rel (0) target = $region17
    $region16: #{moco_forward.17} parent=1 // pred_region
      _
    $region17: #{moco_forward.17} parent=1 // pred_fallthru
      _
    // Predicated region
    $region18: #{moco_forward.17} parent=1 // pred_check
      _
    $region19: #{moco_forward.17} parent=1 // pred_check_branch
      %35 = sbr.rel (0) target = $region21
    $region20: #{moco_forward.17} parent=1 // pred_region
      %37 = vsyncadd [#allocation5], 0
      %s38 = sshll.u32 %s4, 4
      %s39 = int_to_ptr.hbm [resolvable:$true] %s38
      %s40 = sshll.u32 [#allocation4], 4
      %s41 = int_to_ptr.vmem [resolvable:$true] %s40
      %46 = dma.hbm_to_vmem [thread:$0]  %s39, 2048, %s41, [#allocation5], 128, 128, 8
    $region21: #{moco_forward.17} parent=1 // pred_fallthru
      _
    // Predicated region
    $region22: #{moco_forward.17} parent=1 // pred_check
      _
    $region23: #{moco_forward.17} parent=1 // pred_check_branch
      %48 = sbr.rel (0) target = $region25
    $region24: #{moco_forward.17} parent=1 // pred_region
      _
    $region25: #{moco_forward.17} parent=1 // pred_fallthru
      _
    // Predicated region
    $region26: #{moco_forward.17} parent=1 // pred_check
      _
    $region27: #{moco_forward.17} parent=1 // pred_check_branch
      %50 = sbr.rel (0) target = $region29
    $region28: #{moco_forward.17} parent=1 // pred_region
      %52 = vsyncadd [#allocation5], 0
      %s53 = sshll.u32 %s6, 4
      %s54 = int_to_ptr.hbm [resolvable:$true] %s53
      %s55 = sshll.u32 [#allocation6], 4
      %s56 = int_to_ptr.vmem [resolvable:$true] %s55
      %61 = dma.hbm_to_vmem [thread:$0]  %s54, 2048, %s56, [#allocation5], 128, 128, 8
    $region29: #{moco_forward.17} parent=1 // pred_fallthru
      _
    // Predicated region
    $region30: #{moco_forward.17} parent=1 // pred_check
      _
    $region31: #{moco_forward.17} parent=1 // pred_check_branch
      %63 = sbr.rel (0) target = $region33
    $region32: #{moco_forward.17} parent=1 // pred_region
      _
    $region33: #{moco_forward.17} parent=1 // pred_fallthru
      _
    // Predicated region
    $region34: #{moco_forward.17} parent=1 // pred_check
      _
    $region35: #{moco_forward.17} parent=1 // pred_check_branch
      %65 = sbr.rel (0) target = $region37
    $region36: #{moco_forward.17} parent=1 // pred_region
      %67 = dma.done [#allocation3], 4096
    $region37: #{moco_forward.17} parent=1 // pred_fallthru
      _
    // Predicated region
    $region38: #{moco_forward.17} parent=1 // pred_check
      _
    $region39: #{moco_forward.17} parent=1 // pred_check_branch
      %69 = sbr.rel (0) target = $region41
    $region40: #{moco_forward.17} parent=1 // pred_region
      %71 = dma.done [#allocation5], 2048
    $region41: #{moco_forward.17} parent=1 // pred_fallthru
      _
    // Predicated region
    $region42: #{moco_forward.17} parent=1 // pred_check
      _
    $region43: #{moco_forward.17} parent=1 // pred_check_branch
      %73 = sbr.rel (0) target = $region45
    $region44: #{moco_forward.17} parent=1 // pred_region
      %75 = dma.done [#allocation5], 2048
    $region45: #{moco_forward.17} parent=1 // pred_fallthru
      _
    %v76 = vld [vmem:[%s0] sm:$0x77]
    %v77 = vld [vmem:[%s0 + $0x8] sm:$0x77]
    %80 = vst [vmem:[#allocation1] ss:$2 sm:$0xff] %v76
    %v81 = vld.sshfl [vmem:[#allocation1] sm:$0xff pattern:$0x75316420]
    %v82 = vld.sshfl [vmem:[#allocation1 + $0x8] sm:$0xff pattern:$0x75316420]
    %s83 = scalar_lea.vmem [#allocation1], 16
    %84 = vst [vmem:[%s83] ss:$2 sm:$0xff] %v77
    %v85 = vld.sshfl [vmem:[#allocation1 + $0x10] sm:$0xff pattern:$0x75316420]
    %v86 = vld.sshfl [vmem:[#allocation1 + $0x18] sm:$0xff pattern:$0x75316420]
    %vm91 = vcmask 1042432
    %v92 = vsel %vm91, %v81, 0.0
    %v93 = vsel %vm91, %v82, 0.0
    %v94 = vadd.f32 %v92, %v93
    %95 = vadd.xlane.f32.xlu0 %v94
    %v96 = vpop.xlane.xlu0 %95
    %v97 = vsel %vm91, %v85, 0.0
    %v98 = vsel %vm91, %v86, 0.0
    %v99 = vadd.f32 %v97, %v98
    %100 = vadd.xlane.f32.xlu0 %v99
    %v101 = vpop.xlane.xlu0 %100
    %v102 = vmul.f32 %v96, 0.00390625
    %v103 = vmul.f32 %v101, 0.00390625
    %v104 = vld [vmem:[%s1] sm:$0x77]
    %v105 = vperm.slane %v102, 0
    %v106 = vperm.slane %v103, 0
    %v108 = vperm.slane %v104, 0
    %v109 = vperm.slane %v104, 4
    %v112 = vperm.slane %v108, 0
    %v113 = vperm.slane %v109, 0
    %v116 = vlaneseq
    %v117 = vshrl.u32 %v116, 7
    %119 = vset.pattern.permute.xlu0 %v117
    %120 = vperm.xlu0 %119, %v112
    %v121 = vpop.permute.xlu0 %120
    %v122 = vlaneseq
    %v123 = vshrl.u32 %v122, 7
    %v124 = vadd.s32 %v123, 8
    %125 = vset.pattern.permute.xlu0 %v124
    %126 = vperm.xlu0 %125, %v112
    %v127 = vpop.permute.xlu0 %126
    %v128 = vlaneseq
    %v129 = vshrl.u32 %v128, 7
    %v130 = vadd.s32 %v129, 16
    %131 = vset.pattern.permute.xlu0 %v130
    %132 = vperm.xlu0 %131, %v112
    %v133 = vpop.permute.xlu0 %132
    %v134 = vlaneseq
    %v135 = vshrl.u32 %v134, 7
    %v136 = vadd.s32 %v135, 24
    %137 = vset.pattern.permute.xlu0 %v136
    %138 = vperm.xlu0 %137, %v112
    %v139 = vpop.permute.xlu0 %138
    %v140 = vlaneseq
    %v141 = vshrl.u32 %v140, 7
    %v142 = vadd.s32 %v141, 32
    %143 = vset.pattern.permute.xlu0 %v142
    %144 = vperm.xlu0 %143, %v112
    %v145 = vpop.permute.xlu0 %144
    %v146 = vlaneseq
    %v147 = vshrl.u32 %v146, 7
    %v148 = vadd.s32 %v147, 40
    %149 = vset.pattern.permute.xlu0 %v148
    %150 = vperm.xlu0 %149, %v112
    %v151 = vpop.permute.xlu0 %150
    %v152 = vlaneseq
    %v153 = vshrl.u32 %v152, 7
    %v154 = vadd.s32 %v153, 48
    %155 = vset.pattern.permute.xlu0 %v154
    %156 = vperm.xlu0 %155, %v112
    %v157 = vpop.permute.xlu0 %156
    %v158 = vlaneseq
    %v159 = vshrl.u32 %v158, 7
    %v160 = vadd.s32 %v159, 56
    %161 = vset.pattern.permute.xlu0 %v160
    %162 = vperm.xlu0 %161, %v112
    %v163 = vpop.permute.xlu0 %162
    %v164 = vlaneseq
    %v165 = vshrl.u32 %v164, 7
    %v166 = vadd.s32 %v165, 64
    %167 = vset.pattern.permute.xlu0 %v166
    %168 = vperm.xlu0 %167, %v112
    %v169 = vpop.permute.xlu0 %168
    %v170 = vlaneseq
    %v171 = vshrl.u32 %v170, 7
    %v172 = vadd.s32 %v171, 72
    %173 = vset.pattern.permute.xlu0 %v172
    %174 = vperm.xlu0 %173, %v112
    %v175 = vpop.permute.xlu0 %174
    %v176 = vlaneseq
    %v177 = vshrl.u32 %v176, 7
    %v178 = vadd.s32 %v177, 80
    %179 = vset.pattern.permute.xlu0 %v178
    %180 = vperm.xlu0 %179, %v112
    %v181 = vpop.permute.xlu0 %180
    %v182 = vlaneseq
    %v183 = vshrl.u32 %v182, 7
    %v184 = vadd.s32 %v183, 88
    %185 = vset.pattern.permute.xlu0 %v184
    %186 = vperm.xlu0 %185, %v112
    %v187 = vpop.permute.xlu0 %186
    %v188 = vlaneseq
    %v189 = vshrl.u32 %v188, 7
    %v190 = vadd.s32 %v189, 96
    %191 = vset.pattern.permute.xlu0 %v190
    %192 = vperm.xlu0 %191, %v112
    %v193 = vpop.permute.xlu0 %192
    %v194 = vlaneseq
    %v195 = vshrl.u32 %v194, 7
    %v196 = vadd.s32 %v195, 104
    %197 = vset.pattern.permute.xlu0 %v196
    %198 = vperm.xlu0 %197, %v112
    %v199 = vpop.permute.xlu0 %198
    %v200 = vlaneseq
    %v201 = vshrl.u32 %v200, 7
    %v202 = vadd.s32 %v201, 112
    %203 = vset.pattern.permute.xlu0 %v202
    %204 = vperm.xlu0 %203, %v112
    %v205 = vpop.permute.xlu0 %204
    %v206 = vlaneseq
    %v207 = vshrl.u32 %v206, 7
    %v208 = vadd.s32 %v207, 120
    %209 = vset.pattern.permute.xlu0 %v208
    %210 = vperm.xlu0 %209, %v112
    %v211 = vpop.permute.xlu0 %210
    %v212 = vlaneseq
    %v213 = vshrl.u32 %v212, 7
    %215 = vset.pattern.permute.xlu0 %v213
    %216 = vperm.xlu0 %215, %v113
    %v217 = vpop.permute.xlu0 %216
    %v218 = vlaneseq
    %v219 = vshrl.u32 %v218, 7
    %v220 = vadd.s32 %v219, 8
    %221 = vset.pattern.permute.xlu0 %v220
    %222 = vperm.xlu0 %221, %v113
    %v223 = vpop.permute.xlu0 %222
    %v224 = vlaneseq
    %v225 = vshrl.u32 %v224, 7
    %v226 = vadd.s32 %v225, 16
    %227 = vset.pattern.permute.xlu0 %v226
    %228 = vperm.xlu0 %227, %v113
    %v229 = vpop.permute.xlu0 %228
    %v230 = vlaneseq
    %v231 = vshrl.u32 %v230, 7
    %v232 = vadd.s32 %v231, 24
    %233 = vset.pattern.permute.xlu0 %v232
    %234 = vperm.xlu0 %233, %v113
    %v235 = vpop.permute.xlu0 %234
    %v236 = vlaneseq
    %v237 = vshrl.u32 %v236, 7
    %v238 = vadd.s32 %v237, 32
    %239 = vset.pattern.permute.xlu0 %v238
    %240 = vperm.xlu0 %239, %v113
    %v241 = vpop.permute.xlu0 %240
    %v242 = vlaneseq
    %v243 = vshrl.u32 %v242, 7
    %v244 = vadd.s32 %v243, 40
    %245 = vset.pattern.permute.xlu0 %v244
    %246 = vperm.xlu0 %245, %v113
    %v247 = vpop.permute.xlu0 %246
    %v248 = vlaneseq
    %v249 = vshrl.u32 %v248, 7
    %v250 = vadd.s32 %v249, 48
    %251 = vset.pattern.permute.xlu0 %v250
    %252 = vperm.xlu0 %251, %v113
    %v253 = vpop.permute.xlu0 %252
    %v254 = vlaneseq
    %v255 = vshrl.u32 %v254, 7
    %v256 = vadd.s32 %v255, 56
    %257 = vset.pattern.permute.xlu0 %v256
    %258 = vperm.xlu0 %257, %v113
    %v259 = vpop.permute.xlu0 %258
    %v260 = vlaneseq
    %v261 = vshrl.u32 %v260, 7
    %v262 = vadd.s32 %v261, 64
    %263 = vset.pattern.permute.xlu0 %v262
    %264 = vperm.xlu0 %263, %v113
    %v265 = vpop.permute.xlu0 %264
    %v266 = vlaneseq
    %v267 = vshrl.u32 %v266, 7
    %v268 = vadd.s32 %v267, 72
    %269 = vset.pattern.permute.xlu0 %v268
    %270 = vperm.xlu0 %269, %v113
    %v271 = vpop.permute.xlu0 %270
    %v272 = vlaneseq
    %v273 = vshrl.u32 %v272, 7
    %v274 = vadd.s32 %v273, 80
    %275 = vset.pattern.permute.xlu0 %v274
    %276 = vperm.xlu0 %275, %v113
    %v277 = vpop.permute.xlu0 %276
    %v278 = vlaneseq
    %v279 = vshrl.u32 %v278, 7
    %v280 = vadd.s32 %v279, 88
    %281 = vset.pattern.permute.xlu0 %v280
    %282 = vperm.xlu0 %281, %v113
    %v283 = vpop.permute.xlu0 %282
    %v284 = vlaneseq
    %v285 = vshrl.u32 %v284, 7
    %v286 = vadd.s32 %v285, 96
    %287 = vset.pattern.permute.xlu0 %v286
    %288 = vperm.xlu0 %287, %v113
    %v289 = vpop.permute.xlu0 %288
    %v290 = vlaneseq
    %v291 = vshrl.u32 %v290, 7
    %v292 = vadd.s32 %v291, 104
    %293 = vset.pattern.permute.xlu0 %v292
    %294 = vperm.xlu0 %293, %v113
    %v295 = vpop.permute.xlu0 %294
    %v296 = vlaneseq
    %v297 = vshrl.u32 %v296, 7
    %v298 = vadd.s32 %v297, 112
    %299 = vset.pattern.permute.xlu0 %v298
    %300 = vperm.xlu0 %299, %v113
    %v301 = vpop.permute.xlu0 %300
    %v302 = vlaneseq
    %v303 = vshrl.u32 %v302, 7
    %v304 = vadd.s32 %v303, 120
    %305 = vset.pattern.permute.xlu0 %v304
    %306 = vperm.xlu0 %305, %v113
    %v307 = vpop.permute.xlu0 %306
    %v340 = vmul.f32 %v105, %v121
    %v341 = vmul.f32 %v105, %v127
    %v342 = vmul.f32 %v105, %v133
    %v343 = vmul.f32 %v105, %v139
    %v344 = vmul.f32 %v105, %v145
    %v345 = vmul.f32 %v105, %v151
    %v346 = vmul.f32 %v105, %v157
    %v347 = vmul.f32 %v105, %v163
    %v348 = vmul.f32 %v105, %v169
    %v349 = vmul.f32 %v105, %v175
    %v350 = vmul.f32 %v105, %v181
    %v351 = vmul.f32 %v105, %v187
    %v352 = vmul.f32 %v105, %v193
    %v353 = vmul.f32 %v105, %v199
    %v354 = vmul.f32 %v105, %v205
    %v355 = vmul.f32 %v105, %v211
    %v356 = vmul.f32 %v105, %v217
    %v357 = vmul.f32 %v105, %v223
    %v358 = vmul.f32 %v105, %v229
    %v359 = vmul.f32 %v105, %v235
    %v360 = vmul.f32 %v105, %v241
    %v361 = vmul.f32 %v105, %v247
    %v362 = vmul.f32 %v105, %v253
    %v363 = vmul.f32 %v105, %v259
    %v364 = vmul.f32 %v105, %v265
    %v365 = vmul.f32 %v105, %v271
    %v366 = vmul.f32 %v105, %v277
    %v367 = vmul.f32 %v105, %v283
    %v368 = vmul.f32 %v105, %v289
    %v369 = vmul.f32 %v105, %v295
    %v370 = vmul.f32 %v105, %v301
    %v371 = vmul.f32 %v105, %v307
    %v372 = vmul.f32 %v106, %v121
    %v373 = vmul.f32 %v106, %v127
    %v374 = vmul.f32 %v106, %v133
    %v375 = vmul.f32 %v106, %v139
    %v376 = vmul.f32 %v106, %v145
    %v377 = vmul.f32 %v106, %v151
    %v378 = vmul.f32 %v106, %v157
    %v379 = vmul.f32 %v106, %v163
    %v380 = vmul.f32 %v106, %v169
    %v381 = vmul.f32 %v106, %v175
    %v382 = vmul.f32 %v106, %v181
    %v383 = vmul.f32 %v106, %v187
    %v384 = vmul.f32 %v106, %v193
    %v385 = vmul.f32 %v106, %v199
    %v386 = vmul.f32 %v106, %v205
    %v387 = vmul.f32 %v106, %v211
    %v388 = vmul.f32 %v106, %v217
    %v389 = vmul.f32 %v106, %v223
    %v390 = vmul.f32 %v106, %v229
    %v391 = vmul.f32 %v106, %v235
    %v392 = vmul.f32 %v106, %v241
    %v393 = vmul.f32 %v106, %v247
    %v394 = vmul.f32 %v106, %v253
    %v395 = vmul.f32 %v106, %v259
    %v396 = vmul.f32 %v106, %v265
    %v397 = vmul.f32 %v106, %v271
    %v398 = vmul.f32 %v106, %v277
    %v399 = vmul.f32 %v106, %v283
    %v400 = vmul.f32 %v106, %v289
    %v401 = vmul.f32 %v106, %v295
    %v402 = vmul.f32 %v106, %v301
    %v403 = vmul.f32 %v106, %v307
    %v404 = vperm.slane %v102, 1
    %v405 = vperm.slane %v103, 1
    %v406 = vperm.slane %v104, 1
    %v407 = vperm.slane %v104, 5
    %v410 = vperm.slane %v406, 1
    %v411 = vperm.slane %v407, 1
    %v414 = vlaneseq
    %v415 = vshrl.u32 %v414, 7
    %417 = vset.pattern.permute.xlu0 %v415
    %418 = vperm.xlu0 %417, %v410
    %v419 = vpop.permute.xlu0 %418
    %v420 = vlaneseq
    %v421 = vshrl.u32 %v420, 7
    %v422 = vadd.s32 %v421, 8
    %423 = vset.pattern.permute.xlu0 %v422
    %424 = vperm.xlu0 %423, %v410
    %v425 = vpop.permute.xlu0 %424
    %v426 = vlaneseq
    %v427 = vshrl.u32 %v426, 7
    %v428 = vadd.s32 %v427, 16
    %429 = vset.pattern.permute.xlu0 %v428
    %430 = vperm.xlu0 %429, %v410
    %v431 = vpop.permute.xlu0 %430
    %v432 = vlaneseq
    %v433 = vshrl.u32 %v432, 7
    %v434 = vadd.s32 %v433, 24
    %435 = vset.pattern.permute.xlu0 %v434
    %436 = vperm.xlu0 %435, %v410
    %v437 = vpop.permute.xlu0 %436
    %v438 = vlaneseq
    %v439 = vshrl.u32 %v438, 7
    %v440 = vadd.s32 %v439, 32
    %441 = vset.pattern.permute.xlu0 %v440
    %442 = vperm.xlu0 %441, %v410
    %v443 = vpop.permute.xlu0 %442
    %v444 = vlaneseq
    %v445 = vshrl.u32 %v444, 7
    %v446 = vadd.s32 %v445, 40
    %447 = vset.pattern.permute.xlu0 %v446
    %448 = vperm.xlu0 %447, %v410
    %v449 = vpop.permute.xlu0 %448
    %v450 = vlaneseq
    %v451 = vshrl.u32 %v450, 7
    %v452 = vadd.s32 %v451, 48
    %453 = vset.pattern.permute.xlu0 %v452
    %454 = vperm.xlu0 %453, %v410
    %v455 = vpop.permute.xlu0 %454
    %v456 = vlaneseq
    %v457 = vshrl.u32 %v456, 7
    %v458 = vadd.s32 %v457, 56
    %459 = vset.pattern.permute.xlu0 %v458
    %460 = vperm.xlu0 %459, %v410
    %v461 = vpop.permute.xlu0 %460
    %v462 = vlaneseq
    %v463 = vshrl.u32 %v462, 7
    %v464 = vadd.s32 %v463, 64
    %465 = vset.pattern.permute.xlu0 %v464
    %466 = vperm.xlu0 %465, %v410
    %v467 = vpop.permute.xlu0 %466
    %v468 = vlaneseq
    %v469 = vshrl.u32 %v468, 7
    %v470 = vadd.s32 %v469, 72
    %471 = vset.pattern.permute.xlu0 %v470
    %472 = vperm.xlu0 %471, %v410
    %v473 = vpop.permute.xlu0 %472
    %v474 = vlaneseq
    %v475 = vshrl.u32 %v474, 7
    %v476 = vadd.s32 %v475, 80
    %477 = vset.pattern.permute.xlu0 %v476
    %478 = vperm.xlu0 %477, %v410
    %v479 = vpop.permute.xlu0 %478
    %v480 = vlaneseq
    %v481 = vshrl.u32 %v480, 7
    %v482 = vadd.s32 %v481, 88
    %483 = vset.pattern.permute.xlu0 %v482
    %484 = vperm.xlu0 %483, %v410
    %v485 = vpop.permute.xlu0 %484
    %v486 = vlaneseq
    %v487 = vshrl.u32 %v486, 7
    %v488 = vadd.s32 %v487, 96
    %489 = vset.pattern.permute.xlu0 %v488
    %490 = vperm.xlu0 %489, %v410
    %v491 = vpop.permute.xlu0 %490
    %v492 = vlaneseq
    %v493 = vshrl.u32 %v492, 7
    %v494 = vadd.s32 %v493, 104
    %495 = vset.pattern.permute.xlu0 %v494
    %496 = vperm.xlu0 %495, %v410
    %v497 = vpop.permute.xlu0 %496
    %v498 = vlaneseq
    %v499 = vshrl.u32 %v498, 7
    %v500 = vadd.s32 %v499, 112
    %501 = vset.pattern.permute.xlu0 %v500
    %502 = vperm.xlu0 %501, %v410
    %v503 = vpop.permute.xlu0 %502
    %v504 = vlaneseq
    %v505 = vshrl.u32 %v504, 7
    %v506 = vadd.s32 %v505, 120
    %507 = vset.pattern.permute.xlu0 %v506
    %508 = vperm.xlu0 %507, %v410
    %v509 = vpop.permute.xlu0 %508
    %v510 = vlaneseq
    %v511 = vshrl.u32 %v510, 7
    %513 = vset.pattern.permute.xlu0 %v511
    %514 = vperm.xlu0 %513, %v411
    %v515 = vpop.permute.xlu0 %514
    %v516 = vlaneseq
    %v517 = vshrl.u32 %v516, 7
    %v518 = vadd.s32 %v517, 8
    %519 = vset.pattern.permute.xlu0 %v518
    %520 = vperm.xlu0 %519, %v411
    %v521 = vpop.permute.xlu0 %520
    %v522 = vlaneseq
    %v523 = vshrl.u32 %v522, 7
    %v524 = vadd.s32 %v523, 16
    %525 = vset.pattern.permute.xlu0 %v524
    %526 = vperm.xlu0 %525, %v411
    %v527 = vpop.permute.xlu0 %526
    %v528 = vlaneseq
    %v529 = vshrl.u32 %v528, 7
    %v530 = vadd.s32 %v529, 24
    %531 = vset.pattern.permute.xlu0 %v530
    %532 = vperm.xlu0 %531, %v411
    %v533 = vpop.permute.xlu0 %532
    %v534 = vlaneseq
    %v535 = vshrl.u32 %v534, 7
    %v536 = vadd.s32 %v535, 32
    %537 = vset.pattern.permute.xlu0 %v536
    %538 = vperm.xlu0 %537, %v411
    %v539 = vpop.permute.xlu0 %538
    %v540 = vlaneseq
    %v541 = vshrl.u32 %v540, 7
    %v542 = vadd.s32 %v541, 40
    %543 = vset.pattern.permute.xlu0 %v542
    %544 = vperm.xlu0 %543, %v411
    %v545 = vpop.permute.xlu0 %544
    %v546 = vlaneseq
    %v547 = vshrl.u32 %v546, 7
    %v548 = vadd.s32 %v547, 48
    %549 = vset.pattern.permute.xlu0 %v548
    %550 = vperm.xlu0 %549, %v411
    %v551 = vpop.permute.xlu0 %550
    %v552 = vlaneseq
    %v553 = vshrl.u32 %v552, 7
    %v554 = vadd.s32 %v553, 56
    %555 = vset.pattern.permute.xlu0 %v554
    %556 = vperm.xlu0 %555, %v411
    %v557 = vpop.permute.xlu0 %556
    %v558 = vlaneseq
    %v559 = vshrl.u32 %v558, 7
    %v560 = vadd.s32 %v559, 64
    %561 = vset.pattern.permute.xlu0 %v560
    %562 = vperm.xlu0 %561, %v411
    %v563 = vpop.permute.xlu0 %562
    %v564 = vlaneseq
    %v565 = vshrl.u32 %v564, 7
    %v566 = vadd.s32 %v565, 72
    %567 = vset.pattern.permute.xlu0 %v566
    %568 = vperm.xlu0 %567, %v411
    %v569 = vpop.permute.xlu0 %568
    %v570 = vlaneseq
    %v571 = vshrl.u32 %v570, 7
    %v572 = vadd.s32 %v571, 80
    %573 = vset.pattern.permute.xlu0 %v572
    %574 = vperm.xlu0 %573, %v411
    %v575 = vpop.permute.xlu0 %574
    %v576 = vlaneseq
    %v577 = vshrl.u32 %v576, 7
    %v578 = vadd.s32 %v577, 88
    %579 = vset.pattern.permute.xlu0 %v578
    %580 = vperm.xlu0 %579, %v411
    %v581 = vpop.permute.xlu0 %580
    %v582 = vlaneseq
    %v583 = vshrl.u32 %v582, 7
    %v584 = vadd.s32 %v583, 96
    %585 = vset.pattern.permute.xlu0 %v584
    %586 = vperm.xlu0 %585, %v411
    %v587 = vpop.permute.xlu0 %586
    %v588 = vlaneseq
    %v589 = vshrl.u32 %v588, 7
    %v590 = vadd.s32 %v589, 104
    %591 = vset.pattern.permute.xlu0 %v590
    %592 = vperm.xlu0 %591, %v411
    %v593 = vpop.permute.xlu0 %592
    %v594 = vlaneseq
    %v595 = vshrl.u32 %v594, 7
    %v596 = vadd.s32 %v595, 112
    %597 = vset.pattern.permute.xlu0 %v596
    %598 = vperm.xlu0 %597, %v411
    %v599 = vpop.permute.xlu0 %598
    %v600 = vlaneseq
    %v601 = vshrl.u32 %v600, 7
    %v602 = vadd.s32 %v601, 120
    %603 = vset.pattern.permute.xlu0 %v602
    %604 = vperm.xlu0 %603, %v411
    %v605 = vpop.permute.xlu0 %604
    %v638 = vmul.f32 %v404, %v419
    %v639 = vmul.f32 %v404, %v425
    %v640 = vmul.f32 %v404, %v431
    %v641 = vmul.f32 %v404, %v437
    %v642 = vmul.f32 %v404, %v443
    %v643 = vmul.f32 %v404, %v449
    %v644 = vmul.f32 %v404, %v455
    %v645 = vmul.f32 %v404, %v461
    %v646 = vmul.f32 %v404, %v467
    %v647 = vmul.f32 %v404, %v473
    %v648 = vmul.f32 %v404, %v479
    %v649 = vmul.f32 %v404, %v485
    %v650 = vmul.f32 %v404, %v491
    %v651 = vmul.f32 %v404, %v497
    %v652 = vmul.f32 %v404, %v503
    %v653 = vmul.f32 %v404, %v509
    %v654 = vmul.f32 %v404, %v515
    %v655 = vmul.f32 %v404, %v521
    %v656 = vmul.f32 %v404, %v527
    %v657 = vmul.f32 %v404, %v533
    %v658 = vmul.f32 %v404, %v539
    %v659 = vmul.f32 %v404, %v545
    %v660 = vmul.f32 %v404, %v551
    %v661 = vmul.f32 %v404, %v557
    %v662 = vmul.f32 %v404, %v563
    %v663 = vmul.f32 %v404, %v569
    %v664 = vmul.f32 %v404, %v575
    %v665 = vmul.f32 %v404, %v581
    %v666 = vmul.f32 %v404, %v587
    %v667 = vmul.f32 %v404, %v593
    %v668 = vmul.f32 %v404, %v599
    %v669 = vmul.f32 %v404, %v605
    %v670 = vmul.f32 %v405, %v419
    %v671 = vmul.f32 %v405, %v425
    %v672 = vmul.f32 %v405, %v431
    %v673 = vmul.f32 %v405, %v437
    %v674 = vmul.f32 %v405, %v443
    %v675 = vmul.f32 %v405, %v449
    %v676 = vmul.f32 %v405, %v455
    %v677 = vmul.f32 %v405, %v461
    %v678 = vmul.f32 %v405, %v467
    %v679 = vmul.f32 %v405, %v473
    %v680 = vmul.f32 %v405, %v479
    %v681 = vmul.f32 %v405, %v485
    %v682 = vmul.f32 %v405, %v491
    %v683 = vmul.f32 %v405, %v497
    %v684 = vmul.f32 %v405, %v503
    %v685 = vmul.f32 %v405, %v509
    %v686 = vmul.f32 %v405, %v515
    %v687 = vmul.f32 %v405, %v521
    %v688 = vmul.f32 %v405, %v527
    %v689 = vmul.f32 %v405, %v533
    %v690 = vmul.f32 %v405, %v539
    %v691 = vmul.f32 %v405, %v545
    %v692 = vmul.f32 %v405, %v551
    %v693 = vmul.f32 %v405, %v557
    %v694 = vmul.f32 %v405, %v563
    %v695 = vmul.f32 %v405, %v569
    %v696 = vmul.f32 %v405, %v575
    %v697 = vmul.f32 %v405, %v581
    %v698 = vmul.f32 %v405, %v587
    %v699 = vmul.f32 %v405, %v593
    %v700 = vmul.f32 %v405, %v599
    %v701 = vmul.f32 %v405, %v605
    %v702 = vadd.f32 %v340, %v638
    %v703 = vadd.f32 %v341, %v639
    %v704 = vadd.f32 %v342, %v640
    %v705 = vadd.f32 %v343, %v641
    %v706 = vadd.f32 %v344, %v642
    %v707 = vadd.f32 %v345, %v643
    %v708 = vadd.f32 %v346, %v644
    %v709 = vadd.f32 %v347, %v645
    %v710 = vadd.f32 %v348, %v646
    %v711 = vadd.f32 %v349, %v647
    %v712 = vadd.f32 %v350, %v648
    %v713 = vadd.f32 %v351, %v649
    %v714 = vadd.f32 %v352, %v650
    %v715 = vadd.f32 %v353, %v651
    %v716 = vadd.f32 %v354, %v652
    %v717 = vadd.f32 %v355, %v653
    %v718 = vadd.f32 %v356, %v654
    %v719 = vadd.f32 %v357, %v655
    %v720 = vadd.f32 %v358, %v656
    %v721 = vadd.f32 %v359, %v657
    %v722 = vadd.f32 %v360, %v658
    %v723 = vadd.f32 %v361, %v659
    %v724 = vadd.f32 %v362, %v660
    %v725 = vadd.f32 %v363, %v661
    %v726 = vadd.f32 %v364, %v662
    %v727 = vadd.f32 %v365, %v663
    %v728 = vadd.f32 %v366, %v664
    %v729 = vadd.f32 %v367, %v665
    %v730 = vadd.f32 %v368, %v666
    %v731 = vadd.f32 %v369, %v667
    %v732 = vadd.f32 %v370, %v668
    %v733 = vadd.f32 %v371, %v669
    %v734 = vadd.f32 %v372, %v670
    %v735 = vadd.f32 %v373, %v671
    %v736 = vadd.f32 %v374, %v672
    %v737 = vadd.f32 %v375, %v673
    %v738 = vadd.f32 %v376, %v674
    %v739 = vadd.f32 %v377, %v675
    %v740 = vadd.f32 %v378, %v676
    %v741 = vadd.f32 %v379, %v677
    %v742 = vadd.f32 %v380, %v678
    %v743 = vadd.f32 %v381, %v679
    %v744 = vadd.f32 %v382, %v680
    %v745 = vadd.f32 %v383, %v681
    %v746 = vadd.f32 %v384, %v682
    %v747 = vadd.f32 %v385, %v683
    %v748 = vadd.f32 %v386, %v684
    %v749 = vadd.f32 %v387, %v685
    %v750 = vadd.f32 %v388, %v686
    %v751 = vadd.f32 %v389, %v687
    %v752 = vadd.f32 %v390, %v688
    %v753 = vadd.f32 %v391, %v689
    %v754 = vadd.f32 %v392, %v690
    %v755 = vadd.f32 %v393, %v691
    %v756 = vadd.f32 %v394, %v692
    %v757 = vadd.f32 %v395, %v693
    %v758 = vadd.f32 %v396, %v694
    %v759 = vadd.f32 %v397, %v695
    %v760 = vadd.f32 %v398, %v696
    %v761 = vadd.f32 %v399, %v697
    %v762 = vadd.f32 %v400, %v698
    %v763 = vadd.f32 %v401, %v699
    %v764 = vadd.f32 %v402, %v700
    %v765 = vadd.f32 %v403, %v701
    %v766 = vperm.slane %v102, 2
    %v767 = vperm.slane %v103, 2
    %v768 = vperm.slane %v104, 2
    %v769 = vperm.slane %v104, 6
    %v772 = vperm.slane %v768, 2
    %v773 = vperm.slane %v769, 2
    %v776 = vlaneseq
    %v777 = vshrl.u32 %v776, 7
    %779 = vset.pattern.permute.xlu0 %v777
    %780 = vperm.xlu0 %779, %v772
    %v781 = vpop.permute.xlu0 %780
    %v782 = vlaneseq
    %v783 = vshrl.u32 %v782, 7
    %v784 = vadd.s32 %v783, 8
    %785 = vset.pattern.permute.xlu0 %v784
    %786 = vperm.xlu0 %785, %v772
    %v787 = vpop.permute.xlu0 %786
    %v788 = vlaneseq
    %v789 = vshrl.u32 %v788, 7
    %v790 = vadd.s32 %v789, 16
    %791 = vset.pattern.permute.xlu0 %v790
    %792 = vperm.xlu0 %791, %v772
    %v793 = vpop.permute.xlu0 %792
    %v794 = vlaneseq
    %v795 = vshrl.u32 %v794, 7
    %v796 = vadd.s32 %v795, 24
    %797 = vset.pattern.permute.xlu0 %v796
    %798 = vperm.xlu0 %797, %v772
    %v799 = vpop.permute.xlu0 %798
    %v800 = vlaneseq
    %v801 = vshrl.u32 %v800, 7
    %v802 = vadd.s32 %v801, 32
    %803 = vset.pattern.permute.xlu0 %v802
    %804 = vperm.xlu0 %803, %v772
    %v805 = vpop.permute.xlu0 %804
    %v806 = vlaneseq
    %v807 = vshrl.u32 %v806, 7
    %v808 = vadd.s32 %v807, 40
    %809 = vset.pattern.permute.xlu0 %v808
    %810 = vperm.xlu0 %809, %v772
    %v811 = vpop.permute.xlu0 %810
    %v812 = vlaneseq
    %v813 = vshrl.u32 %v812, 7
    %v814 = vadd.s32 %v813, 48
    %815 = vset.pattern.permute.xlu0 %v814
    %816 = vperm.xlu0 %815, %v772
    %v817 = vpop.permute.xlu0 %816
    %v818 = vlaneseq
    %v819 = vshrl.u32 %v818, 7
    %v820 = vadd.s32 %v819, 56
    %821 = vset.pattern.permute.xlu0 %v820
    %822 = vperm.xlu0 %821, %v772
    %v823 = vpop.permute.xlu0 %822
    %v824 = vlaneseq
    %v825 = vshrl.u32 %v824, 7
    %v826 = vadd.s32 %v825, 64
    %827 = vset.pattern.permute.xlu0 %v826
    %828 = vperm.xlu0 %827, %v772
    %v829 = vpop.permute.xlu0 %828
    %v830 = vlaneseq
    %v831 = vshrl.u32 %v830, 7
    %v832 = vadd.s32 %v831, 72
    %833 = vset.pattern.permute.xlu0 %v832
    %834 = vperm.xlu0 %833, %v772
    %v835 = vpop.permute.xlu0 %834
    %v836 = vlaneseq
    %v837 = vshrl.u32 %v836, 7
    %v838 = vadd.s32 %v837, 80
    %839 = vset.pattern.permute.xlu0 %v838
    %840 = vperm.xlu0 %839, %v772
    %v841 = vpop.permute.xlu0 %840
    %v842 = vlaneseq
    %v843 = vshrl.u32 %v842, 7
    %v844 = vadd.s32 %v843, 88
    %845 = vset.pattern.permute.xlu0 %v844
    %846 = vperm.xlu0 %845, %v772
    %v847 = vpop.permute.xlu0 %846
    %v848 = vlaneseq
    %v849 = vshrl.u32 %v848, 7
    %v850 = vadd.s32 %v849, 96
    %851 = vset.pattern.permute.xlu0 %v850
    %852 = vperm.xlu0 %851, %v772
    %v853 = vpop.permute.xlu0 %852
    %v854 = vlaneseq
    %v855 = vshrl.u32 %v854, 7
    %v856 = vadd.s32 %v855, 104
    %857 = vset.pattern.permute.xlu0 %v856
    %858 = vperm.xlu0 %857, %v772
    %v859 = vpop.permute.xlu0 %858
    %v860 = vlaneseq
    %v861 = vshrl.u32 %v860, 7
    %v862 = vadd.s32 %v861, 112
    %863 = vset.pattern.permute.xlu0 %v862
    %864 = vperm.xlu0 %863, %v772
    %v865 = vpop.permute.xlu0 %864
    %v866 = vlaneseq
    %v867 = vshrl.u32 %v866, 7
    %v868 = vadd.s32 %v867, 120
    %869 = vset.pattern.permute.xlu0 %v868
    %870 = vperm.xlu0 %869, %v772
    %v871 = vpop.permute.xlu0 %870
    %v872 = vlaneseq
    %v873 = vshrl.u32 %v872, 7
    %875 = vset.pattern.permute.xlu0 %v873
    %876 = vperm.xlu0 %875, %v773
    %v877 = vpop.permute.xlu0 %876
    %v878 = vlaneseq
    %v879 = vshrl.u32 %v878, 7
    %v880 = vadd.s32 %v879, 8
    %881 = vset.pattern.permute.xlu0 %v880
    %882 = vperm.xlu0 %881, %v773
    %v883 = vpop.permute.xlu0 %882
    %v884 = vlaneseq
    %v885 = vshrl.u32 %v884, 7
    %v886 = vadd.s32 %v885, 16
    %887 = vset.pattern.permute.xlu0 %v886
    %888 = vperm.xlu0 %887, %v773
    %v889 = vpop.permute.xlu0 %888
    %v890 = vlaneseq
    %v891 = vshrl.u32 %v890, 7
    %v892 = vadd.s32 %v891, 24
    %893 = vset.pattern.permute.xlu0 %v892
    %894 = vperm.xlu0 %893, %v773
    %v895 = vpop.permute.xlu0 %894
    %v896 = vlaneseq
    %v897 = vshrl.u32 %v896, 7
    %v898 = vadd.s32 %v897, 32
    %899 = vset.pattern.permute.xlu0 %v898
    %900 = vperm.xlu0 %899, %v773
    %v901 = vpop.permute.xlu0 %900
    %v902 = vlaneseq
    %v903 = vshrl.u32 %v902, 7
    %v904 = vadd.s32 %v903, 40
    %905 = vset.pattern.permute.xlu0 %v904
    %906 = vperm.xlu0 %905, %v773
    %v907 = vpop.permute.xlu0 %906
    %v908 = vlaneseq
    %v909 = vshrl.u32 %v908, 7
    %v910 = vadd.s32 %v909, 48
    %911 = vset.pattern.permute.xlu0 %v910
    %912 = vperm.xlu0 %911, %v773
    %v913 = vpop.permute.xlu0 %912
    %v914 = vlaneseq
    %v915 = vshrl.u32 %v914, 7
    %v916 = vadd.s32 %v915, 56
    %917 = vset.pattern.permute.xlu0 %v916
    %918 = vperm.xlu0 %917, %v773
    %v919 = vpop.permute.xlu0 %918
    %v920 = vlaneseq
    %v921 = vshrl.u32 %v920, 7
    %v922 = vadd.s32 %v921, 64
    %923 = vset.pattern.permute.xlu0 %v922
    %924 = vperm.xlu0 %923, %v773
    %v925 = vpop.permute.xlu0 %924
    %v926 = vlaneseq
    %v927 = vshrl.u32 %v926, 7
    %v928 = vadd.s32 %v927, 72
    %929 = vset.pattern.permute.xlu0 %v928
    %930 = vperm.xlu0 %929, %v773
    %v931 = vpop.permute.xlu0 %930
    %v932 = vlaneseq
    %v933 = vshrl.u32 %v932, 7
    %v934 = vadd.s32 %v933, 80
    %935 = vset.pattern.permute.xlu0 %v934
    %936 = vperm.xlu0 %935, %v773
    %v937 = vpop.permute.xlu0 %936
    %v938 = vlaneseq
    %v939 = vshrl.u32 %v938, 7
    %v940 = vadd.s32 %v939, 88
    %941 = vset.pattern.permute.xlu0 %v940
    %942 = vperm.xlu0 %941, %v773
    %v943 = vpop.permute.xlu0 %942
    %v944 = vlaneseq
    %v945 = vshrl.u32 %v944, 7
    %v946 = vadd.s32 %v945, 96
    %947 = vset.pattern.permute.xlu0 %v946
    %948 = vperm.xlu0 %947, %v773
    %v949 = vpop.permute.xlu0 %948
    %v950 = vlaneseq
    %v951 = vshrl.u32 %v950, 7
    %v952 = vadd.s32 %v951, 104
    %953 = vset.pattern.permute.xlu0 %v952
    %954 = vperm.xlu0 %953, %v773
    %v955 = vpop.permute.xlu0 %954
    %v956 = vlaneseq
    %v957 = vshrl.u32 %v956, 7
    %v958 = vadd.s32 %v957, 112
    %959 = vset.pattern.permute.xlu0 %v958
    %960 = vperm.xlu0 %959, %v773
    %v961 = vpop.permute.xlu0 %960
    %v962 = vlaneseq
    %v963 = vshrl.u32 %v962, 7
    %v964 = vadd.s32 %v963, 120
    %965 = vset.pattern.permute.xlu0 %v964
    %966 = vperm.xlu0 %965, %v773
    %v967 = vpop.permute.xlu0 %966
    %v1000 = vmul.f32 %v766, %v781
    %v1001 = vmul.f32 %v766, %v787
    %v1002 = vmul.f32 %v766, %v793
    %v1003 = vmul.f32 %v766, %v799
    %v1004 = vmul.f32 %v766, %v805
    %v1005 = vmul.f32 %v766, %v811
    %v1006 = vmul.f32 %v766, %v817
    %v1007 = vmul.f32 %v766, %v823
    %v1008 = vmul.f32 %v766, %v829
    %v1009 = vmul.f32 %v766, %v835
    %v1010 = vmul.f32 %v766, %v841
    %v1011 = vmul.f32 %v766, %v847
    %v1012 = vmul.f32 %v766, %v853
    %v1013 = vmul.f32 %v766, %v859
    %v1014 = vmul.f32 %v766, %v865
    %v1015 = vmul.f32 %v766, %v871
    %v1016 = vmul.f32 %v766, %v877
    %v1017 = vmul.f32 %v766, %v883
    %v1018 = vmul.f32 %v766, %v889
    %v1019 = vmul.f32 %v766, %v895
    %v1020 = vmul.f32 %v766, %v901
    %v1021 = vmul.f32 %v766, %v907
    %v1022 = vmul.f32 %v766, %v913
    %v1023 = vmul.f32 %v766, %v919
    %v1024 = vmul.f32 %v766, %v925
    %v1025 = vmul.f32 %v766, %v931
    %v1026 = vmul.f32 %v766, %v937
    %v1027 = vmul.f32 %v766, %v943
    %v1028 = vmul.f32 %v766, %v949
    %v1029 = vmul.f32 %v766, %v955
    %v1030 = vmul.f32 %v766, %v961
    %v1031 = vmul.f32 %v766, %v967
    %v1032 = vmul.f32 %v767, %v781
    %v1033 = vmul.f32 %v767, %v787
    %v1034 = vmul.f32 %v767, %v793
    %v1035 = vmul.f32 %v767, %v799
    %v1036 = vmul.f32 %v767, %v805
    %v1037 = vmul.f32 %v767, %v811
    %v1038 = vmul.f32 %v767, %v817
    %v1039 = vmul.f32 %v767, %v823
    %v1040 = vmul.f32 %v767, %v829
    %v1041 = vmul.f32 %v767, %v835
    %v1042 = vmul.f32 %v767, %v841
    %v1043 = vmul.f32 %v767, %v847
    %v1044 = vmul.f32 %v767, %v853
    %v1045 = vmul.f32 %v767, %v859
    %v1046 = vmul.f32 %v767, %v865
    %v1047 = vmul.f32 %v767, %v871
    %v1048 = vmul.f32 %v767, %v877
    %v1049 = vmul.f32 %v767, %v883
    %v1050 = vmul.f32 %v767, %v889
    %v1051 = vmul.f32 %v767, %v895
    %v1052 = vmul.f32 %v767, %v901
    %v1053 = vmul.f32 %v767, %v907
    %v1054 = vmul.f32 %v767, %v913
    %v1055 = vmul.f32 %v767, %v919
    %v1056 = vmul.f32 %v767, %v925
    %v1057 = vmul.f32 %v767, %v931
    %v1058 = vmul.f32 %v767, %v937
    %v1059 = vmul.f32 %v767, %v943
    %v1060 = vmul.f32 %v767, %v949
    %v1061 = vmul.f32 %v767, %v955
    %v1062 = vmul.f32 %v767, %v961
    %v1063 = vmul.f32 %v767, %v967
    %v1064 = vadd.f32 %v702, %v1000
    %v1065 = vadd.f32 %v703, %v1001
    %v1066 = vadd.f32 %v704, %v1002
    %v1067 = vadd.f32 %v705, %v1003
    %v1068 = vadd.f32 %v706, %v1004
    %v1069 = vadd.f32 %v707, %v1005
    %v1070 = vadd.f32 %v708, %v1006
    %v1071 = vadd.f32 %v709, %v1007
    %v1072 = vadd.f32 %v710, %v1008
    %v1073 = vadd.f32 %v711, %v1009
    %v1074 = vadd.f32 %v712, %v1010
    %v1075 = vadd.f32 %v713, %v1011
    %v1076 = vadd.f32 %v714, %v1012
    %v1077 = vadd.f32 %v715, %v1013
    %v1078 = vadd.f32 %v716, %v1014
    %v1079 = vadd.f32 %v717, %v1015
    %v1080 = vadd.f32 %v718, %v1016
    %v1081 = vadd.f32 %v719, %v1017
    %v1082 = vadd.f32 %v720, %v1018
    %v1083 = vadd.f32 %v721, %v1019
    %v1084 = vadd.f32 %v722, %v1020
    %v1085 = vadd.f32 %v723, %v1021
    %v1086 = vadd.f32 %v724, %v1022
    %v1087 = vadd.f32 %v725, %v1023
    %v1088 = vadd.f32 %v726, %v1024
    %v1089 = vadd.f32 %v727, %v1025
    %v1090 = vadd.f32 %v728, %v1026
    %v1091 = vadd.f32 %v729, %v1027
    %v1092 = vadd.f32 %v730, %v1028
    %v1093 = vadd.f32 %v731, %v1029
    %v1094 = vadd.f32 %v732, %v1030
    %v1095 = vadd.f32 %v733, %v1031
    %v1096 = vadd.f32 %v734, %v1032
    %v1097 = vadd.f32 %v735, %v1033
    %v1098 = vadd.f32 %v736, %v1034
    %v1099 = vadd.f32 %v737, %v1035
    %v1100 = vadd.f32 %v738, %v1036
    %v1101 = vadd.f32 %v739, %v1037
    %v1102 = vadd.f32 %v740, %v1038
    %v1103 = vadd.f32 %v741, %v1039
    %v1104 = vadd.f32 %v742, %v1040
    %v1105 = vadd.f32 %v743, %v1041
    %v1106 = vadd.f32 %v744, %v1042
    %v1107 = vadd.f32 %v745, %v1043
    %v1108 = vadd.f32 %v746, %v1044
    %v1109 = vadd.f32 %v747, %v1045
    %v1110 = vadd.f32 %v748, %v1046
    %v1111 = vadd.f32 %v749, %v1047
    %v1112 = vadd.f32 %v750, %v1048
    %v1113 = vadd.f32 %v751, %v1049
    %v1114 = vadd.f32 %v752, %v1050
    %v1115 = vadd.f32 %v753, %v1051
    %v1116 = vadd.f32 %v754, %v1052
    %v1117 = vadd.f32 %v755, %v1053
    %v1118 = vadd.f32 %v756, %v1054
    %v1119 = vadd.f32 %v757, %v1055
    %v1120 = vadd.f32 %v758, %v1056
    %v1121 = vadd.f32 %v759, %v1057
    %v1122 = vadd.f32 %v760, %v1058
    %v1123 = vadd.f32 %v761, %v1059
    %v1124 = vadd.f32 %v762, %v1060
    %v1125 = vadd.f32 %v763, %v1061
    %v1126 = vadd.f32 %v764, %v1062
    %v1127 = vadd.f32 %v765, %v1063
    %v1128 = vpack.c.bf16 %v1065, %v1064
    %v1129 = vpack.c.bf16 %v1067, %v1066
    %v1130 = vpack.c.bf16 %v1069, %v1068
    %v1131 = vpack.c.bf16 %v1071, %v1070
    %v1132 = vpack.c.bf16 %v1073, %v1072
    %v1133 = vpack.c.bf16 %v1075, %v1074
    %v1134 = vpack.c.bf16 %v1077, %v1076
    %v1135 = vpack.c.bf16 %v1079, %v1078
    %v1136 = vpack.c.bf16 %v1081, %v1080
    %v1137 = vpack.c.bf16 %v1083, %v1082
    %v1138 = vpack.c.bf16 %v1085, %v1084
    %v1139 = vpack.c.bf16 %v1087, %v1086
    %v1140 = vpack.c.bf16 %v1089, %v1088
    %v1141 = vpack.c.bf16 %v1091, %v1090
    %v1142 = vpack.c.bf16 %v1093, %v1092
    %v1143 = vpack.c.bf16 %v1095, %v1094
    %v1144 = vpack.c.bf16 %v1097, %v1096
    %v1145 = vpack.c.bf16 %v1099, %v1098
    %v1146 = vpack.c.bf16 %v1101, %v1100
    %v1147 = vpack.c.bf16 %v1103, %v1102
    %v1148 = vpack.c.bf16 %v1105, %v1104
    %v1149 = vpack.c.bf16 %v1107, %v1106
    %v1150 = vpack.c.bf16 %v1109, %v1108
    %v1151 = vpack.c.bf16 %v1111, %v1110
    %v1152 = vpack.c.bf16 %v1113, %v1112
    %v1153 = vpack.c.bf16 %v1115, %v1114
    %v1154 = vpack.c.bf16 %v1117, %v1116
    %v1155 = vpack.c.bf16 %v1119, %v1118
    %v1156 = vpack.c.bf16 %v1121, %v1120
    %v1157 = vpack.c.bf16 %v1123, %v1122
    %v1158 = vpack.c.bf16 %v1125, %v1124
    %v1159 = vpack.c.bf16 %v1127, %v1126
    %v1160 = vld [vmem:[#allocation2] sm:$0xff]
    %v1161 = vld [vmem:[#allocation2 + $0x8] sm:$0xff]
    %v1162 = vld [vmem:[#allocation2 + $0x10] sm:$0xff]
    %v1163 = vld [vmem:[#allocation2 + $0x18] sm:$0xff]
    %v1164 = vld [vmem:[#allocation2 + $0x20] sm:$0xff]
    %v1165 = vld [vmem:[#allocation2 + $0x28] sm:$0xff]
    %v1166 = vld [vmem:[#allocation2 + $0x30] sm:$0xff]
    %v1167 = vld [vmem:[#allocation2 + $0x38] sm:$0xff]
    %v1168 = vld [vmem:[#allocation2 + $0x40] sm:$0xff]
    %v1169 = vld [vmem:[#allocation2 + $0x48] sm:$0xff]
    %v1170 = vld [vmem:[#allocation2 + $0x50] sm:$0xff]
    %v1171 = vld [vmem:[#allocation2 + $0x58] sm:$0xff]
    %v1172 = vld [vmem:[#allocation2 + $0x60] sm:$0xff]
    %v1173 = vld [vmem:[#allocation2 + $0x68] sm:$0xff]
    %v1174 = vld [vmem:[#allocation2 + $0x70] sm:$0xff]
    %v1175 = vld [vmem:[#allocation2 + $0x78] sm:$0xff]
    %v1176 = vld [vmem:[#allocation2 + $0x80] sm:$0xff]
    %v1177 = vld [vmem:[#allocation2 + $0x88] sm:$0xff]
    %v1178 = vld [vmem:[#allocation2 + $0x90] sm:$0xff]
    %v1179 = vld [vmem:[#allocation2 + $0x98] sm:$0xff]
    %v1180 = vld [vmem:[#allocation2 + $0xa0] sm:$0xff]
    %v1181 = vld [vmem:[#allocation2 + $0xa8] sm:$0xff]
    %v1182 = vld [vmem:[#allocation2 + $0xb0] sm:$0xff]
    %v1183 = vld [vmem:[#allocation2 + $0xb8] sm:$0xff]
    %v1184 = vld [vmem:[#allocation2 + $0xc0] sm:$0xff]
    %v1185 = vld [vmem:[#allocation2 + $0xc8] sm:$0xff]
    %v1186 = vld [vmem:[#allocation2 + $0xd0] sm:$0xff]
    %v1187 = vld [vmem:[#allocation2 + $0xd8] sm:$0xff]
    %v1188 = vld [vmem:[#allocation2 + $0xe0] sm:$0xff]
    %v1189 = vld [vmem:[#allocation2 + $0xe8] sm:$0xff]
    %v1190 = vld [vmem:[#allocation2 + $0xf0] sm:$0xff]
    %v1191 = vld [vmem:[#allocation2 + $0xf8] sm:$0xff]
    %v1192 = vpack.c.bf16 %v1161, %v1160
    %v1193 = vpack.c.bf16 %v1163, %v1162
    %v1194 = vpack.c.bf16 %v1165, %v1164
    %v1195 = vpack.c.bf16 %v1167, %v1166
    %v1196 = vpack.c.bf16 %v1169, %v1168
    %v1197 = vpack.c.bf16 %v1171, %v1170
    %v1198 = vpack.c.bf16 %v1173, %v1172
    %v1199 = vpack.c.bf16 %v1175, %v1174
    %v1200 = vpack.c.bf16 %v1177, %v1176
    %v1201 = vpack.c.bf16 %v1179, %v1178
    %v1202 = vpack.c.bf16 %v1181, %v1180
    %v1203 = vpack.c.bf16 %v1183, %v1182
    %v1204 = vpack.c.bf16 %v1185, %v1184
    %v1205 = vpack.c.bf16 %v1187, %v1186
    %v1206 = vpack.c.bf16 %v1189, %v1188
    %v1207 = vpack.c.bf16 %v1191, %v1190
    %v1208 = vld [vmem:[%s3] sm:$0x1]
    %v1210 = vperm.slane %v1208, 0
    %v1244 = vunpack.c.l.b16 %v1128
    %v1245 = vunpack.c.h.b16 %v1128
    %v1246 = vunpack.c.l.b16 %v1129
    %v1247 = vunpack.c.h.b16 %v1129
    %v1248 = vunpack.c.l.b16 %v1130
    %v1249 = vunpack.c.h.b16 %v1130
    %v1250 = vunpack.c.l.b16 %v1131
    %v1251 = vunpack.c.h.b16 %v1131
    %v1252 = vunpack.c.l.b16 %v1132
    %v1253 = vunpack.c.h.b16 %v1132
    %v1254 = vunpack.c.l.b16 %v1133
    %v1255 = vunpack.c.h.b16 %v1133
    %v1256 = vunpack.c.l.b16 %v1134
    %v1257 = vunpack.c.h.b16 %v1134
    %v1258 = vunpack.c.l.b16 %v1135
    %v1259 = vunpack.c.h.b16 %v1135
    %v1260 = vunpack.c.l.b16 %v1136
    %v1261 = vunpack.c.h.b16 %v1136
    %v1262 = vunpack.c.l.b16 %v1137
    %v1263 = vunpack.c.h.b16 %v1137
    %v1264 = vunpack.c.l.b16 %v1138
    %v1265 = vunpack.c.h.b16 %v1138
    %v1266 = vunpack.c.l.b16 %v1139
    %v1267 = vunpack.c.h.b16 %v1139
    %v1268 = vunpack.c.l.b16 %v1140
    %v1269 = vunpack.c.h.b16 %v1140
    %v1270 = vunpack.c.l.b16 %v1141
    %v1271 = vunpack.c.h.b16 %v1141
    %v1272 = vunpack.c.l.b16 %v1142
    %v1273 = vunpack.c.h.b16 %v1142
    %v1274 = vunpack.c.l.b16 %v1143
    %v1275 = vunpack.c.h.b16 %v1143
    %v1276 = vunpack.c.l.b16 %v1144
    %v1277 = vunpack.c.h.b16 %v1144
    %v1278 = vunpack.c.l.b16 %v1145
    %v1279 = vunpack.c.h.b16 %v1145
    %v1280 = vunpack.c.l.b16 %v1146
    %v1281 = vunpack.c.h.b16 %v1146
    %v1282 = vunpack.c.l.b16 %v1147
    %v1283 = vunpack.c.h.b16 %v1147
    %v1284 = vunpack.c.l.b16 %v1148
    %v1285 = vunpack.c.h.b16 %v1148
    %v1286 = vunpack.c.l.b16 %v1149
    %v1287 = vunpack.c.h.b16 %v1149
    %v1288 = vunpack.c.l.b16 %v1150
    %v1289 = vunpack.c.h.b16 %v1150
    %v1290 = vunpack.c.l.b16 %v1151
    %v1291 = vunpack.c.h.b16 %v1151
    %v1292 = vunpack.c.l.b16 %v1152
    %v1293 = vunpack.c.h.b16 %v1152
    %v1294 = vunpack.c.l.b16 %v1153
    %v1295 = vunpack.c.h.b16 %v1153
    %v1296 = vunpack.c.l.b16 %v1154
    %v1297 = vunpack.c.h.b16 %v1154
    %v1298 = vunpack.c.l.b16 %v1155
    %v1299 = vunpack.c.h.b16 %v1155
    %v1300 = vunpack.c.l.b16 %v1156
    %v1301 = vunpack.c.h.b16 %v1156
    %v1302 = vunpack.c.l.b16 %v1157
    %v1303 = vunpack.c.h.b16 %v1157
    %v1304 = vunpack.c.l.b16 %v1158
    %v1305 = vunpack.c.h.b16 %v1158
    %v1306 = vunpack.c.l.b16 %v1159
    %v1307 = vunpack.c.h.b16 %v1159
    %1308 = vset.pattern.permute.xlu0 0
    %1309 = vperm.xlu0 %1308, %v1244
    %v1310 = vpop.permute.xlu0 %1309
    %1311 = vset.pattern.permute.xlu0 0
    %1312 = vperm.xlu0 %1311, %v1245
    %v1313 = vpop.permute.xlu0 %1312
    %1314 = vset.pattern.permute.xlu0 0
    %1315 = vperm.xlu0 %1314, %v1246
    %v1316 = vpop.permute.xlu0 %1315
    %1317 = vset.pattern.permute.xlu0 0
    %1318 = vperm.xlu0 %1317, %v1247
    %v1319 = vpop.permute.xlu0 %1318
    %1320 = vset.pattern.permute.xlu0 0
    %1321 = vperm.xlu0 %1320, %v1248
    %v1322 = vpop.permute.xlu0 %1321
    %1323 = vset.pattern.permute.xlu0 0
    %1324 = vperm.xlu0 %1323, %v1249
    %v1325 = vpop.permute.xlu0 %1324
    %1326 = vset.pattern.permute.xlu0 0
    %1327 = vperm.xlu0 %1326, %v1250
    %v1328 = vpop.permute.xlu0 %1327
    %1329 = vset.pattern.permute.xlu0 0
    %1330 = vperm.xlu0 %1329, %v1251
    %v1331 = vpop.permute.xlu0 %1330
    %1332 = vset.pattern.permute.xlu0 0
    %1333 = vperm.xlu0 %1332, %v1252
    %v1334 = vpop.permute.xlu0 %1333
    %1335 = vset.pattern.permute.xlu0 0
    %1336 = vperm.xlu0 %1335, %v1253
    %v1337 = vpop.permute.xlu0 %1336
    %1338 = vset.pattern.permute.xlu0 0
    %1339 = vperm.xlu0 %1338, %v1254
    %v1340 = vpop.permute.xlu0 %1339
    %1341 = vset.pattern.permute.xlu0 0
    %1342 = vperm.xlu0 %1341, %v1255
    %v1343 = vpop.permute.xlu0 %1342
    %1344 = vset.pattern.permute.xlu0 0
    %1345 = vperm.xlu0 %1344, %v1256
    %v1346 = vpop.permute.xlu0 %1345
    %1347 = vset.pattern.permute.xlu0 0
    %1348 = vperm.xlu0 %1347, %v1257
    %v1349 = vpop.permute.xlu0 %1348
    %1350 = vset.pattern.permute.xlu0 0
    %1351 = vperm.xlu0 %1350, %v1258
    %v1352 = vpop.permute.xlu0 %1351
    %1353 = vset.pattern.permute.xlu0 0
    %1354 = vperm.xlu0 %1353, %v1259
    %v1355 = vpop.permute.xlu0 %1354
    %1356 = vset.pattern.permute.xlu0 0
    %1357 = vperm.xlu0 %1356, %v1260
    %v1358 = vpop.permute.xlu0 %1357
    %1359 = vset.pattern.permute.xlu0 0
    %1360 = vperm.xlu0 %1359, %v1261
    %v1361 = vpop.permute.xlu0 %1360
    %1362 = vset.pattern.permute.xlu0 0
    %1363 = vperm.xlu0 %1362, %v1262
    %v1364 = vpop.permute.xlu0 %1363
    %1365 = vset.pattern.permute.xlu0 0
    %1366 = vperm.xlu0 %1365, %v1263
    %v1367 = vpop.permute.xlu0 %1366
    %1368 = vset.pattern.permute.xlu0 0
    %1369 = vperm.xlu0 %1368, %v1264
    %v1370 = vpop.permute.xlu0 %1369
    %1371 = vset.pattern.permute.xlu0 0
    %1372 = vperm.xlu0 %1371, %v1265
    %v1373 = vpop.permute.xlu0 %1372
    %1374 = vset.pattern.permute.xlu0 0
    %1375 = vperm.xlu0 %1374, %v1266
    %v1376 = vpop.permute.xlu0 %1375
    %1377 = vset.pattern.permute.xlu0 0
    %1378 = vperm.xlu0 %1377, %v1267
    %v1379 = vpop.permute.xlu0 %1378
    %1380 = vset.pattern.permute.xlu0 0
    %1381 = vperm.xlu0 %1380, %v1268
    %v1382 = vpop.permute.xlu0 %1381
    %1383 = vset.pattern.permute.xlu0 0
    %1384 = vperm.xlu0 %1383, %v1269
    %v1385 = vpop.permute.xlu0 %1384
    %1386 = vset.pattern.permute.xlu0 0
    %1387 = vperm.xlu0 %1386, %v1270
    %v1388 = vpop.permute.xlu0 %1387
    %1389 = vset.pattern.permute.xlu0 0
    %1390 = vperm.xlu0 %1389, %v1271
    %v1391 = vpop.permute.xlu0 %1390
    %1392 = vset.pattern.permute.xlu0 0
    %1393 = vperm.xlu0 %1392, %v1272
    %v1394 = vpop.permute.xlu0 %1393
    %1395 = vset.pattern.permute.xlu0 0
    %1396 = vperm.xlu0 %1395, %v1273
    %v1397 = vpop.permute.xlu0 %1396
    %1398 = vset.pattern.permute.xlu0 0
    %1399 = vperm.xlu0 %1398, %v1274
    %v1400 = vpop.permute.xlu0 %1399
    %1401 = vset.pattern.permute.xlu0 0
    %1402 = vperm.xlu0 %1401, %v1275
    %v1403 = vpop.permute.xlu0 %1402
    %1404 = vset.pattern.permute.xlu0 0
    %1405 = vperm.xlu0 %1404, %v1276
    %v1406 = vpop.permute.xlu0 %1405
    %1407 = vset.pattern.permute.xlu0 0
    %1408 = vperm.xlu0 %1407, %v1277
    %v1409 = vpop.permute.xlu0 %1408
    %1410 = vset.pattern.permute.xlu0 0
    %1411 = vperm.xlu0 %1410, %v1278
    %v1412 = vpop.permute.xlu0 %1411
    %1413 = vset.pattern.permute.xlu0 0
    %1414 = vperm.xlu0 %1413, %v1279
    %v1415 = vpop.permute.xlu0 %1414
    %1416 = vset.pattern.permute.xlu0 0
    %1417 = vperm.xlu0 %1416, %v1280
    %v1418 = vpop.permute.xlu0 %1417
    %1419 = vset.pattern.permute.xlu0 0
    %1420 = vperm.xlu0 %1419, %v1281
    %v1421 = vpop.permute.xlu0 %1420
    %1422 = vset.pattern.permute.xlu0 0
    %1423 = vperm.xlu0 %1422, %v1282
    %v1424 = vpop.permute.xlu0 %1423
    %1425 = vset.pattern.permute.xlu0 0
    %1426 = vperm.xlu0 %1425, %v1283
    %v1427 = vpop.permute.xlu0 %1426
    %1428 = vset.pattern.permute.xlu0 0
    %1429 = vperm.xlu0 %1428, %v1284
    %v1430 = vpop.permute.xlu0 %1429
    %1431 = vset.pattern.permute.xlu0 0
    %1432 = vperm.xlu0 %1431, %v1285
    %v1433 = vpop.permute.xlu0 %1432
    %1434 = vset.pattern.permute.xlu0 0
    %1435 = vperm.xlu0 %1434, %v1286
    %v1436 = vpop.permute.xlu0 %1435
    %1437 = vset.pattern.permute.xlu0 0
    %1438 = vperm.xlu0 %1437, %v1287
    %v1439 = vpop.permute.xlu0 %1438
    %1440 = vset.pattern.permute.xlu0 0
    %1441 = vperm.xlu0 %1440, %v1288
    %v1442 = vpop.permute.xlu0 %1441
    %1443 = vset.pattern.permute.xlu0 0
    %1444 = vperm.xlu0 %1443, %v1289
    %v1445 = vpop.permute.xlu0 %1444
    %1446 = vset.pattern.permute.xlu0 0
    %1447 = vperm.xlu0 %1446, %v1290
    %v1448 = vpop.permute.xlu0 %1447
    %1449 = vset.pattern.permute.xlu0 0
    %1450 = vperm.xlu0 %1449, %v1291
    %v1451 = vpop.permute.xlu0 %1450
    %1452 = vset.pattern.permute.xlu0 0
    %1453 = vperm.xlu0 %1452, %v1292
    %v1454 = vpop.permute.xlu0 %1453
    %1455 = vset.pattern.permute.xlu0 0
    %1456 = vperm.xlu0 %1455, %v1293
    %v1457 = vpop.permute.xlu0 %1456
    %1458 = vset.pattern.permute.xlu0 0
    %1459 = vperm.xlu0 %1458, %v1294
    %v1460 = vpop.permute.xlu0 %1459
    %1461 = vset.pattern.permute.xlu0 0
    %1462 = vperm.xlu0 %1461, %v1295
    %v1463 = vpop.permute.xlu0 %1462
    %1464 = vset.pattern.permute.xlu0 0
    %1465 = vperm.xlu0 %1464, %v1296
    %v1466 = vpop.permute.xlu0 %1465
    %1467 = vset.pattern.permute.xlu0 0
    %1468 = vperm.xlu0 %1467, %v1297
    %v1469 = vpop.permute.xlu0 %1468
    %1470 = vset.pattern.permute.xlu0 0
    %1471 = vperm.xlu0 %1470, %v1298
    %v1472 = vpop.permute.xlu0 %1471
    %1473 = vset.pattern.permute.xlu0 0
    %1474 = vperm.xlu0 %1473, %v1299
    %v1475 = vpop.permute.xlu0 %1474
    %1476 = vset.pattern.permute.xlu0 0
    %1477 = vperm.xlu0 %1476, %v1300
    %v1478 = vpop.permute.xlu0 %1477
    %1479 = vset.pattern.permute.xlu0 0
    %1480 = vperm.xlu0 %1479, %v1301
    %v1481 = vpop.permute.xlu0 %1480
    %1482 = vset.pattern.permute.xlu0 0
    %1483 = vperm.xlu0 %1482, %v1302
    %v1484 = vpop.permute.xlu0 %1483
    %1485 = vset.pattern.permute.xlu0 0
    %1486 = vperm.xlu0 %1485, %v1303
    %v1487 = vpop.permute.xlu0 %1486
    %1488 = vset.pattern.permute.xlu0 0
    %1489 = vperm.xlu0 %1488, %v1304
    %v1490 = vpop.permute.xlu0 %1489
    %1491 = vset.pattern.permute.xlu0 0
    %1492 = vperm.xlu0 %1491, %v1305
    %v1493 = vpop.permute.xlu0 %1492
    %1494 = vset.pattern.permute.xlu0 0
    %1495 = vperm.xlu0 %1494, %v1306
    %v1496 = vpop.permute.xlu0 %1495
    %1497 = vset.pattern.permute.xlu0 0
    %1498 = vperm.xlu0 %1497, %v1307
    %v1499 = vpop.permute.xlu0 %1498
    %v1500 = vlaneseq
    %v1501 = vand.u32 %v1500, 127
    %v1502 = vperm.slane %v1310, %v1501
    %v1503 = vadd.s32 %v1501, 4294967288
    %v1504 = vperm.slane %v1313, %v1503
    %vm1505 = vcmask 130112
    %v1506 = vsel %vm1505, %v1504, %v1502
    %v1507 = vadd.s32 %v1501, 4294967280
    %v1508 = vperm.slane %v1316, %v1507
    %vm1509 = vcmask 195712
    %v1510 = vsel %vm1509, %v1508, %v1506
    %v1511 = vadd.s32 %v1501, 4294967272
    %v1512 = vperm.slane %v1319, %v1511
    %vm1513 = vcmask 261312
    %v1514 = vsel %vm1513, %v1512, %v1510
    %v1515 = vadd.s32 %v1501, 4294967264
    %v1516 = vperm.slane %v1322, %v1515
    %vm1517 = vcmask 326912
    %v1518 = vsel %vm1517, %v1516, %v1514
    %v1519 = vadd.s32 %v1501, 4294967256
    %v1520 = vperm.slane %v1325, %v1519
    %vm1521 = vcmask 392512
    %v1522 = vsel %vm1521, %v1520, %v1518
    %v1523 = vadd.s32 %v1501, 4294967248
    %v1524 = vperm.slane %v1328, %v1523
    %vm1525 = vcmask 458112
    %v1526 = vsel %vm1525, %v1524, %v1522
    %v1527 = vadd.s32 %v1501, 4294967240
    %v1528 = vperm.slane %v1331, %v1527
    %vm1529 = vcmask 523712
    %v1530 = vsel %vm1529, %v1528, %v1526
    %v1531 = vadd.s32 %v1501, 4294967232
    %v1532 = vperm.slane %v1334, %v1531
    %vm1533 = vcmask 589312
    %v1534 = vsel %vm1533, %v1532, %v1530
    %v1535 = vadd.s32 %v1501, 4294967224
    %v1536 = vperm.slane %v1337, %v1535
    %vm1537 = vcmask 654912
    %v1538 = vsel %vm1537, %v1536, %v1534
    %v1539 = vadd.s32 %v1501, 4294967216
    %v1540 = vperm.slane %v1340, %v1539
    %vm1541 = vcmask 720512
    %v1542 = vsel %vm1541, %v1540, %v1538
    %v1543 = vadd.s32 %v1501, 4294967208
    %v1544 = vperm.slane %v1343, %v1543
    %vm1545 = vcmask 786112
    %v1546 = vsel %vm1545, %v1544, %v1542
    %v1547 = vadd.s32 %v1501, 4294967200
    %v1548 = vperm.slane %v1346, %v1547
    %vm1549 = vcmask 851712
    %v1550 = vsel %vm1549, %v1548, %v1546
    %v1551 = vadd.s32 %v1501, 4294967192
    %v1552 = vperm.slane %v1349, %v1551
    %vm1553 = vcmask 917312
    %v1554 = vsel %vm1553, %v1552, %v1550
    %v1555 = vadd.s32 %v1501, 4294967184
    %v1556 = vperm.slane %v1352, %v1555
    %vm1557 = vcmask 982912
    %v1558 = vsel %vm1557, %v1556, %v1554
    %v1559 = vadd.s32 %v1501, 4294967176
    %v1560 = vperm.slane %v1355, %v1559
    %vm1561 = vcmask 1048512
    %v1562 = vsel %vm1561, %v1560, %v1558
    %v1563 = vperm.slane %v1358, %v1501
    %v1564 = vperm.slane %v1361, %v1503
    %v1565 = vsel %vm1505, %v1564, %v1563
    %v1566 = vperm.slane %v1364, %v1507
    %v1567 = vsel %vm1509, %v1566, %v1565
    %v1568 = vperm.slane %v1367, %v1511
    %v1569 = vsel %vm1513, %v1568, %v1567
    %v1570 = vperm.slane %v1370, %v1515
    %v1571 = vsel %vm1517, %v1570, %v1569
    %v1572 = vperm.slane %v1373, %v1519
    %v1573 = vsel %vm1521, %v1572, %v1571
    %v1574 = vperm.slane %v1376, %v1523
    %v1575 = vsel %vm1525, %v1574, %v1573
    %v1576 = vperm.slane %v1379, %v1527
    %v1577 = vsel %vm1529, %v1576, %v1575
    %v1578 = vperm.slane %v1382, %v1531
    %v1579 = vsel %vm1533, %v1578, %v1577
    %v1580 = vperm.slane %v1385, %v1535
    %v1581 = vsel %vm1537, %v1580, %v1579
    %v1582 = vperm.slane %v1388, %v1539
    %v1583 = vsel %vm1541, %v1582, %v1581
    %v1584 = vperm.slane %v1391, %v1543
    %v1585 = vsel %vm1545, %v1584, %v1583
    %v1586 = vperm.slane %v1394, %v1547
    %v1587 = vsel %vm1549, %v1586, %v1585
    %v1588 = vperm.slane %v1397, %v1551
    %v1589 = vsel %vm1553, %v1588, %v1587
    %v1590 = vperm.slane %v1400, %v1555
    %v1591 = vsel %vm1557, %v1590, %v1589
    %v1592 = vperm.slane %v1403, %v1559
    %v1593 = vsel %vm1561, %v1592, %v1591
    %v1594 = vperm.slane %v1406, %v1501
    %v1595 = vperm.slane %v1409, %v1503
    %v1596 = vsel %vm1505, %v1595, %v1594
    %v1597 = vperm.slane %v1412, %v1507
    %v1598 = vsel %vm1509, %v1597, %v1596
    %v1599 = vperm.slane %v1415, %v1511
    %v1600 = vsel %vm1513, %v1599, %v1598
    %v1601 = vperm.slane %v1418, %v1515
    %v1602 = vsel %vm1517, %v1601, %v1600
    %v1603 = vperm.slane %v1421, %v1519
    %v1604 = vsel %vm1521, %v1603, %v1602
    %v1605 = vperm.slane %v1424, %v1523
    %v1606 = vsel %vm1525, %v1605, %v1604
    %v1607 = vperm.slane %v1427, %v1527
    %v1608 = vsel %vm1529, %v1607, %v1606
    %v1609 = vperm.slane %v1430, %v1531
    %v1610 = vsel %vm1533, %v1609, %v1608
    %v1611 = vperm.slane %v1433, %v1535
    %v1612 = vsel %vm1537, %v1611, %v1610
    %v1613 = vperm.slane %v1436, %v1539
    %v1614 = vsel %vm1541, %v1613, %v1612
    %v1615 = vperm.slane %v1439, %v1543
    %v1616 = vsel %vm1545, %v1615, %v1614
    %v1617 = vperm.slane %v1442, %v1547
    %v1618 = vsel %vm1549, %v1617, %v1616
    %v1619 = vperm.slane %v1445, %v1551
    %v1620 = vsel %vm1553, %v1619, %v1618
    %v1621 = vperm.slane %v1448, %v1555
    %v1622 = vsel %vm1557, %v1621, %v1620
    %v1623 = vperm.slane %v1451, %v1559
    %v1624 = vsel %vm1561, %v1623, %v1622
    %v1625 = vperm.slane %v1454, %v1501
    %v1626 = vperm.slane %v1457, %v1503
    %v1627 = vsel %vm1505, %v1626, %v1625
    %v1628 = vperm.slane %v1460, %v1507
    %v1629 = vsel %vm1509, %v1628, %v1627
    %v1630 = vperm.slane %v1463, %v1511
    %v1631 = vsel %vm1513, %v1630, %v1629
    %v1632 = vperm.slane %v1466, %v1515
    %v1633 = vsel %vm1517, %v1632, %v1631
    %v1634 = vperm.slane %v1469, %v1519
    %v1635 = vsel %vm1521, %v1634, %v1633
    %v1636 = vperm.slane %v1472, %v1523
    %v1637 = vsel %vm1525, %v1636, %v1635
    %v1638 = vperm.slane %v1475, %v1527
    %v1639 = vsel %vm1529, %v1638, %v1637
    %v1640 = vperm.slane %v1478, %v1531
    %v1641 = vsel %vm1533, %v1640, %v1639
    %v1642 = vperm.slane %v1481, %v1535
    %v1643 = vsel %vm1537, %v1642, %v1641
    %v1644 = vperm.slane %v1484, %v1539
    %v1645 = vsel %vm1541, %v1644, %v1643
    %v1646 = vperm.slane %v1487, %v1543
    %v1647 = vsel %vm1545, %v1646, %v1645
    %v1648 = vperm.slane %v1490, %v1547
    %v1649 = vsel %vm1549, %v1648, %v1647
    %v1650 = vperm.slane %v1493, %v1551
    %v1651 = vsel %vm1553, %v1650, %v1649
    %v1652 = vperm.slane %v1496, %v1555
    %v1653 = vsel %vm1557, %v1652, %v1651
    %v1654 = vperm.slane %v1499, %v1559
    %v1655 = vsel %vm1561, %v1654, %v1653
    %vm1656 = vcmask 1041409
    %v1657 = vsel %vm1656, %v1624, %v1562
    %v1658 = vsel %vm1656, %v1655, %v1593
    %v1659 = vpack.c.b16 %v1657, %v1657
    %v1660 = vpack.c.b16 %v1658, %v1658
    %1663 = vmatpush.bf16.msra.mxu0 %v1199
    %1664 = vmatpush.bf16.msra.mxu0 %v1198
    %1665 = vmatpush.bf16.msra.mxu0 %v1197
    %1666 = vmatpush.bf16.msra.mxu0 %v1196
    %1667 = vmatpush.bf16.msra.mxu0 %v1195
    %1668 = vmatpush.bf16.msra.mxu0 %v1194
    %1669 = vmatpush.bf16.msra.mxu0 %v1193
    %1670 = vmatpush.bf16.msra.mxu0 %v1192
    %1671 = vmatmul.bf16.gmra.mxu0 %v1659
    %v1672 = vpop.f32.mrf.mxu0
    %v1673 = vadd.f32 %v1210, %v1672
    %v1674 = vpop.f32.mrf.mxu0
    %1675 = vdwg.mxu0
    %1676 = vmatpush.bf16.msra.mxu0 %v1207
    %1677 = vmatpush.bf16.msra.mxu0 %v1206
    %1678 = vmatpush.bf16.msra.mxu0 %v1205
    %1679 = vmatpush.bf16.msra.mxu0 %v1204
    %1680 = vmatpush.bf16.msra.mxu0 %v1203
    %1681 = vmatpush.bf16.msra.mxu0 %v1202
    %1682 = vmatpush.bf16.msra.mxu0 %v1201
    %1683 = vmatpush.bf16.msra.mxu0 %v1200
    %1684 = vmatmul.bf16.gmra.mxu0 %v1660
    %v1685 = vpop.f32.mrf.mxu0
    %v1686 = vadd.f32 %v1673, %v1685
    %v1687 = vpop.f32.mrf.mxu0
    %1688 = vdwg.mxu0
    %v1689 = vmax.f32 %v1686, 0.0
    %v1690 = vpack.c.bf16 %v1689, %v1689
    %v1691 = vld [vmem:[#allocation4] sm:$0xff]
    %v1692 = vld [vmem:[#allocation4 + $0x8] sm:$0xff]
    %v1693 = vld [vmem:[#allocation4 + $0x10] sm:$0xff]
    %v1694 = vld [vmem:[#allocation4 + $0x18] sm:$0xff]
    %v1695 = vld [vmem:[#allocation4 + $0x20] sm:$0xff]
    %v1696 = vld [vmem:[#allocation4 + $0x28] sm:$0xff]
    %v1697 = vld [vmem:[#allocation4 + $0x30] sm:$0xff]
    %v1698 = vld [vmem:[#allocation4 + $0x38] sm:$0xff]
    %v1699 = vld [vmem:[#allocation4 + $0x40] sm:$0xff]
    %v1700 = vld [vmem:[#allocation4 + $0x48] sm:$0xff]
    %v1701 = vld [vmem:[#allocation4 + $0x50] sm:$0xff]
    %v1702 = vld [vmem:[#allocation4 + $0x58] sm:$0xff]
    %v1703 = vld [vmem:[#allocation4 + $0x60] sm:$0xff]
    %v1704 = vld [vmem:[#allocation4 + $0x68] sm:$0xff]
    %v1705 = vld [vmem:[#allocation4 + $0x70] sm:$0xff]
    %v1706 = vld [vmem:[#allocation4 + $0x78] sm:$0xff]
    %v1707 = vpack.c.bf16 %v1692, %v1691
    %v1708 = vpack.c.bf16 %v1694, %v1693
    %v1709 = vpack.c.bf16 %v1696, %v1695
    %v1710 = vpack.c.bf16 %v1698, %v1697
    %v1711 = vpack.c.bf16 %v1700, %v1699
    %v1712 = vpack.c.bf16 %v1702, %v1701
    %v1713 = vpack.c.bf16 %v1704, %v1703
    %v1714 = vpack.c.bf16 %v1706, %v1705
    %v1715 = vld [vmem:[%s5] sm:$0x1]
    %v1717 = vperm.slane %v1715, 0
    %1719 = vmatpush.bf16.msra.mxu0 %v1714
    %1720 = vmatpush.bf16.msra.mxu0 %v1713
    %1721 = vmatpush.bf16.msra.mxu0 %v1712
    %1722 = vmatpush.bf16.msra.mxu0 %v1711
    %1723 = vmatpush.bf16.msra.mxu0 %v1710
    %1724 = vmatpush.bf16.msra.mxu0 %v1709
    %1725 = vmatpush.bf16.msra.mxu0 %v1708
    %1726 = vmatpush.bf16.msra.mxu0 %v1707
    %1727 = vmatmul.bf16.gmra.mxu0 %v1690
    %v1728 = vpop.f32.mrf.mxu0
    %v1729 = vadd.f32 %v1717, %v1728
    %v1730 = vpop.f32.mrf.mxu0
    %1731 = vdwg.mxu0
    %v1732 = vmax.f32 %v1729, 0.0
    %v1733 = vpack.c.bf16 %v1732, %v1732
    %v1734 = vld [vmem:[#allocation6] sm:$0xff]
    %v1735 = vld [vmem:[#allocation6 + $0x8] sm:$0xff]
    %v1736 = vld [vmem:[#allocation6 + $0x10] sm:$0xff]
    %v1737 = vld [vmem:[#allocation6 + $0x18] sm:$0xff]
    %v1738 = vld [vmem:[#allocation6 + $0x20] sm:$0xff]
    %v1739 = vld [vmem:[#allocation6 + $0x28] sm:$0xff]
    %v1740 = vld [vmem:[#allocation6 + $0x30] sm:$0xff]
    %v1741 = vld [vmem:[#allocation6 + $0x38] sm:$0xff]
    %v1742 = vld [vmem:[#allocation6 + $0x40] sm:$0xff]
    %v1743 = vld [vmem:[#allocation6 + $0x48] sm:$0xff]
    %v1744 = vld [vmem:[#allocation6 + $0x50] sm:$0xff]
    %v1745 = vld [vmem:[#allocation6 + $0x58] sm:$0xff]
    %v1746 = vld [vmem:[#allocation6 + $0x60] sm:$0xff]
    %v1747 = vld [vmem:[#allocation6 + $0x68] sm:$0xff]
    %v1748 = vld [vmem:[#allocation6 + $0x70] sm:$0xff]
    %v1749 = vld [vmem:[#allocation6 + $0x78] sm:$0xff]
    %v1750 = vpack.c.bf16 %v1735, %v1734
    %v1751 = vpack.c.bf16 %v1737, %v1736
    %v1752 = vpack.c.bf16 %v1739, %v1738
    %v1753 = vpack.c.bf16 %v1741, %v1740
    %v1754 = vpack.c.bf16 %v1743, %v1742
    %v1755 = vpack.c.bf16 %v1745, %v1744
    %v1756 = vpack.c.bf16 %v1747, %v1746
    %v1757 = vpack.c.bf16 %v1749, %v1748
    %v1758 = vld [vmem:[%s7] sm:$0x1]
    %v1760 = vperm.slane %v1758, 0
    %1762 = vmatpush.bf16.msra.mxu0 %v1757
    %1763 = vmatpush.bf16.msra.mxu0 %v1756
    %1764 = vmatpush.bf16.msra.mxu0 %v1755
    %1765 = vmatpush.bf16.msra.mxu0 %v1754
    %1766 = vmatpush.bf16.msra.mxu0 %v1753
    %1767 = vmatpush.bf16.msra.mxu0 %v1752
    %1768 = vmatpush.bf16.msra.mxu0 %v1751
    %1769 = vmatpush.bf16.msra.mxu0 %v1750
    %1770 = vmatmul.bf16.gmra.mxu0 %v1733
    %v1771 = vpop.f32.mrf.mxu0
    %v1772 = vadd.f32 %v1760, %v1771
    %v1773 = vpop.f32.mrf.mxu0
    %1774 = vdwg.mxu0
    %1775 = vst [vmem:[%s8] sm:$0x3] %v1772
    // Predicated region
    $region46: #{moco_forward.17} parent=1 // pred_check
      _
    $region47: #{moco_forward.17} parent=1 // pred_check_branch
      %1777 = sbr.rel (0) target = $region49
    $region48: #{moco_forward.17} parent=1 // pred_region
      _
    $region49: #{moco_forward.17} parent=1 // pred_fallthru
      _
    // Predicated region
    $region50: #{moco_forward.17} parent=1 // pred_check
      _
    $region51: #{moco_forward.17} parent=1 // pred_check_branch
      %1779 = sbr.rel (0) target = $region53
    $region52: #{moco_forward.17} parent=1 // pred_region
      _
    $region53: #{moco_forward.17} parent=1 // pred_fallthru
      _
    %1780 = vsyncpa [#allocation3], 1
    %1781 = vsyncpa [#allocation5], 1

// kernel: moco_forward.20
$region0: #{moco_forward.20}
  #allocation0 [shape = 'u32[]', space=smem, size = 0x4, offset = 0x4, fixed_abs, tag = 'smem constant byte address 0x4 - core index']
  #allocation1 [shape = 'u32[72,128]{1,0:T(1,128)}', space=vmem, size = 0x9000, scoped, tag = 'internal scratch']
  #allocation2 [shape = 'bf16[8,128]{1,0:T(8,128)(2,1)}', space=vmem, size = 0x800, scoped, tag = 'scratch operand']
  %s0 = inlined_call_operand.vmem [shape: f32[8,128], index: 0, kind: input, shape index: {}]
  %s1 = inlined_call_operand.vmem [shape: f32[8,128], index: 1, kind: input, shape index: {}]
  %s2 = inlined_call_operand.vmem [shape: bf16[128,1024], index: 2, kind: input, shape index: {}]
  %s3 = inlined_call_operand.hbm [shape: f32[8,1], index: 3, kind: output, shape index: {0}]
  %s4 = inlined_call_operand.vmem [shape: f32[8,128], index: 4, kind: output, shape index: {1}]
  %s5 = inlined_call_operand.hbm [shape: f32[8,1024], index: 5, kind: output, shape index: {2}]
  %6 = xla_tuple %s3, %s4, %s5
  %s7 = sld [smem:[#allocation0]]
  $region88: #{moco_forward.20} parent=0
    _
  %s9 = ssub.s32 1, %s7
  %s10 = scalar_select 0, %s9, %s7
  $region1: #{moco_forward.20} parent=0
    #allocation3 [shape = 'u8[262144]{0}', space=vmem, size = 0x40000, scoped, tag = 'input window, operand 2']
    #allocation4 [shape = 'u8[4096]{0}', space=vmem, size = 0x1000, scoped, tag = 'output window, operand 0, single buffered']
    #allocation5 [shape = 's32[2]{0}', space=sflag, size = 0x8, scoped, tag = 'scoped memory for moco_forward.20']
    #allocation6 [shape = 'u8[32768]{0}', space=vmem, size = 0x8000, scoped, tag = 'output window, operand 2']
    #allocation7 [shape = 's32[2]{0}', space=sflag, size = 0x8, scoped, tag = 'scoped memory for moco_forward.20']
    %11 = vsyncpa [#allocation5], 0
    %12 = vsyncpa [#allocation7], 0
    %s13 = scalar_lea.sflag [#allocation7], 1
    %14 = vsyncpa %s13, 0
    loop: start=0, step=1, limit=4
    $region2: #{moco_forward.20} parent=1 // loop_pre_header
      _
    $region3: #{moco_forward.20} parent=1 // loop_header
      %s16 = sphi 0, %s20
      %p17 = scmp.ge.s32.totalorder %s16, 4
      %s24 = sphi 0, %s24
      %s26 = sphi 0, %s24
      %s27 = sphi 0, %s26
      %s41 = sphi 0, %s27
      %s45 = sphi 0, %s45
      %s47 = sphi 0, %s45
      %s48 = sphi 0, %s47
      %s62 = sphi 0, %s48
      %s68 = sphi 0, %s70
      %s71 = sphi 0, %s68
      %s72 = sphi 0, %s71
      %s88 = sphi 0, %s72
      %s92 = sphi 0, %s92
      %s94 = sphi 0, %s92
      %s95 = sphi 0, %s94
      %s109 = sphi 0, %s95
      %s113 = sphi 0, %s113
      %s115 = sphi 0, %s113
      %s116 = sphi 0, %s115
      %s130 = sphi 0, %s116
      %s136 = sphi 0, %s138
      %s139 = sphi 0, %s136
      %s140 = sphi 0, %s139
      %s156 = sphi 0, %s140
    $region4: #{moco_forward.20} parent=1 // loop_header_branch
      %19 = sbr.rel (%p17) target = $region8
    $region5: #{moco_forward.20} parent=1 // loop_body
      %s21 = ssub.s32 %s16, 1
      %s22 = ssub.s32 %s16, 2
      %s23 = sadd.s32 %s16, 1
      %s25 = sadd.s32 %s24, 1
      %p28 = scmp.eq.s32.totalorder %s16, 1
      %p29 = scmp.ne.s32.totalorder %s24, %s26
      %p30 = scmp.eq.s32.totalorder %s16, 0
      %p31 = por %p29, %p30
      %p32 = scmp.ne.s32.totalorder %s24, %s26
      %p33 = scmp.eq.s32.totalorder %s21, 1
      %p34 = por %p32, %p33
      %p35 = scmp.ne.s32.totalorder %s26, %s27
      %p36 = scmp.eq.s32.totalorder %s21, 0
      %p37 = por %p35, %p36
      %p38 = scmp.ne.s32.totalorder %s26, %s27
      %p39 = scmp.eq.s32.totalorder %s22, 1
      %p40 = por %p38, %p39
      %p42 = scmp.ne.s32.totalorder %s27, %s41
      %p43 = scmp.eq.s32.totalorder %s22, 0
      %p44 = por %p42, %p43
      %s46 = sadd.s32 %s45, 1
      %p49 = scmp.eq.s32.totalorder %s16, 1
      %p50 = scmp.ne.s32.totalorder %s45, %s47
      %p51 = scmp.eq.s32.totalorder %s16, 0
      %p52 = por %p50, %p51
      %p53 = scmp.ne.s32.totalorder %s45, %s47
      %p54 = scmp.eq.s32.totalorder %s21, 1
      %p55 = por %p53, %p54
      %p56 = scmp.ne.s32.totalorder %s47, %s48
      %p57 = scmp.eq.s32.totalorder %s21, 0
      %p58 = por %p56, %p57
      %p59 = scmp.ne.s32.totalorder %s47, %s48
      %p60 = scmp.eq.s32.totalorder %s22, 1
      %p61 = por %p59, %p60
      %p63 = scmp.ne.s32.totalorder %s48, %s62
      %p64 = scmp.eq.s32.totalorder %s22, 0
      %p65 = por %p63, %p64
      %s66 = ssub.s32 %s16, %s23
      %p67 = scmp.eq.s32.totalorder %s66, 0
      %s69 = sadd.s32 %s68, 1
      %s70 = scalar_select %p67, %s68, %s69
      %p73 = pneg %p67
      %p74 = scmp.eq.s32.totalorder %s16, 1
      %p75 = por %p73, %p74
      %p76 = scmp.ne.s32.totalorder %s68, %s71
      %p77 = scmp.eq.s32.totalorder %s16, 0
      %p78 = por %p76, %p77
      %p79 = scmp.ne.s32.totalorder %s68, %s71
      %p80 = scmp.eq.s32.totalorder %s21, 1
      %p81 = por %p79, %p80
      %p82 = scmp.ne.s32.totalorder %s71, %s72
      %p83 = scmp.eq.s32.totalorder %s21, 0
      %p84 = por %p82, %p83
      %p85 = scmp.ne.s32.totalorder %s71, %s72
      %p86 = scmp.eq.s32.totalorder %s22, 1
      %p87 = por %p85, %p86
      %p89 = scmp.ne.s32.totalorder %s72, %s88
      %p90 = scmp.eq.s32.totalorder %s22, 0
      %p91 = por %p89, %p90
      %s93 = sadd.s32 %s92, 1
      %p96 = scmp.eq.s32.totalorder %s16, 1
      %p97 = scmp.ne.s32.totalorder %s92, %s94
      %p98 = scmp.eq.s32.totalorder %s16, 0
      %p99 = por %p97, %p98
      %p100 = scmp.ne.s32.totalorder %s92, %s94
      %p101 = scmp.eq.s32.totalorder %s21, 1
      %p102 = por %p100, %p101
      %p103 = scmp.ne.s32.totalorder %s94, %s95
      %p104 = scmp.eq.s32.totalorder %s21, 0
      %p105 = por %p103, %p104
      %p106 = scmp.ne.s32.totalorder %s94, %s95
      %p107 = scmp.eq.s32.totalorder %s22, 1
      %p108 = por %p106, %p107
      %p110 = scmp.ne.s32.totalorder %s95, %s109
      %p111 = scmp.eq.s32.totalorder %s22, 0
      %p112 = por %p110, %p111
      %s114 = sadd.s32 %s113, 1
      %p117 = scmp.eq.s32.totalorder %s16, 1
      %p118 = scmp.ne.s32.totalorder %s113, %s115
      %p119 = scmp.eq.s32.totalorder %s16, 0
      %p120 = por %p118, %p119
      %p121 = scmp.ne.s32.totalorder %s113, %s115
      %p122 = scmp.eq.s32.totalorder %s21, 1
      %p123 = por %p121, %p122
      %p124 = scmp.ne.s32.totalorder %s115, %s116
      %p125 = scmp.eq.s32.totalorder %s21, 0
      %p126 = por %p124, %p125
      %p127 = scmp.ne.s32.totalorder %s115, %s116
      %p128 = scmp.eq.s32.totalorder %s22, 1
      %p129 = por %p127, %p128
      %p131 = scmp.ne.s32.totalorder %s116, %s130
      %p132 = scmp.eq.s32.totalorder %s22, 0
      %p133 = por %p131, %p132
      %s134 = ssub.s32 %s16, %s23
      %p135 = scmp.eq.s32.totalorder %s134, 0
      %s137 = sadd.s32 %s136, 1
      %s138 = scalar_select %p135, %s136, %s137
      %p141 = pneg %p135
      %p142 = scmp.eq.s32.totalorder %s16, 1
      %p143 = por %p141, %p142
      %p144 = scmp.ne.s32.totalorder %s136, %s139
      %p145 = scmp.eq.s32.totalorder %s16, 0
      %p146 = por %p144, %p145
      %p147 = scmp.ne.s32.totalorder %s136, %s139
      %p148 = scmp.eq.s32.totalorder %s21, 1
      %p149 = por %p147, %p148
      %p150 = scmp.ne.s32.totalorder %s139, %s140
      %p151 = scmp.eq.s32.totalorder %s21, 0
      %p152 = por %p150, %p151
      %p153 = scmp.ne.s32.totalorder %s139, %s140
      %p154 = scmp.eq.s32.totalorder %s22, 1
      %p155 = por %p153, %p154
      %p157 = scmp.ne.s32.totalorder %s140, %s156
      %p158 = scmp.eq.s32.totalorder %s22, 0
      %p159 = por %p157, %p158
      %p160 = scmp.le.s32.totalorder 1, %s16
      %p161 = scmp.lt.s32.totalorder %s16, 3
      %p162 = pnand %p160, %p161
      %p163 = pneg %p162
      // Predicated region
      $region9: #{moco_forward.20} parent=5 // pred_check
        _
      $region10: #{moco_forward.20} parent=5 // pred_check_branch
        %165 = sbr.rel (%p162) target = $region12
      $region11: #{moco_forward.20} parent=5 // pred_region
        %s166 = ssub.s32 %s16, 1
        // Predicated region
        $region13: #{moco_forward.20} parent=11 // pred_check
          %p167 = pneg %p37
        $region14: #{moco_forward.20} parent=11 // pred_check_branch
          %169 = sbr.rel (%p167) target = $region16
        $region15: #{moco_forward.20} parent=11 // pred_region
          _
        $region16: #{moco_forward.20} parent=11 // pred_fallthru
          _
        // Predicated region
        $region17: #{moco_forward.20} parent=11 // pred_check
          %p170 = pneg %p58
        $region18: #{moco_forward.20} parent=11 // pred_check_branch
          %172 = sbr.rel (%p170) target = $region20
        $region19: #{moco_forward.20} parent=11 // pred_region
          _
        $region20: #{moco_forward.20} parent=11 // pred_fallthru
          _
      $region12: #{moco_forward.20} parent=5 // pred_fallthru
        _
      %p173 = scmp.lt.s32.totalorder %s16, 2
      // Predicated region
      $region21: #{moco_forward.20} parent=5 // pred_check
        %p174 = pneg %p173
      $region22: #{moco_forward.20} parent=5 // pred_check_branch
        %176 = sbr.rel (%p174) target = $region24
      $region23: #{moco_forward.20} parent=5 // pred_region
        // Predicated region
        $region25: #{moco_forward.20} parent=23 // pred_check
          %p177 = pneg %p78
        $region26: #{moco_forward.20} parent=23 // pred_check_branch
          %179 = sbr.rel (%p177) target = $region28
        $region27: #{moco_forward.20} parent=23 // pred_region
          %s180 = sand.u32 %s68, 1
          %s181 = sand.u32 %s68, 1
          %s182 = smul.addr %s181, 256
          %s183 = scalar_lea.vmem [#allocation3], %s182
          %s184 = smul.u32 4, %s16
          %s185 = smul.addr %s184, 4
          %s186 = scalar_lea.vmem %s2, %s185
          // Predicated region
          $region29: #{moco_forward.20} parent=27 // pred_check
            _
          $region30: #{moco_forward.20} parent=27 // pred_check_branch
            %188 = sbr.rel (0) target = $region32
          $region31: #{moco_forward.20} parent=27 // pred_region
            // Predicated region
            $region33: #{moco_forward.20} parent=31 // pred_check
              _
            $region34: #{moco_forward.20} parent=31 // pred_check_branch
              %190 = sbr.rel (0) target = $region36
            $region35: #{moco_forward.20} parent=31 // pred_region
              loop: start=0, step=1, limit=1
              $region37: #{moco_forward.20} parent=35 // loop_pre_header
                _
              $region38: #{moco_forward.20} parent=35 // loop_header
                %s192 = sphi 0, %s196
                %p193 = scmp.ge.s32.totalorder %s192, 1
                %s197 = sphi %s186, %s186
                %s198 = sphi %s183, %s183
              $region39: #{moco_forward.20} parent=35 // loop_header_branch
                %195 = sbr.rel (%p193) target = $region43
              $region40: #{moco_forward.20} parent=35 // loop_body
                %v199 = vld [vmem:[%s197] sm:$0xff]
                %200 = vst [vmem:[%s198] sm:$0xff] %v199
                %v201 = vld [vmem:[%s197 + $0x8] sm:$0xff]
                %202 = vst [vmem:[%s198 + $0x8] sm:$0xff] %v201
                %v203 = vld [vmem:[%s197 + $0x20] sm:$0xff]
                %204 = vst [vmem:[%s198 + $0x10] sm:$0xff] %v203
                %v205 = vld [vmem:[%s197 + $0x28] sm:$0xff]
                %206 = vst [vmem:[%s198 + $0x18] sm:$0xff] %v205
                %v207 = vld [vmem:[%s197 + $0x40] sm:$0xff]
                %208 = vst [vmem:[%s198 + $0x20] sm:$0xff] %v207
                %v209 = vld [vmem:[%s197 + $0x48] sm:$0xff]
                %210 = vst [vmem:[%s198 + $0x28] sm:$0xff] %v209
                %v211 = vld [vmem:[%s197 + $0x60] sm:$0xff]
                %212 = vst [vmem:[%s198 + $0x30] sm:$0xff] %v211
                %v213 = vld [vmem:[%s197 + $0x68] sm:$0xff]
                %214 = vst [vmem:[%s198 + $0x38] sm:$0xff] %v213
                %v215 = vld [vmem:[%s197 + $0x80] sm:$0xff]
                %216 = vst [vmem:[%s198 + $0x40] sm:$0xff] %v215
                %v217 = vld [vmem:[%s197 + $0x88] sm:$0xff]
                %218 = vst [vmem:[%s198 + $0x48] sm:$0xff] %v217
                %v219 = vld [vmem:[%s197 + $0xa0] sm:$0xff]
                %220 = vst [vmem:[%s198 + $0x50] sm:$0xff] %v219
                %v221 = vld [vmem:[%s197 + $0xa8] sm:$0xff]
                %222 = vst [vmem:[%s198 + $0x58] sm:$0xff] %v221
                %v223 = vld [vmem:[%s197 + $0xc0] sm:$0xff]
                %224 = vst [vmem:[%s198 + $0x60] sm:$0xff] %v223
                %v225 = vld [vmem:[%s197 + $0xc8] sm:$0xff]
                %226 = vst [vmem:[%s198 + $0x68] sm:$0xff] %v225
                %v227 = vld [vmem:[%s197 + $0xe0] sm:$0xff]
                %228 = vst [vmem:[%s198 + $0x70] sm:$0xff] %v227
                %v229 = vld [vmem:[%s197 + $0xe8] sm:$0xff]
                %230 = vst [vmem:[%s198 + $0x78] sm:$0xff] %v229
                %v231 = vld [vmem:[%s197 + $0x100] sm:$0xff]
                %232 = vst [vmem:[%s198 + $0x80] sm:$0xff] %v231
                %v233 = vld [vmem:[%s197 + $0x108] sm:$0xff]
                %234 = vst [vmem:[%s198 + $0x88] sm:$0xff] %v233
                %v235 = vld [vmem:[%s197 + $0x120] sm:$0xff]
                %236 = vst [vmem:[%s198 + $0x90] sm:$0xff] %v235
                %v237 = vld [vmem:[%s197 + $0x128] sm:$0xff]
                %238 = vst [vmem:[%s198 + $0x98] sm:$0xff] %v237
                %v239 = vld [vmem:[%s197 + $0x140] sm:$0xff]
                %240 = vst [vmem:[%s198 + $0xa0] sm:$0xff] %v239
                %v241 = vld [vmem:[%s197 + $0x148] sm:$0xff]
                %242 = vst [vmem:[%s198 + $0xa8] sm:$0xff] %v241
                %v243 = vld [vmem:[%s197 + $0x160] sm:$0xff]
                %244 = vst [vmem:[%s198 + $0xb0] sm:$0xff] %v243
                %v245 = vld [vmem:[%s197 + $0x168] sm:$0xff]
                %246 = vst [vmem:[%s198 + $0xb8] sm:$0xff] %v245
                %v247 = vld [vmem:[%s197 + $0x180] sm:$0xff]
                %248 = vst [vmem:[%s198 + $0xc0] sm:$0xff] %v247
                %v249 = vld [vmem:[%s197 + $0x188] sm:$0xff]
                %250 = vst [vmem:[%s198 + $0xc8] sm:$0xff] %v249
                %v251 = vld [vmem:[%s197 + $0x1a0] sm:$0xff]
                %252 = vst [vmem:[%s198 + $0xd0] sm:$0xff] %v251
                %v253 = vld [vmem:[%s197 + $0x1a8] sm:$0xff]
                %254 = vst [vmem:[%s198 + $0xd8] sm:$0xff] %v253
                %v255 = vld [vmem:[%s197 + $0x1c0] sm:$0xff]
                %256 = vst [vmem:[%s198 + $0xe0] sm:$0xff] %v255
                %v257 = vld [vmem:[%s197 + $0x1c8] sm:$0xff]
                %258 = vst [vmem:[%s198 + $0xe8] sm:$0xff] %v257
                %v259 = vld [vmem:[%s197 + $0x1e0] sm:$0xff]
                %260 = vst [vmem:[%s198 + $0xf0] sm:$0xff] %v259
                %v261 = vld [vmem:[%s197 + $0x1e8] sm:$0xff]
                %262 = vst [vmem:[%s198 + $0xf8] sm:$0xff] %v261
              $region41: #{moco_forward.20} parent=35 // loop_footer
                %s196 = sadd.s32 1, %s192
              $region42: #{moco_forward.20} parent=35 // loop_footer_branch
                %191 = sbr.rel target = $region38
              $region43: #{moco_forward.20} parent=35 // loop_exit
                _
            $region36: #{moco_forward.20} parent=31 // pred_fallthru
              _
            // Predicated region
            $region44: #{moco_forward.20} parent=31 // pred_check
              _
            $region45: #{moco_forward.20} parent=31 // pred_check_branch
              %264 = sbr.rel target = $region47
            $region46: #{moco_forward.20} parent=31 // pred_region
              _
            $region47: #{moco_forward.20} parent=31 // pred_fallthru
              _
          $region32: #{moco_forward.20} parent=27 // pred_fallthru
            _
          %265 = vnop
        $region28: #{moco_forward.20} parent=23 // pred_fallthru
          _
      $region24: #{moco_forward.20} parent=5 // pred_fallthru
        _
      %p266 = scmp.le.s32.totalorder 1, %s16
      %p267 = scmp.lt.s32.totalorder %s16, 3
      %p268 = pnand %p266, %p267
      %p269 = pneg %p268
      // Predicated region
      $region48: #{moco_forward.20} parent=5 // pred_check
        _
      $region49: #{moco_forward.20} parent=5 // pred_check_branch
        %271 = sbr.rel (%p268) target = $region51
      $region50: #{moco_forward.20} parent=5 // pred_region
        %s272 = ssub.s32 %s16, 1
        %s273 = sand.u32 %s71, 1
        %s274 = sand.u32 %s71, 1
        %s275 = smul.addr %s274, 256
        %s276 = scalar_lea.vmem [#allocation3], %s275
        // Predicated region
        $region52: #{moco_forward.20} parent=50 // pred_check
          %p277 = pneg %p84
        $region53: #{moco_forward.20} parent=50 // pred_check_branch
          %279 = sbr.rel (%p277) target = $region55
        $region54: #{moco_forward.20} parent=50 // pred_region
          _
        $region55: #{moco_forward.20} parent=50 // pred_fallthru
          _
        %p280 = pneg %p37
        %p281 = pneg %p34
        %p282 = pneg %p58
        %p283 = pneg %p55
        %s284 = sand.u32 %s71, 1
        %s285 = sand.u32 %s71, 1
        %s286 = smul.addr %s285, 256
        %s287 = scalar_lea.vmem [#allocation3], %s286
        %p288 = pneg %p84
        %p289 = pneg %p81
        %p290 = pneg %p105
        %p291 = pneg %p102
        %p292 = pneg %p126
        %p293 = pneg %p123
        %p294 = pneg %p152
        %p295 = pneg %p149
        %s296 = sand.u32 %s139, 1
        %s297 = scalar_lea.sflag [#allocation7], %s296
        %s298 = sand.u32 %s139, 1
        %s299 = smul.addr %s298, 32
        %s300 = scalar_lea.vmem [#allocation6], %s299
        %s301 = smul.u32 4, %s21
        %s302 = smul.u32 4, %s21
        %p303 = scmp.eq.s32.totalorder %s21, 0
        // Predicated region
        $region56: #{moco_forward.20} parent=50 // pred_check
          %p304 = pneg %p303
        $region57: #{moco_forward.20} parent=50 // pred_check_branch
          %306 = sbr.rel (%p304) target = $region59
        $region58: #{moco_forward.20} parent=50 // pred_region
          %v307 = vld [vmem:[%s0] sm:$0xff]
          %v308 = vld [vmem:[%s1] sm:$0xff]
          %v309 = vmul.f32 %v307, %v307
          %310 = vadd.xlane.f32.xlu0 %v309
          %v311 = vpop.xlane.xlu0 %310
          %v312 = vmax.f32 %v311, 1e-24
          %v313 = vrsqrt.pop %v312
          %v314 = vmul.f32 %v313, %v312
          %v315 = vmul.f32 %v314, %v313
          %v316 = vmul.f32 0.5, %v315
          %v317 = vsub.f32 1.5, %v316
          %v318 = vmul.f32 %v313, %v317
          %vm319 = vweird.f32 %v312
          %vm320 = vweird.f32 %v313
          %vm321 = vmor %vm319, %vm320
          %v322 = vsel %vm321, %v313, %v318
          %v323 = vmul.f32 %v307, %v322
          %v324 = vmul.f32 %v308, %v308
          %325 = vadd.xlane.f32.xlu0 %v324
          %v326 = vpop.xlane.xlu0 %325
          %v327 = vmax.f32 %v326, 1e-24
          %v328 = vrsqrt.pop %v327
          %v329 = vmul.f32 %v328, %v327
          %v330 = vmul.f32 %v329, %v328
          %v331 = vmul.f32 0.5, %v330
          %v332 = vsub.f32 1.5, %v331
          %v333 = vmul.f32 %v328, %v332
          %vm334 = vweird.f32 %v327
          %vm335 = vweird.f32 %v328
          %vm336 = vmor %vm334, %vm335
          %v337 = vsel %vm336, %v328, %v333
          %v338 = vmul.f32 %v308, %v337
          %v339 = vmul.f32 %v323, 14.285714
          %v340 = vmul.f32 %v339, %v338
          %341 = vadd.xlane.f32.xlu0 %v340
          %v342 = vpop.xlane.xlu0 %341
          %vm343 = vcmask 7168
          %344 = vst.msk [vmem:[#allocation4] sm:$0xff] %vm343, %v342
          %345 = vst [vmem:[%s4] sm:$0xff] %v338
          %v346 = vpack.c.bf16 %v339, %v339
          %347 = vst [vmem:[#allocation2] sm:$0xf] %v346
        $region59: #{moco_forward.20} parent=50 // pred_fallthru
          _
        %v348 = vld [vmem:[#allocation2] sm:$0xf]
        %v349 = vld [vmem:[%s276] sm:$0xff]
        %v350 = vld [vmem:[%s276 + $0x8] sm:$0xff]
        %v351 = vld [vmem:[%s276 + $0x10] sm:$0xff]
        %v352 = vld [vmem:[%s276 + $0x18] sm:$0xff]
        %v353 = vld [vmem:[%s276 + $0x20] sm:$0xff]
        %v354 = vld [vmem:[%s276 + $0x28] sm:$0xff]
        %v355 = vld [vmem:[%s276 + $0x30] sm:$0xff]
        %v356 = vld [vmem:[%s276 + $0x38] sm:$0xff]
        %v357 = vld [vmem:[%s276 + $0x40] sm:$0xff]
        %v358 = vld [vmem:[%s276 + $0x48] sm:$0xff]
        %v359 = vld [vmem:[%s276 + $0x50] sm:$0xff]
        %v360 = vld [vmem:[%s276 + $0x58] sm:$0xff]
        %v361 = vld [vmem:[%s276 + $0x60] sm:$0xff]
        %v362 = vld [vmem:[%s276 + $0x68] sm:$0xff]
        %v363 = vld [vmem:[%s276 + $0x70] sm:$0xff]
        %v364 = vld [vmem:[%s276 + $0x78] sm:$0xff]
        %v365 = vld [vmem:[%s276 + $0x80] sm:$0xff]
        %v366 = vld [vmem:[%s276 + $0x88] sm:$0xff]
        %v367 = vld [vmem:[%s276 + $0x90] sm:$0xff]
        %v368 = vld [vmem:[%s276 + $0x98] sm:$0xff]
        %v369 = vld [vmem:[%s276 + $0xa0] sm:$0xff]
        %v370 = vld [vmem:[%s276 + $0xa8] sm:$0xff]
        %v371 = vld [vmem:[%s276 + $0xb0] sm:$0xff]
        %v372 = vld [vmem:[%s276 + $0xb8] sm:$0xff]
        %v373 = vld [vmem:[%s276 + $0xc0] sm:$0xff]
        %v374 = vld [vmem:[%s276 + $0xc8] sm:$0xff]
        %v375 = vld [vmem:[%s276 + $0xd0] sm:$0xff]
        %v376 = vld [vmem:[%s276 + $0xd8] sm:$0xff]
        %v377 = vld [vmem:[%s276 + $0xe0] sm:$0xff]
        %v378 = vld [vmem:[%s276 + $0xe8] sm:$0xff]
        %v379 = vld [vmem:[%s276 + $0xf0] sm:$0xff]
        %v380 = vld [vmem:[%s276 + $0xf8] sm:$0xff]
        %v413 = vunpack.c.l.b16 %v349
        %v414 = vunpack.c.h.b16 %v349
        %v415 = vunpack.c.l.b16 %v350
        %v416 = vunpack.c.h.b16 %v350
        %v417 = vunpack.c.l.b16 %v351
        %v418 = vunpack.c.h.b16 %v351
        %v419 = vunpack.c.l.b16 %v352
        %v420 = vunpack.c.h.b16 %v352
        %v421 = vunpack.c.l.b16 %v353
        %v422 = vunpack.c.h.b16 %v353
        %v423 = vunpack.c.l.b16 %v354
        %v424 = vunpack.c.h.b16 %v354
        %v425 = vunpack.c.l.b16 %v355
        %v426 = vunpack.c.h.b16 %v355
        %v427 = vunpack.c.l.b16 %v356
        %v428 = vunpack.c.h.b16 %v356
        %v429 = vunpack.c.l.b16 %v357
        %v430 = vunpack.c.h.b16 %v357
        %v431 = vunpack.c.l.b16 %v358
        %v432 = vunpack.c.h.b16 %v358
        %v433 = vunpack.c.l.b16 %v359
        %v434 = vunpack.c.h.b16 %v359
        %v435 = vunpack.c.l.b16 %v360
        %v436 = vunpack.c.h.b16 %v360
        %v437 = vunpack.c.l.b16 %v361
        %v438 = vunpack.c.h.b16 %v361
        %v439 = vunpack.c.l.b16 %v362
        %v440 = vunpack.c.h.b16 %v362
        %v441 = vunpack.c.l.b16 %v363
        %v442 = vunpack.c.h.b16 %v363
        %v443 = vunpack.c.l.b16 %v364
        %v444 = vunpack.c.h.b16 %v364
        %v445 = vunpack.c.l.b16 %v365
        %v446 = vunpack.c.h.b16 %v365
        %v447 = vunpack.c.l.b16 %v366
        %v448 = vunpack.c.h.b16 %v366
        %v449 = vunpack.c.l.b16 %v367
        %v450 = vunpack.c.h.b16 %v367
        %v451 = vunpack.c.l.b16 %v368
        %v452 = vunpack.c.h.b16 %v368
        %v453 = vunpack.c.l.b16 %v369
        %v454 = vunpack.c.h.b16 %v369
        %v455 = vunpack.c.l.b16 %v370
        %v456 = vunpack.c.h.b16 %v370
        %v457 = vunpack.c.l.b16 %v371
        %v458 = vunpack.c.h.b16 %v371
        %v459 = vunpack.c.l.b16 %v372
        %v460 = vunpack.c.h.b16 %v372
        %v461 = vunpack.c.l.b16 %v373
        %v462 = vunpack.c.h.b16 %v373
        %v463 = vunpack.c.l.b16 %v374
        %v464 = vunpack.c.h.b16 %v374
        %v465 = vunpack.c.l.b16 %v375
        %v466 = vunpack.c.h.b16 %v375
        %v467 = vunpack.c.l.b16 %v376
        %v468 = vunpack.c.h.b16 %v376
        %v469 = vunpack.c.l.b16 %v377
        %v470 = vunpack.c.h.b16 %v377
        %v471 = vunpack.c.l.b16 %v378
        %v472 = vunpack.c.h.b16 %v378
        %v473 = vunpack.c.l.b16 %v379
        %v474 = vunpack.c.h.b16 %v379
        %v475 = vunpack.c.l.b16 %v380
        %v476 = vunpack.c.h.b16 %v380
        %v477 = vpack.c.b16 %v417, %v413
        %v478 = vpack.c.b16 %v418, %v414
        %v479 = vpack.c.b16 %v419, %v415
        %v480 = vpack.c.b16 %v420, %v416
        %v481 = vpack.c.b16 %v425, %v421
        %v482 = vpack.c.b16 %v426, %v422
        %v483 = vpack.c.b16 %v427, %v423
        %v484 = vpack.c.b16 %v428, %v424
        %v485 = vpack.c.b16 %v433, %v429
        %v486 = vpack.c.b16 %v434, %v430
        %v487 = vpack.c.b16 %v435, %v431
        %v488 = vpack.c.b16 %v436, %v432
        %v489 = vpack.c.b16 %v441, %v437
        %v490 = vpack.c.b16 %v442, %v438
        %v491 = vpack.c.b16 %v443, %v439
        %v492 = vpack.c.b16 %v444, %v440
        %v493 = vpack.c.b16 %v449, %v445
        %v494 = vpack.c.b16 %v450, %v446
        %v495 = vpack.c.b16 %v451, %v447
        %v496 = vpack.c.b16 %v452, %v448
        %v497 = vpack.c.b16 %v457, %v453
        %v498 = vpack.c.b16 %v458, %v454
        %v499 = vpack.c.b16 %v459, %v455
        %v500 = vpack.c.b16 %v460, %v456
        %v501 = vpack.c.b16 %v465, %v461
        %v502 = vpack.c.b16 %v466, %v462
        %v503 = vpack.c.b16 %v467, %v463
        %v504 = vpack.c.b16 %v468, %v464
        %v505 = vpack.c.b16 %v473, %v469
        %v506 = vpack.c.b16 %v474, %v470
        %v507 = vpack.c.b16 %v475, %v471
        %v508 = vpack.c.b16 %v476, %v472
        %541 = vmatpush.bf16.msra.mxu0 %v505
        %542 = vmatpush.bf16.msra.mxu0 %v501
        %543 = vmatpush.bf16.msra.mxu0 %v497
        %544 = vmatpush.bf16.msra.mxu0 %v493
        %545 = vmatpush.bf16.msra.mxu0 %v489
        %546 = vmatpush.bf16.msra.mxu0 %v485
        %547 = vmatpush.bf16.msra.mxu0 %v481
        %548 = vmatpush.bf16.msra.mxu0 %v477
        %549 = vmatmul.bf16.gmra.mxu0 %v348
        %v550 = vpop.f32.mrf.mxu0
        %v551 = vadd.f32 0.0, %v550
        %v552 = vpop.f32.mrf.mxu0
        %553 = vdwg.mxu0
        %554 = vmatpush.bf16.msra.mxu0 %v506
        %555 = vmatpush.bf16.msra.mxu0 %v502
        %556 = vmatpush.bf16.msra.mxu0 %v498
        %557 = vmatpush.bf16.msra.mxu0 %v494
        %558 = vmatpush.bf16.msra.mxu0 %v490
        %559 = vmatpush.bf16.msra.mxu0 %v486
        %560 = vmatpush.bf16.msra.mxu0 %v482
        %561 = vmatpush.bf16.msra.mxu0 %v478
        %562 = vmatmul.bf16.gmra.mxu0 %v348
        %v563 = vpop.f32.mrf.mxu0
        %v564 = vadd.f32 0.0, %v563
        %v565 = vpop.f32.mrf.mxu0
        %566 = vdwg.mxu0
        %567 = vmatpush.bf16.msra.mxu0 %v507
        %568 = vmatpush.bf16.msra.mxu0 %v503
        %569 = vmatpush.bf16.msra.mxu0 %v499
        %570 = vmatpush.bf16.msra.mxu0 %v495
        %571 = vmatpush.bf16.msra.mxu0 %v491
        %572 = vmatpush.bf16.msra.mxu0 %v487
        %573 = vmatpush.bf16.msra.mxu0 %v483
        %574 = vmatpush.bf16.msra.mxu0 %v479
        %575 = vmatmul.bf16.gmra.mxu0 %v348
        %v576 = vpop.f32.mrf.mxu0
        %v577 = vadd.f32 0.0, %v576
        %v578 = vpop.f32.mrf.mxu0
        %579 = vdwg.mxu0
        %580 = vmatpush.bf16.msra.mxu0 %v508
        %581 = vmatpush.bf16.msra.mxu0 %v504
        %582 = vmatpush.bf16.msra.mxu0 %v500
        %583 = vmatpush.bf16.msra.mxu0 %v496
        %584 = vmatpush.bf16.msra.mxu0 %v492
        %585 = vmatpush.bf16.msra.mxu0 %v488
        %586 = vmatpush.bf16.msra.mxu0 %v484
        %587 = vmatpush.bf16.msra.mxu0 %v480
        %588 = vmatmul.bf16.gmra.mxu0 %v348
        %v589 = vpop.f32.mrf.mxu0
        %v590 = vadd.f32 0.0, %v589
        %v591 = vpop.f32.mrf.mxu0
        %592 = vdwg.mxu0
        %593 = vst [vmem:[%s300] sm:$0xff] %v551
        %594 = vst [vmem:[%s300 + $0x8] sm:$0xff] %v564
        %595 = vst [vmem:[%s300 + $0x10] sm:$0xff] %v577
        %596 = vst [vmem:[%s300 + $0x18] sm:$0xff] %v590
        %s597 = sand.u32 %s139, 1
        %s598 = scalar_lea.sflag [#allocation7], %s597
        %s599 = sand.u32 %s139, 1
        %s600 = smul.addr %s599, 32
        %s601 = scalar_lea.vmem [#allocation6], %s600
        // Predicated region
        $region60: #{moco_forward.20} parent=50 // pred_check
          %p602 = pneg %p102
        $region61: #{moco_forward.20} parent=50 // pred_check_branch
          %604 = sbr.rel (%p602) target = $region63
        $region62: #{moco_forward.20} parent=50 // pred_region
          %606 = vsyncadd [#allocation5], 0
          %s608 = sshll.u32 [#allocation4], 4
          %s609 = int_to_ptr.vmem [resolvable:$true] %s608
          %s610 = sshll.u32 %s3, 4
          %s611 = int_to_ptr.hbm [resolvable:$true] %s610
          %613 = dma.vmem_to_hbm [thread:$0]  %s609, 128, %s611, [#allocation5]
        $region63: #{moco_forward.20} parent=50 // pred_fallthru
          _
        // Predicated region
        $region64: #{moco_forward.20} parent=50 // pred_check
          %p614 = pneg %p123
        $region65: #{moco_forward.20} parent=50 // pred_check_branch
          %616 = sbr.rel (%p614) target = $region67
        $region66: #{moco_forward.20} parent=50 // pred_region
          _
        $region67: #{moco_forward.20} parent=50 // pred_fallthru
          _
        // Predicated region
        $region68: #{moco_forward.20} parent=50 // pred_check
          %p617 = pneg %p149
        $region69: #{moco_forward.20} parent=50 // pred_check_branch
          %619 = sbr.rel (%p617) target = $region71
        $region70: #{moco_forward.20} parent=50 // pred_region
          %s620 = smul.u32 4, %s21
          %622 = vsyncadd %s598, 0
          %s623 = smul.addr %s620, 8
          %s624 = scalar_lea.hbm %s5, %s623
          %s626 = sshll.u32 %s601, 4
          %s627 = int_to_ptr.vmem [resolvable:$true] %s626
          %s628 = sshll.u32 %s624, 4
          %s629 = int_to_ptr.hbm [resolvable:$true] %s628
          %631 = dma.vmem_to_hbm [thread:$0]  %s627, 512, %s629, %s598
        $region71: #{moco_forward.20} parent=50 // pred_fallthru
          _
        // Predicated region
        $region72: #{moco_forward.20} parent=50 // pred_check
          %p632 = pneg %p102
        $region73: #{moco_forward.20} parent=50 // pred_check_branch
          %634 = sbr.rel (%p632) target = $region75
        $region74: #{moco_forward.20} parent=50 // pred_region
          %636 = dma.done [#allocation5], 128
        $region75: #{moco_forward.20} parent=50 // pred_fallthru
          _
        // Predicated region
        $region76: #{moco_forward.20} parent=50 // pred_check
          %p637 = pneg %p123
        $region77: #{moco_forward.20} parent=50 // pred_check_branch
          %639 = sbr.rel (%p637) target = $region79
        $region78: #{moco_forward.20} parent=50 // pred_region
          _
        $region79: #{moco_forward.20} parent=50 // pred_fallthru
          _
      $region51: #{moco_forward.20} parent=5 // pred_fallthru
        _
      %p640 = scmp.le.s32.totalorder 2, %s16
      // Predicated region
      $region80: #{moco_forward.20} parent=5 // pred_check
        %p641 = pneg %p640
      $region81: #{moco_forward.20} parent=5 // pred_check_branch
        %643 = sbr.rel (%p641) target = $region83
      $region82: #{moco_forward.20} parent=5 // pred_region
        %s644 = ssub.s32 %s16, 2
        // Predicated region
        $region84: #{moco_forward.20} parent=82 // pred_check
          %p645 = pneg %p155
        $region85: #{moco_forward.20} parent=82 // pred_check_branch
          %647 = sbr.rel (%p645) target = $region87
        $region86: #{moco_forward.20} parent=82 // pred_region
          %s648 = sand.u32 %s140, 1
          %s649 = scalar_lea.sflag [#allocation7], %s648
          %s650 = sand.u32 %s140, 1
          %s651 = smul.addr %s650, 32
          %s652 = scalar_lea.vmem [#allocation6], %s651
          %654 = dma.done %s649, 512
        $region87: #{moco_forward.20} parent=82 // pred_fallthru
          _
      $region83: #{moco_forward.20} parent=5 // pred_fallthru
        _
    $region6: #{moco_forward.20} parent=1 // loop_footer
      %s20 = sadd.s32 1, %s16
    $region7: #{moco_forward.20} parent=1 // loop_footer_branch
      %15 = sbr.rel target = $region3
    $region8: #{moco_forward.20} parent=1 // loop_exit
      _
    %655 = vsyncpa [#allocation5], 1
    %s656 = scalar_lea.sflag [#allocation5], 1
    %657 = vsyncpa %s656, 1
    %658 = vsyncpa [#allocation7], 1
    %s659 = scalar_lea.sflag [#allocation7], 1
    %660 = vsyncpa %s659, 1

// kernel: moco_forward.12
$region0: #{moco_forward.12}
  #allocation0 [shape = 'u32[]', space=smem, size = 0x4, offset = 0x4, fixed_abs, tag = 'smem constant byte address 0x4 - core index']
  #allocation1 [shape = 'u32[72,128]{1,0:T(1,128)}', space=vmem, size = 0x9000, scoped, tag = 'internal scratch']
  %s0 = inlined_call_operand.vmem [shape: f32[4,3,256], index: 0, kind: input, shape index: {}]
  %s1 = inlined_call_operand.vmem [shape: f32[3,256], index: 1, kind: input, shape index: {}]
  %s2 = inlined_call_operand.hbm [shape: f32[256,128], index: 2, kind: input, shape index: {}]
  %s3 = inlined_call_operand.vmem [shape: f32[1,128], index: 3, kind: input, shape index: {}]
  %s4 = inlined_call_operand.hbm [shape: f32[128,128], index: 4, kind: input, shape index: {}]
  %s5 = inlined_call_operand.vmem [shape: f32[1,128], index: 5, kind: input, shape index: {}]
  %s6 = inlined_call_operand.hbm [shape: f32[128,128], index: 6, kind: input, shape index: {}]
  %s7 = inlined_call_operand.vmem [shape: f32[1,128], index: 7, kind: input, shape index: {}]
  %s8 = inlined_call_operand.vmem [shape: f32[4,128], index: 8, kind: output, shape index: {}]
  %s9 = sld [smem:[#allocation0]]
  $region54: #{moco_forward.12} parent=0
    _
  %s11 = ssub.s32 1, %s9
  %s12 = scalar_select 0, %s11, %s9
  $region1: #{moco_forward.12} parent=0
    #allocation2 [shape = 'u8[131072]{0}', space=vmem, size = 0x20000, scoped, tag = 'input window, operand 2, single buffered']
    #allocation3 [shape = 's32[1]{0}', space=sflag, size = 0x4, scoped, tag = 'scoped memory for moco_forward.12']
    #allocation4 [shape = 'u8[65536]{0}', space=vmem, size = 0x10000, scoped, tag = 'input window, operand 4, single buffered']
    #allocation5 [shape = 's32[1]{0}', space=sflag, size = 0x4, scoped, tag = 'scoped memory for moco_forward.12']
    #allocation6 [shape = 'u8[65536]{0}', space=vmem, size = 0x10000, scoped, tag = 'input window, operand 6, single buffered']
    %13 = vsyncpa [#allocation3], 0
    %14 = vsyncpa [#allocation5], 0
    // Predicated region
    $region2: #{moco_forward.12} parent=1 // pred_check
      _
    $region3: #{moco_forward.12} parent=1 // pred_check_branch
      %16 = sbr.rel (0) target = $region5
    $region4: #{moco_forward.12} parent=1 // pred_region
      _
    $region5: #{moco_forward.12} parent=1 // pred_fallthru
      _
    // Predicated region
    $region6: #{moco_forward.12} parent=1 // pred_check
      _
    $region7: #{moco_forward.12} parent=1 // pred_check_branch
      %18 = sbr.rel (0) target = $region9
    $region8: #{moco_forward.12} parent=1 // pred_region
      _
    $region9: #{moco_forward.12} parent=1 // pred_fallthru
      _
    // Predicated region
    $region10: #{moco_forward.12} parent=1 // pred_check
      _
    $region11: #{moco_forward.12} parent=1 // pred_check_branch
      %20 = sbr.rel (0) target = $region13
    $region12: #{moco_forward.12} parent=1 // pred_region
      %22 = vsyncadd [#allocation3], 0
      %s23 = sshll.u32 %s2, 4
      %s24 = int_to_ptr.hbm [resolvable:$true] %s23
      %s25 = sshll.u32 [#allocation2], 4
      %s26 = int_to_ptr.vmem [resolvable:$true] %s25
      %31 = dma.hbm_to_vmem [thread:$0]  %s24, 4096, %s26, [#allocation3], 128, 128, 8
    $region13: #{moco_forward.12} parent=1 // pred_fallthru
      _
    // Predicated region
    $region14: #{moco_forward.12} parent=1 // pred_check
      _
    $region15: #{moco_forward.12} parent=1 // pred_check_branch
      %33 = sbr.rel (0) target = $region17
    $region16: #{moco_forward.12} parent=1 // pred_region
      _
    $region17: #{moco_forward.12} parent=1 // pred_fallthru
      _
    // Predicated region
    $region18: #{moco_forward.12} parent=1 // pred_check
      _
    $region19: #{moco_forward.12} parent=1 // pred_check_branch
      %35 = sbr.rel (0) target = $region21
    $region20: #{moco_forward.12} parent=1 // pred_region
      %37 = vsyncadd [#allocation5], 0
      %s38 = sshll.u32 %s4, 4
      %s39 = int_to_ptr.hbm [resolvable:$true] %s38
      %s40 = sshll.u32 [#allocation4], 4
      %s41 = int_to_ptr.vmem [resolvable:$true] %s40
      %46 = dma.hbm_to_vmem [thread:$0]  %s39, 2048, %s41, [#allocation5], 128, 128, 8
    $region21: #{moco_forward.12} parent=1 // pred_fallthru
      _
    // Predicated region
    $region22: #{moco_forward.12} parent=1 // pred_check
      _
    $region23: #{moco_forward.12} parent=1 // pred_check_branch
      %48 = sbr.rel (0) target = $region25
    $region24: #{moco_forward.12} parent=1 // pred_region
      _
    $region25: #{moco_forward.12} parent=1 // pred_fallthru
      _
    // Predicated region
    $region26: #{moco_forward.12} parent=1 // pred_check
      _
    $region27: #{moco_forward.12} parent=1 // pred_check_branch
      %50 = sbr.rel (0) target = $region29
    $region28: #{moco_forward.12} parent=1 // pred_region
      %52 = vsyncadd [#allocation5], 0
      %s53 = sshll.u32 %s6, 4
      %s54 = int_to_ptr.hbm [resolvable:$true] %s53
      %s55 = sshll.u32 [#allocation6], 4
      %s56 = int_to_ptr.vmem [resolvable:$true] %s55
      %61 = dma.hbm_to_vmem [thread:$0]  %s54, 2048, %s56, [#allocation5], 128, 128, 8
    $region29: #{moco_forward.12} parent=1 // pred_fallthru
      _
    // Predicated region
    $region30: #{moco_forward.12} parent=1 // pred_check
      _
    $region31: #{moco_forward.12} parent=1 // pred_check_branch
      %63 = sbr.rel (0) target = $region33
    $region32: #{moco_forward.12} parent=1 // pred_region
      _
    $region33: #{moco_forward.12} parent=1 // pred_fallthru
      _
    // Predicated region
    $region34: #{moco_forward.12} parent=1 // pred_check
      _
    $region35: #{moco_forward.12} parent=1 // pred_check_branch
      %65 = sbr.rel (0) target = $region37
    $region36: #{moco_forward.12} parent=1 // pred_region
      %67 = dma.done [#allocation3], 4096
    $region37: #{moco_forward.12} parent=1 // pred_fallthru
      _
    // Predicated region
    $region38: #{moco_forward.12} parent=1 // pred_check
      _
    $region39: #{moco_forward.12} parent=1 // pred_check_branch
      %69 = sbr.rel (0) target = $region41
    $region40: #{moco_forward.12} parent=1 // pred_region
      %71 = dma.done [#allocation5], 2048
    $region41: #{moco_forward.12} parent=1 // pred_fallthru
      _
    // Predicated region
    $region42: #{moco_forward.12} parent=1 // pred_check
      _
    $region43: #{moco_forward.12} parent=1 // pred_check_branch
      %73 = sbr.rel (0) target = $region45
    $region44: #{moco_forward.12} parent=1 // pred_region
      %75 = dma.done [#allocation5], 2048
    $region45: #{moco_forward.12} parent=1 // pred_fallthru
      _
    %v76 = vld [vmem:[%s0] sm:$0x77]
    %v77 = vld [vmem:[%s0 + $0x8] sm:$0x77]
    %v78 = vld [vmem:[%s0 + $0x10] sm:$0x77]
    %v79 = vld [vmem:[%s0 + $0x18] sm:$0x77]
    %84 = vst [vmem:[#allocation1] ss:$2 sm:$0xff] %v76
    %v85 = vld.sshfl [vmem:[#allocation1] sm:$0xff pattern:$0x75316420]
    %v86 = vld.sshfl [vmem:[#allocation1 + $0x8] sm:$0xff pattern:$0x75316420]
    %s87 = scalar_lea.vmem [#allocation1], 16
    %88 = vst [vmem:[%s87] ss:$2 sm:$0xff] %v77
    %v89 = vld.sshfl [vmem:[#allocation1 + $0x10] sm:$0xff pattern:$0x75316420]
    %v90 = vld.sshfl [vmem:[#allocation1 + $0x18] sm:$0xff pattern:$0x75316420]
    %s91 = scalar_lea.vmem [#allocation1], 32
    %92 = vst [vmem:[%s91] ss:$2 sm:$0xff] %v78
    %v93 = vld.sshfl [vmem:[#allocation1 + $0x20] sm:$0xff pattern:$0x75316420]
    %v94 = vld.sshfl [vmem:[#allocation1 + $0x28] sm:$0xff pattern:$0x75316420]
    %s95 = scalar_lea.vmem [#allocation1], 48
    %96 = vst [vmem:[%s95] ss:$2 sm:$0xff] %v79
    %v97 = vld.sshfl [vmem:[#allocation1 + $0x30] sm:$0xff pattern:$0x75316420]
    %v98 = vld.sshfl [vmem:[#allocation1 + $0x38] sm:$0xff pattern:$0x75316420]
    %vm107 = vcmask 1042432
    %v108 = vsel %vm107, %v85, 0.0
    %v109 = vsel %vm107, %v86, 0.0
    %v110 = vadd.f32 %v108, %v109
    %111 = vadd.xlane.f32.xlu0 %v110
    %v112 = vpop.xlane.xlu0 %111
    %v113 = vsel %vm107, %v89, 0.0
    %v114 = vsel %vm107, %v90, 0.0
    %v115 = vadd.f32 %v113, %v114
    %116 = vadd.xlane.f32.xlu0 %v115
    %v117 = vpop.xlane.xlu0 %116
    %v118 = vsel %vm107, %v93, 0.0
    %v119 = vsel %vm107, %v94, 0.0
    %v120 = vadd.f32 %v118, %v119
    %121 = vadd.xlane.f32.xlu0 %v120
    %v122 = vpop.xlane.xlu0 %121
    %v123 = vsel %vm107, %v97, 0.0
    %v124 = vsel %vm107, %v98, 0.0
    %v125 = vadd.f32 %v123, %v124
    %126 = vadd.xlane.f32.xlu0 %v125
    %v127 = vpop.xlane.xlu0 %126
    %v128 = vmul.f32 %v112, 0.00390625
    %v129 = vmul.f32 %v117, 0.00390625
    %v130 = vmul.f32 %v122, 0.00390625
    %v131 = vmul.f32 %v127, 0.00390625
    %v132 = vld [vmem:[%s1] sm:$0x77]
    %v133 = vperm.slane %v128, 0
    %v134 = vperm.slane %v129, 0
    %v135 = vperm.slane %v130, 0
    %v136 = vperm.slane %v131, 0
    %v138 = vperm.slane %v132, 0
    %v139 = vperm.slane %v132, 4
    %v142 = vperm.slane %v138, 0
    %v143 = vperm.slane %v139, 0
    %v146 = vlaneseq
    %v147 = vshrl.u32 %v146, 7
    %149 = vset.pattern.permute.xlu0 %v147
    %150 = vperm.xlu0 %149, %v142
    %v151 = vpop.permute.xlu0 %150
    %v152 = vlaneseq
    %v153 = vshrl.u32 %v152, 7
    %v154 = vadd.s32 %v153, 8
    %155 = vset.pattern.permute.xlu0 %v154
    %156 = vperm.xlu0 %155, %v142
    %v157 = vpop.permute.xlu0 %156
    %v158 = vlaneseq
    %v159 = vshrl.u32 %v158, 7
    %v160 = vadd.s32 %v159, 16
    %161 = vset.pattern.permute.xlu0 %v160
    %162 = vperm.xlu0 %161, %v142
    %v163 = vpop.permute.xlu0 %162
    %v164 = vlaneseq
    %v165 = vshrl.u32 %v164, 7
    %v166 = vadd.s32 %v165, 24
    %167 = vset.pattern.permute.xlu0 %v166
    %168 = vperm.xlu0 %167, %v142
    %v169 = vpop.permute.xlu0 %168
    %v170 = vlaneseq
    %v171 = vshrl.u32 %v170, 7
    %v172 = vadd.s32 %v171, 32
    %173 = vset.pattern.permute.xlu0 %v172
    %174 = vperm.xlu0 %173, %v142
    %v175 = vpop.permute.xlu0 %174
    %v176 = vlaneseq
    %v177 = vshrl.u32 %v176, 7
    %v178 = vadd.s32 %v177, 40
    %179 = vset.pattern.permute.xlu0 %v178
    %180 = vperm.xlu0 %179, %v142
    %v181 = vpop.permute.xlu0 %180
    %v182 = vlaneseq
    %v183 = vshrl.u32 %v182, 7
    %v184 = vadd.s32 %v183, 48
    %185 = vset.pattern.permute.xlu0 %v184
    %186 = vperm.xlu0 %185, %v142
    %v187 = vpop.permute.xlu0 %186
    %v188 = vlaneseq
    %v189 = vshrl.u32 %v188, 7
    %v190 = vadd.s32 %v189, 56
    %191 = vset.pattern.permute.xlu0 %v190
    %192 = vperm.xlu0 %191, %v142
    %v193 = vpop.permute.xlu0 %192
    %v194 = vlaneseq
    %v195 = vshrl.u32 %v194, 7
    %v196 = vadd.s32 %v195, 64
    %197 = vset.pattern.permute.xlu0 %v196
    %198 = vperm.xlu0 %197, %v142
    %v199 = vpop.permute.xlu0 %198
    %v200 = vlaneseq
    %v201 = vshrl.u32 %v200, 7
    %v202 = vadd.s32 %v201, 72
    %203 = vset.pattern.permute.xlu0 %v202
    %204 = vperm.xlu0 %203, %v142
    %v205 = vpop.permute.xlu0 %204
    %v206 = vlaneseq
    %v207 = vshrl.u32 %v206, 7
    %v208 = vadd.s32 %v207, 80
    %209 = vset.pattern.permute.xlu0 %v208
    %210 = vperm.xlu0 %209, %v142
    %v211 = vpop.permute.xlu0 %210
    %v212 = vlaneseq
    %v213 = vshrl.u32 %v212, 7
    %v214 = vadd.s32 %v213, 88
    %215 = vset.pattern.permute.xlu0 %v214
    %216 = vperm.xlu0 %215, %v142
    %v217 = vpop.permute.xlu0 %216
    %v218 = vlaneseq
    %v219 = vshrl.u32 %v218, 7
    %v220 = vadd.s32 %v219, 96
    %221 = vset.pattern.permute.xlu0 %v220
    %222 = vperm.xlu0 %221, %v142
    %v223 = vpop.permute.xlu0 %222
    %v224 = vlaneseq
    %v225 = vshrl.u32 %v224, 7
    %v226 = vadd.s32 %v225, 104
    %227 = vset.pattern.permute.xlu0 %v226
    %228 = vperm.xlu0 %227, %v142
    %v229 = vpop.permute.xlu0 %228
    %v230 = vlaneseq
    %v231 = vshrl.u32 %v230, 7
    %v232 = vadd.s32 %v231, 112
    %233 = vset.pattern.permute.xlu0 %v232
    %234 = vperm.xlu0 %233, %v142
    %v235 = vpop.permute.xlu0 %234
    %v236 = vlaneseq
    %v237 = vshrl.u32 %v236, 7
    %v238 = vadd.s32 %v237, 120
    %239 = vset.pattern.permute.xlu0 %v238
    %240 = vperm.xlu0 %239, %v142
    %v241 = vpop.permute.xlu0 %240
    %v242 = vlaneseq
    %v243 = vshrl.u32 %v242, 7
    %245 = vset.pattern.permute.xlu0 %v243
    %246 = vperm.xlu0 %245, %v143
    %v247 = vpop.permute.xlu0 %246
    %v248 = vlaneseq
    %v249 = vshrl.u32 %v248, 7
    %v250 = vadd.s32 %v249, 8
    %251 = vset.pattern.permute.xlu0 %v250
    %252 = vperm.xlu0 %251, %v143
    %v253 = vpop.permute.xlu0 %252
    %v254 = vlaneseq
    %v255 = vshrl.u32 %v254, 7
    %v256 = vadd.s32 %v255, 16
    %257 = vset.pattern.permute.xlu0 %v256
    %258 = vperm.xlu0 %257, %v143
    %v259 = vpop.permute.xlu0 %258
    %v260 = vlaneseq
    %v261 = vshrl.u32 %v260, 7
    %v262 = vadd.s32 %v261, 24
    %263 = vset.pattern.permute.xlu0 %v262
    %264 = vperm.xlu0 %263, %v143
    %v265 = vpop.permute.xlu0 %264
    %v266 = vlaneseq
    %v267 = vshrl.u32 %v266, 7
    %v268 = vadd.s32 %v267, 32
    %269 = vset.pattern.permute.xlu0 %v268
    %270 = vperm.xlu0 %269, %v143
    %v271 = vpop.permute.xlu0 %270
    %v272 = vlaneseq
    %v273 = vshrl.u32 %v272, 7
    %v274 = vadd.s32 %v273, 40
    %275 = vset.pattern.permute.xlu0 %v274
    %276 = vperm.xlu0 %275, %v143
    %v277 = vpop.permute.xlu0 %276
    %v278 = vlaneseq
    %v279 = vshrl.u32 %v278, 7
    %v280 = vadd.s32 %v279, 48
    %281 = vset.pattern.permute.xlu0 %v280
    %282 = vperm.xlu0 %281, %v143
    %v283 = vpop.permute.xlu0 %282
    %v284 = vlaneseq
    %v285 = vshrl.u32 %v284, 7
    %v286 = vadd.s32 %v285, 56
    %287 = vset.pattern.permute.xlu0 %v286
    %288 = vperm.xlu0 %287, %v143
    %v289 = vpop.permute.xlu0 %288
    %v290 = vlaneseq
    %v291 = vshrl.u32 %v290, 7
    %v292 = vadd.s32 %v291, 64
    %293 = vset.pattern.permute.xlu0 %v292
    %294 = vperm.xlu0 %293, %v143
    %v295 = vpop.permute.xlu0 %294
    %v296 = vlaneseq
    %v297 = vshrl.u32 %v296, 7
    %v298 = vadd.s32 %v297, 72
    %299 = vset.pattern.permute.xlu0 %v298
    %300 = vperm.xlu0 %299, %v143
    %v301 = vpop.permute.xlu0 %300
    %v302 = vlaneseq
    %v303 = vshrl.u32 %v302, 7
    %v304 = vadd.s32 %v303, 80
    %305 = vset.pattern.permute.xlu0 %v304
    %306 = vperm.xlu0 %305, %v143
    %v307 = vpop.permute.xlu0 %306
    %v308 = vlaneseq
    %v309 = vshrl.u32 %v308, 7
    %v310 = vadd.s32 %v309, 88
    %311 = vset.pattern.permute.xlu0 %v310
    %312 = vperm.xlu0 %311, %v143
    %v313 = vpop.permute.xlu0 %312
    %v314 = vlaneseq
    %v315 = vshrl.u32 %v314, 7
    %v316 = vadd.s32 %v315, 96
    %317 = vset.pattern.permute.xlu0 %v316
    %318 = vperm.xlu0 %317, %v143
    %v319 = vpop.permute.xlu0 %318
    %v320 = vlaneseq
    %v321 = vshrl.u32 %v320, 7
    %v322 = vadd.s32 %v321, 104
    %323 = vset.pattern.permute.xlu0 %v322
    %324 = vperm.xlu0 %323, %v143
    %v325 = vpop.permute.xlu0 %324
    %v326 = vlaneseq
    %v327 = vshrl.u32 %v326, 7
    %v328 = vadd.s32 %v327, 112
    %329 = vset.pattern.permute.xlu0 %v328
    %330 = vperm.xlu0 %329, %v143
    %v331 = vpop.permute.xlu0 %330
    %v332 = vlaneseq
    %v333 = vshrl.u32 %v332, 7
    %v334 = vadd.s32 %v333, 120
    %335 = vset.pattern.permute.xlu0 %v334
    %336 = vperm.xlu0 %335, %v143
    %v337 = vpop.permute.xlu0 %336
    %v370 = vmul.f32 %v133, %v151
    %v371 = vmul.f32 %v133, %v157
    %v372 = vmul.f32 %v133, %v163
    %v373 = vmul.f32 %v133, %v169
    %v374 = vmul.f32 %v133, %v175
    %v375 = vmul.f32 %v133, %v181
    %v376 = vmul.f32 %v133, %v187
    %v377 = vmul.f32 %v133, %v193
    %v378 = vmul.f32 %v133, %v199
    %v379 = vmul.f32 %v133, %v205
    %v380 = vmul.f32 %v133, %v211
    %v381 = vmul.f32 %v133, %v217
    %v382 = vmul.f32 %v133, %v223
    %v383 = vmul.f32 %v133, %v229
    %v384 = vmul.f32 %v133, %v235
    %v385 = vmul.f32 %v133, %v241
    %v386 = vmul.f32 %v133, %v247
    %v387 = vmul.f32 %v133, %v253
    %v388 = vmul.f32 %v133, %v259
    %v389 = vmul.f32 %v133, %v265
    %v390 = vmul.f32 %v133, %v271
    %v391 = vmul.f32 %v133, %v277
    %v392 = vmul.f32 %v133, %v283
    %v393 = vmul.f32 %v133, %v289
    %v394 = vmul.f32 %v133, %v295
    %v395 = vmul.f32 %v133, %v301
    %v396 = vmul.f32 %v133, %v307
    %v397 = vmul.f32 %v133, %v313
    %v398 = vmul.f32 %v133, %v319
    %v399 = vmul.f32 %v133, %v325
    %v400 = vmul.f32 %v133, %v331
    %v401 = vmul.f32 %v133, %v337
    %v402 = vmul.f32 %v134, %v151
    %v403 = vmul.f32 %v134, %v157
    %v404 = vmul.f32 %v134, %v163
    %v405 = vmul.f32 %v134, %v169
    %v406 = vmul.f32 %v134, %v175
    %v407 = vmul.f32 %v134, %v181
    %v408 = vmul.f32 %v134, %v187
    %v409 = vmul.f32 %v134, %v193
    %v410 = vmul.f32 %v134, %v199
    %v411 = vmul.f32 %v134, %v205
    %v412 = vmul.f32 %v134, %v211
    %v413 = vmul.f32 %v134, %v217
    %v414 = vmul.f32 %v134, %v223
    %v415 = vmul.f32 %v134, %v229
    %v416 = vmul.f32 %v134, %v235
    %v417 = vmul.f32 %v134, %v241
    %v418 = vmul.f32 %v134, %v247
    %v419 = vmul.f32 %v134, %v253
    %v420 = vmul.f32 %v134, %v259
    %v421 = vmul.f32 %v134, %v265
    %v422 = vmul.f32 %v134, %v271
    %v423 = vmul.f32 %v134, %v277
    %v424 = vmul.f32 %v134, %v283
    %v425 = vmul.f32 %v134, %v289
    %v426 = vmul.f32 %v134, %v295
    %v427 = vmul.f32 %v134, %v301
    %v428 = vmul.f32 %v134, %v307
    %v429 = vmul.f32 %v134, %v313
    %v430 = vmul.f32 %v134, %v319
    %v431 = vmul.f32 %v134, %v325
    %v432 = vmul.f32 %v134, %v331
    %v433 = vmul.f32 %v134, %v337
    %v434 = vmul.f32 %v135, %v151
    %v435 = vmul.f32 %v135, %v157
    %v436 = vmul.f32 %v135, %v163
    %v437 = vmul.f32 %v135, %v169
    %v438 = vmul.f32 %v135, %v175
    %v439 = vmul.f32 %v135, %v181
    %v440 = vmul.f32 %v135, %v187
    %v441 = vmul.f32 %v135, %v193
    %v442 = vmul.f32 %v135, %v199
    %v443 = vmul.f32 %v135, %v205
    %v444 = vmul.f32 %v135, %v211
    %v445 = vmul.f32 %v135, %v217
    %v446 = vmul.f32 %v135, %v223
    %v447 = vmul.f32 %v135, %v229
    %v448 = vmul.f32 %v135, %v235
    %v449 = vmul.f32 %v135, %v241
    %v450 = vmul.f32 %v135, %v247
    %v451 = vmul.f32 %v135, %v253
    %v452 = vmul.f32 %v135, %v259
    %v453 = vmul.f32 %v135, %v265
    %v454 = vmul.f32 %v135, %v271
    %v455 = vmul.f32 %v135, %v277
    %v456 = vmul.f32 %v135, %v283
    %v457 = vmul.f32 %v135, %v289
    %v458 = vmul.f32 %v135, %v295
    %v459 = vmul.f32 %v135, %v301
    %v460 = vmul.f32 %v135, %v307
    %v461 = vmul.f32 %v135, %v313
    %v462 = vmul.f32 %v135, %v319
    %v463 = vmul.f32 %v135, %v325
    %v464 = vmul.f32 %v135, %v331
    %v465 = vmul.f32 %v135, %v337
    %v466 = vmul.f32 %v136, %v151
    %v467 = vmul.f32 %v136, %v157
    %v468 = vmul.f32 %v136, %v163
    %v469 = vmul.f32 %v136, %v169
    %v470 = vmul.f32 %v136, %v175
    %v471 = vmul.f32 %v136, %v181
    %v472 = vmul.f32 %v136, %v187
    %v473 = vmul.f32 %v136, %v193
    %v474 = vmul.f32 %v136, %v199
    %v475 = vmul.f32 %v136, %v205
    %v476 = vmul.f32 %v136, %v211
    %v477 = vmul.f32 %v136, %v217
    %v478 = vmul.f32 %v136, %v223
    %v479 = vmul.f32 %v136, %v229
    %v480 = vmul.f32 %v136, %v235
    %v481 = vmul.f32 %v136, %v241
    %v482 = vmul.f32 %v136, %v247
    %v483 = vmul.f32 %v136, %v253
    %v484 = vmul.f32 %v136, %v259
    %v485 = vmul.f32 %v136, %v265
    %v486 = vmul.f32 %v136, %v271
    %v487 = vmul.f32 %v136, %v277
    %v488 = vmul.f32 %v136, %v283
    %v489 = vmul.f32 %v136, %v289
    %v490 = vmul.f32 %v136, %v295
    %v491 = vmul.f32 %v136, %v301
    %v492 = vmul.f32 %v136, %v307
    %v493 = vmul.f32 %v136, %v313
    %v494 = vmul.f32 %v136, %v319
    %v495 = vmul.f32 %v136, %v325
    %v496 = vmul.f32 %v136, %v331
    %v497 = vmul.f32 %v136, %v337
    %v498 = vperm.slane %v128, 1
    %v499 = vperm.slane %v129, 1
    %v500 = vperm.slane %v130, 1
    %v501 = vperm.slane %v131, 1
    %v502 = vperm.slane %v132, 1
    %v503 = vperm.slane %v132, 5
    %v506 = vperm.slane %v502, 1
    %v507 = vperm.slane %v503, 1
    %v510 = vlaneseq
    %v511 = vshrl.u32 %v510, 7
    %513 = vset.pattern.permute.xlu0 %v511
    %514 = vperm.xlu0 %513, %v506
    %v515 = vpop.permute.xlu0 %514
    %v516 = vlaneseq
    %v517 = vshrl.u32 %v516, 7
    %v518 = vadd.s32 %v517, 8
    %519 = vset.pattern.permute.xlu0 %v518
    %520 = vperm.xlu0 %519, %v506
    %v521 = vpop.permute.xlu0 %520
    %v522 = vlaneseq
    %v523 = vshrl.u32 %v522, 7
    %v524 = vadd.s32 %v523, 16
    %525 = vset.pattern.permute.xlu0 %v524
    %526 = vperm.xlu0 %525, %v506
    %v527 = vpop.permute.xlu0 %526
    %v528 = vlaneseq
    %v529 = vshrl.u32 %v528, 7
    %v530 = vadd.s32 %v529, 24
    %531 = vset.pattern.permute.xlu0 %v530
    %532 = vperm.xlu0 %531, %v506
    %v533 = vpop.permute.xlu0 %532
    %v534 = vlaneseq
    %v535 = vshrl.u32 %v534, 7
    %v536 = vadd.s32 %v535, 32
    %537 = vset.pattern.permute.xlu0 %v536
    %538 = vperm.xlu0 %537, %v506
    %v539 = vpop.permute.xlu0 %538
    %v540 = vlaneseq
    %v541 = vshrl.u32 %v540, 7
    %v542 = vadd.s32 %v541, 40
    %543 = vset.pattern.permute.xlu0 %v542
    %544 = vperm.xlu0 %543, %v506
    %v545 = vpop.permute.xlu0 %544
    %v546 = vlaneseq
    %v547 = vshrl.u32 %v546, 7
    %v548 = vadd.s32 %v547, 48
    %549 = vset.pattern.permute.xlu0 %v548
    %550 = vperm.xlu0 %549, %v506
    %v551 = vpop.permute.xlu0 %550
    %v552 = vlaneseq
    %v553 = vshrl.u32 %v552, 7
    %v554 = vadd.s32 %v553, 56
    %555 = vset.pattern.permute.xlu0 %v554
    %556 = vperm.xlu0 %555, %v506
    %v557 = vpop.permute.xlu0 %556
    %v558 = vlaneseq
    %v559 = vshrl.u32 %v558, 7
    %v560 = vadd.s32 %v559, 64
    %561 = vset.pattern.permute.xlu0 %v560
    %562 = vperm.xlu0 %561, %v506
    %v563 = vpop.permute.xlu0 %562
    %v564 = vlaneseq
    %v565 = vshrl.u32 %v564, 7
    %v566 = vadd.s32 %v565, 72
    %567 = vset.pattern.permute.xlu0 %v566
    %568 = vperm.xlu0 %567, %v506
    %v569 = vpop.permute.xlu0 %568
    %v570 = vlaneseq
    %v571 = vshrl.u32 %v570, 7
    %v572 = vadd.s32 %v571, 80
    %573 = vset.pattern.permute.xlu0 %v572
    %574 = vperm.xlu0 %573, %v506
    %v575 = vpop.permute.xlu0 %574
    %v576 = vlaneseq
    %v577 = vshrl.u32 %v576, 7
    %v578 = vadd.s32 %v577, 88
    %579 = vset.pattern.permute.xlu0 %v578
    %580 = vperm.xlu0 %579, %v506
    %v581 = vpop.permute.xlu0 %580
    %v582 = vlaneseq
    %v583 = vshrl.u32 %v582, 7
    %v584 = vadd.s32 %v583, 96
    %585 = vset.pattern.permute.xlu0 %v584
    %586 = vperm.xlu0 %585, %v506
    %v587 = vpop.permute.xlu0 %586
    %v588 = vlaneseq
    %v589 = vshrl.u32 %v588, 7
    %v590 = vadd.s32 %v589, 104
    %591 = vset.pattern.permute.xlu0 %v590
    %592 = vperm.xlu0 %591, %v506
    %v593 = vpop.permute.xlu0 %592
    %v594 = vlaneseq
    %v595 = vshrl.u32 %v594, 7
    %v596 = vadd.s32 %v595, 112
    %597 = vset.pattern.permute.xlu0 %v596
    %598 = vperm.xlu0 %597, %v506
    %v599 = vpop.permute.xlu0 %598
    %v600 = vlaneseq
    %v601 = vshrl.u32 %v600, 7
    %v602 = vadd.s32 %v601, 120
    %603 = vset.pattern.permute.xlu0 %v602
    %604 = vperm.xlu0 %603, %v506
    %v605 = vpop.permute.xlu0 %604
    %v606 = vlaneseq
    %v607 = vshrl.u32 %v606, 7
    %609 = vset.pattern.permute.xlu0 %v607
    %610 = vperm.xlu0 %609, %v507
    %v611 = vpop.permute.xlu0 %610
    %v612 = vlaneseq
    %v613 = vshrl.u32 %v612, 7
    %v614 = vadd.s32 %v613, 8
    %615 = vset.pattern.permute.xlu0 %v614
    %616 = vperm.xlu0 %615, %v507
    %v617 = vpop.permute.xlu0 %616
    %v618 = vlaneseq
    %v619 = vshrl.u32 %v618, 7
    %v620 = vadd.s32 %v619, 16
    %621 = vset.pattern.permute.xlu0 %v620
    %622 = vperm.xlu0 %621, %v507
    %v623 = vpop.permute.xlu0 %622
    %v624 = vlaneseq
    %v625 = vshrl.u32 %v624, 7
    %v626 = vadd.s32 %v625, 24
    %627 = vset.pattern.permute.xlu0 %v626
    %628 = vperm.xlu0 %627, %v507
    %v629 = vpop.permute.xlu0 %628
    %v630 = vlaneseq
    %v631 = vshrl.u32 %v630, 7
    %v632 = vadd.s32 %v631, 32
    %633 = vset.pattern.permute.xlu0 %v632
    %634 = vperm.xlu0 %633, %v507
    %v635 = vpop.permute.xlu0 %634
    %v636 = vlaneseq
    %v637 = vshrl.u32 %v636, 7
    %v638 = vadd.s32 %v637, 40
    %639 = vset.pattern.permute.xlu0 %v638
    %640 = vperm.xlu0 %639, %v507
    %v641 = vpop.permute.xlu0 %640
    %v642 = vlaneseq
    %v643 = vshrl.u32 %v642, 7
    %v644 = vadd.s32 %v643, 48
    %645 = vset.pattern.permute.xlu0 %v644
    %646 = vperm.xlu0 %645, %v507
    %v647 = vpop.permute.xlu0 %646
    %v648 = vlaneseq
    %v649 = vshrl.u32 %v648, 7
    %v650 = vadd.s32 %v649, 56
    %651 = vset.pattern.permute.xlu0 %v650
    %652 = vperm.xlu0 %651, %v507
    %v653 = vpop.permute.xlu0 %652
    %v654 = vlaneseq
    %v655 = vshrl.u32 %v654, 7
    %v656 = vadd.s32 %v655, 64
    %657 = vset.pattern.permute.xlu0 %v656
    %658 = vperm.xlu0 %657, %v507
    %v659 = vpop.permute.xlu0 %658
    %v660 = vlaneseq
    %v661 = vshrl.u32 %v660, 7
    %v662 = vadd.s32 %v661, 72
    %663 = vset.pattern.permute.xlu0 %v662
    %664 = vperm.xlu0 %663, %v507
    %v665 = vpop.permute.xlu0 %664
    %v666 = vlaneseq
    %v667 = vshrl.u32 %v666, 7
    %v668 = vadd.s32 %v667, 80
    %669 = vset.pattern.permute.xlu0 %v668
    %670 = vperm.xlu0 %669, %v507
    %v671 = vpop.permute.xlu0 %670
    %v672 = vlaneseq
    %v673 = vshrl.u32 %v672, 7
    %v674 = vadd.s32 %v673, 88
    %675 = vset.pattern.permute.xlu0 %v674
    %676 = vperm.xlu0 %675, %v507
    %v677 = vpop.permute.xlu0 %676
    %v678 = vlaneseq
    %v679 = vshrl.u32 %v678, 7
    %v680 = vadd.s32 %v679, 96
    %681 = vset.pattern.permute.xlu0 %v680
    %682 = vperm.xlu0 %681, %v507
    %v683 = vpop.permute.xlu0 %682
    %v684 = vlaneseq
    %v685 = vshrl.u32 %v684, 7
    %v686 = vadd.s32 %v685, 104
    %687 = vset.pattern.permute.xlu0 %v686
    %688 = vperm.xlu0 %687, %v507
    %v689 = vpop.permute.xlu0 %688
    %v690 = vlaneseq
    %v691 = vshrl.u32 %v690, 7
    %v692 = vadd.s32 %v691, 112
    %693 = vset.pattern.permute.xlu0 %v692
    %694 = vperm.xlu0 %693, %v507
    %v695 = vpop.permute.xlu0 %694
    %v696 = vlaneseq
    %v697 = vshrl.u32 %v696, 7
    %v698 = vadd.s32 %v697, 120
    %699 = vset.pattern.permute.xlu0 %v698
    %700 = vperm.xlu0 %699, %v507
    %v701 = vpop.permute.xlu0 %700
    %v734 = vmul.f32 %v498, %v515
    %v735 = vmul.f32 %v498, %v521
    %v736 = vmul.f32 %v498, %v527
    %v737 = vmul.f32 %v498, %v533
    %v738 = vmul.f32 %v498, %v539
    %v739 = vmul.f32 %v498, %v545
    %v740 = vmul.f32 %v498, %v551
    %v741 = vmul.f32 %v498, %v557
    %v742 = vmul.f32 %v498, %v563
    %v743 = vmul.f32 %v498, %v569
    %v744 = vmul.f32 %v498, %v575
    %v745 = vmul.f32 %v498, %v581
    %v746 = vmul.f32 %v498, %v587
    %v747 = vmul.f32 %v498, %v593
    %v748 = vmul.f32 %v498, %v599
    %v749 = vmul.f32 %v498, %v605
    %v750 = vmul.f32 %v498, %v611
    %v751 = vmul.f32 %v498, %v617
    %v752 = vmul.f32 %v498, %v623
    %v753 = vmul.f32 %v498, %v629
    %v754 = vmul.f32 %v498, %v635
    %v755 = vmul.f32 %v498, %v641
    %v756 = vmul.f32 %v498, %v647
    %v757 = vmul.f32 %v498, %v653
    %v758 = vmul.f32 %v498, %v659
    %v759 = vmul.f32 %v498, %v665
    %v760 = vmul.f32 %v498, %v671
    %v761 = vmul.f32 %v498, %v677
    %v762 = vmul.f32 %v498, %v683
    %v763 = vmul.f32 %v498, %v689
    %v764 = vmul.f32 %v498, %v695
    %v765 = vmul.f32 %v498, %v701
    %v766 = vmul.f32 %v499, %v515
    %v767 = vmul.f32 %v499, %v521
    %v768 = vmul.f32 %v499, %v527
    %v769 = vmul.f32 %v499, %v533
    %v770 = vmul.f32 %v499, %v539
    %v771 = vmul.f32 %v499, %v545
    %v772 = vmul.f32 %v499, %v551
    %v773 = vmul.f32 %v499, %v557
    %v774 = vmul.f32 %v499, %v563
    %v775 = vmul.f32 %v499, %v569
    %v776 = vmul.f32 %v499, %v575
    %v777 = vmul.f32 %v499, %v581
    %v778 = vmul.f32 %v499, %v587
    %v779 = vmul.f32 %v499, %v593
    %v780 = vmul.f32 %v499, %v599
    %v781 = vmul.f32 %v499, %v605
    %v782 = vmul.f32 %v499, %v611
    %v783 = vmul.f32 %v499, %v617
    %v784 = vmul.f32 %v499, %v623
    %v785 = vmul.f32 %v499, %v629
    %v786 = vmul.f32 %v499, %v635
    %v787 = vmul.f32 %v499, %v641
    %v788 = vmul.f32 %v499, %v647
    %v789 = vmul.f32 %v499, %v653
    %v790 = vmul.f32 %v499, %v659
    %v791 = vmul.f32 %v499, %v665
    %v792 = vmul.f32 %v499, %v671
    %v793 = vmul.f32 %v499, %v677
    %v794 = vmul.f32 %v499, %v683
    %v795 = vmul.f32 %v499, %v689
    %v796 = vmul.f32 %v499, %v695
    %v797 = vmul.f32 %v499, %v701
    %v798 = vmul.f32 %v500, %v515
    %v799 = vmul.f32 %v500, %v521
    %v800 = vmul.f32 %v500, %v527
    %v801 = vmul.f32 %v500, %v533
    %v802 = vmul.f32 %v500, %v539
    %v803 = vmul.f32 %v500, %v545
    %v804 = vmul.f32 %v500, %v551
    %v805 = vmul.f32 %v500, %v557
    %v806 = vmul.f32 %v500, %v563
    %v807 = vmul.f32 %v500, %v569
    %v808 = vmul.f32 %v500, %v575
    %v809 = vmul.f32 %v500, %v581
    %v810 = vmul.f32 %v500, %v587
    %v811 = vmul.f32 %v500, %v593
    %v812 = vmul.f32 %v500, %v599
    %v813 = vmul.f32 %v500, %v605
    %v814 = vmul.f32 %v500, %v611
    %v815 = vmul.f32 %v500, %v617
    %v816 = vmul.f32 %v500, %v623
    %v817 = vmul.f32 %v500, %v629
    %v818 = vmul.f32 %v500, %v635
    %v819 = vmul.f32 %v500, %v641
    %v820 = vmul.f32 %v500, %v647
    %v821 = vmul.f32 %v500, %v653
    %v822 = vmul.f32 %v500, %v659
    %v823 = vmul.f32 %v500, %v665
    %v824 = vmul.f32 %v500, %v671
    %v825 = vmul.f32 %v500, %v677
    %v826 = vmul.f32 %v500, %v683
    %v827 = vmul.f32 %v500, %v689
    %v828 = vmul.f32 %v500, %v695
    %v829 = vmul.f32 %v500, %v701
    %v830 = vmul.f32 %v501, %v515
    %v831 = vmul.f32 %v501, %v521
    %v832 = vmul.f32 %v501, %v527
    %v833 = vmul.f32 %v501, %v533
    %v834 = vmul.f32 %v501, %v539
    %v835 = vmul.f32 %v501, %v545
    %v836 = vmul.f32 %v501, %v551
    %v837 = vmul.f32 %v501, %v557
    %v838 = vmul.f32 %v501, %v563
    %v839 = vmul.f32 %v501, %v569
    %v840 = vmul.f32 %v501, %v575
    %v841 = vmul.f32 %v501, %v581
    %v842 = vmul.f32 %v501, %v587
    %v843 = vmul.f32 %v501, %v593
    %v844 = vmul.f32 %v501, %v599
    %v845 = vmul.f32 %v501, %v605
    %v846 = vmul.f32 %v501, %v611
    %v847 = vmul.f32 %v501, %v617
    %v848 = vmul.f32 %v501, %v623
    %v849 = vmul.f32 %v501, %v629
    %v850 = vmul.f32 %v501, %v635
    %v851 = vmul.f32 %v501, %v641
    %v852 = vmul.f32 %v501, %v647
    %v853 = vmul.f32 %v501, %v653
    %v854 = vmul.f32 %v501, %v659
    %v855 = vmul.f32 %v501, %v665
    %v856 = vmul.f32 %v501, %v671
    %v857 = vmul.f32 %v501, %v677
    %v858 = vmul.f32 %v501, %v683
    %v859 = vmul.f32 %v501, %v689
    %v860 = vmul.f32 %v501, %v695
    %v861 = vmul.f32 %v501, %v701
    %v862 = vadd.f32 %v370, %v734
    %v863 = vadd.f32 %v371, %v735
    %v864 = vadd.f32 %v372, %v736
    %v865 = vadd.f32 %v373, %v737
    %v866 = vadd.f32 %v374, %v738
    %v867 = vadd.f32 %v375, %v739
    %v868 = vadd.f32 %v376, %v740
    %v869 = vadd.f32 %v377, %v741
    %v870 = vadd.f32 %v378, %v742
    %v871 = vadd.f32 %v379, %v743
    %v872 = vadd.f32 %v380, %v744
    %v873 = vadd.f32 %v381, %v745
    %v874 = vadd.f32 %v382, %v746
    %v875 = vadd.f32 %v383, %v747
    %v876 = vadd.f32 %v384, %v748
    %v877 = vadd.f32 %v385, %v749
    %v878 = vadd.f32 %v386, %v750
    %v879 = vadd.f32 %v387, %v751
    %v880 = vadd.f32 %v388, %v752
    %v881 = vadd.f32 %v389, %v753
    %v882 = vadd.f32 %v390, %v754
    %v883 = vadd.f32 %v391, %v755
    %v884 = vadd.f32 %v392, %v756
    %v885 = vadd.f32 %v393, %v757
    %v886 = vadd.f32 %v394, %v758
    %v887 = vadd.f32 %v395, %v759
    %v888 = vadd.f32 %v396, %v760
    %v889 = vadd.f32 %v397, %v761
    %v890 = vadd.f32 %v398, %v762
    %v891 = vadd.f32 %v399, %v763
    %v892 = vadd.f32 %v400, %v764
    %v893 = vadd.f32 %v401, %v765
    %v894 = vadd.f32 %v402, %v766
    %v895 = vadd.f32 %v403, %v767
    %v896 = vadd.f32 %v404, %v768
    %v897 = vadd.f32 %v405, %v769
    %v898 = vadd.f32 %v406, %v770
    %v899 = vadd.f32 %v407, %v771
    %v900 = vadd.f32 %v408, %v772
    %v901 = vadd.f32 %v409, %v773
    %v902 = vadd.f32 %v410, %v774
    %v903 = vadd.f32 %v411, %v775
    %v904 = vadd.f32 %v412, %v776
    %v905 = vadd.f32 %v413, %v777
    %v906 = vadd.f32 %v414, %v778
    %v907 = vadd.f32 %v415, %v779
    %v908 = vadd.f32 %v416, %v780
    %v909 = vadd.f32 %v417, %v781
    %v910 = vadd.f32 %v418, %v782
    %v911 = vadd.f32 %v419, %v783
    %v912 = vadd.f32 %v420, %v784
    %v913 = vadd.f32 %v421, %v785
    %v914 = vadd.f32 %v422, %v786
    %v915 = vadd.f32 %v423, %v787
    %v916 = vadd.f32 %v424, %v788
    %v917 = vadd.f32 %v425, %v789
    %v918 = vadd.f32 %v426, %v790
    %v919 = vadd.f32 %v427, %v791
    %v920 = vadd.f32 %v428, %v792
    %v921 = vadd.f32 %v429, %v793
    %v922 = vadd.f32 %v430, %v794
    %v923 = vadd.f32 %v431, %v795
    %v924 = vadd.f32 %v432, %v796
    %v925 = vadd.f32 %v433, %v797
    %v926 = vadd.f32 %v434, %v798
    %v927 = vadd.f32 %v435, %v799
    %v928 = vadd.f32 %v436, %v800
    %v929 = vadd.f32 %v437, %v801
    %v930 = vadd.f32 %v438, %v802
    %v931 = vadd.f32 %v439, %v803
    %v932 = vadd.f32 %v440, %v804
    %v933 = vadd.f32 %v441, %v805
    %v934 = vadd.f32 %v442, %v806
    %v935 = vadd.f32 %v443, %v807
    %v936 = vadd.f32 %v444, %v808
    %v937 = vadd.f32 %v445, %v809
    %v938 = vadd.f32 %v446, %v810
    %v939 = vadd.f32 %v447, %v811
    %v940 = vadd.f32 %v448, %v812
    %v941 = vadd.f32 %v449, %v813
    %v942 = vadd.f32 %v450, %v814
    %v943 = vadd.f32 %v451, %v815
    %v944 = vadd.f32 %v452, %v816
    %v945 = vadd.f32 %v453, %v817
    %v946 = vadd.f32 %v454, %v818
    %v947 = vadd.f32 %v455, %v819
    %v948 = vadd.f32 %v456, %v820
    %v949 = vadd.f32 %v457, %v821
    %v950 = vadd.f32 %v458, %v822
    %v951 = vadd.f32 %v459, %v823
    %v952 = vadd.f32 %v460, %v824
    %v953 = vadd.f32 %v461, %v825
    %v954 = vadd.f32 %v462, %v826
    %v955 = vadd.f32 %v463, %v827
    %v956 = vadd.f32 %v464, %v828
    %v957 = vadd.f32 %v465, %v829
    %v958 = vadd.f32 %v466, %v830
    %v959 = vadd.f32 %v467, %v831
    %v960 = vadd.f32 %v468, %v832
    %v961 = vadd.f32 %v469, %v833
    %v962 = vadd.f32 %v470, %v834
    %v963 = vadd.f32 %v471, %v835
    %v964 = vadd.f32 %v472, %v836
    %v965 = vadd.f32 %v473, %v837
    %v966 = vadd.f32 %v474, %v838
    %v967 = vadd.f32 %v475, %v839
    %v968 = vadd.f32 %v476, %v840
    %v969 = vadd.f32 %v477, %v841
    %v970 = vadd.f32 %v478, %v842
    %v971 = vadd.f32 %v479, %v843
    %v972 = vadd.f32 %v480, %v844
    %v973 = vadd.f32 %v481, %v845
    %v974 = vadd.f32 %v482, %v846
    %v975 = vadd.f32 %v483, %v847
    %v976 = vadd.f32 %v484, %v848
    %v977 = vadd.f32 %v485, %v849
    %v978 = vadd.f32 %v486, %v850
    %v979 = vadd.f32 %v487, %v851
    %v980 = vadd.f32 %v488, %v852
    %v981 = vadd.f32 %v489, %v853
    %v982 = vadd.f32 %v490, %v854
    %v983 = vadd.f32 %v491, %v855
    %v984 = vadd.f32 %v492, %v856
    %v985 = vadd.f32 %v493, %v857
    %v986 = vadd.f32 %v494, %v858
    %v987 = vadd.f32 %v495, %v859
    %v988 = vadd.f32 %v496, %v860
    %v989 = vadd.f32 %v497, %v861
    %v990 = vperm.slane %v128, 2
    %v991 = vperm.slane %v129, 2
    %v992 = vperm.slane %v130, 2
    %v993 = vperm.slane %v131, 2
    %v994 = vperm.slane %v132, 2
    %v995 = vperm.slane %v132, 6
    %v998 = vperm.slane %v994, 2
    %v999 = vperm.slane %v995, 2
    %v1002 = vlaneseq
    %v1003 = vshrl.u32 %v1002, 7
    %1005 = vset.pattern.permute.xlu0 %v1003
    %1006 = vperm.xlu0 %1005, %v998
    %v1007 = vpop.permute.xlu0 %1006
    %v1008 = vlaneseq
    %v1009 = vshrl.u32 %v1008, 7
    %v1010 = vadd.s32 %v1009, 8
    %1011 = vset.pattern.permute.xlu0 %v1010
    %1012 = vperm.xlu0 %1011, %v998
    %v1013 = vpop.permute.xlu0 %1012
    %v1014 = vlaneseq
    %v1015 = vshrl.u32 %v1014, 7
    %v1016 = vadd.s32 %v1015, 16
    %1017 = vset.pattern.permute.xlu0 %v1016
    %1018 = vperm.xlu0 %1017, %v998
    %v1019 = vpop.permute.xlu0 %1018
    %v1020 = vlaneseq
    %v1021 = vshrl.u32 %v1020, 7
    %v1022 = vadd.s32 %v1021, 24
    %1023 = vset.pattern.permute.xlu0 %v1022
    %1024 = vperm.xlu0 %1023, %v998
    %v1025 = vpop.permute.xlu0 %1024
    %v1026 = vlaneseq
    %v1027 = vshrl.u32 %v1026, 7
    %v1028 = vadd.s32 %v1027, 32
    %1029 = vset.pattern.permute.xlu0 %v1028
    %1030 = vperm.xlu0 %1029, %v998
    %v1031 = vpop.permute.xlu0 %1030
    %v1032 = vlaneseq
    %v1033 = vshrl.u32 %v1032, 7
    %v1034 = vadd.s32 %v1033, 40
    %1035 = vset.pattern.permute.xlu0 %v1034
    %1036 = vperm.xlu0 %1035, %v998
    %v1037 = vpop.permute.xlu0 %1036
    %v1038 = vlaneseq
    %v1039 = vshrl.u32 %v1038, 7
    %v1040 = vadd.s32 %v1039, 48
    %1041 = vset.pattern.permute.xlu0 %v1040
    %1042 = vperm.xlu0 %1041, %v998
    %v1043 = vpop.permute.xlu0 %1042
    %v1044 = vlaneseq
    %v1045 = vshrl.u32 %v1044, 7
    %v1046 = vadd.s32 %v1045, 56
    %1047 = vset.pattern.permute.xlu0 %v1046
    %1048 = vperm.xlu0 %1047, %v998
    %v1049 = vpop.permute.xlu0 %1048
    %v1050 = vlaneseq
    %v1051 = vshrl.u32 %v1050, 7
    %v1052 = vadd.s32 %v1051, 64
    %1053 = vset.pattern.permute.xlu0 %v1052
    %1054 = vperm.xlu0 %1053, %v998
    %v1055 = vpop.permute.xlu0 %1054
    %v1056 = vlaneseq
    %v1057 = vshrl.u32 %v1056, 7
    %v1058 = vadd.s32 %v1057, 72
    %1059 = vset.pattern.permute.xlu0 %v1058
    %1060 = vperm.xlu0 %1059, %v998
    %v1061 = vpop.permute.xlu0 %1060
    %v1062 = vlaneseq
    %v1063 = vshrl.u32 %v1062, 7
    %v1064 = vadd.s32 %v1063, 80
    %1065 = vset.pattern.permute.xlu0 %v1064
    %1066 = vperm.xlu0 %1065, %v998
    %v1067 = vpop.permute.xlu0 %1066
    %v1068 = vlaneseq
    %v1069 = vshrl.u32 %v1068, 7
    %v1070 = vadd.s32 %v1069, 88
    %1071 = vset.pattern.permute.xlu0 %v1070
    %1072 = vperm.xlu0 %1071, %v998
    %v1073 = vpop.permute.xlu0 %1072
    %v1074 = vlaneseq
    %v1075 = vshrl.u32 %v1074, 7
    %v1076 = vadd.s32 %v1075, 96
    %1077 = vset.pattern.permute.xlu0 %v1076
    %1078 = vperm.xlu0 %1077, %v998
    %v1079 = vpop.permute.xlu0 %1078
    %v1080 = vlaneseq
    %v1081 = vshrl.u32 %v1080, 7
    %v1082 = vadd.s32 %v1081, 104
    %1083 = vset.pattern.permute.xlu0 %v1082
    %1084 = vperm.xlu0 %1083, %v998
    %v1085 = vpop.permute.xlu0 %1084
    %v1086 = vlaneseq
    %v1087 = vshrl.u32 %v1086, 7
    %v1088 = vadd.s32 %v1087, 112
    %1089 = vset.pattern.permute.xlu0 %v1088
    %1090 = vperm.xlu0 %1089, %v998
    %v1091 = vpop.permute.xlu0 %1090
    %v1092 = vlaneseq
    %v1093 = vshrl.u32 %v1092, 7
    %v1094 = vadd.s32 %v1093, 120
    %1095 = vset.pattern.permute.xlu0 %v1094
    %1096 = vperm.xlu0 %1095, %v998
    %v1097 = vpop.permute.xlu0 %1096
    %v1098 = vlaneseq
    %v1099 = vshrl.u32 %v1098, 7
    %1101 = vset.pattern.permute.xlu0 %v1099
    %1102 = vperm.xlu0 %1101, %v999
    %v1103 = vpop.permute.xlu0 %1102
    %v1104 = vlaneseq
    %v1105 = vshrl.u32 %v1104, 7
    %v1106 = vadd.s32 %v1105, 8
    %1107 = vset.pattern.permute.xlu0 %v1106
    %1108 = vperm.xlu0 %1107, %v999
    %v1109 = vpop.permute.xlu0 %1108
    %v1110 = vlaneseq
    %v1111 = vshrl.u32 %v1110, 7
    %v1112 = vadd.s32 %v1111, 16
    %1113 = vset.pattern.permute.xlu0 %v1112
    %1114 = vperm.xlu0 %1113, %v999
    %v1115 = vpop.permute.xlu0 %1114
    %v1116 = vlaneseq
    %v1117 = vshrl.u32 %v1116, 7
    %v1118 = vadd.s32 %v1117, 24
    %1119 = vset.pattern.permute.xlu0 %v1118
    %1120 = vperm.xlu0 %1119, %v999
    %v1121 = vpop.permute.xlu0 %1120
    %v1122 = vlaneseq
    %v1123 = vshrl.u32 %v1122, 7
    %v1124 = vadd.s32 %v1123, 32
    %1125 = vset.pattern.permute.xlu0 %v1124
    %1126 = vperm.xlu0 %1125, %v999
    %v1127 = vpop.permute.xlu0 %1126
    %v1128 = vlaneseq
    %v1129 = vshrl.u32 %v1128, 7
    %v1130 = vadd.s32 %v1129, 40
    %1131 = vset.pattern.permute.xlu0 %v1130
    %1132 = vperm.xlu0 %1131, %v999
    %v1133 = vpop.permute.xlu0 %1132
    %v1134 = vlaneseq
    %v1135 = vshrl.u32 %v1134, 7
    %v1136 = vadd.s32 %v1135, 48
    %1137 = vset.pattern.permute.xlu0 %v1136
    %1138 = vperm.xlu0 %1137, %v999
    %v1139 = vpop.permute.xlu0 %1138
    %v1140 = vlaneseq
    %v1141 = vshrl.u32 %v1140, 7
    %v1142 = vadd.s32 %v1141, 56
    %1143 = vset.pattern.permute.xlu0 %v1142
    %1144 = vperm.xlu0 %1143, %v999
    %v1145 = vpop.permute.xlu0 %1144
    %v1146 = vlaneseq
    %v1147 = vshrl.u32 %v1146, 7
    %v1148 = vadd.s32 %v1147, 64
    %1149 = vset.pattern.permute.xlu0 %v1148
    %1150 = vperm.xlu0 %1149, %v999
    %v1151 = vpop.permute.xlu0 %1150
    %v1152 = vlaneseq
    %v1153 = vshrl.u32 %v1152, 7
    %v1154 = vadd.s32 %v1153, 72
    %1155 = vset.pattern.permute.xlu0 %v1154
    %1156 = vperm.xlu0 %1155, %v999
    %v1157 = vpop.permute.xlu0 %1156
    %v1158 = vlaneseq
    %v1159 = vshrl.u32 %v1158, 7
    %v1160 = vadd.s32 %v1159, 80
    %1161 = vset.pattern.permute.xlu0 %v1160
    %1162 = vperm.xlu0 %1161, %v999
    %v1163 = vpop.permute.xlu0 %1162
    %v1164 = vlaneseq
    %v1165 = vshrl.u32 %v1164, 7
    %v1166 = vadd.s32 %v1165, 88
    %1167 = vset.pattern.permute.xlu0 %v1166
    %1168 = vperm.xlu0 %1167, %v999
    %v1169 = vpop.permute.xlu0 %1168
    %v1170 = vlaneseq
    %v1171 = vshrl.u32 %v1170, 7
    %v1172 = vadd.s32 %v1171, 96
    %1173 = vset.pattern.permute.xlu0 %v1172
    %1174 = vperm.xlu0 %1173, %v999
    %v1175 = vpop.permute.xlu0 %1174
    %v1176 = vlaneseq
    %v1177 = vshrl.u32 %v1176, 7
    %v1178 = vadd.s32 %v1177, 104
    %1179 = vset.pattern.permute.xlu0 %v1178
    %1180 = vperm.xlu0 %1179, %v999
    %v1181 = vpop.permute.xlu0 %1180
    %v1182 = vlaneseq
    %v1183 = vshrl.u32 %v1182, 7
    %v1184 = vadd.s32 %v1183, 112
    %1185 = vset.pattern.permute.xlu0 %v1184
    %1186 = vperm.xlu0 %1185, %v999
    %v1187 = vpop.permute.xlu0 %1186
    %v1188 = vlaneseq
    %v1189 = vshrl.u32 %v1188, 7
    %v1190 = vadd.s32 %v1189, 120
    %1191 = vset.pattern.permute.xlu0 %v1190
    %1192 = vperm.xlu0 %1191, %v999
    %v1193 = vpop.permute.xlu0 %1192
    %v1226 = vmul.f32 %v990, %v1007
    %v1227 = vmul.f32 %v990, %v1013
    %v1228 = vmul.f32 %v990, %v1019
    %v1229 = vmul.f32 %v990, %v1025
    %v1230 = vmul.f32 %v990, %v1031
    %v1231 = vmul.f32 %v990, %v1037
    %v1232 = vmul.f32 %v990, %v1043
    %v1233 = vmul.f32 %v990, %v1049
    %v1234 = vmul.f32 %v990, %v1055
    %v1235 = vmul.f32 %v990, %v1061
    %v1236 = vmul.f32 %v990, %v1067
    %v1237 = vmul.f32 %v990, %v1073
    %v1238 = vmul.f32 %v990, %v1079
    %v1239 = vmul.f32 %v990, %v1085
    %v1240 = vmul.f32 %v990, %v1091
    %v1241 = vmul.f32 %v990, %v1097
    %v1242 = vmul.f32 %v990, %v1103
    %v1243 = vmul.f32 %v990, %v1109
    %v1244 = vmul.f32 %v990, %v1115
    %v1245 = vmul.f32 %v990, %v1121
    %v1246 = vmul.f32 %v990, %v1127
    %v1247 = vmul.f32 %v990, %v1133
    %v1248 = vmul.f32 %v990, %v1139
    %v1249 = vmul.f32 %v990, %v1145
    %v1250 = vmul.f32 %v990, %v1151
    %v1251 = vmul.f32 %v990, %v1157
    %v1252 = vmul.f32 %v990, %v1163
    %v1253 = vmul.f32 %v990, %v1169
    %v1254 = vmul.f32 %v990, %v1175
    %v1255 = vmul.f32 %v990, %v1181
    %v1256 = vmul.f32 %v990, %v1187
    %v1257 = vmul.f32 %v990, %v1193
    %v1258 = vmul.f32 %v991, %v1007
    %v1259 = vmul.f32 %v991, %v1013
    %v1260 = vmul.f32 %v991, %v1019
    %v1261 = vmul.f32 %v991, %v1025
    %v1262 = vmul.f32 %v991, %v1031
    %v1263 = vmul.f32 %v991, %v1037
    %v1264 = vmul.f32 %v991, %v1043
    %v1265 = vmul.f32 %v991, %v1049
    %v1266 = vmul.f32 %v991, %v1055
    %v1267 = vmul.f32 %v991, %v1061
    %v1268 = vmul.f32 %v991, %v1067
    %v1269 = vmul.f32 %v991, %v1073
    %v1270 = vmul.f32 %v991, %v1079
    %v1271 = vmul.f32 %v991, %v1085
    %v1272 = vmul.f32 %v991, %v1091
    %v1273 = vmul.f32 %v991, %v1097
    %v1274 = vmul.f32 %v991, %v1103
    %v1275 = vmul.f32 %v991, %v1109
    %v1276 = vmul.f32 %v991, %v1115
    %v1277 = vmul.f32 %v991, %v1121
    %v1278 = vmul.f32 %v991, %v1127
    %v1279 = vmul.f32 %v991, %v1133
    %v1280 = vmul.f32 %v991, %v1139
    %v1281 = vmul.f32 %v991, %v1145
    %v1282 = vmul.f32 %v991, %v1151
    %v1283 = vmul.f32 %v991, %v1157
    %v1284 = vmul.f32 %v991, %v1163
    %v1285 = vmul.f32 %v991, %v1169
    %v1286 = vmul.f32 %v991, %v1175
    %v1287 = vmul.f32 %v991, %v1181
    %v1288 = vmul.f32 %v991, %v1187
    %v1289 = vmul.f32 %v991, %v1193
    %v1290 = vmul.f32 %v992, %v1007
    %v1291 = vmul.f32 %v992, %v1013
    %v1292 = vmul.f32 %v992, %v1019
    %v1293 = vmul.f32 %v992, %v1025
    %v1294 = vmul.f32 %v992, %v1031
    %v1295 = vmul.f32 %v992, %v1037
    %v1296 = vmul.f32 %v992, %v1043
    %v1297 = vmul.f32 %v992, %v1049
    %v1298 = vmul.f32 %v992, %v1055
    %v1299 = vmul.f32 %v992, %v1061
    %v1300 = vmul.f32 %v992, %v1067
    %v1301 = vmul.f32 %v992, %v1073
    %v1302 = vmul.f32 %v992, %v1079
    %v1303 = vmul.f32 %v992, %v1085
    %v1304 = vmul.f32 %v992, %v1091
    %v1305 = vmul.f32 %v992, %v1097
    %v1306 = vmul.f32 %v992, %v1103
    %v1307 = vmul.f32 %v992, %v1109
    %v1308 = vmul.f32 %v992, %v1115
    %v1309 = vmul.f32 %v992, %v1121
    %v1310 = vmul.f32 %v992, %v1127
    %v1311 = vmul.f32 %v992, %v1133
    %v1312 = vmul.f32 %v992, %v1139
    %v1313 = vmul.f32 %v992, %v1145
    %v1314 = vmul.f32 %v992, %v1151
    %v1315 = vmul.f32 %v992, %v1157
    %v1316 = vmul.f32 %v992, %v1163
    %v1317 = vmul.f32 %v992, %v1169
    %v1318 = vmul.f32 %v992, %v1175
    %v1319 = vmul.f32 %v992, %v1181
    %v1320 = vmul.f32 %v992, %v1187
    %v1321 = vmul.f32 %v992, %v1193
    %v1322 = vmul.f32 %v993, %v1007
    %v1323 = vmul.f32 %v993, %v1013
    %v1324 = vmul.f32 %v993, %v1019
    %v1325 = vmul.f32 %v993, %v1025
    %v1326 = vmul.f32 %v993, %v1031
    %v1327 = vmul.f32 %v993, %v1037
    %v1328 = vmul.f32 %v993, %v1043
    %v1329 = vmul.f32 %v993, %v1049
    %v1330 = vmul.f32 %v993, %v1055
    %v1331 = vmul.f32 %v993, %v1061
    %v1332 = vmul.f32 %v993, %v1067
    %v1333 = vmul.f32 %v993, %v1073
    %v1334 = vmul.f32 %v993, %v1079
    %v1335 = vmul.f32 %v993, %v1085
    %v1336 = vmul.f32 %v993, %v1091
    %v1337 = vmul.f32 %v993, %v1097
    %v1338 = vmul.f32 %v993, %v1103
    %v1339 = vmul.f32 %v993, %v1109
    %v1340 = vmul.f32 %v993, %v1115
    %v1341 = vmul.f32 %v993, %v1121
    %v1342 = vmul.f32 %v993, %v1127
    %v1343 = vmul.f32 %v993, %v1133
    %v1344 = vmul.f32 %v993, %v1139
    %v1345 = vmul.f32 %v993, %v1145
    %v1346 = vmul.f32 %v993, %v1151
    %v1347 = vmul.f32 %v993, %v1157
    %v1348 = vmul.f32 %v993, %v1163
    %v1349 = vmul.f32 %v993, %v1169
    %v1350 = vmul.f32 %v993, %v1175
    %v1351 = vmul.f32 %v993, %v1181
    %v1352 = vmul.f32 %v993, %v1187
    %v1353 = vmul.f32 %v993, %v1193
    %v1354 = vadd.f32 %v862, %v1226
    %v1355 = vadd.f32 %v863, %v1227
    %v1356 = vadd.f32 %v864, %v1228
    %v1357 = vadd.f32 %v865, %v1229
    %v1358 = vadd.f32 %v866, %v1230
    %v1359 = vadd.f32 %v867, %v1231
    %v1360 = vadd.f32 %v868, %v1232
    %v1361 = vadd.f32 %v869, %v1233
    %v1362 = vadd.f32 %v870, %v1234
    %v1363 = vadd.f32 %v871, %v1235
    %v1364 = vadd.f32 %v872, %v1236
    %v1365 = vadd.f32 %v873, %v1237
    %v1366 = vadd.f32 %v874, %v1238
    %v1367 = vadd.f32 %v875, %v1239
    %v1368 = vadd.f32 %v876, %v1240
    %v1369 = vadd.f32 %v877, %v1241
    %v1370 = vadd.f32 %v878, %v1242
    %v1371 = vadd.f32 %v879, %v1243
    %v1372 = vadd.f32 %v880, %v1244
    %v1373 = vadd.f32 %v881, %v1245
    %v1374 = vadd.f32 %v882, %v1246
    %v1375 = vadd.f32 %v883, %v1247
    %v1376 = vadd.f32 %v884, %v1248
    %v1377 = vadd.f32 %v885, %v1249
    %v1378 = vadd.f32 %v886, %v1250
    %v1379 = vadd.f32 %v887, %v1251
    %v1380 = vadd.f32 %v888, %v1252
    %v1381 = vadd.f32 %v889, %v1253
    %v1382 = vadd.f32 %v890, %v1254
    %v1383 = vadd.f32 %v891, %v1255
    %v1384 = vadd.f32 %v892, %v1256
    %v1385 = vadd.f32 %v893, %v1257
    %v1386 = vadd.f32 %v894, %v1258
    %v1387 = vadd.f32 %v895, %v1259
    %v1388 = vadd.f32 %v896, %v1260
    %v1389 = vadd.f32 %v897, %v1261
    %v1390 = vadd.f32 %v898, %v1262
    %v1391 = vadd.f32 %v899, %v1263
    %v1392 = vadd.f32 %v900, %v1264
    %v1393 = vadd.f32 %v901, %v1265
    %v1394 = vadd.f32 %v902, %v1266
    %v1395 = vadd.f32 %v903, %v1267
    %v1396 = vadd.f32 %v904, %v1268
    %v1397 = vadd.f32 %v905, %v1269
    %v1398 = vadd.f32 %v906, %v1270
    %v1399 = vadd.f32 %v907, %v1271
    %v1400 = vadd.f32 %v908, %v1272
    %v1401 = vadd.f32 %v909, %v1273
    %v1402 = vadd.f32 %v910, %v1274
    %v1403 = vadd.f32 %v911, %v1275
    %v1404 = vadd.f32 %v912, %v1276
    %v1405 = vadd.f32 %v913, %v1277
    %v1406 = vadd.f32 %v914, %v1278
    %v1407 = vadd.f32 %v915, %v1279
    %v1408 = vadd.f32 %v916, %v1280
    %v1409 = vadd.f32 %v917, %v1281
    %v1410 = vadd.f32 %v918, %v1282
    %v1411 = vadd.f32 %v919, %v1283
    %v1412 = vadd.f32 %v920, %v1284
    %v1413 = vadd.f32 %v921, %v1285
    %v1414 = vadd.f32 %v922, %v1286
    %v1415 = vadd.f32 %v923, %v1287
    %v1416 = vadd.f32 %v924, %v1288
    %v1417 = vadd.f32 %v925, %v1289
    %v1418 = vadd.f32 %v926, %v1290
    %v1419 = vadd.f32 %v927, %v1291
    %v1420 = vadd.f32 %v928, %v1292
    %v1421 = vadd.f32 %v929, %v1293
    %v1422 = vadd.f32 %v930, %v1294
    %v1423 = vadd.f32 %v931, %v1295
    %v1424 = vadd.f32 %v932, %v1296
    %v1425 = vadd.f32 %v933, %v1297
    %v1426 = vadd.f32 %v934, %v1298
    %v1427 = vadd.f32 %v935, %v1299
    %v1428 = vadd.f32 %v936, %v1300
    %v1429 = vadd.f32 %v937, %v1301
    %v1430 = vadd.f32 %v938, %v1302
    %v1431 = vadd.f32 %v939, %v1303
    %v1432 = vadd.f32 %v940, %v1304
    %v1433 = vadd.f32 %v941, %v1305
    %v1434 = vadd.f32 %v942, %v1306
    %v1435 = vadd.f32 %v943, %v1307
    %v1436 = vadd.f32 %v944, %v1308
    %v1437 = vadd.f32 %v945, %v1309
    %v1438 = vadd.f32 %v946, %v1310
    %v1439 = vadd.f32 %v947, %v1311
    %v1440 = vadd.f32 %v948, %v1312
    %v1441 = vadd.f32 %v949, %v1313
    %v1442 = vadd.f32 %v950, %v1314
    %v1443 = vadd.f32 %v951, %v1315
    %v1444 = vadd.f32 %v952, %v1316
    %v1445 = vadd.f32 %v953, %v1317
    %v1446 = vadd.f32 %v954, %v1318
    %v1447 = vadd.f32 %v955, %v1319
    %v1448 = vadd.f32 %v956, %v1320
    %v1449 = vadd.f32 %v957, %v1321
    %v1450 = vadd.f32 %v958, %v1322
    %v1451 = vadd.f32 %v959, %v1323
    %v1452 = vadd.f32 %v960, %v1324
    %v1453 = vadd.f32 %v961, %v1325
    %v1454 = vadd.f32 %v962, %v1326
    %v1455 = vadd.f32 %v963, %v1327
    %v1456 = vadd.f32 %v964, %v1328
    %v1457 = vadd.f32 %v965, %v1329
    %v1458 = vadd.f32 %v966, %v1330
    %v1459 = vadd.f32 %v967, %v1331
    %v1460 = vadd.f32 %v968, %v1332
    %v1461 = vadd.f32 %v969, %v1333
    %v1462 = vadd.f32 %v970, %v1334
    %v1463 = vadd.f32 %v971, %v1335
    %v1464 = vadd.f32 %v972, %v1336
    %v1465 = vadd.f32 %v973, %v1337
    %v1466 = vadd.f32 %v974, %v1338
    %v1467 = vadd.f32 %v975, %v1339
    %v1468 = vadd.f32 %v976, %v1340
    %v1469 = vadd.f32 %v977, %v1341
    %v1470 = vadd.f32 %v978, %v1342
    %v1471 = vadd.f32 %v979, %v1343
    %v1472 = vadd.f32 %v980, %v1344
    %v1473 = vadd.f32 %v981, %v1345
    %v1474 = vadd.f32 %v982, %v1346
    %v1475 = vadd.f32 %v983, %v1347
    %v1476 = vadd.f32 %v984, %v1348
    %v1477 = vadd.f32 %v985, %v1349
    %v1478 = vadd.f32 %v986, %v1350
    %v1479 = vadd.f32 %v987, %v1351
    %v1480 = vadd.f32 %v988, %v1352
    %v1481 = vadd.f32 %v989, %v1353
    %v1482 = vpack.c.bf16 %v1355, %v1354
    %v1483 = vpack.c.bf16 %v1357, %v1356
    %v1484 = vpack.c.bf16 %v1359, %v1358
    %v1485 = vpack.c.bf16 %v1361, %v1360
    %v1486 = vpack.c.bf16 %v1363, %v1362
    %v1487 = vpack.c.bf16 %v1365, %v1364
    %v1488 = vpack.c.bf16 %v1367, %v1366
    %v1489 = vpack.c.bf16 %v1369, %v1368
    %v1490 = vpack.c.bf16 %v1371, %v1370
    %v1491 = vpack.c.bf16 %v1373, %v1372
    %v1492 = vpack.c.bf16 %v1375, %v1374
    %v1493 = vpack.c.bf16 %v1377, %v1376
    %v1494 = vpack.c.bf16 %v1379, %v1378
    %v1495 = vpack.c.bf16 %v1381, %v1380
    %v1496 = vpack.c.bf16 %v1383, %v1382
    %v1497 = vpack.c.bf16 %v1385, %v1384
    %v1498 = vpack.c.bf16 %v1387, %v1386
    %v1499 = vpack.c.bf16 %v1389, %v1388
    %v1500 = vpack.c.bf16 %v1391, %v1390
    %v1501 = vpack.c.bf16 %v1393, %v1392
    %v1502 = vpack.c.bf16 %v1395, %v1394
    %v1503 = vpack.c.bf16 %v1397, %v1396
    %v1504 = vpack.c.bf16 %v1399, %v1398
    %v1505 = vpack.c.bf16 %v1401, %v1400
    %v1506 = vpack.c.bf16 %v1403, %v1402
    %v1507 = vpack.c.bf16 %v1405, %v1404
    %v1508 = vpack.c.bf16 %v1407, %v1406
    %v1509 = vpack.c.bf16 %v1409, %v1408
    %v1510 = vpack.c.bf16 %v1411, %v1410
    %v1511 = vpack.c.bf16 %v1413, %v1412
    %v1512 = vpack.c.bf16 %v1415, %v1414
    %v1513 = vpack.c.bf16 %v1417, %v1416
    %v1514 = vpack.c.bf16 %v1419, %v1418
    %v1515 = vpack.c.bf16 %v1421, %v1420
    %v1516 = vpack.c.bf16 %v1423, %v1422
    %v1517 = vpack.c.bf16 %v1425, %v1424
    %v1518 = vpack.c.bf16 %v1427, %v1426
    %v1519 = vpack.c.bf16 %v1429, %v1428
    %v1520 = vpack.c.bf16 %v1431, %v1430
    %v1521 = vpack.c.bf16 %v1433, %v1432
    %v1522 = vpack.c.bf16 %v1435, %v1434
    %v1523 = vpack.c.bf16 %v1437, %v1436
    %v1524 = vpack.c.bf16 %v1439, %v1438
    %v1525 = vpack.c.bf16 %v1441, %v1440
    %v1526 = vpack.c.bf16 %v1443, %v1442
    %v1527 = vpack.c.bf16 %v1445, %v1444
    %v1528 = vpack.c.bf16 %v1447, %v1446
    %v1529 = vpack.c.bf16 %v1449, %v1448
    %v1530 = vpack.c.bf16 %v1451, %v1450
    %v1531 = vpack.c.bf16 %v1453, %v1452
    %v1532 = vpack.c.bf16 %v1455, %v1454
    %v1533 = vpack.c.bf16 %v1457, %v1456
    %v1534 = vpack.c.bf16 %v1459, %v1458
    %v1535 = vpack.c.bf16 %v1461, %v1460
    %v1536 = vpack.c.bf16 %v1463, %v1462
    %v1537 = vpack.c.bf16 %v1465, %v1464
    %v1538 = vpack.c.bf16 %v1467, %v1466
    %v1539 = vpack.c.bf16 %v1469, %v1468
    %v1540 = vpack.c.bf16 %v1471, %v1470
    %v1541 = vpack.c.bf16 %v1473, %v1472
    %v1542 = vpack.c.bf16 %v1475, %v1474
    %v1543 = vpack.c.bf16 %v1477, %v1476
    %v1544 = vpack.c.bf16 %v1479, %v1478
    %v1545 = vpack.c.bf16 %v1481, %v1480
    %v1546 = vld [vmem:[#allocation2] sm:$0xff]
    %v1547 = vld [vmem:[#allocation2 + $0x8] sm:$0xff]
    %v1548 = vld [vmem:[#allocation2 + $0x10] sm:$0xff]
    %v1549 = vld [vmem:[#allocation2 + $0x18] sm:$0xff]
    %v1550 = vld [vmem:[#allocation2 + $0x20] sm:$0xff]
    %v1551 = vld [vmem:[#allocation2 + $0x28] sm:$0xff]
    %v1552 = vld [vmem:[#allocation2 + $0x30] sm:$0xff]
    %v1553 = vld [vmem:[#allocation2 + $0x38] sm:$0xff]
    %v1554 = vld [vmem:[#allocation2 + $0x40] sm:$0xff]
    %v1555 = vld [vmem:[#allocation2 + $0x48] sm:$0xff]
    %v1556 = vld [vmem:[#allocation2 + $0x50] sm:$0xff]
    %v1557 = vld [vmem:[#allocation2 + $0x58] sm:$0xff]
    %v1558 = vld [vmem:[#allocation2 + $0x60] sm:$0xff]
    %v1559 = vld [vmem:[#allocation2 + $0x68] sm:$0xff]
    %v1560 = vld [vmem:[#allocation2 + $0x70] sm:$0xff]
    %v1561 = vld [vmem:[#allocation2 + $0x78] sm:$0xff]
    %v1562 = vld [vmem:[#allocation2 + $0x80] sm:$0xff]
    %v1563 = vld [vmem:[#allocation2 + $0x88] sm:$0xff]
    %v1564 = vld [vmem:[#allocation2 + $0x90] sm:$0xff]
    %v1565 = vld [vmem:[#allocation2 + $0x98] sm:$0xff]
    %v1566 = vld [vmem:[#allocation2 + $0xa0] sm:$0xff]
    %v1567 = vld [vmem:[#allocation2 + $0xa8] sm:$0xff]
    %v1568 = vld [vmem:[#allocation2 + $0xb0] sm:$0xff]
    %v1569 = vld [vmem:[#allocation2 + $0xb8] sm:$0xff]
    %v1570 = vld [vmem:[#allocation2 + $0xc0] sm:$0xff]
    %v1571 = vld [vmem:[#allocation2 + $0xc8] sm:$0xff]
    %v1572 = vld [vmem:[#allocation2 + $0xd0] sm:$0xff]
    %v1573 = vld [vmem:[#allocation2 + $0xd8] sm:$0xff]
    %v1574 = vld [vmem:[#allocation2 + $0xe0] sm:$0xff]
    %v1575 = vld [vmem:[#allocation2 + $0xe8] sm:$0xff]
    %v1576 = vld [vmem:[#allocation2 + $0xf0] sm:$0xff]
    %v1577 = vld [vmem:[#allocation2 + $0xf8] sm:$0xff]
    %v1578 = vpack.c.bf16 %v1547, %v1546
    %v1579 = vpack.c.bf16 %v1549, %v1548
    %v1580 = vpack.c.bf16 %v1551, %v1550
    %v1581 = vpack.c.bf16 %v1553, %v1552
    %v1582 = vpack.c.bf16 %v1555, %v1554
    %v1583 = vpack.c.bf16 %v1557, %v1556
    %v1584 = vpack.c.bf16 %v1559, %v1558
    %v1585 = vpack.c.bf16 %v1561, %v1560
    %v1586 = vpack.c.bf16 %v1563, %v1562
    %v1587 = vpack.c.bf16 %v1565, %v1564
    %v1588 = vpack.c.bf16 %v1567, %v1566
    %v1589 = vpack.c.bf16 %v1569, %v1568
    %v1590 = vpack.c.bf16 %v1571, %v1570
    %v1591 = vpack.c.bf16 %v1573, %v1572
    %v1592 = vpack.c.bf16 %v1575, %v1574
    %v1593 = vpack.c.bf16 %v1577, %v1576
    %v1594 = vld [vmem:[%s3] sm:$0x1]
    %v1596 = vperm.slane %v1594, 0
    %v1662 = vunpack.c.l.b16 %v1482
    %v1663 = vunpack.c.h.b16 %v1482
    %v1664 = vunpack.c.l.b16 %v1483
    %v1665 = vunpack.c.h.b16 %v1483
    %v1666 = vunpack.c.l.b16 %v1484
    %v1667 = vunpack.c.h.b16 %v1484
    %v1668 = vunpack.c.l.b16 %v1485
    %v1669 = vunpack.c.h.b16 %v1485
    %v1670 = vunpack.c.l.b16 %v1486
    %v1671 = vunpack.c.h.b16 %v1486
    %v1672 = vunpack.c.l.b16 %v1487
    %v1673 = vunpack.c.h.b16 %v1487
    %v1674 = vunpack.c.l.b16 %v1488
    %v1675 = vunpack.c.h.b16 %v1488
    %v1676 = vunpack.c.l.b16 %v1489
    %v1677 = vunpack.c.h.b16 %v1489
    %v1678 = vunpack.c.l.b16 %v1490
    %v1679 = vunpack.c.h.b16 %v1490
    %v1680 = vunpack.c.l.b16 %v1491
    %v1681 = vunpack.c.h.b16 %v1491
    %v1682 = vunpack.c.l.b16 %v1492
    %v1683 = vunpack.c.h.b16 %v1492
    %v1684 = vunpack.c.l.b16 %v1493
    %v1685 = vunpack.c.h.b16 %v1493
    %v1686 = vunpack.c.l.b16 %v1494
    %v1687 = vunpack.c.h.b16 %v1494
    %v1688 = vunpack.c.l.b16 %v1495
    %v1689 = vunpack.c.h.b16 %v1495
    %v1690 = vunpack.c.l.b16 %v1496
    %v1691 = vunpack.c.h.b16 %v1496
    %v1692 = vunpack.c.l.b16 %v1497
    %v1693 = vunpack.c.h.b16 %v1497
    %v1694 = vunpack.c.l.b16 %v1498
    %v1695 = vunpack.c.h.b16 %v1498
    %v1696 = vunpack.c.l.b16 %v1499
    %v1697 = vunpack.c.h.b16 %v1499
    %v1698 = vunpack.c.l.b16 %v1500
    %v1699 = vunpack.c.h.b16 %v1500
    %v1700 = vunpack.c.l.b16 %v1501
    %v1701 = vunpack.c.h.b16 %v1501
    %v1702 = vunpack.c.l.b16 %v1502
    %v1703 = vunpack.c.h.b16 %v1502
    %v1704 = vunpack.c.l.b16 %v1503
    %v1705 = vunpack.c.h.b16 %v1503
    %v1706 = vunpack.c.l.b16 %v1504
    %v1707 = vunpack.c.h.b16 %v1504
    %v1708 = vunpack.c.l.b16 %v1505
    %v1709 = vunpack.c.h.b16 %v1505
    %v1710 = vunpack.c.l.b16 %v1506
    %v1711 = vunpack.c.h.b16 %v1506
    %v1712 = vunpack.c.l.b16 %v1507
    %v1713 = vunpack.c.h.b16 %v1507
    %v1714 = vunpack.c.l.b16 %v1508
    %v1715 = vunpack.c.h.b16 %v1508
    %v1716 = vunpack.c.l.b16 %v1509
    %v1717 = vunpack.c.h.b16 %v1509
    %v1718 = vunpack.c.l.b16 %v1510
    %v1719 = vunpack.c.h.b16 %v1510
    %v1720 = vunpack.c.l.b16 %v1511
    %v1721 = vunpack.c.h.b16 %v1511
    %v1722 = vunpack.c.l.b16 %v1512
    %v1723 = vunpack.c.h.b16 %v1512
    %v1724 = vunpack.c.l.b16 %v1513
    %v1725 = vunpack.c.h.b16 %v1513
    %v1726 = vunpack.c.l.b16 %v1514
    %v1727 = vunpack.c.h.b16 %v1514
    %v1728 = vunpack.c.l.b16 %v1515
    %v1729 = vunpack.c.h.b16 %v1515
    %v1730 = vunpack.c.l.b16 %v1516
    %v1731 = vunpack.c.h.b16 %v1516
    %v1732 = vunpack.c.l.b16 %v1517
    %v1733 = vunpack.c.h.b16 %v1517
    %v1734 = vunpack.c.l.b16 %v1518
    %v1735 = vunpack.c.h.b16 %v1518
    %v1736 = vunpack.c.l.b16 %v1519
    %v1737 = vunpack.c.h.b16 %v1519
    %v1738 = vunpack.c.l.b16 %v1520
    %v1739 = vunpack.c.h.b16 %v1520
    %v1740 = vunpack.c.l.b16 %v1521
    %v1741 = vunpack.c.h.b16 %v1521
    %v1742 = vunpack.c.l.b16 %v1522
    %v1743 = vunpack.c.h.b16 %v1522
    %v1744 = vunpack.c.l.b16 %v1523
    %v1745 = vunpack.c.h.b16 %v1523
    %v1746 = vunpack.c.l.b16 %v1524
    %v1747 = vunpack.c.h.b16 %v1524
    %v1748 = vunpack.c.l.b16 %v1525
    %v1749 = vunpack.c.h.b16 %v1525
    %v1750 = vunpack.c.l.b16 %v1526
    %v1751 = vunpack.c.h.b16 %v1526
    %v1752 = vunpack.c.l.b16 %v1527
    %v1753 = vunpack.c.h.b16 %v1527
    %v1754 = vunpack.c.l.b16 %v1528
    %v1755 = vunpack.c.h.b16 %v1528
    %v1756 = vunpack.c.l.b16 %v1529
    %v1757 = vunpack.c.h.b16 %v1529
    %v1758 = vunpack.c.l.b16 %v1530
    %v1759 = vunpack.c.h.b16 %v1530
    %v1760 = vunpack.c.l.b16 %v1531
    %v1761 = vunpack.c.h.b16 %v1531
    %v1762 = vunpack.c.l.b16 %v1532
    %v1763 = vunpack.c.h.b16 %v1532
    %v1764 = vunpack.c.l.b16 %v1533
    %v1765 = vunpack.c.h.b16 %v1533
    %v1766 = vunpack.c.l.b16 %v1534
    %v1767 = vunpack.c.h.b16 %v1534
    %v1768 = vunpack.c.l.b16 %v1535
    %v1769 = vunpack.c.h.b16 %v1535
    %v1770 = vunpack.c.l.b16 %v1536
    %v1771 = vunpack.c.h.b16 %v1536
    %v1772 = vunpack.c.l.b16 %v1537
    %v1773 = vunpack.c.h.b16 %v1537
    %v1774 = vunpack.c.l.b16 %v1538
    %v1775 = vunpack.c.h.b16 %v1538
    %v1776 = vunpack.c.l.b16 %v1539
    %v1777 = vunpack.c.h.b16 %v1539
    %v1778 = vunpack.c.l.b16 %v1540
    %v1779 = vunpack.c.h.b16 %v1540
    %v1780 = vunpack.c.l.b16 %v1541
    %v1781 = vunpack.c.h.b16 %v1541
    %v1782 = vunpack.c.l.b16 %v1542
    %v1783 = vunpack.c.h.b16 %v1542
    %v1784 = vunpack.c.l.b16 %v1543
    %v1785 = vunpack.c.h.b16 %v1543
    %v1786 = vunpack.c.l.b16 %v1544
    %v1787 = vunpack.c.h.b16 %v1544
    %v1788 = vunpack.c.l.b16 %v1545
    %v1789 = vunpack.c.h.b16 %v1545
    %1790 = vset.pattern.permute.xlu0 0
    %1791 = vperm.xlu0 %1790, %v1662
    %v1792 = vpop.permute.xlu0 %1791
    %1793 = vset.pattern.permute.xlu0 0
    %1794 = vperm.xlu0 %1793, %v1663
    %v1795 = vpop.permute.xlu0 %1794
    %1796 = vset.pattern.permute.xlu0 0
    %1797 = vperm.xlu0 %1796, %v1664
    %v1798 = vpop.permute.xlu0 %1797
    %1799 = vset.pattern.permute.xlu0 0
    %1800 = vperm.xlu0 %1799, %v1665
    %v1801 = vpop.permute.xlu0 %1800
    %1802 = vset.pattern.permute.xlu0 0
    %1803 = vperm.xlu0 %1802, %v1666
    %v1804 = vpop.permute.xlu0 %1803
    %1805 = vset.pattern.permute.xlu0 0
    %1806 = vperm.xlu0 %1805, %v1667
    %v1807 = vpop.permute.xlu0 %1806
    %1808 = vset.pattern.permute.xlu0 0
    %1809 = vperm.xlu0 %1808, %v1668
    %v1810 = vpop.permute.xlu0 %1809
    %1811 = vset.pattern.permute.xlu0 0
    %1812 = vperm.xlu0 %1811, %v1669
    %v1813 = vpop.permute.xlu0 %1812
    %1814 = vset.pattern.permute.xlu0 0
    %1815 = vperm.xlu0 %1814, %v1670
    %v1816 = vpop.permute.xlu0 %1815
    %1817 = vset.pattern.permute.xlu0 0
    %1818 = vperm.xlu0 %1817, %v1671
    %v1819 = vpop.permute.xlu0 %1818
    %1820 = vset.pattern.permute.xlu0 0
    %1821 = vperm.xlu0 %1820, %v1672
    %v1822 = vpop.permute.xlu0 %1821
    %1823 = vset.pattern.permute.xlu0 0
    %1824 = vperm.xlu0 %1823, %v1673
    %v1825 = vpop.permute.xlu0 %1824
    %1826 = vset.pattern.permute.xlu0 0
    %1827 = vperm.xlu0 %1826, %v1674
    %v1828 = vpop.permute.xlu0 %1827
    %1829 = vset.pattern.permute.xlu0 0
    %1830 = vperm.xlu0 %1829, %v1675
    %v1831 = vpop.permute.xlu0 %1830
    %1832 = vset.pattern.permute.xlu0 0
    %1833 = vperm.xlu0 %1832, %v1676
    %v1834 = vpop.permute.xlu0 %1833
    %1835 = vset.pattern.permute.xlu0 0
    %1836 = vperm.xlu0 %1835, %v1677
    %v1837 = vpop.permute.xlu0 %1836
    %1838 = vset.pattern.permute.xlu0 0
    %1839 = vperm.xlu0 %1838, %v1678
    %v1840 = vpop.permute.xlu0 %1839
    %1841 = vset.pattern.permute.xlu0 0
    %1842 = vperm.xlu0 %1841, %v1679
    %v1843 = vpop.permute.xlu0 %1842
    %1844 = vset.pattern.permute.xlu0 0
    %1845 = vperm.xlu0 %1844, %v1680
    %v1846 = vpop.permute.xlu0 %1845
    %1847 = vset.pattern.permute.xlu0 0
    %1848 = vperm.xlu0 %1847, %v1681
    %v1849 = vpop.permute.xlu0 %1848
    %1850 = vset.pattern.permute.xlu0 0
    %1851 = vperm.xlu0 %1850, %v1682
    %v1852 = vpop.permute.xlu0 %1851
    %1853 = vset.pattern.permute.xlu0 0
    %1854 = vperm.xlu0 %1853, %v1683
    %v1855 = vpop.permute.xlu0 %1854
    %1856 = vset.pattern.permute.xlu0 0
    %1857 = vperm.xlu0 %1856, %v1684
    %v1858 = vpop.permute.xlu0 %1857
    %1859 = vset.pattern.permute.xlu0 0
    %1860 = vperm.xlu0 %1859, %v1685
    %v1861 = vpop.permute.xlu0 %1860
    %1862 = vset.pattern.permute.xlu0 0
    %1863 = vperm.xlu0 %1862, %v1686
    %v1864 = vpop.permute.xlu0 %1863
    %1865 = vset.pattern.permute.xlu0 0
    %1866 = vperm.xlu0 %1865, %v1687
    %v1867 = vpop.permute.xlu0 %1866
    %1868 = vset.pattern.permute.xlu0 0
    %1869 = vperm.xlu0 %1868, %v1688
    %v1870 = vpop.permute.xlu0 %1869
    %1871 = vset.pattern.permute.xlu0 0
    %1872 = vperm.xlu0 %1871, %v1689
    %v1873 = vpop.permute.xlu0 %1872
    %1874 = vset.pattern.permute.xlu0 0
    %1875 = vperm.xlu0 %1874, %v1690
    %v1876 = vpop.permute.xlu0 %1875
    %1877 = vset.pattern.permute.xlu0 0
    %1878 = vperm.xlu0 %1877, %v1691
    %v1879 = vpop.permute.xlu0 %1878
    %1880 = vset.pattern.permute.xlu0 0
    %1881 = vperm.xlu0 %1880, %v1692
    %v1882 = vpop.permute.xlu0 %1881
    %1883 = vset.pattern.permute.xlu0 0
    %1884 = vperm.xlu0 %1883, %v1693
    %v1885 = vpop.permute.xlu0 %1884
    %1886 = vset.pattern.permute.xlu0 0
    %1887 = vperm.xlu0 %1886, %v1694
    %v1888 = vpop.permute.xlu0 %1887
    %1889 = vset.pattern.permute.xlu0 0
    %1890 = vperm.xlu0 %1889, %v1695
    %v1891 = vpop.permute.xlu0 %1890
    %1892 = vset.pattern.permute.xlu0 0
    %1893 = vperm.xlu0 %1892, %v1696
    %v1894 = vpop.permute.xlu0 %1893
    %1895 = vset.pattern.permute.xlu0 0
    %1896 = vperm.xlu0 %1895, %v1697
    %v1897 = vpop.permute.xlu0 %1896
    %1898 = vset.pattern.permute.xlu0 0
    %1899 = vperm.xlu0 %1898, %v1698
    %v1900 = vpop.permute.xlu0 %1899
    %1901 = vset.pattern.permute.xlu0 0
    %1902 = vperm.xlu0 %1901, %v1699
    %v1903 = vpop.permute.xlu0 %1902
    %1904 = vset.pattern.permute.xlu0 0
    %1905 = vperm.xlu0 %1904, %v1700
    %v1906 = vpop.permute.xlu0 %1905
    %1907 = vset.pattern.permute.xlu0 0
    %1908 = vperm.xlu0 %1907, %v1701
    %v1909 = vpop.permute.xlu0 %1908
    %1910 = vset.pattern.permute.xlu0 0
    %1911 = vperm.xlu0 %1910, %v1702
    %v1912 = vpop.permute.xlu0 %1911
    %1913 = vset.pattern.permute.xlu0 0
    %1914 = vperm.xlu0 %1913, %v1703
    %v1915 = vpop.permute.xlu0 %1914
    %1916 = vset.pattern.permute.xlu0 0
    %1917 = vperm.xlu0 %1916, %v1704
    %v1918 = vpop.permute.xlu0 %1917
    %1919 = vset.pattern.permute.xlu0 0
    %1920 = vperm.xlu0 %1919, %v1705
    %v1921 = vpop.permute.xlu0 %1920
    %1922 = vset.pattern.permute.xlu0 0
    %1923 = vperm.xlu0 %1922, %v1706
    %v1924 = vpop.permute.xlu0 %1923
    %1925 = vset.pattern.permute.xlu0 0
    %1926 = vperm.xlu0 %1925, %v1707
    %v1927 = vpop.permute.xlu0 %1926
    %1928 = vset.pattern.permute.xlu0 0
    %1929 = vperm.xlu0 %1928, %v1708
    %v1930 = vpop.permute.xlu0 %1929
    %1931 = vset.pattern.permute.xlu0 0
    %1932 = vperm.xlu0 %1931, %v1709
    %v1933 = vpop.permute.xlu0 %1932
    %1934 = vset.pattern.permute.xlu0 0
    %1935 = vperm.xlu0 %1934, %v1710
    %v1936 = vpop.permute.xlu0 %1935
    %1937 = vset.pattern.permute.xlu0 0
    %1938 = vperm.xlu0 %1937, %v1711
    %v1939 = vpop.permute.xlu0 %1938
    %1940 = vset.pattern.permute.xlu0 0
    %1941 = vperm.xlu0 %1940, %v1712
    %v1942 = vpop.permute.xlu0 %1941
    %1943 = vset.pattern.permute.xlu0 0
    %1944 = vperm.xlu0 %1943, %v1713
    %v1945 = vpop.permute.xlu0 %1944
    %1946 = vset.pattern.permute.xlu0 0
    %1947 = vperm.xlu0 %1946, %v1714
    %v1948 = vpop.permute.xlu0 %1947
    %1949 = vset.pattern.permute.xlu0 0
    %1950 = vperm.xlu0 %1949, %v1715
    %v1951 = vpop.permute.xlu0 %1950
    %1952 = vset.pattern.permute.xlu0 0
    %1953 = vperm.xlu0 %1952, %v1716
    %v1954 = vpop.permute.xlu0 %1953
    %1955 = vset.pattern.permute.xlu0 0
    %1956 = vperm.xlu0 %1955, %v1717
    %v1957 = vpop.permute.xlu0 %1956
    %1958 = vset.pattern.permute.xlu0 0
    %1959 = vperm.xlu0 %1958, %v1718
    %v1960 = vpop.permute.xlu0 %1959
    %1961 = vset.pattern.permute.xlu0 0
    %1962 = vperm.xlu0 %1961, %v1719
    %v1963 = vpop.permute.xlu0 %1962
    %1964 = vset.pattern.permute.xlu0 0
    %1965 = vperm.xlu0 %1964, %v1720
    %v1966 = vpop.permute.xlu0 %1965
    %1967 = vset.pattern.permute.xlu0 0
    %1968 = vperm.xlu0 %1967, %v1721
    %v1969 = vpop.permute.xlu0 %1968
    %1970 = vset.pattern.permute.xlu0 0
    %1971 = vperm.xlu0 %1970, %v1722
    %v1972 = vpop.permute.xlu0 %1971
    %1973 = vset.pattern.permute.xlu0 0
    %1974 = vperm.xlu0 %1973, %v1723
    %v1975 = vpop.permute.xlu0 %1974
    %1976 = vset.pattern.permute.xlu0 0
    %1977 = vperm.xlu0 %1976, %v1724
    %v1978 = vpop.permute.xlu0 %1977
    %1979 = vset.pattern.permute.xlu0 0
    %1980 = vperm.xlu0 %1979, %v1725
    %v1981 = vpop.permute.xlu0 %1980
    %1982 = vset.pattern.permute.xlu0 0
    %1983 = vperm.xlu0 %1982, %v1726
    %v1984 = vpop.permute.xlu0 %1983
    %1985 = vset.pattern.permute.xlu0 0
    %1986 = vperm.xlu0 %1985, %v1727
    %v1987 = vpop.permute.xlu0 %1986
    %1988 = vset.pattern.permute.xlu0 0
    %1989 = vperm.xlu0 %1988, %v1728
    %v1990 = vpop.permute.xlu0 %1989
    %1991 = vset.pattern.permute.xlu0 0
    %1992 = vperm.xlu0 %1991, %v1729
    %v1993 = vpop.permute.xlu0 %1992
    %1994 = vset.pattern.permute.xlu0 0
    %1995 = vperm.xlu0 %1994, %v1730
    %v1996 = vpop.permute.xlu0 %1995
    %1997 = vset.pattern.permute.xlu0 0
    %1998 = vperm.xlu0 %1997, %v1731
    %v1999 = vpop.permute.xlu0 %1998
    %2000 = vset.pattern.permute.xlu0 0
    %2001 = vperm.xlu0 %2000, %v1732
    %v2002 = vpop.permute.xlu0 %2001
    %2003 = vset.pattern.permute.xlu0 0
    %2004 = vperm.xlu0 %2003, %v1733
    %v2005 = vpop.permute.xlu0 %2004
    %2006 = vset.pattern.permute.xlu0 0
    %2007 = vperm.xlu0 %2006, %v1734
    %v2008 = vpop.permute.xlu0 %2007
    %2009 = vset.pattern.permute.xlu0 0
    %2010 = vperm.xlu0 %2009, %v1735
    %v2011 = vpop.permute.xlu0 %2010
    %2012 = vset.pattern.permute.xlu0 0
    %2013 = vperm.xlu0 %2012, %v1736
    %v2014 = vpop.permute.xlu0 %2013
    %2015 = vset.pattern.permute.xlu0 0
    %2016 = vperm.xlu0 %2015, %v1737
    %v2017 = vpop.permute.xlu0 %2016
    %2018 = vset.pattern.permute.xlu0 0
    %2019 = vperm.xlu0 %2018, %v1738
    %v2020 = vpop.permute.xlu0 %2019
    %2021 = vset.pattern.permute.xlu0 0
    %2022 = vperm.xlu0 %2021, %v1739
    %v2023 = vpop.permute.xlu0 %2022
    %2024 = vset.pattern.permute.xlu0 0
    %2025 = vperm.xlu0 %2024, %v1740
    %v2026 = vpop.permute.xlu0 %2025
    %2027 = vset.pattern.permute.xlu0 0
    %2028 = vperm.xlu0 %2027, %v1741
    %v2029 = vpop.permute.xlu0 %2028
    %2030 = vset.pattern.permute.xlu0 0
    %2031 = vperm.xlu0 %2030, %v1742
    %v2032 = vpop.permute.xlu0 %2031
    %2033 = vset.pattern.permute.xlu0 0
    %2034 = vperm.xlu0 %2033, %v1743
    %v2035 = vpop.permute.xlu0 %2034
    %2036 = vset.pattern.permute.xlu0 0
    %2037 = vperm.xlu0 %2036, %v1744
    %v2038 = vpop.permute.xlu0 %2037
    %2039 = vset.pattern.permute.xlu0 0
    %2040 = vperm.xlu0 %2039, %v1745
    %v2041 = vpop.permute.xlu0 %2040
    %2042 = vset.pattern.permute.xlu0 0
    %2043 = vperm.xlu0 %2042, %v1746
    %v2044 = vpop.permute.xlu0 %2043
    %2045 = vset.pattern.permute.xlu0 0
    %2046 = vperm.xlu0 %2045, %v1747
    %v2047 = vpop.permute.xlu0 %2046
    %2048 = vset.pattern.permute.xlu0 0
    %2049 = vperm.xlu0 %2048, %v1748
    %v2050 = vpop.permute.xlu0 %2049
    %2051 = vset.pattern.permute.xlu0 0
    %2052 = vperm.xlu0 %2051, %v1749
    %v2053 = vpop.permute.xlu0 %2052
    %2054 = vset.pattern.permute.xlu0 0
    %2055 = vperm.xlu0 %2054, %v1750
    %v2056 = vpop.permute.xlu0 %2055
    %2057 = vset.pattern.permute.xlu0 0
    %2058 = vperm.xlu0 %2057, %v1751
    %v2059 = vpop.permute.xlu0 %2058
    %2060 = vset.pattern.permute.xlu0 0
    %2061 = vperm.xlu0 %2060, %v1752
    %v2062 = vpop.permute.xlu0 %2061
    %2063 = vset.pattern.permute.xlu0 0
    %2064 = vperm.xlu0 %2063, %v1753
    %v2065 = vpop.permute.xlu0 %2064
    %2066 = vset.pattern.permute.xlu0 0
    %2067 = vperm.xlu0 %2066, %v1754
    %v2068 = vpop.permute.xlu0 %2067
    %2069 = vset.pattern.permute.xlu0 0
    %2070 = vperm.xlu0 %2069, %v1755
    %v2071 = vpop.permute.xlu0 %2070
    %2072 = vset.pattern.permute.xlu0 0
    %2073 = vperm.xlu0 %2072, %v1756
    %v2074 = vpop.permute.xlu0 %2073
    %2075 = vset.pattern.permute.xlu0 0
    %2076 = vperm.xlu0 %2075, %v1757
    %v2077 = vpop.permute.xlu0 %2076
    %2078 = vset.pattern.permute.xlu0 0
    %2079 = vperm.xlu0 %2078, %v1758
    %v2080 = vpop.permute.xlu0 %2079
    %2081 = vset.pattern.permute.xlu0 0
    %2082 = vperm.xlu0 %2081, %v1759
    %v2083 = vpop.permute.xlu0 %2082
    %2084 = vset.pattern.permute.xlu0 0
    %2085 = vperm.xlu0 %2084, %v1760
    %v2086 = vpop.permute.xlu0 %2085
    %2087 = vset.pattern.permute.xlu0 0
    %2088 = vperm.xlu0 %2087, %v1761
    %v2089 = vpop.permute.xlu0 %2088
    %2090 = vset.pattern.permute.xlu0 0
    %2091 = vperm.xlu0 %2090, %v1762
    %v2092 = vpop.permute.xlu0 %2091
    %2093 = vset.pattern.permute.xlu0 0
    %2094 = vperm.xlu0 %2093, %v1763
    %v2095 = vpop.permute.xlu0 %2094
    %2096 = vset.pattern.permute.xlu0 0
    %2097 = vperm.xlu0 %2096, %v1764
    %v2098 = vpop.permute.xlu0 %2097
    %2099 = vset.pattern.permute.xlu0 0
    %2100 = vperm.xlu0 %2099, %v1765
    %v2101 = vpop.permute.xlu0 %2100
    %2102 = vset.pattern.permute.xlu0 0
    %2103 = vperm.xlu0 %2102, %v1766
    %v2104 = vpop.permute.xlu0 %2103
    %2105 = vset.pattern.permute.xlu0 0
    %2106 = vperm.xlu0 %2105, %v1767
    %v2107 = vpop.permute.xlu0 %2106
    %2108 = vset.pattern.permute.xlu0 0
    %2109 = vperm.xlu0 %2108, %v1768
    %v2110 = vpop.permute.xlu0 %2109
    %2111 = vset.pattern.permute.xlu0 0
    %2112 = vperm.xlu0 %2111, %v1769
    %v2113 = vpop.permute.xlu0 %2112
    %2114 = vset.pattern.permute.xlu0 0
    %2115 = vperm.xlu0 %2114, %v1770
    %v2116 = vpop.permute.xlu0 %2115
    %2117 = vset.pattern.permute.xlu0 0
    %2118 = vperm.xlu0 %2117, %v1771
    %v2119 = vpop.permute.xlu0 %2118
    %2120 = vset.pattern.permute.xlu0 0
    %2121 = vperm.xlu0 %2120, %v1772
    %v2122 = vpop.permute.xlu0 %2121
    %2123 = vset.pattern.permute.xlu0 0
    %2124 = vperm.xlu0 %2123, %v1773
    %v2125 = vpop.permute.xlu0 %2124
    %2126 = vset.pattern.permute.xlu0 0
    %2127 = vperm.xlu0 %2126, %v1774
    %v2128 = vpop.permute.xlu0 %2127
    %2129 = vset.pattern.permute.xlu0 0
    %2130 = vperm.xlu0 %2129, %v1775
    %v2131 = vpop.permute.xlu0 %2130
    %2132 = vset.pattern.permute.xlu0 0
    %2133 = vperm.xlu0 %2132, %v1776
    %v2134 = vpop.permute.xlu0 %2133
    %2135 = vset.pattern.permute.xlu0 0
    %2136 = vperm.xlu0 %2135, %v1777
    %v2137 = vpop.permute.xlu0 %2136
    %2138 = vset.pattern.permute.xlu0 0
    %2139 = vperm.xlu0 %2138, %v1778
    %v2140 = vpop.permute.xlu0 %2139
    %2141 = vset.pattern.permute.xlu0 0
    %2142 = vperm.xlu0 %2141, %v1779
    %v2143 = vpop.permute.xlu0 %2142
    %2144 = vset.pattern.permute.xlu0 0
    %2145 = vperm.xlu0 %2144, %v1780
    %v2146 = vpop.permute.xlu0 %2145
    %2147 = vset.pattern.permute.xlu0 0
    %2148 = vperm.xlu0 %2147, %v1781
    %v2149 = vpop.permute.xlu0 %2148
    %2150 = vset.pattern.permute.xlu0 0
    %2151 = vperm.xlu0 %2150, %v1782
    %v2152 = vpop.permute.xlu0 %2151
    %2153 = vset.pattern.permute.xlu0 0
    %2154 = vperm.xlu0 %2153, %v1783
    %v2155 = vpop.permute.xlu0 %2154
    %2156 = vset.pattern.permute.xlu0 0
    %2157 = vperm.xlu0 %2156, %v1784
    %v2158 = vpop.permute.xlu0 %2157
    %2159 = vset.pattern.permute.xlu0 0
    %2160 = vperm.xlu0 %2159, %v1785
    %v2161 = vpop.permute.xlu0 %2160
    %2162 = vset.pattern.permute.xlu0 0
    %2163 = vperm.xlu0 %2162, %v1786
    %v2164 = vpop.permute.xlu0 %2163
    %2165 = vset.pattern.permute.xlu0 0
    %2166 = vperm.xlu0 %2165, %v1787
    %v2167 = vpop.permute.xlu0 %2166
    %2168 = vset.pattern.permute.xlu0 0
    %2169 = vperm.xlu0 %2168, %v1788
    %v2170 = vpop.permute.xlu0 %2169
    %2171 = vset.pattern.permute.xlu0 0
    %2172 = vperm.xlu0 %2171, %v1789
    %v2173 = vpop.permute.xlu0 %2172
    %v2174 = vlaneseq
    %v2175 = vand.u32 %v2174, 127
    %v2176 = vperm.slane %v1792, %v2175
    %v2177 = vadd.s32 %v2175, 4294967288
    %v2178 = vperm.slane %v1795, %v2177
    %vm2179 = vcmask 130112
    %v2180 = vsel %vm2179, %v2178, %v2176
    %v2181 = vadd.s32 %v2175, 4294967280
    %v2182 = vperm.slane %v1798, %v2181
    %vm2183 = vcmask 195712
    %v2184 = vsel %vm2183, %v2182, %v2180
    %v2185 = vadd.s32 %v2175, 4294967272
    %v2186 = vperm.slane %v1801, %v2185
    %vm2187 = vcmask 261312
    %v2188 = vsel %vm2187, %v2186, %v2184
    %v2189 = vadd.s32 %v2175, 4294967264
    %v2190 = vperm.slane %v1804, %v2189
    %vm2191 = vcmask 326912
    %v2192 = vsel %vm2191, %v2190, %v2188
    %v2193 = vadd.s32 %v2175, 4294967256
    %v2194 = vperm.slane %v1807, %v2193
    %vm2195 = vcmask 392512
    %v2196 = vsel %vm2195, %v2194, %v2192
    %v2197 = vadd.s32 %v2175, 4294967248
    %v2198 = vperm.slane %v1810, %v2197
    %vm2199 = vcmask 458112
    %v2200 = vsel %vm2199, %v2198, %v2196
    %v2201 = vadd.s32 %v2175, 4294967240
    %v2202 = vperm.slane %v1813, %v2201
    %vm2203 = vcmask 523712
    %v2204 = vsel %vm2203, %v2202, %v2200
    %v2205 = vadd.s32 %v2175, 4294967232
    %v2206 = vperm.slane %v1816, %v2205
    %vm2207 = vcmask 589312
    %v2208 = vsel %vm2207, %v2206, %v2204
    %v2209 = vadd.s32 %v2175, 4294967224
    %v2210 = vperm.slane %v1819, %v2209
    %vm2211 = vcmask 654912
    %v2212 = vsel %vm2211, %v2210, %v2208
    %v2213 = vadd.s32 %v2175, 4294967216
    %v2214 = vperm.slane %v1822, %v2213
    %vm2215 = vcmask 720512
    %v2216 = vsel %vm2215, %v2214, %v2212
    %v2217 = vadd.s32 %v2175, 4294967208
    %v2218 = vperm.slane %v1825, %v2217
    %vm2219 = vcmask 786112
    %v2220 = vsel %vm2219, %v2218, %v2216
    %v2221 = vadd.s32 %v2175, 4294967200
    %v2222 = vperm.slane %v1828, %v2221
    %vm2223 = vcmask 851712
    %v2224 = vsel %vm2223, %v2222, %v2220
    %v2225 = vadd.s32 %v2175, 4294967192
    %v2226 = vperm.slane %v1831, %v2225
    %vm2227 = vcmask 917312
    %v2228 = vsel %vm2227, %v2226, %v2224
    %v2229 = vadd.s32 %v2175, 4294967184
    %v2230 = vperm.slane %v1834, %v2229
    %vm2231 = vcmask 982912
    %v2232 = vsel %vm2231, %v2230, %v2228
    %v2233 = vadd.s32 %v2175, 4294967176
    %v2234 = vperm.slane %v1837, %v2233
    %vm2235 = vcmask 1048512
    %v2236 = vsel %vm2235, %v2234, %v2232
    %v2237 = vperm.slane %v1840, %v2175
    %v2238 = vperm.slane %v1843, %v2177
    %v2239 = vsel %vm2179, %v2238, %v2237
    %v2240 = vperm.slane %v1846, %v2181
    %v2241 = vsel %vm2183, %v2240, %v2239
    %v2242 = vperm.slane %v1849, %v2185
    %v2243 = vsel %vm2187, %v2242, %v2241
    %v2244 = vperm.slane %v1852, %v2189
    %v2245 = vsel %vm2191, %v2244, %v2243
    %v2246 = vperm.slane %v1855, %v2193
    %v2247 = vsel %vm2195, %v2246, %v2245
    %v2248 = vperm.slane %v1858, %v2197
    %v2249 = vsel %vm2199, %v2248, %v2247
    %v2250 = vperm.slane %v1861, %v2201
    %v2251 = vsel %vm2203, %v2250, %v2249
    %v2252 = vperm.slane %v1864, %v2205
    %v2253 = vsel %vm2207, %v2252, %v2251
    %v2254 = vperm.slane %v1867, %v2209
    %v2255 = vsel %vm2211, %v2254, %v2253
    %v2256 = vperm.slane %v1870, %v2213
    %v2257 = vsel %vm2215, %v2256, %v2255
    %v2258 = vperm.slane %v1873, %v2217
    %v2259 = vsel %vm2219, %v2258, %v2257
    %v2260 = vperm.slane %v1876, %v2221
    %v2261 = vsel %vm2223, %v2260, %v2259
    %v2262 = vperm.slane %v1879, %v2225
    %v2263 = vsel %vm2227, %v2262, %v2261
    %v2264 = vperm.slane %v1882, %v2229
    %v2265 = vsel %vm2231, %v2264, %v2263
    %v2266 = vperm.slane %v1885, %v2233
    %v2267 = vsel %vm2235, %v2266, %v2265
    %v2268 = vperm.slane %v1888, %v2175
    %v2269 = vperm.slane %v1891, %v2177
    %v2270 = vsel %vm2179, %v2269, %v2268
    %v2271 = vperm.slane %v1894, %v2181
    %v2272 = vsel %vm2183, %v2271, %v2270
    %v2273 = vperm.slane %v1897, %v2185
    %v2274 = vsel %vm2187, %v2273, %v2272
    %v2275 = vperm.slane %v1900, %v2189
    %v2276 = vsel %vm2191, %v2275, %v2274
    %v2277 = vperm.slane %v1903, %v2193
    %v2278 = vsel %vm2195, %v2277, %v2276
    %v2279 = vperm.slane %v1906, %v2197
    %v2280 = vsel %vm2199, %v2279, %v2278
    %v2281 = vperm.slane %v1909, %v2201
    %v2282 = vsel %vm2203, %v2281, %v2280
    %v2283 = vperm.slane %v1912, %v2205
    %v2284 = vsel %vm2207, %v2283, %v2282
    %v2285 = vperm.slane %v1915, %v2209
    %v2286 = vsel %vm2211, %v2285, %v2284
    %v2287 = vperm.slane %v1918, %v2213
    %v2288 = vsel %vm2215, %v2287, %v2286
    %v2289 = vperm.slane %v1921, %v2217
    %v2290 = vsel %vm2219, %v2289, %v2288
    %v2291 = vperm.slane %v1924, %v2221
    %v2292 = vsel %vm2223, %v2291, %v2290
    %v2293 = vperm.slane %v1927, %v2225
    %v2294 = vsel %vm2227, %v2293, %v2292
    %v2295 = vperm.slane %v1930, %v2229
    %v2296 = vsel %vm2231, %v2295, %v2294
    %v2297 = vperm.slane %v1933, %v2233
    %v2298 = vsel %vm2235, %v2297, %v2296
    %v2299 = vperm.slane %v1936, %v2175
    %v2300 = vperm.slane %v1939, %v2177
    %v2301 = vsel %vm2179, %v2300, %v2299
    %v2302 = vperm.slane %v1942, %v2181
    %v2303 = vsel %vm2183, %v2302, %v2301
    %v2304 = vperm.slane %v1945, %v2185
    %v2305 = vsel %vm2187, %v2304, %v2303
    %v2306 = vperm.slane %v1948, %v2189
    %v2307 = vsel %vm2191, %v2306, %v2305
    %v2308 = vperm.slane %v1951, %v2193
    %v2309 = vsel %vm2195, %v2308, %v2307
    %v2310 = vperm.slane %v1954, %v2197
    %v2311 = vsel %vm2199, %v2310, %v2309
    %v2312 = vperm.slane %v1957, %v2201
    %v2313 = vsel %vm2203, %v2312, %v2311
    %v2314 = vperm.slane %v1960, %v2205
    %v2315 = vsel %vm2207, %v2314, %v2313
    %v2316 = vperm.slane %v1963, %v2209
    %v2317 = vsel %vm2211, %v2316, %v2315
    %v2318 = vperm.slane %v1966, %v2213
    %v2319 = vsel %vm2215, %v2318, %v2317
    %v2320 = vperm.slane %v1969, %v2217
    %v2321 = vsel %vm2219, %v2320, %v2319
    %v2322 = vperm.slane %v1972, %v2221
    %v2323 = vsel %vm2223, %v2322, %v2321
    %v2324 = vperm.slane %v1975, %v2225
    %v2325 = vsel %vm2227, %v2324, %v2323
    %v2326 = vperm.slane %v1978, %v2229
    %v2327 = vsel %vm2231, %v2326, %v2325
    %v2328 = vperm.slane %v1981, %v2233
    %v2329 = vsel %vm2235, %v2328, %v2327
    %v2330 = vperm.slane %v1984, %v2175
    %v2331 = vperm.slane %v1987, %v2177
    %v2332 = vsel %vm2179, %v2331, %v2330
    %v2333 = vperm.slane %v1990, %v2181
    %v2334 = vsel %vm2183, %v2333, %v2332
    %v2335 = vperm.slane %v1993, %v2185
    %v2336 = vsel %vm2187, %v2335, %v2334
    %v2337 = vperm.slane %v1996, %v2189
    %v2338 = vsel %vm2191, %v2337, %v2336
    %v2339 = vperm.slane %v1999, %v2193
    %v2340 = vsel %vm2195, %v2339, %v2338
    %v2341 = vperm.slane %v2002, %v2197
    %v2342 = vsel %vm2199, %v2341, %v2340
    %v2343 = vperm.slane %v2005, %v2201
    %v2344 = vsel %vm2203, %v2343, %v2342
    %v2345 = vperm.slane %v2008, %v2205
    %v2346 = vsel %vm2207, %v2345, %v2344
    %v2347 = vperm.slane %v2011, %v2209
    %v2348 = vsel %vm2211, %v2347, %v2346
    %v2349 = vperm.slane %v2014, %v2213
    %v2350 = vsel %vm2215, %v2349, %v2348
    %v2351 = vperm.slane %v2017, %v2217
    %v2352 = vsel %vm2219, %v2351, %v2350
    %v2353 = vperm.slane %v2020, %v2221
    %v2354 = vsel %vm2223, %v2353, %v2352
    %v2355 = vperm.slane %v2023, %v2225
    %v2356 = vsel %vm2227, %v2355, %v2354
    %v2357 = vperm.slane %v2026, %v2229
    %v2358 = vsel %vm2231, %v2357, %v2356
    %v2359 = vperm.slane %v2029, %v2233
    %v2360 = vsel %vm2235, %v2359, %v2358
    %v2361 = vperm.slane %v2032, %v2175
    %v2362 = vperm.slane %v2035, %v2177
    %v2363 = vsel %vm2179, %v2362, %v2361
    %v2364 = vperm.slane %v2038, %v2181
    %v2365 = vsel %vm2183, %v2364, %v2363
    %v2366 = vperm.slane %v2041, %v2185
    %v2367 = vsel %vm2187, %v2366, %v2365
    %v2368 = vperm.slane %v2044, %v2189
    %v2369 = vsel %vm2191, %v2368, %v2367
    %v2370 = vperm.slane %v2047, %v2193
    %v2371 = vsel %vm2195, %v2370, %v2369
    %v2372 = vperm.slane %v2050, %v2197
    %v2373 = vsel %vm2199, %v2372, %v2371
    %v2374 = vperm.slane %v2053, %v2201
    %v2375 = vsel %vm2203, %v2374, %v2373
    %v2376 = vperm.slane %v2056, %v2205
    %v2377 = vsel %vm2207, %v2376, %v2375
    %v2378 = vperm.slane %v2059, %v2209
    %v2379 = vsel %vm2211, %v2378, %v2377
    %v2380 = vperm.slane %v2062, %v2213
    %v2381 = vsel %vm2215, %v2380, %v2379
    %v2382 = vperm.slane %v2065, %v2217
    %v2383 = vsel %vm2219, %v2382, %v2381
    %v2384 = vperm.slane %v2068, %v2221
    %v2385 = vsel %vm2223, %v2384, %v2383
    %v2386 = vperm.slane %v2071, %v2225
    %v2387 = vsel %vm2227, %v2386, %v2385
    %v2388 = vperm.slane %v2074, %v2229
    %v2389 = vsel %vm2231, %v2388, %v2387
    %v2390 = vperm.slane %v2077, %v2233
    %v2391 = vsel %vm2235, %v2390, %v2389
    %v2392 = vperm.slane %v2080, %v2175
    %v2393 = vperm.slane %v2083, %v2177
    %v2394 = vsel %vm2179, %v2393, %v2392
    %v2395 = vperm.slane %v2086, %v2181
    %v2396 = vsel %vm2183, %v2395, %v2394
    %v2397 = vperm.slane %v2089, %v2185
    %v2398 = vsel %vm2187, %v2397, %v2396
    %v2399 = vperm.slane %v2092, %v2189
    %v2400 = vsel %vm2191, %v2399, %v2398
    %v2401 = vperm.slane %v2095, %v2193
    %v2402 = vsel %vm2195, %v2401, %v2400
    %v2403 = vperm.slane %v2098, %v2197
    %v2404 = vsel %vm2199, %v2403, %v2402
    %v2405 = vperm.slane %v2101, %v2201
    %v2406 = vsel %vm2203, %v2405, %v2404
    %v2407 = vperm.slane %v2104, %v2205
    %v2408 = vsel %vm2207, %v2407, %v2406
    %v2409 = vperm.slane %v2107, %v2209
    %v2410 = vsel %vm2211, %v2409, %v2408
    %v2411 = vperm.slane %v2110, %v2213
    %v2412 = vsel %vm2215, %v2411, %v2410
    %v2413 = vperm.slane %v2113, %v2217
    %v2414 = vsel %vm2219, %v2413, %v2412
    %v2415 = vperm.slane %v2116, %v2221
    %v2416 = vsel %vm2223, %v2415, %v2414
    %v2417 = vperm.slane %v2119, %v2225
    %v2418 = vsel %vm2227, %v2417, %v2416
    %v2419 = vperm.slane %v2122, %v2229
    %v2420 = vsel %vm2231, %v2419, %v2418
    %v2421 = vperm.slane %v2125, %v2233
    %v2422 = vsel %vm2235, %v2421, %v2420
    %v2423 = vperm.slane %v2128, %v2175
    %v2424 = vperm.slane %v2131, %v2177
    %v2425 = vsel %vm2179, %v2424, %v2423
    %v2426 = vperm.slane %v2134, %v2181
    %v2427 = vsel %vm2183, %v2426, %v2425
    %v2428 = vperm.slane %v2137, %v2185
    %v2429 = vsel %vm2187, %v2428, %v2427
    %v2430 = vperm.slane %v2140, %v2189
    %v2431 = vsel %vm2191, %v2430, %v2429
    %v2432 = vperm.slane %v2143, %v2193
    %v2433 = vsel %vm2195, %v2432, %v2431
    %v2434 = vperm.slane %v2146, %v2197
    %v2435 = vsel %vm2199, %v2434, %v2433
    %v2436 = vperm.slane %v2149, %v2201
    %v2437 = vsel %vm2203, %v2436, %v2435
    %v2438 = vperm.slane %v2152, %v2205
    %v2439 = vsel %vm2207, %v2438, %v2437
    %v2440 = vperm.slane %v2155, %v2209
    %v2441 = vsel %vm2211, %v2440, %v2439
    %v2442 = vperm.slane %v2158, %v2213
    %v2443 = vsel %vm2215, %v2442, %v2441
    %v2444 = vperm.slane %v2161, %v2217
    %v2445 = vsel %vm2219, %v2444, %v2443
    %v2446 = vperm.slane %v2164, %v2221
    %v2447 = vsel %vm2223, %v2446, %v2445
    %v2448 = vperm.slane %v2167, %v2225
    %v2449 = vsel %vm2227, %v2448, %v2447
    %v2450 = vperm.slane %v2170, %v2229
    %v2451 = vsel %vm2231, %v2450, %v2449
    %v2452 = vperm.slane %v2173, %v2233
    %v2453 = vsel %vm2235, %v2452, %v2451
    %vm2454 = vcmask 1041409
    %v2455 = vsel %vm2454, %v2298, %v2236
    %vm2456 = vcmask 1042434
    %v2457 = vsel %vm2456, %v2360, %v2455
    %vm2458 = vcmask 1043459
    %v2459 = vsel %vm2458, %v2422, %v2457
    %v2460 = vsel %vm2454, %v2329, %v2267
    %v2461 = vsel %vm2456, %v2391, %v2460
    %v2462 = vsel %vm2458, %v2453, %v2461
    %v2463 = vpack.c.b16 %v2459, %v2459
    %v2464 = vpack.c.b16 %v2462, %v2462
    %2467 = vmatpush.bf16.msra.mxu0 %v1585
    %2468 = vmatpush.bf16.msra.mxu0 %v1584
    %2469 = vmatpush.bf16.msra.mxu0 %v1583
    %2470 = vmatpush.bf16.msra.mxu0 %v1582
    %2471 = vmatpush.bf16.msra.mxu0 %v1581
    %2472 = vmatpush.bf16.msra.mxu0 %v1580
    %2473 = vmatpush.bf16.msra.mxu0 %v1579
    %2474 = vmatpush.bf16.msra.mxu0 %v1578
    %2475 = vmatmul.bf16.gmra.mxu0 %v2463
    %v2476 = vpop.f32.mrf.mxu0
    %v2477 = vadd.f32 %v1596, %v2476
    %v2478 = vpop.f32.mrf.mxu0
    %2479 = vdwg.mxu0
    %2480 = vmatpush.bf16.msra.mxu0 %v1593
    %2481 = vmatpush.bf16.msra.mxu0 %v1592
    %2482 = vmatpush.bf16.msra.mxu0 %v1591
    %2483 = vmatpush.bf16.msra.mxu0 %v1590
    %2484 = vmatpush.bf16.msra.mxu0 %v1589
    %2485 = vmatpush.bf16.msra.mxu0 %v1588
    %2486 = vmatpush.bf16.msra.mxu0 %v1587
    %2487 = vmatpush.bf16.msra.mxu0 %v1586
    %2488 = vmatmul.bf16.gmra.mxu0 %v2464
    %v2489 = vpop.f32.mrf.mxu0
    %v2490 = vadd.f32 %v2477, %v2489
    %v2491 = vpop.f32.mrf.mxu0
    %2492 = vdwg.mxu0
    %v2493 = vmax.f32 %v2490, 0.0
    %v2494 = vpack.c.bf16 %v2493, %v2493
    %v2495 = vld [vmem:[#allocation4] sm:$0xff]
    %v2496 = vld [vmem:[#allocation4 + $0x8] sm:$0xff]
    %v2497 = vld [vmem:[#allocation4 + $0x10] sm:$0xff]
    %v2498 = vld [vmem:[#allocation4 + $0x18] sm:$0xff]
    %v2499 = vld [vmem:[#allocation4 + $0x20] sm:$0xff]
    %v2500 = vld [vmem:[#allocation4 + $0x28] sm:$0xff]
    %v2501 = vld [vmem:[#allocation4 + $0x30] sm:$0xff]
    %v2502 = vld [vmem:[#allocation4 + $0x38] sm:$0xff]
    %v2503 = vld [vmem:[#allocation4 + $0x40] sm:$0xff]
    %v2504 = vld [vmem:[#allocation4 + $0x48] sm:$0xff]
    %v2505 = vld [vmem:[#allocation4 + $0x50] sm:$0xff]
    %v2506 = vld [vmem:[#allocation4 + $0x58] sm:$0xff]
    %v2507 = vld [vmem:[#allocation4 + $0x60] sm:$0xff]
    %v2508 = vld [vmem:[#allocation4 + $0x68] sm:$0xff]
    %v2509 = vld [vmem:[#allocation4 + $0x70] sm:$0xff]
    %v2510 = vld [vmem:[#allocation4 + $0x78] sm:$0xff]
    %v2511 = vpack.c.bf16 %v2496, %v2495
    %v2512 = vpack.c.bf16 %v2498, %v2497
    %v2513 = vpack.c.bf16 %v2500, %v2499
    %v2514 = vpack.c.bf16 %v2502, %v2501
    %v2515 = vpack.c.bf16 %v2504, %v2503
    %v2516 = vpack.c.bf16 %v2506, %v2505
    %v2517 = vpack.c.bf16 %v2508, %v2507
    %v2518 = vpack.c.bf16 %v2510, %v2509
    %v2519 = vld [vmem:[%s5] sm:$0x1]
    %v2521 = vperm.slane %v2519, 0
    %2523 = vmatpush.bf16.msra.mxu0 %v2518
    %2524 = vmatpush.bf16.msra.mxu0 %v2517
    %2525 = vmatpush.bf16.msra.mxu0 %v2516
    %2526 = vmatpush.bf16.msra.mxu0 %v2515
    %2527 = vmatpush.bf16.msra.mxu0 %v2514
    %2528 = vmatpush.bf16.msra.mxu0 %v2513
    %2529 = vmatpush.bf16.msra.mxu0 %v2512
    %2530 = vmatpush.bf16.msra.mxu0 %v2511
    %2531 = vmatmul.bf16.gmra.mxu0 %v2494
    %v2532 = vpop.f32.mrf.mxu0
    %v2533 = vadd.f32 %v2521, %v2532
    %v2534 = vpop.f32.mrf.mxu0
    %2535 = vdwg.mxu0
    %v2536 = vmax.f32 %v2533, 0.0
    %v2537 = vpack.c.bf16 %v2536, %v2536
    %v2538 = vld [vmem:[#allocation6] sm:$0xff]
    %v2539 = vld [vmem:[#allocation6 + $0x8] sm:$0xff]
    %v2540 = vld [vmem:[#allocation6 + $0x10] sm:$0xff]
    %v2541 = vld [vmem:[#allocation6 + $0x18] sm:$0xff]
    %v2542 = vld [vmem:[#allocation6 + $0x20] sm:$0xff]
    %v2543 = vld [vmem:[#allocation6 + $0x28] sm:$0xff]
    %v2544 = vld [vmem:[#allocation6 + $0x30] sm:$0xff]
    %v2545 = vld [vmem:[#allocation6 + $0x38] sm:$0xff]
    %v2546 = vld [vmem:[#allocation6 + $0x40] sm:$0xff]
    %v2547 = vld [vmem:[#allocation6 + $0x48] sm:$0xff]
    %v2548 = vld [vmem:[#allocation6 + $0x50] sm:$0xff]
    %v2549 = vld [vmem:[#allocation6 + $0x58] sm:$0xff]
    %v2550 = vld [vmem:[#allocation6 + $0x60] sm:$0xff]
    %v2551 = vld [vmem:[#allocation6 + $0x68] sm:$0xff]
    %v2552 = vld [vmem:[#allocation6 + $0x70] sm:$0xff]
    %v2553 = vld [vmem:[#allocation6 + $0x78] sm:$0xff]
    %v2554 = vpack.c.bf16 %v2539, %v2538
    %v2555 = vpack.c.bf16 %v2541, %v2540
    %v2556 = vpack.c.bf16 %v2543, %v2542
    %v2557 = vpack.c.bf16 %v2545, %v2544
    %v2558 = vpack.c.bf16 %v2547, %v2546
    %v2559 = vpack.c.bf16 %v2549, %v2548
    %v2560 = vpack.c.bf16 %v2551, %v2550
    %v2561 = vpack.c.bf16 %v2553, %v2552
    %v2562 = vld [vmem:[%s7] sm:$0x1]
    %v2564 = vperm.slane %v2562, 0
    %2566 = vmatpush.bf16.msra.mxu0 %v2561
    %2567 = vmatpush.bf16.msra.mxu0 %v2560
    %2568 = vmatpush.bf16.msra.mxu0 %v2559
    %2569 = vmatpush.bf16.msra.mxu0 %v2558
    %2570 = vmatpush.bf16.msra.mxu0 %v2557
    %2571 = vmatpush.bf16.msra.mxu0 %v2556
    %2572 = vmatpush.bf16.msra.mxu0 %v2555
    %2573 = vmatpush.bf16.msra.mxu0 %v2554
    %2574 = vmatmul.bf16.gmra.mxu0 %v2537
    %v2575 = vpop.f32.mrf.mxu0
    %v2576 = vadd.f32 %v2564, %v2575
    %v2577 = vpop.f32.mrf.mxu0
    %2578 = vdwg.mxu0
    %2579 = vst [vmem:[%s8] sm:$0xf] %v2576
    // Predicated region
    $region46: #{moco_forward.12} parent=1 // pred_check
      _
    $region47: #{moco_forward.12} parent=1 // pred_check_branch
      %2581 = sbr.rel (0) target = $region49
    $region48: #{moco_forward.12} parent=1 // pred_region
      _
    $region49: #{moco_forward.12} parent=1 // pred_fallthru
      _
    // Predicated region
    $region50: #{moco_forward.12} parent=1 // pred_check
      _
    $region51: #{moco_forward.12} parent=1 // pred_check_branch
      %2583 = sbr.rel (0) target = $region53
    $region52: #{moco_forward.12} parent=1 // pred_region
      _
    $region53: #{moco_forward.12} parent=1 // pred_fallthru
      _
    %2584 = vsyncpa [#allocation3], 1
    %2585 = vsyncpa [#allocation5], 1

// kernel: moco_forward.15
$region0: #{moco_forward.15}
  #allocation0 [shape = 'u32[]', space=smem, size = 0x4, offset = 0x4, fixed_abs, tag = 'smem constant byte address 0x4 - core index']
  #allocation1 [shape = 'u32[72,128]{1,0:T(1,128)}', space=vmem, size = 0x9000, scoped, tag = 'internal scratch']
  %s0 = inlined_call_operand.vmem [shape: f32[256,128], index: 0, kind: input, shape index: {}]
  %s1 = inlined_call_operand.vmem [shape: f32[1,128], index: 1, kind: input, shape index: {}]
  %s2 = inlined_call_operand.vmem [shape: f32[128,128], index: 2, kind: input, shape index: {}]
  %s3 = inlined_call_operand.vmem [shape: f32[1,128], index: 3, kind: input, shape index: {}]
  %s4 = inlined_call_operand.hbm [shape: f32[128,128], index: 4, kind: input, shape index: {}]
  %s5 = inlined_call_operand.vmem [shape: f32[1,128], index: 5, kind: input, shape index: {}]
  %s6 = inlined_call_operand.vmem [shape: f32[3,256], index: 6, kind: input, shape index: {}]
  %s7 = inlined_call_operand.vmem [shape: f32[256,128], index: 7, kind: input, shape index: {}, may-alias: {7,14}]
  %s8 = inlined_call_operand.vmem [shape: f32[1,128], index: 8, kind: input, shape index: {}, may-alias: {8,15}]
  %s9 = inlined_call_operand.vmem [shape: f32[128,128], index: 9, kind: input, shape index: {}, may-alias: {9,16}]
  %s10 = inlined_call_operand.vmem [shape: f32[1,128], index: 10, kind: input, shape index: {}, may-alias: {10,17}]
  %s11 = inlined_call_operand.vmem [shape: f32[128,128], index: 11, kind: input, shape index: {}, may-alias: {11,18}]
  %s12 = inlined_call_operand.vmem [shape: f32[1,128], index: 12, kind: input, shape index: {}, may-alias: {12,19}]
  %s13 = inlined_call_operand.vmem [shape: f32[3,256], index: 13, kind: input, shape index: {}, may-alias: {13,20}]
  %s14 = inlined_call_operand.vmem [shape: f32[256,128], index: 14, kind: output, shape index: {0}, may-alias: {7,14}]
  %s15 = inlined_call_operand.vmem [shape: f32[1,128], index: 15, kind: output, shape index: {1}, may-alias: {8,15}]
  %s16 = inlined_call_operand.vmem [shape: f32[128,128], index: 16, kind: output, shape index: {2}, may-alias: {9,16}]
  %s17 = inlined_call_operand.vmem [shape: f32[1,128], index: 17, kind: output, shape index: {3}, may-alias: {10,17}]
  %s18 = inlined_call_operand.vmem [shape: f32[128,128], index: 18, kind: output, shape index: {4}, may-alias: {11,18}]
  %s19 = inlined_call_operand.vmem [shape: f32[1,128], index: 19, kind: output, shape index: {5}, may-alias: {12,19}]
  %s20 = inlined_call_operand.vmem [shape: f32[3,256], index: 20, kind: output, shape index: {6}, may-alias: {13,20}]
  %21 = xla_tuple %s14, %s15, %s16, %s17, %s18, %s19, %s20
  %s22 = sld [smem:[#allocation0]]
  $region118: #{moco_forward.15} parent=0
    _
  %s24 = ssub.s32 1, %s22
  %s25 = scalar_select 0, %s24, %s22
  $region1: #{moco_forward.15} parent=0
    #allocation2 [shape = 'u8[65536]{0}', space=vmem, size = 0x10000, scoped, tag = 'input window, operand 4, single buffered']
    #allocation3 [shape = 's32[1]{0}', space=sflag, size = 0x4, scoped, tag = 'scoped memory for moco_forward.15']
    %26 = vsyncpa [#allocation3], 0
    // Predicated region
    $region2: #{moco_forward.15} parent=1 // pred_check
      _
    $region3: #{moco_forward.15} parent=1 // pred_check_branch
      %28 = sbr.rel (0) target = $region5
    $region4: #{moco_forward.15} parent=1 // pred_region
      _
    $region5: #{moco_forward.15} parent=1 // pred_fallthru
      _
    // Predicated region
    $region6: #{moco_forward.15} parent=1 // pred_check
      _
    $region7: #{moco_forward.15} parent=1 // pred_check_branch
      %30 = sbr.rel (0) target = $region9
    $region8: #{moco_forward.15} parent=1 // pred_region
      _
    $region9: #{moco_forward.15} parent=1 // pred_fallthru
      _
    // Predicated region
    $region10: #{moco_forward.15} parent=1 // pred_check
      _
    $region11: #{moco_forward.15} parent=1 // pred_check_branch
      %32 = sbr.rel (0) target = $region13
    $region12: #{moco_forward.15} parent=1 // pred_region
      _
    $region13: #{moco_forward.15} parent=1 // pred_fallthru
      _
    // Predicated region
    $region14: #{moco_forward.15} parent=1 // pred_check
      _
    $region15: #{moco_forward.15} parent=1 // pred_check_branch
      %34 = sbr.rel (0) target = $region17
    $region16: #{moco_forward.15} parent=1 // pred_region
      _
    $region17: #{moco_forward.15} parent=1 // pred_fallthru
      _
    // Predicated region
    $region18: #{moco_forward.15} parent=1 // pred_check
      _
    $region19: #{moco_forward.15} parent=1 // pred_check_branch
      %36 = sbr.rel (0) target = $region21
    $region20: #{moco_forward.15} parent=1 // pred_region
      %38 = vsyncadd [#allocation3], 0
      %s39 = sshll.u32 %s4, 4
      %s40 = int_to_ptr.hbm [resolvable:$true] %s39
      %s41 = sshll.u32 [#allocation2], 4
      %s42 = int_to_ptr.vmem [resolvable:$true] %s41
      %47 = dma.hbm_to_vmem [thread:$0]  %s40, 2048, %s42, [#allocation3], 128, 128, 8
    $region21: #{moco_forward.15} parent=1 // pred_fallthru
      _
    // Predicated region
    $region22: #{moco_forward.15} parent=1 // pred_check
      _
    $region23: #{moco_forward.15} parent=1 // pred_check_branch
      %49 = sbr.rel (0) target = $region25
    $region24: #{moco_forward.15} parent=1 // pred_region
      _
    $region25: #{moco_forward.15} parent=1 // pred_fallthru
      _
    // Predicated region
    $region26: #{moco_forward.15} parent=1 // pred_check
      _
    $region27: #{moco_forward.15} parent=1 // pred_check_branch
      %51 = sbr.rel (0) target = $region29
    $region28: #{moco_forward.15} parent=1 // pred_region
      _
    $region29: #{moco_forward.15} parent=1 // pred_fallthru
      _
    // Predicated region
    $region30: #{moco_forward.15} parent=1 // pred_check
      _
    $region31: #{moco_forward.15} parent=1 // pred_check_branch
      %53 = sbr.rel (0) target = $region33
    $region32: #{moco_forward.15} parent=1 // pred_region
      _
    $region33: #{moco_forward.15} parent=1 // pred_fallthru
      _
    // Predicated region
    $region34: #{moco_forward.15} parent=1 // pred_check
      _
    $region35: #{moco_forward.15} parent=1 // pred_check_branch
      %55 = sbr.rel (0) target = $region37
    $region36: #{moco_forward.15} parent=1 // pred_region
      _
    $region37: #{moco_forward.15} parent=1 // pred_fallthru
      _
    // Predicated region
    $region38: #{moco_forward.15} parent=1 // pred_check
      _
    $region39: #{moco_forward.15} parent=1 // pred_check_branch
      %57 = sbr.rel (0) target = $region41
    $region40: #{moco_forward.15} parent=1 // pred_region
      _
    $region41: #{moco_forward.15} parent=1 // pred_fallthru
      _
    // Predicated region
    $region42: #{moco_forward.15} parent=1 // pred_check
      _
    $region43: #{moco_forward.15} parent=1 // pred_check_branch
      %59 = sbr.rel (0) target = $region45
    $region44: #{moco_forward.15} parent=1 // pred_region
      _
    $region45: #{moco_forward.15} parent=1 // pred_fallthru
      _
    // Predicated region
    $region46: #{moco_forward.15} parent=1 // pred_check
      _
    $region47: #{moco_forward.15} parent=1 // pred_check_branch
      %61 = sbr.rel (0) target = $region49
    $region48: #{moco_forward.15} parent=1 // pred_region
      _
    $region49: #{moco_forward.15} parent=1 // pred_fallthru
      _
    // Predicated region
    $region50: #{moco_forward.15} parent=1 // pred_check
      _
    $region51: #{moco_forward.15} parent=1 // pred_check_branch
      %63 = sbr.rel (0) target = $region53
    $region52: #{moco_forward.15} parent=1 // pred_region
      _
    $region53: #{moco_forward.15} parent=1 // pred_fallthru
      _
    // Predicated region
    $region54: #{moco_forward.15} parent=1 // pred_check
      _
    $region55: #{moco_forward.15} parent=1 // pred_check_branch
      %65 = sbr.rel (0) target = $region57
    $region56: #{moco_forward.15} parent=1 // pred_region
      _
    $region57: #{moco_forward.15} parent=1 // pred_fallthru
      _
    // Predicated region
    $region58: #{moco_forward.15} parent=1 // pred_check
      _
    $region59: #{moco_forward.15} parent=1 // pred_check_branch
      %67 = sbr.rel (0) target = $region61
    $region60: #{moco_forward.15} parent=1 // pred_region
      %69 = dma.done [#allocation3], 2048
    $region61: #{moco_forward.15} parent=1 // pred_fallthru
      _
    %v70 = vld [vmem:[%s7] sm:$0xff]
    %v71 = vld [vmem:[%s7 + $0x8] sm:$0xff]
    %v72 = vld [vmem:[%s7 + $0x10] sm:$0xff]
    %v73 = vld [vmem:[%s7 + $0x18] sm:$0xff]
    %v74 = vld [vmem:[%s7 + $0x20] sm:$0xff]
    %v75 = vld [vmem:[%s7 + $0x28] sm:$0xff]
    %v76 = vld [vmem:[%s7 + $0x30] sm:$0xff]
    %v77 = vld [vmem:[%s7 + $0x38] sm:$0xff]
    %v78 = vld [vmem:[%s7 + $0x40] sm:$0xff]
    %v79 = vld [vmem:[%s7 + $0x48] sm:$0xff]
    %v80 = vld [vmem:[%s7 + $0x50] sm:$0xff]
    %v81 = vld [vmem:[%s7 + $0x58] sm:$0xff]
    %v82 = vld [vmem:[%s7 + $0x60] sm:$0xff]
    %v83 = vld [vmem:[%s7 + $0x68] sm:$0xff]
    %v84 = vld [vmem:[%s7 + $0x70] sm:$0xff]
    %v85 = vld [vmem:[%s7 + $0x78] sm:$0xff]
    %v86 = vld [vmem:[%s7 + $0x80] sm:$0xff]
    %v87 = vld [vmem:[%s7 + $0x88] sm:$0xff]
    %v88 = vld [vmem:[%s7 + $0x90] sm:$0xff]
    %v89 = vld [vmem:[%s7 + $0x98] sm:$0xff]
    %v90 = vld [vmem:[%s7 + $0xa0] sm:$0xff]
    %v91 = vld [vmem:[%s7 + $0xa8] sm:$0xff]
    %v92 = vld [vmem:[%s7 + $0xb0] sm:$0xff]
    %v93 = vld [vmem:[%s7 + $0xb8] sm:$0xff]
    %v94 = vld [vmem:[%s7 + $0xc0] sm:$0xff]
    %v95 = vld [vmem:[%s7 + $0xc8] sm:$0xff]
    %v96 = vld [vmem:[%s7 + $0xd0] sm:$0xff]
    %v97 = vld [vmem:[%s7 + $0xd8] sm:$0xff]
    %v98 = vld [vmem:[%s7 + $0xe0] sm:$0xff]
    %v99 = vld [vmem:[%s7 + $0xe8] sm:$0xff]
    %v100 = vld [vmem:[%s7 + $0xf0] sm:$0xff]
    %v101 = vld [vmem:[%s7 + $0xf8] sm:$0xff]
    %v102 = vmul.f32 %v70, 0.999
    %v103 = vmul.f32 %v71, 0.999
    %v104 = vmul.f32 %v72, 0.999
    %v105 = vmul.f32 %v73, 0.999
    %v106 = vmul.f32 %v74, 0.999
    %v107 = vmul.f32 %v75, 0.999
    %v108 = vmul.f32 %v76, 0.999
    %v109 = vmul.f32 %v77, 0.999
    %v110 = vmul.f32 %v78, 0.999
    %v111 = vmul.f32 %v79, 0.999
    %v112 = vmul.f32 %v80, 0.999
    %v113 = vmul.f32 %v81, 0.999
    %v114 = vmul.f32 %v82, 0.999
    %v115 = vmul.f32 %v83, 0.999
    %v116 = vmul.f32 %v84, 0.999
    %v117 = vmul.f32 %v85, 0.999
    %v118 = vmul.f32 %v86, 0.999
    %v119 = vmul.f32 %v87, 0.999
    %v120 = vmul.f32 %v88, 0.999
    %v121 = vmul.f32 %v89, 0.999
    %v122 = vmul.f32 %v90, 0.999
    %v123 = vmul.f32 %v91, 0.999
    %v124 = vmul.f32 %v92, 0.999
    %v125 = vmul.f32 %v93, 0.999
    %v126 = vmul.f32 %v94, 0.999
    %v127 = vmul.f32 %v95, 0.999
    %v128 = vmul.f32 %v96, 0.999
    %v129 = vmul.f32 %v97, 0.999
    %v130 = vmul.f32 %v98, 0.999
    %v131 = vmul.f32 %v99, 0.999
    %v132 = vmul.f32 %v100, 0.999
    %v133 = vmul.f32 %v101, 0.999
    %v134 = vld [vmem:[%s0] sm:$0xff]
    %v135 = vld [vmem:[%s0 + $0x8] sm:$0xff]
    %v136 = vld [vmem:[%s0 + $0x10] sm:$0xff]
    %v137 = vld [vmem:[%s0 + $0x18] sm:$0xff]
    %v138 = vld [vmem:[%s0 + $0x20] sm:$0xff]
    %v139 = vld [vmem:[%s0 + $0x28] sm:$0xff]
    %v140 = vld [vmem:[%s0 + $0x30] sm:$0xff]
    %v141 = vld [vmem:[%s0 + $0x38] sm:$0xff]
    %v142 = vld [vmem:[%s0 + $0x40] sm:$0xff]
    %v143 = vld [vmem:[%s0 + $0x48] sm:$0xff]
    %v144 = vld [vmem:[%s0 + $0x50] sm:$0xff]
    %v145 = vld [vmem:[%s0 + $0x58] sm:$0xff]
    %v146 = vld [vmem:[%s0 + $0x60] sm:$0xff]
    %v147 = vld [vmem:[%s0 + $0x68] sm:$0xff]
    %v148 = vld [vmem:[%s0 + $0x70] sm:$0xff]
    %v149 = vld [vmem:[%s0 + $0x78] sm:$0xff]
    %v150 = vld [vmem:[%s0 + $0x80] sm:$0xff]
    %v151 = vld [vmem:[%s0 + $0x88] sm:$0xff]
    %v152 = vld [vmem:[%s0 + $0x90] sm:$0xff]
    %v153 = vld [vmem:[%s0 + $0x98] sm:$0xff]
    %v154 = vld [vmem:[%s0 + $0xa0] sm:$0xff]
    %v155 = vld [vmem:[%s0 + $0xa8] sm:$0xff]
    %v156 = vld [vmem:[%s0 + $0xb0] sm:$0xff]
    %v157 = vld [vmem:[%s0 + $0xb8] sm:$0xff]
    %v158 = vld [vmem:[%s0 + $0xc0] sm:$0xff]
    %v159 = vld [vmem:[%s0 + $0xc8] sm:$0xff]
    %v160 = vld [vmem:[%s0 + $0xd0] sm:$0xff]
    %v161 = vld [vmem:[%s0 + $0xd8] sm:$0xff]
    %v162 = vld [vmem:[%s0 + $0xe0] sm:$0xff]
    %v163 = vld [vmem:[%s0 + $0xe8] sm:$0xff]
    %v164 = vld [vmem:[%s0 + $0xf0] sm:$0xff]
    %v165 = vld [vmem:[%s0 + $0xf8] sm:$0xff]
    %v166 = vmul.f32 %v134, 0.001
    %v167 = vmul.f32 %v135, 0.001
    %v168 = vmul.f32 %v136, 0.001
    %v169 = vmul.f32 %v137, 0.001
    %v170 = vmul.f32 %v138, 0.001
    %v171 = vmul.f32 %v139, 0.001
    %v172 = vmul.f32 %v140, 0.001
    %v173 = vmul.f32 %v141, 0.001
    %v174 = vmul.f32 %v142, 0.001
    %v175 = vmul.f32 %v143, 0.001
    %v176 = vmul.f32 %v144, 0.001
    %v177 = vmul.f32 %v145, 0.001
    %v178 = vmul.f32 %v146, 0.001
    %v179 = vmul.f32 %v147, 0.001
    %v180 = vmul.f32 %v148, 0.001
    %v181 = vmul.f32 %v149, 0.001
    %v182 = vmul.f32 %v150, 0.001
    %v183 = vmul.f32 %v151, 0.001
    %v184 = vmul.f32 %v152, 0.001
    %v185 = vmul.f32 %v153, 0.001
    %v186 = vmul.f32 %v154, 0.001
    %v187 = vmul.f32 %v155, 0.001
    %v188 = vmul.f32 %v156, 0.001
    %v189 = vmul.f32 %v157, 0.001
    %v190 = vmul.f32 %v158, 0.001
    %v191 = vmul.f32 %v159, 0.001
    %v192 = vmul.f32 %v160, 0.001
    %v193 = vmul.f32 %v161, 0.001
    %v194 = vmul.f32 %v162, 0.001
    %v195 = vmul.f32 %v163, 0.001
    %v196 = vmul.f32 %v164, 0.001
    %v197 = vmul.f32 %v165, 0.001
    %v198 = vadd.f32 %v102, %v166
    %v199 = vadd.f32 %v103, %v167
    %v200 = vadd.f32 %v104, %v168
    %v201 = vadd.f32 %v105, %v169
    %v202 = vadd.f32 %v106, %v170
    %v203 = vadd.f32 %v107, %v171
    %v204 = vadd.f32 %v108, %v172
    %v205 = vadd.f32 %v109, %v173
    %v206 = vadd.f32 %v110, %v174
    %v207 = vadd.f32 %v111, %v175
    %v208 = vadd.f32 %v112, %v176
    %v209 = vadd.f32 %v113, %v177
    %v210 = vadd.f32 %v114, %v178
    %v211 = vadd.f32 %v115, %v179
    %v212 = vadd.f32 %v116, %v180
    %v213 = vadd.f32 %v117, %v181
    %v214 = vadd.f32 %v118, %v182
    %v215 = vadd.f32 %v119, %v183
    %v216 = vadd.f32 %v120, %v184
    %v217 = vadd.f32 %v121, %v185
    %v218 = vadd.f32 %v122, %v186
    %v219 = vadd.f32 %v123, %v187
    %v220 = vadd.f32 %v124, %v188
    %v221 = vadd.f32 %v125, %v189
    %v222 = vadd.f32 %v126, %v190
    %v223 = vadd.f32 %v127, %v191
    %v224 = vadd.f32 %v128, %v192
    %v225 = vadd.f32 %v129, %v193
    %v226 = vadd.f32 %v130, %v194
    %v227 = vadd.f32 %v131, %v195
    %v228 = vadd.f32 %v132, %v196
    %v229 = vadd.f32 %v133, %v197
    %230 = vst [vmem:[%s14] sm:$0xff] %v198
    %231 = vst [vmem:[%s14 + $0x8] sm:$0xff] %v199
    %232 = vst [vmem:[%s14 + $0x10] sm:$0xff] %v200
    %233 = vst [vmem:[%s14 + $0x18] sm:$0xff] %v201
    %234 = vst [vmem:[%s14 + $0x20] sm:$0xff] %v202
    %235 = vst [vmem:[%s14 + $0x28] sm:$0xff] %v203
    %236 = vst [vmem:[%s14 + $0x30] sm:$0xff] %v204
    %237 = vst [vmem:[%s14 + $0x38] sm:$0xff] %v205
    %238 = vst [vmem:[%s14 + $0x40] sm:$0xff] %v206
    %239 = vst [vmem:[%s14 + $0x48] sm:$0xff] %v207
    %240 = vst [vmem:[%s14 + $0x50] sm:$0xff] %v208
    %241 = vst [vmem:[%s14 + $0x58] sm:$0xff] %v209
    %242 = vst [vmem:[%s14 + $0x60] sm:$0xff] %v210
    %243 = vst [vmem:[%s14 + $0x68] sm:$0xff] %v211
    %244 = vst [vmem:[%s14 + $0x70] sm:$0xff] %v212
    %245 = vst [vmem:[%s14 + $0x78] sm:$0xff] %v213
    %246 = vst [vmem:[%s14 + $0x80] sm:$0xff] %v214
    %247 = vst [vmem:[%s14 + $0x88] sm:$0xff] %v215
    %248 = vst [vmem:[%s14 + $0x90] sm:$0xff] %v216
    %249 = vst [vmem:[%s14 + $0x98] sm:$0xff] %v217
    %250 = vst [vmem:[%s14 + $0xa0] sm:$0xff] %v218
    %251 = vst [vmem:[%s14 + $0xa8] sm:$0xff] %v219
    %252 = vst [vmem:[%s14 + $0xb0] sm:$0xff] %v220
    %253 = vst [vmem:[%s14 + $0xb8] sm:$0xff] %v221
    %254 = vst [vmem:[%s14 + $0xc0] sm:$0xff] %v222
    %255 = vst [vmem:[%s14 + $0xc8] sm:$0xff] %v223
    %256 = vst [vmem:[%s14 + $0xd0] sm:$0xff] %v224
    %257 = vst [vmem:[%s14 + $0xd8] sm:$0xff] %v225
    %258 = vst [vmem:[%s14 + $0xe0] sm:$0xff] %v226
    %259 = vst [vmem:[%s14 + $0xe8] sm:$0xff] %v227
    %260 = vst [vmem:[%s14 + $0xf0] sm:$0xff] %v228
    %261 = vst [vmem:[%s14 + $0xf8] sm:$0xff] %v229
    %v262 = vld [vmem:[%s8] sm:$0x1]
    %v263 = vmul.f32 %v262, 0.999
    %v264 = vld [vmem:[%s1] sm:$0x1]
    %v265 = vmul.f32 %v264, 0.001
    %v266 = vadd.f32 %v263, %v265
    %267 = vst [vmem:[%s15] sm:$0x1] %v266
    %v268 = vld [vmem:[%s9] sm:$0xff]
    %v269 = vld [vmem:[%s9 + $0x8] sm:$0xff]
    %v270 = vld [vmem:[%s9 + $0x10] sm:$0xff]
    %v271 = vld [vmem:[%s9 + $0x18] sm:$0xff]
    %v272 = vld [vmem:[%s9 + $0x20] sm:$0xff]
    %v273 = vld [vmem:[%s9 + $0x28] sm:$0xff]
    %v274 = vld [vmem:[%s9 + $0x30] sm:$0xff]
    %v275 = vld [vmem:[%s9 + $0x38] sm:$0xff]
    %v276 = vld [vmem:[%s9 + $0x40] sm:$0xff]
    %v277 = vld [vmem:[%s9 + $0x48] sm:$0xff]
    %v278 = vld [vmem:[%s9 + $0x50] sm:$0xff]
    %v279 = vld [vmem:[%s9 + $0x58] sm:$0xff]
    %v280 = vld [vmem:[%s9 + $0x60] sm:$0xff]
    %v281 = vld [vmem:[%s9 + $0x68] sm:$0xff]
    %v282 = vld [vmem:[%s9 + $0x70] sm:$0xff]
    %v283 = vld [vmem:[%s9 + $0x78] sm:$0xff]
    %v284 = vmul.f32 %v268, 0.999
    %v285 = vmul.f32 %v269, 0.999
    %v286 = vmul.f32 %v270, 0.999
    %v287 = vmul.f32 %v271, 0.999
    %v288 = vmul.f32 %v272, 0.999
    %v289 = vmul.f32 %v273, 0.999
    %v290 = vmul.f32 %v274, 0.999
    %v291 = vmul.f32 %v275, 0.999
    %v292 = vmul.f32 %v276, 0.999
    %v293 = vmul.f32 %v277, 0.999
    %v294 = vmul.f32 %v278, 0.999
    %v295 = vmul.f32 %v279, 0.999
    %v296 = vmul.f32 %v280, 0.999
    %v297 = vmul.f32 %v281, 0.999
    %v298 = vmul.f32 %v282, 0.999
    %v299 = vmul.f32 %v283, 0.999
    %v300 = vld [vmem:[%s2] sm:$0xff]
    %v301 = vld [vmem:[%s2 + $0x8] sm:$0xff]
    %v302 = vld [vmem:[%s2 + $0x10] sm:$0xff]
    %v303 = vld [vmem:[%s2 + $0x18] sm:$0xff]
    %v304 = vld [vmem:[%s2 + $0x20] sm:$0xff]
    %v305 = vld [vmem:[%s2 + $0x28] sm:$0xff]
    %v306 = vld [vmem:[%s2 + $0x30] sm:$0xff]
    %v307 = vld [vmem:[%s2 + $0x38] sm:$0xff]
    %v308 = vld [vmem:[%s2 + $0x40] sm:$0xff]
    %v309 = vld [vmem:[%s2 + $0x48] sm:$0xff]
    %v310 = vld [vmem:[%s2 + $0x50] sm:$0xff]
    %v311 = vld [vmem:[%s2 + $0x58] sm:$0xff]
    %v312 = vld [vmem:[%s2 + $0x60] sm:$0xff]
    %v313 = vld [vmem:[%s2 + $0x68] sm:$0xff]
    %v314 = vld [vmem:[%s2 + $0x70] sm:$0xff]
    %v315 = vld [vmem:[%s2 + $0x78] sm:$0xff]
    %v316 = vmul.f32 %v300, 0.001
    %v317 = vmul.f32 %v301, 0.001
    %v318 = vmul.f32 %v302, 0.001
    %v319 = vmul.f32 %v303, 0.001
    %v320 = vmul.f32 %v304, 0.001
    %v321 = vmul.f32 %v305, 0.001
    %v322 = vmul.f32 %v306, 0.001
    %v323 = vmul.f32 %v307, 0.001
    %v324 = vmul.f32 %v308, 0.001
    %v325 = vmul.f32 %v309, 0.001
    %v326 = vmul.f32 %v310, 0.001
    %v327 = vmul.f32 %v311, 0.001
    %v328 = vmul.f32 %v312, 0.001
    %v329 = vmul.f32 %v313, 0.001
    %v330 = vmul.f32 %v314, 0.001
    %v331 = vmul.f32 %v315, 0.001
    %v332 = vadd.f32 %v284, %v316
    %v333 = vadd.f32 %v285, %v317
    %v334 = vadd.f32 %v286, %v318
    %v335 = vadd.f32 %v287, %v319
    %v336 = vadd.f32 %v288, %v320
    %v337 = vadd.f32 %v289, %v321
    %v338 = vadd.f32 %v290, %v322
    %v339 = vadd.f32 %v291, %v323
    %v340 = vadd.f32 %v292, %v324
    %v341 = vadd.f32 %v293, %v325
    %v342 = vadd.f32 %v294, %v326
    %v343 = vadd.f32 %v295, %v327
    %v344 = vadd.f32 %v296, %v328
    %v345 = vadd.f32 %v297, %v329
    %v346 = vadd.f32 %v298, %v330
    %v347 = vadd.f32 %v299, %v331
    %348 = vst [vmem:[%s16] sm:$0xff] %v332
    %349 = vst [vmem:[%s16 + $0x8] sm:$0xff] %v333
    %350 = vst [vmem:[%s16 + $0x10] sm:$0xff] %v334
    %351 = vst [vmem:[%s16 + $0x18] sm:$0xff] %v335
    %352 = vst [vmem:[%s16 + $0x20] sm:$0xff] %v336
    %353 = vst [vmem:[%s16 + $0x28] sm:$0xff] %v337
    %354 = vst [vmem:[%s16 + $0x30] sm:$0xff] %v338
    %355 = vst [vmem:[%s16 + $0x38] sm:$0xff] %v339
    %356 = vst [vmem:[%s16 + $0x40] sm:$0xff] %v340
    %357 = vst [vmem:[%s16 + $0x48] sm:$0xff] %v341
    %358 = vst [vmem:[%s16 + $0x50] sm:$0xff] %v342
    %359 = vst [vmem:[%s16 + $0x58] sm:$0xff] %v343
    %360 = vst [vmem:[%s16 + $0x60] sm:$0xff] %v344
    %361 = vst [vmem:[%s16 + $0x68] sm:$0xff] %v345
    %362 = vst [vmem:[%s16 + $0x70] sm:$0xff] %v346
    %363 = vst [vmem:[%s16 + $0x78] sm:$0xff] %v347
    %v364 = vld [vmem:[%s10] sm:$0x1]
    %v365 = vmul.f32 %v364, 0.999
    %v366 = vld [vmem:[%s3] sm:$0x1]
    %v367 = vmul.f32 %v366, 0.001
    %v368 = vadd.f32 %v365, %v367
    %369 = vst [vmem:[%s17] sm:$0x1] %v368
    %v370 = vld [vmem:[%s11] sm:$0xff]
    %v371 = vld [vmem:[%s11 + $0x8] sm:$0xff]
    %v372 = vld [vmem:[%s11 + $0x10] sm:$0xff]
    %v373 = vld [vmem:[%s11 + $0x18] sm:$0xff]
    %v374 = vld [vmem:[%s11 + $0x20] sm:$0xff]
    %v375 = vld [vmem:[%s11 + $0x28] sm:$0xff]
    %v376 = vld [vmem:[%s11 + $0x30] sm:$0xff]
    %v377 = vld [vmem:[%s11 + $0x38] sm:$0xff]
    %v378 = vld [vmem:[%s11 + $0x40] sm:$0xff]
    %v379 = vld [vmem:[%s11 + $0x48] sm:$0xff]
    %v380 = vld [vmem:[%s11 + $0x50] sm:$0xff]
    %v381 = vld [vmem:[%s11 + $0x58] sm:$0xff]
    %v382 = vld [vmem:[%s11 + $0x60] sm:$0xff]
    %v383 = vld [vmem:[%s11 + $0x68] sm:$0xff]
    %v384 = vld [vmem:[%s11 + $0x70] sm:$0xff]
    %v385 = vld [vmem:[%s11 + $0x78] sm:$0xff]
    %v386 = vmul.f32 %v370, 0.999
    %v387 = vmul.f32 %v371, 0.999
    %v388 = vmul.f32 %v372, 0.999
    %v389 = vmul.f32 %v373, 0.999
    %v390 = vmul.f32 %v374, 0.999
    %v391 = vmul.f32 %v375, 0.999
    %v392 = vmul.f32 %v376, 0.999
    %v393 = vmul.f32 %v377, 0.999
    %v394 = vmul.f32 %v378, 0.999
    %v395 = vmul.f32 %v379, 0.999
    %v396 = vmul.f32 %v380, 0.999
    %v397 = vmul.f32 %v381, 0.999
    %v398 = vmul.f32 %v382, 0.999
    %v399 = vmul.f32 %v383, 0.999
    %v400 = vmul.f32 %v384, 0.999
    %v401 = vmul.f32 %v385, 0.999
    %v402 = vld [vmem:[#allocation2] sm:$0xff]
    %v403 = vld [vmem:[#allocation2 + $0x8] sm:$0xff]
    %v404 = vld [vmem:[#allocation2 + $0x10] sm:$0xff]
    %v405 = vld [vmem:[#allocation2 + $0x18] sm:$0xff]
    %v406 = vld [vmem:[#allocation2 + $0x20] sm:$0xff]
    %v407 = vld [vmem:[#allocation2 + $0x28] sm:$0xff]
    %v408 = vld [vmem:[#allocation2 + $0x30] sm:$0xff]
    %v409 = vld [vmem:[#allocation2 + $0x38] sm:$0xff]
    %v410 = vld [vmem:[#allocation2 + $0x40] sm:$0xff]
    %v411 = vld [vmem:[#allocation2 + $0x48] sm:$0xff]
    %v412 = vld [vmem:[#allocation2 + $0x50] sm:$0xff]
    %v413 = vld [vmem:[#allocation2 + $0x58] sm:$0xff]
    %v414 = vld [vmem:[#allocation2 + $0x60] sm:$0xff]
    %v415 = vld [vmem:[#allocation2 + $0x68] sm:$0xff]
    %v416 = vld [vmem:[#allocation2 + $0x70] sm:$0xff]
    %v417 = vld [vmem:[#allocation2 + $0x78] sm:$0xff]
    %v418 = vmul.f32 %v402, 0.001
    %v419 = vmul.f32 %v403, 0.001
    %v420 = vmul.f32 %v404, 0.001
    %v421 = vmul.f32 %v405, 0.001
    %v422 = vmul.f32 %v406, 0.001
    %v423 = vmul.f32 %v407, 0.001
    %v424 = vmul.f32 %v408, 0.001
    %v425 = vmul.f32 %v409, 0.001
    %v426 = vmul.f32 %v410, 0.001
    %v427 = vmul.f32 %v411, 0.001
    %v428 = vmul.f32 %v412, 0.001
    %v429 = vmul.f32 %v413, 0.001
    %v430 = vmul.f32 %v414, 0.001
    %v431 = vmul.f32 %v415, 0.001
    %v432 = vmul.f32 %v416, 0.001
    %v433 = vmul.f32 %v417, 0.001
    %v434 = vadd.f32 %v386, %v418
    %v435 = vadd.f32 %v387, %v419
    %v436 = vadd.f32 %v388, %v420
    %v437 = vadd.f32 %v389, %v421
    %v438 = vadd.f32 %v390, %v422
    %v439 = vadd.f32 %v391, %v423
    %v440 = vadd.f32 %v392, %v424
    %v441 = vadd.f32 %v393, %v425
    %v442 = vadd.f32 %v394, %v426
    %v443 = vadd.f32 %v395, %v427
    %v444 = vadd.f32 %v396, %v428
    %v445 = vadd.f32 %v397, %v429
    %v446 = vadd.f32 %v398, %v430
    %v447 = vadd.f32 %v399, %v431
    %v448 = vadd.f32 %v400, %v432
    %v449 = vadd.f32 %v401, %v433
    %450 = vst [vmem:[%s18] sm:$0xff] %v434
    %451 = vst [vmem:[%s18 + $0x8] sm:$0xff] %v435
    %452 = vst [vmem:[%s18 + $0x10] sm:$0xff] %v436
    %453 = vst [vmem:[%s18 + $0x18] sm:$0xff] %v437
    %454 = vst [vmem:[%s18 + $0x20] sm:$0xff] %v438
    %455 = vst [vmem:[%s18 + $0x28] sm:$0xff] %v439
    %456 = vst [vmem:[%s18 + $0x30] sm:$0xff] %v440
    %457 = vst [vmem:[%s18 + $0x38] sm:$0xff] %v441
    %458 = vst [vmem:[%s18 + $0x40] sm:$0xff] %v442
    %459 = vst [vmem:[%s18 + $0x48] sm:$0xff] %v443
    %460 = vst [vmem:[%s18 + $0x50] sm:$0xff] %v444
    %461 = vst [vmem:[%s18 + $0x58] sm:$0xff] %v445
    %462 = vst [vmem:[%s18 + $0x60] sm:$0xff] %v446
    %463 = vst [vmem:[%s18 + $0x68] sm:$0xff] %v447
    %464 = vst [vmem:[%s18 + $0x70] sm:$0xff] %v448
    %465 = vst [vmem:[%s18 + $0x78] sm:$0xff] %v449
    %v466 = vld [vmem:[%s12] sm:$0x1]
    %v467 = vmul.f32 %v466, 0.999
    %v468 = vld [vmem:[%s5] sm:$0x1]
    %v469 = vmul.f32 %v468, 0.001
    %v470 = vadd.f32 %v467, %v469
    %471 = vst [vmem:[%s19] sm:$0x1] %v470
    %v472 = vld [vmem:[%s13] sm:$0x77]
    %v473 = vmul.f32 %v472, 0.999
    %v474 = vld [vmem:[%s6] sm:$0x77]
    %v475 = vmul.f32 %v474, 0.001
    %v476 = vadd.f32 %v473, %v475
    %477 = vst [vmem:[%s20] sm:$0x77] %v476
    // Predicated region
    $region62: #{moco_forward.15} parent=1 // pred_check
      _
    $region63: #{moco_forward.15} parent=1 // pred_check_branch
      %479 = sbr.rel (0) target = $region65
    $region64: #{moco_forward.15} parent=1 // pred_region
      _
    $region65: #{moco_forward.15} parent=1 // pred_fallthru
      _
    // Predicated region
    $region66: #{moco_forward.15} parent=1 // pred_check
      _
    $region67: #{moco_forward.15} parent=1 // pred_check_branch
      %481 = sbr.rel (0) target = $region69
    $region68: #{moco_forward.15} parent=1 // pred_region
      _
    $region69: #{moco_forward.15} parent=1 // pred_fallthru
      _
    // Predicated region
    $region70: #{moco_forward.15} parent=1 // pred_check
      _
    $region71: #{moco_forward.15} parent=1 // pred_check_branch
      %483 = sbr.rel (0) target = $region73
    $region72: #{moco_forward.15} parent=1 // pred_region
      _
    $region73: #{moco_forward.15} parent=1 // pred_fallthru
      _
    // Predicated region
    $region74: #{moco_forward.15} parent=1 // pred_check
      _
    $region75: #{moco_forward.15} parent=1 // pred_check_branch
      %485 = sbr.rel (0) target = $region77
    $region76: #{moco_forward.15} parent=1 // pred_region
      _
    $region77: #{moco_forward.15} parent=1 // pred_fallthru
      _
    // Predicated region
    $region78: #{moco_forward.15} parent=1 // pred_check
      _
    $region79: #{moco_forward.15} parent=1 // pred_check_branch
      %487 = sbr.rel (0) target = $region81
    $region80: #{moco_forward.15} parent=1 // pred_region
      _
    $region81: #{moco_forward.15} parent=1 // pred_fallthru
      _
    // Predicated region
    $region82: #{moco_forward.15} parent=1 // pred_check
      _
    $region83: #{moco_forward.15} parent=1 // pred_check_branch
      %489 = sbr.rel (0) target = $region85
    $region84: #{moco_forward.15} parent=1 // pred_region
      _
    $region85: #{moco_forward.15} parent=1 // pred_fallthru
      _
    // Predicated region
    $region86: #{moco_forward.15} parent=1 // pred_check
      _
    $region87: #{moco_forward.15} parent=1 // pred_check_branch
      %491 = sbr.rel (0) target = $region89
    $region88: #{moco_forward.15} parent=1 // pred_region
      _
    $region89: #{moco_forward.15} parent=1 // pred_fallthru
      _
    // Predicated region
    $region90: #{moco_forward.15} parent=1 // pred_check
      _
    $region91: #{moco_forward.15} parent=1 // pred_check_branch
      %493 = sbr.rel (0) target = $region93
    $region92: #{moco_forward.15} parent=1 // pred_region
      _
    $region93: #{moco_forward.15} parent=1 // pred_fallthru
      _
    // Predicated region
    $region94: #{moco_forward.15} parent=1 // pred_check
      _
    $region95: #{moco_forward.15} parent=1 // pred_check_branch
      %495 = sbr.rel (0) target = $region97
    $region96: #{moco_forward.15} parent=1 // pred_region
      _
    $region97: #{moco_forward.15} parent=1 // pred_fallthru
      _
    // Predicated region
    $region98: #{moco_forward.15} parent=1 // pred_check
      _
    $region99: #{moco_forward.15} parent=1 // pred_check_branch
      %497 = sbr.rel (0) target = $region101
    $region100: #{moco_forward.15} parent=1 // pred_region
      _
    $region101: #{moco_forward.15} parent=1 // pred_fallthru
      _
    // Predicated region
    $region102: #{moco_forward.15} parent=1 // pred_check
      _
    $region103: #{moco_forward.15} parent=1 // pred_check_branch
      %499 = sbr.rel (0) target = $region105
    $region104: #{moco_forward.15} parent=1 // pred_region
      _
    $region105: #{moco_forward.15} parent=1 // pred_fallthru
      _
    // Predicated region
    $region106: #{moco_forward.15} parent=1 // pred_check
      _
    $region107: #{moco_forward.15} parent=1 // pred_check_branch
      %501 = sbr.rel (0) target = $region109
    $region108: #{moco_forward.15} parent=1 // pred_region
      _
    $region109: #{moco_forward.15} parent=1 // pred_fallthru
      _
    // Predicated region
    $region110: #{moco_forward.15} parent=1 // pred_check
      _
    $region111: #{moco_forward.15} parent=1 // pred_check_branch
      %503 = sbr.rel (0) target = $region113
    $region112: #{moco_forward.15} parent=1 // pred_region
      _
    $region113: #{moco_forward.15} parent=1 // pred_fallthru
      _
    // Predicated region
    $region114: #{moco_forward.15} parent=1 // pred_check
      _
    $region115: #{moco_forward.15} parent=1 // pred_check_branch
      %505 = sbr.rel (0) target = $region117
    $region116: #{moco_forward.15} parent=1 // pred_region
      _
    $region117: #{moco_forward.15} parent=1 // pred_fallthru
      _
    %506 = vsyncpa [#allocation3], 1

// kernel: moco_forward.16
$region0: #{moco_forward.16}
  #allocation0 [shape = 'u32[]', space=smem, size = 0x4, offset = 0x4, fixed_abs, tag = 'smem constant byte address 0x4 - core index']
  #allocation1 [shape = 'u32[72,128]{1,0:T(1,128)}', space=vmem, size = 0x9000, scoped, tag = 'internal scratch']
  %s0 = inlined_call_operand.vmem [shape: f32[2,3,256], index: 0, kind: input, shape index: {}]
  %s1 = inlined_call_operand.vmem [shape: f32[3,256], index: 1, kind: input, shape index: {}]
  %s2 = inlined_call_operand.vmem [shape: f32[256,128], index: 2, kind: input, shape index: {}]
  %s3 = inlined_call_operand.vmem [shape: f32[1,128], index: 3, kind: input, shape index: {}]
  %s4 = inlined_call_operand.vmem [shape: f32[128,128], index: 4, kind: input, shape index: {}]
  %s5 = inlined_call_operand.vmem [shape: f32[1,128], index: 5, kind: input, shape index: {}]
  %s6 = inlined_call_operand.vmem [shape: f32[128,128], index: 6, kind: input, shape index: {}]
  %s7 = inlined_call_operand.vmem [shape: f32[1,128], index: 7, kind: input, shape index: {}]
  %s8 = inlined_call_operand.vmem [shape: f32[2,128], index: 8, kind: output, shape index: {}]
  %s9 = sld [smem:[#allocation0]]
  $region42: #{moco_forward.16} parent=0
    _
  %s11 = ssub.s32 1, %s9
  %s12 = scalar_select 0, %s11, %s9
  // Predicated region
  $region2: #{moco_forward.16} parent=0 // pred_check
    _
  $region3: #{moco_forward.16} parent=0 // pred_check_branch
    %14 = sbr.rel (0) target = $region5
  $region4: #{moco_forward.16} parent=0 // pred_region
    _
  $region5: #{moco_forward.16} parent=0 // pred_fallthru
    _
  // Predicated region
  $region6: #{moco_forward.16} parent=0 // pred_check
    _
  $region7: #{moco_forward.16} parent=0 // pred_check_branch
    %16 = sbr.rel (0) target = $region9
  $region8: #{moco_forward.16} parent=0 // pred_region
    _
  $region9: #{moco_forward.16} parent=0 // pred_fallthru
    _
  // Predicated region
  $region10: #{moco_forward.16} parent=0 // pred_check
    _
  $region11: #{moco_forward.16} parent=0 // pred_check_branch
    %18 = sbr.rel (0) target = $region13
  $region12: #{moco_forward.16} parent=0 // pred_region
    _
  $region13: #{moco_forward.16} parent=0 // pred_fallthru
    _
  // Predicated region
  $region14: #{moco_forward.16} parent=0 // pred_check
    _
  $region15: #{moco_forward.16} parent=0 // pred_check_branch
    %20 = sbr.rel (0) target = $region17
  $region16: #{moco_forward.16} parent=0 // pred_region
    _
  $region17: #{moco_forward.16} parent=0 // pred_fallthru
    _
  // Predicated region
  $region18: #{moco_forward.16} parent=0 // pred_check
    _
  $region19: #{moco_forward.16} parent=0 // pred_check_branch
    %22 = sbr.rel (0) target = $region21
  $region20: #{moco_forward.16} parent=0 // pred_region
    _
  $region21: #{moco_forward.16} parent=0 // pred_fallthru
    _
  // Predicated region
  $region22: #{moco_forward.16} parent=0 // pred_check
    _
  $region23: #{moco_forward.16} parent=0 // pred_check_branch
    %24 = sbr.rel (0) target = $region25
  $region24: #{moco_forward.16} parent=0 // pred_region
    _
  $region25: #{moco_forward.16} parent=0 // pred_fallthru
    _
  // Predicated region
  $region26: #{moco_forward.16} parent=0 // pred_check
    _
  $region27: #{moco_forward.16} parent=0 // pred_check_branch
    %26 = sbr.rel (0) target = $region29
  $region28: #{moco_forward.16} parent=0 // pred_region
    _
  $region29: #{moco_forward.16} parent=0 // pred_fallthru
    _
  // Predicated region
  $region30: #{moco_forward.16} parent=0 // pred_check
    _
  $region31: #{moco_forward.16} parent=0 // pred_check_branch
    %28 = sbr.rel (0) target = $region33
  $region32: #{moco_forward.16} parent=0 // pred_region
    _
  $region33: #{moco_forward.16} parent=0 // pred_fallthru
    _
  %v29 = vld [vmem:[%s0] sm:$0x77]
  %v30 = vld [vmem:[%s0 + $0x8] sm:$0x77]
  %33 = vst [vmem:[#allocation1] ss:$2 sm:$0xff] %v29
  %v34 = vld.sshfl [vmem:[#allocation1] sm:$0xff pattern:$0x75316420]
  %v35 = vld.sshfl [vmem:[#allocation1 + $0x8] sm:$0xff pattern:$0x75316420]
  %s36 = scalar_lea.vmem [#allocation1], 16
  %37 = vst [vmem:[%s36] ss:$2 sm:$0xff] %v30
  %v38 = vld.sshfl [vmem:[#allocation1 + $0x10] sm:$0xff pattern:$0x75316420]
  %v39 = vld.sshfl [vmem:[#allocation1 + $0x18] sm:$0xff pattern:$0x75316420]
  %vm44 = vcmask 1042432
  %v45 = vsel %vm44, %v34, 0.0
  %v46 = vsel %vm44, %v35, 0.0
  %v47 = vadd.f32 %v45, %v46
  %48 = vadd.xlane.f32.xlu0 %v47
  %v49 = vpop.xlane.xlu0 %48
  %v50 = vsel %vm44, %v38, 0.0
  %v51 = vsel %vm44, %v39, 0.0
  %v52 = vadd.f32 %v50, %v51
  %53 = vadd.xlane.f32.xlu0 %v52
  %v54 = vpop.xlane.xlu0 %53
  %v55 = vmul.f32 %v49, 0.00390625
  %v56 = vmul.f32 %v54, 0.00390625
  %v57 = vld [vmem:[%s1] sm:$0x77]
  %v58 = vperm.slane %v55, 0
  %v59 = vperm.slane %v56, 0
  %v61 = vperm.slane %v57, 0
  %v62 = vperm.slane %v57, 4
  %v65 = vperm.slane %v61, 0
  %v66 = vperm.slane %v62, 0
  %v69 = vlaneseq
  %v70 = vshrl.u32 %v69, 7
  %72 = vset.pattern.permute.xlu0 %v70
  %73 = vperm.xlu0 %72, %v65
  %v74 = vpop.permute.xlu0 %73
  %v75 = vlaneseq
  %v76 = vshrl.u32 %v75, 7
  %v77 = vadd.s32 %v76, 8
  %78 = vset.pattern.permute.xlu0 %v77
  %79 = vperm.xlu0 %78, %v65
  %v80 = vpop.permute.xlu0 %79
  %v81 = vlaneseq
  %v82 = vshrl.u32 %v81, 7
  %v83 = vadd.s32 %v82, 16
  %84 = vset.pattern.permute.xlu0 %v83
  %85 = vperm.xlu0 %84, %v65
  %v86 = vpop.permute.xlu0 %85
  %v87 = vlaneseq
  %v88 = vshrl.u32 %v87, 7
  %v89 = vadd.s32 %v88, 24
  %90 = vset.pattern.permute.xlu0 %v89
  %91 = vperm.xlu0 %90, %v65
  %v92 = vpop.permute.xlu0 %91
  %v93 = vlaneseq
  %v94 = vshrl.u32 %v93, 7
  %v95 = vadd.s32 %v94, 32
  %96 = vset.pattern.permute.xlu0 %v95
  %97 = vperm.xlu0 %96, %v65
  %v98 = vpop.permute.xlu0 %97
  %v99 = vlaneseq
  %v100 = vshrl.u32 %v99, 7
  %v101 = vadd.s32 %v100, 40
  %102 = vset.pattern.permute.xlu0 %v101
  %103 = vperm.xlu0 %102, %v65
  %v104 = vpop.permute.xlu0 %103
  %v105 = vlaneseq
  %v106 = vshrl.u32 %v105, 7
  %v107 = vadd.s32 %v106, 48
  %108 = vset.pattern.permute.xlu0 %v107
  %109 = vperm.xlu0 %108, %v65
  %v110 = vpop.permute.xlu0 %109
  %v111 = vlaneseq
  %v112 = vshrl.u32 %v111, 7
  %v113 = vadd.s32 %v112, 56
  %114 = vset.pattern.permute.xlu0 %v113
  %115 = vperm.xlu0 %114, %v65
  %v116 = vpop.permute.xlu0 %115
  %v117 = vlaneseq
  %v118 = vshrl.u32 %v117, 7
  %v119 = vadd.s32 %v118, 64
  %120 = vset.pattern.permute.xlu0 %v119
  %121 = vperm.xlu0 %120, %v65
  %v122 = vpop.permute.xlu0 %121
  %v123 = vlaneseq
  %v124 = vshrl.u32 %v123, 7
  %v125 = vadd.s32 %v124, 72
  %126 = vset.pattern.permute.xlu0 %v125
  %127 = vperm.xlu0 %126, %v65
  %v128 = vpop.permute.xlu0 %127
  %v129 = vlaneseq
  %v130 = vshrl.u32 %v129, 7
  %v131 = vadd.s32 %v130, 80
  %132 = vset.pattern.permute.xlu0 %v131
  %133 = vperm.xlu0 %132, %v65
  %v134 = vpop.permute.xlu0 %133
  %v135 = vlaneseq
  %v136 = vshrl.u32 %v135, 7
  %v137 = vadd.s32 %v136, 88
  %138 = vset.pattern.permute.xlu0 %v137
  %139 = vperm.xlu0 %138, %v65
  %v140 = vpop.permute.xlu0 %139
  %v141 = vlaneseq
  %v142 = vshrl.u32 %v141, 7
  %v143 = vadd.s32 %v142, 96
  %144 = vset.pattern.permute.xlu0 %v143
  %145 = vperm.xlu0 %144, %v65
  %v146 = vpop.permute.xlu0 %145
  %v147 = vlaneseq
  %v148 = vshrl.u32 %v147, 7
  %v149 = vadd.s32 %v148, 104
  %150 = vset.pattern.permute.xlu0 %v149
  %151 = vperm.xlu0 %150, %v65
  %v152 = vpop.permute.xlu0 %151
  %v153 = vlaneseq
  %v154 = vshrl.u32 %v153, 7
  %v155 = vadd.s32 %v154, 112
  %156 = vset.pattern.permute.xlu0 %v155
  %157 = vperm.xlu0 %156, %v65
  %v158 = vpop.permute.xlu0 %157
  %v159 = vlaneseq
  %v160 = vshrl.u32 %v159, 7
  %v161 = vadd.s32 %v160, 120
  %162 = vset.pattern.permute.xlu0 %v161
  %163 = vperm.xlu0 %162, %v65
  %v164 = vpop.permute.xlu0 %163
  %v165 = vlaneseq
  %v166 = vshrl.u32 %v165, 7
  %168 = vset.pattern.permute.xlu0 %v166
  %169 = vperm.xlu0 %168, %v66
  %v170 = vpop.permute.xlu0 %169
  %v171 = vlaneseq
  %v172 = vshrl.u32 %v171, 7
  %v173 = vadd.s32 %v172, 8
  %174 = vset.pattern.permute.xlu0 %v173
  %175 = vperm.xlu0 %174, %v66
  %v176 = vpop.permute.xlu0 %175
  %v177 = vlaneseq
  %v178 = vshrl.u32 %v177, 7
  %v179 = vadd.s32 %v178, 16
  %180 = vset.pattern.permute.xlu0 %v179
  %181 = vperm.xlu0 %180, %v66
  %v182 = vpop.permute.xlu0 %181
  %v183 = vlaneseq
  %v184 = vshrl.u32 %v183, 7
  %v185 = vadd.s32 %v184, 24
  %186 = vset.pattern.permute.xlu0 %v185
  %187 = vperm.xlu0 %186, %v66
  %v188 = vpop.permute.xlu0 %187
  %v189 = vlaneseq
  %v190 = vshrl.u32 %v189, 7
  %v191 = vadd.s32 %v190, 32
  %192 = vset.pattern.permute.xlu0 %v191
  %193 = vperm.xlu0 %192, %v66
  %v194 = vpop.permute.xlu0 %193
  %v195 = vlaneseq
  %v196 = vshrl.u32 %v195, 7
  %v197 = vadd.s32 %v196, 40
  %198 = vset.pattern.permute.xlu0 %v197
  %199 = vperm.xlu0 %198, %v66
  %v200 = vpop.permute.xlu0 %199
  %v201 = vlaneseq
  %v202 = vshrl.u32 %v201, 7
  %v203 = vadd.s32 %v202, 48
  %204 = vset.pattern.permute.xlu0 %v203
  %205 = vperm.xlu0 %204, %v66
  %v206 = vpop.permute.xlu0 %205
  %v207 = vlaneseq
  %v208 = vshrl.u32 %v207, 7
  %v209 = vadd.s32 %v208, 56
  %210 = vset.pattern.permute.xlu0 %v209
  %211 = vperm.xlu0 %210, %v66
  %v212 = vpop.permute.xlu0 %211
  %v213 = vlaneseq
  %v214 = vshrl.u32 %v213, 7
  %v215 = vadd.s32 %v214, 64
  %216 = vset.pattern.permute.xlu0 %v215
  %217 = vperm.xlu0 %216, %v66
  %v218 = vpop.permute.xlu0 %217
  %v219 = vlaneseq
  %v220 = vshrl.u32 %v219, 7
  %v221 = vadd.s32 %v220, 72
  %222 = vset.pattern.permute.xlu0 %v221
  %223 = vperm.xlu0 %222, %v66
  %v224 = vpop.permute.xlu0 %223
  %v225 = vlaneseq
  %v226 = vshrl.u32 %v225, 7
  %v227 = vadd.s32 %v226, 80
  %228 = vset.pattern.permute.xlu0 %v227
  %229 = vperm.xlu0 %228, %v66
  %v230 = vpop.permute.xlu0 %229
  %v231 = vlaneseq
  %v232 = vshrl.u32 %v231, 7
  %v233 = vadd.s32 %v232, 88
  %234 = vset.pattern.permute.xlu0 %v233
  %235 = vperm.xlu0 %234, %v66
  %v236 = vpop.permute.xlu0 %235
  %v237 = vlaneseq
  %v238 = vshrl.u32 %v237, 7
  %v239 = vadd.s32 %v238, 96
  %240 = vset.pattern.permute.xlu0 %v239
  %241 = vperm.xlu0 %240, %v66
  %v242 = vpop.permute.xlu0 %241
  %v243 = vlaneseq
  %v244 = vshrl.u32 %v243, 7
  %v245 = vadd.s32 %v244, 104
  %246 = vset.pattern.permute.xlu0 %v245
  %247 = vperm.xlu0 %246, %v66
  %v248 = vpop.permute.xlu0 %247
  %v249 = vlaneseq
  %v250 = vshrl.u32 %v249, 7
  %v251 = vadd.s32 %v250, 112
  %252 = vset.pattern.permute.xlu0 %v251
  %253 = vperm.xlu0 %252, %v66
  %v254 = vpop.permute.xlu0 %253
  %v255 = vlaneseq
  %v256 = vshrl.u32 %v255, 7
  %v257 = vadd.s32 %v256, 120
  %258 = vset.pattern.permute.xlu0 %v257
  %259 = vperm.xlu0 %258, %v66
  %v260 = vpop.permute.xlu0 %259
  %v293 = vmul.f32 %v58, %v74
  %v294 = vmul.f32 %v58, %v80
  %v295 = vmul.f32 %v58, %v86
  %v296 = vmul.f32 %v58, %v92
  %v297 = vmul.f32 %v58, %v98
  %v298 = vmul.f32 %v58, %v104
  %v299 = vmul.f32 %v58, %v110
  %v300 = vmul.f32 %v58, %v116
  %v301 = vmul.f32 %v58, %v122
  %v302 = vmul.f32 %v58, %v128
  %v303 = vmul.f32 %v58, %v134
  %v304 = vmul.f32 %v58, %v140
  %v305 = vmul.f32 %v58, %v146
  %v306 = vmul.f32 %v58, %v152
  %v307 = vmul.f32 %v58, %v158
  %v308 = vmul.f32 %v58, %v164
  %v309 = vmul.f32 %v58, %v170
  %v310 = vmul.f32 %v58, %v176
  %v311 = vmul.f32 %v58, %v182
  %v312 = vmul.f32 %v58, %v188
  %v313 = vmul.f32 %v58, %v194
  %v314 = vmul.f32 %v58, %v200
  %v315 = vmul.f32 %v58, %v206
  %v316 = vmul.f32 %v58, %v212
  %v317 = vmul.f32 %v58, %v218
  %v318 = vmul.f32 %v58, %v224
  %v319 = vmul.f32 %v58, %v230
  %v320 = vmul.f32 %v58, %v236
  %v321 = vmul.f32 %v58, %v242
  %v322 = vmul.f32 %v58, %v248
  %v323 = vmul.f32 %v58, %v254
  %v324 = vmul.f32 %v58, %v260
  %v325 = vmul.f32 %v59, %v74
  %v326 = vmul.f32 %v59, %v80
  %v327 = vmul.f32 %v59, %v86
  %v328 = vmul.f32 %v59, %v92
  %v329 = vmul.f32 %v59, %v98
  %v330 = vmul.f32 %v59, %v104
  %v331 = vmul.f32 %v59, %v110
  %v332 = vmul.f32 %v59, %v116
  %v333 = vmul.f32 %v59, %v122
  %v334 = vmul.f32 %v59, %v128
  %v335 = vmul.f32 %v59, %v134
  %v336 = vmul.f32 %v59, %v140
  %v337 = vmul.f32 %v59, %v146
  %v338 = vmul.f32 %v59, %v152
  %v339 = vmul.f32 %v59, %v158
  %v340 = vmul.f32 %v59, %v164
  %v341 = vmul.f32 %v59, %v170
  %v342 = vmul.f32 %v59, %v176
  %v343 = vmul.f32 %v59, %v182
  %v344 = vmul.f32 %v59, %v188
  %v345 = vmul.f32 %v59, %v194
  %v346 = vmul.f32 %v59, %v200
  %v347 = vmul.f32 %v59, %v206
  %v348 = vmul.f32 %v59, %v212
  %v349 = vmul.f32 %v59, %v218
  %v350 = vmul.f32 %v59, %v224
  %v351 = vmul.f32 %v59, %v230
  %v352 = vmul.f32 %v59, %v236
  %v353 = vmul.f32 %v59, %v242
  %v354 = vmul.f32 %v59, %v248
  %v355 = vmul.f32 %v59, %v254
  %v356 = vmul.f32 %v59, %v260
  %v357 = vperm.slane %v55, 1
  %v358 = vperm.slane %v56, 1
  %v359 = vperm.slane %v57, 1
  %v360 = vperm.slane %v57, 5
  %v363 = vperm.slane %v359, 1
  %v364 = vperm.slane %v360, 1
  %v367 = vlaneseq
  %v368 = vshrl.u32 %v367, 7
  %370 = vset.pattern.permute.xlu0 %v368
  %371 = vperm.xlu0 %370, %v363
  %v372 = vpop.permute.xlu0 %371
  %v373 = vlaneseq
  %v374 = vshrl.u32 %v373, 7
  %v375 = vadd.s32 %v374, 8
  %376 = vset.pattern.permute.xlu0 %v375
  %377 = vperm.xlu0 %376, %v363
  %v378 = vpop.permute.xlu0 %377
  %v379 = vlaneseq
  %v380 = vshrl.u32 %v379, 7
  %v381 = vadd.s32 %v380, 16
  %382 = vset.pattern.permute.xlu0 %v381
  %383 = vperm.xlu0 %382, %v363
  %v384 = vpop.permute.xlu0 %383
  %v385 = vlaneseq
  %v386 = vshrl.u32 %v385, 7
  %v387 = vadd.s32 %v386, 24
  %388 = vset.pattern.permute.xlu0 %v387
  %389 = vperm.xlu0 %388, %v363
  %v390 = vpop.permute.xlu0 %389
  %v391 = vlaneseq
  %v392 = vshrl.u32 %v391, 7
  %v393 = vadd.s32 %v392, 32
  %394 = vset.pattern.permute.xlu0 %v393
  %395 = vperm.xlu0 %394, %v363
  %v396 = vpop.permute.xlu0 %395
  %v397 = vlaneseq
  %v398 = vshrl.u32 %v397, 7
  %v399 = vadd.s32 %v398, 40
  %400 = vset.pattern.permute.xlu0 %v399
  %401 = vperm.xlu0 %400, %v363
  %v402 = vpop.permute.xlu0 %401
  %v403 = vlaneseq
  %v404 = vshrl.u32 %v403, 7
  %v405 = vadd.s32 %v404, 48
  %406 = vset.pattern.permute.xlu0 %v405
  %407 = vperm.xlu0 %406, %v363
  %v408 = vpop.permute.xlu0 %407
  %v409 = vlaneseq
  %v410 = vshrl.u32 %v409, 7
  %v411 = vadd.s32 %v410, 56
  %412 = vset.pattern.permute.xlu0 %v411
  %413 = vperm.xlu0 %412, %v363
  %v414 = vpop.permute.xlu0 %413
  %v415 = vlaneseq
  %v416 = vshrl.u32 %v415, 7
  %v417 = vadd.s32 %v416, 64
  %418 = vset.pattern.permute.xlu0 %v417
  %419 = vperm.xlu0 %418, %v363
  %v420 = vpop.permute.xlu0 %419
  %v421 = vlaneseq
  %v422 = vshrl.u32 %v421, 7
  %v423 = vadd.s32 %v422, 72
  %424 = vset.pattern.permute.xlu0 %v423
  %425 = vperm.xlu0 %424, %v363
  %v426 = vpop.permute.xlu0 %425
  %v427 = vlaneseq
  %v428 = vshrl.u32 %v427, 7
  %v429 = vadd.s32 %v428, 80
  %430 = vset.pattern.permute.xlu0 %v429
  %431 = vperm.xlu0 %430, %v363
  %v432 = vpop.permute.xlu0 %431
  %v433 = vlaneseq
  %v434 = vshrl.u32 %v433, 7
  %v435 = vadd.s32 %v434, 88
  %436 = vset.pattern.permute.xlu0 %v435
  %437 = vperm.xlu0 %436, %v363
  %v438 = vpop.permute.xlu0 %437
  %v439 = vlaneseq
  %v440 = vshrl.u32 %v439, 7
  %v441 = vadd.s32 %v440, 96
  %442 = vset.pattern.permute.xlu0 %v441
  %443 = vperm.xlu0 %442, %v363
  %v444 = vpop.permute.xlu0 %443
  %v445 = vlaneseq
  %v446 = vshrl.u32 %v445, 7
  %v447 = vadd.s32 %v446, 104
  %448 = vset.pattern.permute.xlu0 %v447
  %449 = vperm.xlu0 %448, %v363
  %v450 = vpop.permute.xlu0 %449
  %v451 = vlaneseq
  %v452 = vshrl.u32 %v451, 7
  %v453 = vadd.s32 %v452, 112
  %454 = vset.pattern.permute.xlu0 %v453
  %455 = vperm.xlu0 %454, %v363
  %v456 = vpop.permute.xlu0 %455
  %v457 = vlaneseq
  %v458 = vshrl.u32 %v457, 7
  %v459 = vadd.s32 %v458, 120
  %460 = vset.pattern.permute.xlu0 %v459
  %461 = vperm.xlu0 %460, %v363
  %v462 = vpop.permute.xlu0 %461
  %v463 = vlaneseq
  %v464 = vshrl.u32 %v463, 7
  %466 = vset.pattern.permute.xlu0 %v464
  %467 = vperm.xlu0 %466, %v364
  %v468 = vpop.permute.xlu0 %467
  %v469 = vlaneseq
  %v470 = vshrl.u32 %v469, 7
  %v471 = vadd.s32 %v470, 8
  %472 = vset.pattern.permute.xlu0 %v471
  %473 = vperm.xlu0 %472, %v364
  %v474 = vpop.permute.xlu0 %473
  %v475 = vlaneseq
  %v476 = vshrl.u32 %v475, 7
  %v477 = vadd.s32 %v476, 16
  %478 = vset.pattern.permute.xlu0 %v477
  %479 = vperm.xlu0 %478, %v364
  %v480 = vpop.permute.xlu0 %479
  %v481 = vlaneseq
  %v482 = vshrl.u32 %v481, 7
  %v483 = vadd.s32 %v482, 24
  %484 = vset.pattern.permute.xlu0 %v483
  %485 = vperm.xlu0 %484, %v364
  %v486 = vpop.permute.xlu0 %485
  %v487 = vlaneseq
  %v488 = vshrl.u32 %v487, 7
  %v489 = vadd.s32 %v488, 32
  %490 = vset.pattern.permute.xlu0 %v489
  %491 = vperm.xlu0 %490, %v364
  %v492 = vpop.permute.xlu0 %491
  %v493 = vlaneseq
  %v494 = vshrl.u32 %v493, 7
  %v495 = vadd.s32 %v494, 40
  %496 = vset.pattern.permute.xlu0 %v495
  %497 = vperm.xlu0 %496, %v364
  %v498 = vpop.permute.xlu0 %497
  %v499 = vlaneseq
  %v500 = vshrl.u32 %v499, 7
  %v501 = vadd.s32 %v500, 48
  %502 = vset.pattern.permute.xlu0 %v501
  %503 = vperm.xlu0 %502, %v364
  %v504 = vpop.permute.xlu0 %503
  %v505 = vlaneseq
  %v506 = vshrl.u32 %v505, 7
  %v507 = vadd.s32 %v506, 56
  %508 = vset.pattern.permute.xlu0 %v507
  %509 = vperm.xlu0 %508, %v364
  %v510 = vpop.permute.xlu0 %509
  %v511 = vlaneseq
  %v512 = vshrl.u32 %v511, 7
  %v513 = vadd.s32 %v512, 64
  %514 = vset.pattern.permute.xlu0 %v513
  %515 = vperm.xlu0 %514, %v364
  %v516 = vpop.permute.xlu0 %515
  %v517 = vlaneseq
  %v518 = vshrl.u32 %v517, 7
  %v519 = vadd.s32 %v518, 72
  %520 = vset.pattern.permute.xlu0 %v519
  %521 = vperm.xlu0 %520, %v364
  %v522 = vpop.permute.xlu0 %521
  %v523 = vlaneseq
  %v524 = vshrl.u32 %v523, 7
  %v525 = vadd.s32 %v524, 80
  %526 = vset.pattern.permute.xlu0 %v525
  %527 = vperm.xlu0 %526, %v364
  %v528 = vpop.permute.xlu0 %527
  %v529 = vlaneseq
  %v530 = vshrl.u32 %v529, 7
  %v531 = vadd.s32 %v530, 88
  %532 = vset.pattern.permute.xlu0 %v531
  %533 = vperm.xlu0 %532, %v364
  %v534 = vpop.permute.xlu0 %533
  %v535 = vlaneseq
  %v536 = vshrl.u32 %v535, 7
  %v537 = vadd.s32 %v536, 96
  %538 = vset.pattern.permute.xlu0 %v537
  %539 = vperm.xlu0 %538, %v364
  %v540 = vpop.permute.xlu0 %539
  %v541 = vlaneseq
  %v542 = vshrl.u32 %v541, 7
  %v543 = vadd.s32 %v542, 104
  %544 = vset.pattern.permute.xlu0 %v543
  %545 = vperm.xlu0 %544, %v364
  %v546 = vpop.permute.xlu0 %545
  %v547 = vlaneseq
  %v548 = vshrl.u32 %v547, 7
  %v549 = vadd.s32 %v548, 112
  %550 = vset.pattern.permute.xlu0 %v549
  %551 = vperm.xlu0 %550, %v364
  %v552 = vpop.permute.xlu0 %551
  %v553 = vlaneseq
  %v554 = vshrl.u32 %v553, 7
  %v555 = vadd.s32 %v554, 120
  %556 = vset.pattern.permute.xlu0 %v555
  %557 = vperm.xlu0 %556, %v364
  %v558 = vpop.permute.xlu0 %557
  %v591 = vmul.f32 %v357, %v372
  %v592 = vmul.f32 %v357, %v378
  %v593 = vmul.f32 %v357, %v384
  %v594 = vmul.f32 %v357, %v390
  %v595 = vmul.f32 %v357, %v396
  %v596 = vmul.f32 %v357, %v402
  %v597 = vmul.f32 %v357, %v408
  %v598 = vmul.f32 %v357, %v414
  %v599 = vmul.f32 %v357, %v420
  %v600 = vmul.f32 %v357, %v426
  %v601 = vmul.f32 %v357, %v432
  %v602 = vmul.f32 %v357, %v438
  %v603 = vmul.f32 %v357, %v444
  %v604 = vmul.f32 %v357, %v450
  %v605 = vmul.f32 %v357, %v456
  %v606 = vmul.f32 %v357, %v462
  %v607 = vmul.f32 %v357, %v468
  %v608 = vmul.f32 %v357, %v474
  %v609 = vmul.f32 %v357, %v480
  %v610 = vmul.f32 %v357, %v486
  %v611 = vmul.f32 %v357, %v492
  %v612 = vmul.f32 %v357, %v498
  %v613 = vmul.f32 %v357, %v504
  %v614 = vmul.f32 %v357, %v510
  %v615 = vmul.f32 %v357, %v516
  %v616 = vmul.f32 %v357, %v522
  %v617 = vmul.f32 %v357, %v528
  %v618 = vmul.f32 %v357, %v534
  %v619 = vmul.f32 %v357, %v540
  %v620 = vmul.f32 %v357, %v546
  %v621 = vmul.f32 %v357, %v552
  %v622 = vmul.f32 %v357, %v558
  %v623 = vmul.f32 %v358, %v372
  %v624 = vmul.f32 %v358, %v378
  %v625 = vmul.f32 %v358, %v384
  %v626 = vmul.f32 %v358, %v390
  %v627 = vmul.f32 %v358, %v396
  %v628 = vmul.f32 %v358, %v402
  %v629 = vmul.f32 %v358, %v408
  %v630 = vmul.f32 %v358, %v414
  %v631 = vmul.f32 %v358, %v420
  %v632 = vmul.f32 %v358, %v426
  %v633 = vmul.f32 %v358, %v432
  %v634 = vmul.f32 %v358, %v438
  %v635 = vmul.f32 %v358, %v444
  %v636 = vmul.f32 %v358, %v450
  %v637 = vmul.f32 %v358, %v456
  %v638 = vmul.f32 %v358, %v462
  %v639 = vmul.f32 %v358, %v468
  %v640 = vmul.f32 %v358, %v474
  %v641 = vmul.f32 %v358, %v480
  %v642 = vmul.f32 %v358, %v486
  %v643 = vmul.f32 %v358, %v492
  %v644 = vmul.f32 %v358, %v498
  %v645 = vmul.f32 %v358, %v504
  %v646 = vmul.f32 %v358, %v510
  %v647 = vmul.f32 %v358, %v516
  %v648 = vmul.f32 %v358, %v522
  %v649 = vmul.f32 %v358, %v528
  %v650 = vmul.f32 %v358, %v534
  %v651 = vmul.f32 %v358, %v540
  %v652 = vmul.f32 %v358, %v546
  %v653 = vmul.f32 %v358, %v552
  %v654 = vmul.f32 %v358, %v558
  %v655 = vadd.f32 %v293, %v591
  %v656 = vadd.f32 %v294, %v592
  %v657 = vadd.f32 %v295, %v593
  %v658 = vadd.f32 %v296, %v594
  %v659 = vadd.f32 %v297, %v595
  %v660 = vadd.f32 %v298, %v596
  %v661 = vadd.f32 %v299, %v597
  %v662 = vadd.f32 %v300, %v598
  %v663 = vadd.f32 %v301, %v599
  %v664 = vadd.f32 %v302, %v600
  %v665 = vadd.f32 %v303, %v601
  %v666 = vadd.f32 %v304, %v602
  %v667 = vadd.f32 %v305, %v603
  %v668 = vadd.f32 %v306, %v604
  %v669 = vadd.f32 %v307, %v605
  %v670 = vadd.f32 %v308, %v606
  %v671 = vadd.f32 %v309, %v607
  %v672 = vadd.f32 %v310, %v608
  %v673 = vadd.f32 %v311, %v609
  %v674 = vadd.f32 %v312, %v610
  %v675 = vadd.f32 %v313, %v611
  %v676 = vadd.f32 %v314, %v612
  %v677 = vadd.f32 %v315, %v613
  %v678 = vadd.f32 %v316, %v614
  %v679 = vadd.f32 %v317, %v615
  %v680 = vadd.f32 %v318, %v616
  %v681 = vadd.f32 %v319, %v617
  %v682 = vadd.f32 %v320, %v618
  %v683 = vadd.f32 %v321, %v619
  %v684 = vadd.f32 %v322, %v620
  %v685 = vadd.f32 %v323, %v621
  %v686 = vadd.f32 %v324, %v622
  %v687 = vadd.f32 %v325, %v623
  %v688 = vadd.f32 %v326, %v624
  %v689 = vadd.f32 %v327, %v625
  %v690 = vadd.f32 %v328, %v626
  %v691 = vadd.f32 %v329, %v627
  %v692 = vadd.f32 %v330, %v628
  %v693 = vadd.f32 %v331, %v629
  %v694 = vadd.f32 %v332, %v630
  %v695 = vadd.f32 %v333, %v631
  %v696 = vadd.f32 %v334, %v632
  %v697 = vadd.f32 %v335, %v633
  %v698 = vadd.f32 %v336, %v634
  %v699 = vadd.f32 %v337, %v635
  %v700 = vadd.f32 %v338, %v636
  %v701 = vadd.f32 %v339, %v637
  %v702 = vadd.f32 %v340, %v638
  %v703 = vadd.f32 %v341, %v639
  %v704 = vadd.f32 %v342, %v640
  %v705 = vadd.f32 %v343, %v641
  %v706 = vadd.f32 %v344, %v642
  %v707 = vadd.f32 %v345, %v643
  %v708 = vadd.f32 %v346, %v644
  %v709 = vadd.f32 %v347, %v645
  %v710 = vadd.f32 %v348, %v646
  %v711 = vadd.f32 %v349, %v647
  %v712 = vadd.f32 %v350, %v648
  %v713 = vadd.f32 %v351, %v649
  %v714 = vadd.f32 %v352, %v650
  %v715 = vadd.f32 %v353, %v651
  %v716 = vadd.f32 %v354, %v652
  %v717 = vadd.f32 %v355, %v653
  %v718 = vadd.f32 %v356, %v654
  %v719 = vperm.slane %v55, 2
  %v720 = vperm.slane %v56, 2
  %v721 = vperm.slane %v57, 2
  %v722 = vperm.slane %v57, 6
  %v725 = vperm.slane %v721, 2
  %v726 = vperm.slane %v722, 2
  %v729 = vlaneseq
  %v730 = vshrl.u32 %v729, 7
  %732 = vset.pattern.permute.xlu0 %v730
  %733 = vperm.xlu0 %732, %v725
  %v734 = vpop.permute.xlu0 %733
  %v735 = vlaneseq
  %v736 = vshrl.u32 %v735, 7
  %v737 = vadd.s32 %v736, 8
  %738 = vset.pattern.permute.xlu0 %v737
  %739 = vperm.xlu0 %738, %v725
  %v740 = vpop.permute.xlu0 %739
  %v741 = vlaneseq
  %v742 = vshrl.u32 %v741, 7
  %v743 = vadd.s32 %v742, 16
  %744 = vset.pattern.permute.xlu0 %v743
  %745 = vperm.xlu0 %744, %v725
  %v746 = vpop.permute.xlu0 %745
  %v747 = vlaneseq
  %v748 = vshrl.u32 %v747, 7
  %v749 = vadd.s32 %v748, 24
  %750 = vset.pattern.permute.xlu0 %v749
  %751 = vperm.xlu0 %750, %v725
  %v752 = vpop.permute.xlu0 %751
  %v753 = vlaneseq
  %v754 = vshrl.u32 %v753, 7
  %v755 = vadd.s32 %v754, 32
  %756 = vset.pattern.permute.xlu0 %v755
  %757 = vperm.xlu0 %756, %v725
  %v758 = vpop.permute.xlu0 %757
  %v759 = vlaneseq
  %v760 = vshrl.u32 %v759, 7
  %v761 = vadd.s32 %v760, 40
  %762 = vset.pattern.permute.xlu0 %v761
  %763 = vperm.xlu0 %762, %v725
  %v764 = vpop.permute.xlu0 %763
  %v765 = vlaneseq
  %v766 = vshrl.u32 %v765, 7
  %v767 = vadd.s32 %v766, 48
  %768 = vset.pattern.permute.xlu0 %v767
  %769 = vperm.xlu0 %768, %v725
  %v770 = vpop.permute.xlu0 %769
  %v771 = vlaneseq
  %v772 = vshrl.u32 %v771, 7
  %v773 = vadd.s32 %v772, 56
  %774 = vset.pattern.permute.xlu0 %v773
  %775 = vperm.xlu0 %774, %v725
  %v776 = vpop.permute.xlu0 %775
  %v777 = vlaneseq
  %v778 = vshrl.u32 %v777, 7
  %v779 = vadd.s32 %v778, 64
  %780 = vset.pattern.permute.xlu0 %v779
  %781 = vperm.xlu0 %780, %v725
  %v782 = vpop.permute.xlu0 %781
  %v783 = vlaneseq
  %v784 = vshrl.u32 %v783, 7
  %v785 = vadd.s32 %v784, 72
  %786 = vset.pattern.permute.xlu0 %v785
  %787 = vperm.xlu0 %786, %v725
  %v788 = vpop.permute.xlu0 %787
  %v789 = vlaneseq
  %v790 = vshrl.u32 %v789, 7
  %v791 = vadd.s32 %v790, 80
  %792 = vset.pattern.permute.xlu0 %v791
  %793 = vperm.xlu0 %792, %v725
  %v794 = vpop.permute.xlu0 %793
  %v795 = vlaneseq
  %v796 = vshrl.u32 %v795, 7
  %v797 = vadd.s32 %v796, 88
  %798 = vset.pattern.permute.xlu0 %v797
  %799 = vperm.xlu0 %798, %v725
  %v800 = vpop.permute.xlu0 %799
  %v801 = vlaneseq
  %v802 = vshrl.u32 %v801, 7
  %v803 = vadd.s32 %v802, 96
  %804 = vset.pattern.permute.xlu0 %v803
  %805 = vperm.xlu0 %804, %v725
  %v806 = vpop.permute.xlu0 %805
  %v807 = vlaneseq
  %v808 = vshrl.u32 %v807, 7
  %v809 = vadd.s32 %v808, 104
  %810 = vset.pattern.permute.xlu0 %v809
  %811 = vperm.xlu0 %810, %v725
  %v812 = vpop.permute.xlu0 %811
  %v813 = vlaneseq
  %v814 = vshrl.u32 %v813, 7
  %v815 = vadd.s32 %v814, 112
  %816 = vset.pattern.permute.xlu0 %v815
  %817 = vperm.xlu0 %816, %v725
  %v818 = vpop.permute.xlu0 %817
  %v819 = vlaneseq
  %v820 = vshrl.u32 %v819, 7
  %v821 = vadd.s32 %v820, 120
  %822 = vset.pattern.permute.xlu0 %v821
  %823 = vperm.xlu0 %822, %v725
  %v824 = vpop.permute.xlu0 %823
  %v825 = vlaneseq
  %v826 = vshrl.u32 %v825, 7
  %828 = vset.pattern.permute.xlu0 %v826
  %829 = vperm.xlu0 %828, %v726
  %v830 = vpop.permute.xlu0 %829
  %v831 = vlaneseq
  %v832 = vshrl.u32 %v831, 7
  %v833 = vadd.s32 %v832, 8
  %834 = vset.pattern.permute.xlu0 %v833
  %835 = vperm.xlu0 %834, %v726
  %v836 = vpop.permute.xlu0 %835
  %v837 = vlaneseq
  %v838 = vshrl.u32 %v837, 7
  %v839 = vadd.s32 %v838, 16
  %840 = vset.pattern.permute.xlu0 %v839
  %841 = vperm.xlu0 %840, %v726
  %v842 = vpop.permute.xlu0 %841
  %v843 = vlaneseq
  %v844 = vshrl.u32 %v843, 7
  %v845 = vadd.s32 %v844, 24
  %846 = vset.pattern.permute.xlu0 %v845
  %847 = vperm.xlu0 %846, %v726
  %v848 = vpop.permute.xlu0 %847
  %v849 = vlaneseq
  %v850 = vshrl.u32 %v849, 7
  %v851 = vadd.s32 %v850, 32
  %852 = vset.pattern.permute.xlu0 %v851
  %853 = vperm.xlu0 %852, %v726
  %v854 = vpop.permute.xlu0 %853
  %v855 = vlaneseq
  %v856 = vshrl.u32 %v855, 7
  %v857 = vadd.s32 %v856, 40
  %858 = vset.pattern.permute.xlu0 %v857
  %859 = vperm.xlu0 %858, %v726
  %v860 = vpop.permute.xlu0 %859
  %v861 = vlaneseq
  %v862 = vshrl.u32 %v861, 7
  %v863 = vadd.s32 %v862, 48
  %864 = vset.pattern.permute.xlu0 %v863
  %865 = vperm.xlu0 %864, %v726
  %v866 = vpop.permute.xlu0 %865
  %v867 = vlaneseq
  %v868 = vshrl.u32 %v867, 7
  %v869 = vadd.s32 %v868, 56
  %870 = vset.pattern.permute.xlu0 %v869
  %871 = vperm.xlu0 %870, %v726
  %v872 = vpop.permute.xlu0 %871
  %v873 = vlaneseq
  %v874 = vshrl.u32 %v873, 7
  %v875 = vadd.s32 %v874, 64
  %876 = vset.pattern.permute.xlu0 %v875
  %877 = vperm.xlu0 %876, %v726
  %v878 = vpop.permute.xlu0 %877
  %v879 = vlaneseq
  %v880 = vshrl.u32 %v879, 7
  %v881 = vadd.s32 %v880, 72
  %882 = vset.pattern.permute.xlu0 %v881
  %883 = vperm.xlu0 %882, %v726
  %v884 = vpop.permute.xlu0 %883
  %v885 = vlaneseq
  %v886 = vshrl.u32 %v885, 7
  %v887 = vadd.s32 %v886, 80
  %888 = vset.pattern.permute.xlu0 %v887
  %889 = vperm.xlu0 %888, %v726
  %v890 = vpop.permute.xlu0 %889
  %v891 = vlaneseq
  %v892 = vshrl.u32 %v891, 7
  %v893 = vadd.s32 %v892, 88
  %894 = vset.pattern.permute.xlu0 %v893
  %895 = vperm.xlu0 %894, %v726
  %v896 = vpop.permute.xlu0 %895
  %v897 = vlaneseq
  %v898 = vshrl.u32 %v897, 7
  %v899 = vadd.s32 %v898, 96
  %900 = vset.pattern.permute.xlu0 %v899
  %901 = vperm.xlu0 %900, %v726
  %v902 = vpop.permute.xlu0 %901
  %v903 = vlaneseq
  %v904 = vshrl.u32 %v903, 7
  %v905 = vadd.s32 %v904, 104
  %906 = vset.pattern.permute.xlu0 %v905
  %907 = vperm.xlu0 %906, %v726
  %v908 = vpop.permute.xlu0 %907
  %v909 = vlaneseq
  %v910 = vshrl.u32 %v909, 7
  %v911 = vadd.s32 %v910, 112
  %912 = vset.pattern.permute.xlu0 %v911
  %913 = vperm.xlu0 %912, %v726
  %v914 = vpop.permute.xlu0 %913
  %v915 = vlaneseq
  %v916 = vshrl.u32 %v915, 7
  %v917 = vadd.s32 %v916, 120
  %918 = vset.pattern.permute.xlu0 %v917
  %919 = vperm.xlu0 %918, %v726
  %v920 = vpop.permute.xlu0 %919
  %v953 = vmul.f32 %v719, %v734
  %v954 = vmul.f32 %v719, %v740
  %v955 = vmul.f32 %v719, %v746
  %v956 = vmul.f32 %v719, %v752
  %v957 = vmul.f32 %v719, %v758
  %v958 = vmul.f32 %v719, %v764
  %v959 = vmul.f32 %v719, %v770
  %v960 = vmul.f32 %v719, %v776
  %v961 = vmul.f32 %v719, %v782
  %v962 = vmul.f32 %v719, %v788
  %v963 = vmul.f32 %v719, %v794
  %v964 = vmul.f32 %v719, %v800
  %v965 = vmul.f32 %v719, %v806
  %v966 = vmul.f32 %v719, %v812
  %v967 = vmul.f32 %v719, %v818
  %v968 = vmul.f32 %v719, %v824
  %v969 = vmul.f32 %v719, %v830
  %v970 = vmul.f32 %v719, %v836
  %v971 = vmul.f32 %v719, %v842
  %v972 = vmul.f32 %v719, %v848
  %v973 = vmul.f32 %v719, %v854
  %v974 = vmul.f32 %v719, %v860
  %v975 = vmul.f32 %v719, %v866
  %v976 = vmul.f32 %v719, %v872
  %v977 = vmul.f32 %v719, %v878
  %v978 = vmul.f32 %v719, %v884
  %v979 = vmul.f32 %v719, %v890
  %v980 = vmul.f32 %v719, %v896
  %v981 = vmul.f32 %v719, %v902
  %v982 = vmul.f32 %v719, %v908
  %v983 = vmul.f32 %v719, %v914
  %v984 = vmul.f32 %v719, %v920
  %v985 = vmul.f32 %v720, %v734
  %v986 = vmul.f32 %v720, %v740
  %v987 = vmul.f32 %v720, %v746
  %v988 = vmul.f32 %v720, %v752
  %v989 = vmul.f32 %v720, %v758
  %v990 = vmul.f32 %v720, %v764
  %v991 = vmul.f32 %v720, %v770
  %v992 = vmul.f32 %v720, %v776
  %v993 = vmul.f32 %v720, %v782
  %v994 = vmul.f32 %v720, %v788
  %v995 = vmul.f32 %v720, %v794
  %v996 = vmul.f32 %v720, %v800
  %v997 = vmul.f32 %v720, %v806
  %v998 = vmul.f32 %v720, %v812
  %v999 = vmul.f32 %v720, %v818
  %v1000 = vmul.f32 %v720, %v824
  %v1001 = vmul.f32 %v720, %v830
  %v1002 = vmul.f32 %v720, %v836
  %v1003 = vmul.f32 %v720, %v842
  %v1004 = vmul.f32 %v720, %v848
  %v1005 = vmul.f32 %v720, %v854
  %v1006 = vmul.f32 %v720, %v860
  %v1007 = vmul.f32 %v720, %v866
  %v1008 = vmul.f32 %v720, %v872
  %v1009 = vmul.f32 %v720, %v878
  %v1010 = vmul.f32 %v720, %v884
  %v1011 = vmul.f32 %v720, %v890
  %v1012 = vmul.f32 %v720, %v896
  %v1013 = vmul.f32 %v720, %v902
  %v1014 = vmul.f32 %v720, %v908
  %v1015 = vmul.f32 %v720, %v914
  %v1016 = vmul.f32 %v720, %v920
  %v1017 = vadd.f32 %v655, %v953
  %v1018 = vadd.f32 %v656, %v954
  %v1019 = vadd.f32 %v657, %v955
  %v1020 = vadd.f32 %v658, %v956
  %v1021 = vadd.f32 %v659, %v957
  %v1022 = vadd.f32 %v660, %v958
  %v1023 = vadd.f32 %v661, %v959
  %v1024 = vadd.f32 %v662, %v960
  %v1025 = vadd.f32 %v663, %v961
  %v1026 = vadd.f32 %v664, %v962
  %v1027 = vadd.f32 %v665, %v963
  %v1028 = vadd.f32 %v666, %v964
  %v1029 = vadd.f32 %v667, %v965
  %v1030 = vadd.f32 %v668, %v966
  %v1031 = vadd.f32 %v669, %v967
  %v1032 = vadd.f32 %v670, %v968
  %v1033 = vadd.f32 %v671, %v969
  %v1034 = vadd.f32 %v672, %v970
  %v1035 = vadd.f32 %v673, %v971
  %v1036 = vadd.f32 %v674, %v972
  %v1037 = vadd.f32 %v675, %v973
  %v1038 = vadd.f32 %v676, %v974
  %v1039 = vadd.f32 %v677, %v975
  %v1040 = vadd.f32 %v678, %v976
  %v1041 = vadd.f32 %v679, %v977
  %v1042 = vadd.f32 %v680, %v978
  %v1043 = vadd.f32 %v681, %v979
  %v1044 = vadd.f32 %v682, %v980
  %v1045 = vadd.f32 %v683, %v981
  %v1046 = vadd.f32 %v684, %v982
  %v1047 = vadd.f32 %v685, %v983
  %v1048 = vadd.f32 %v686, %v984
  %v1049 = vadd.f32 %v687, %v985
  %v1050 = vadd.f32 %v688, %v986
  %v1051 = vadd.f32 %v689, %v987
  %v1052 = vadd.f32 %v690, %v988
  %v1053 = vadd.f32 %v691, %v989
  %v1054 = vadd.f32 %v692, %v990
  %v1055 = vadd.f32 %v693, %v991
  %v1056 = vadd.f32 %v694, %v992
  %v1057 = vadd.f32 %v695, %v993
  %v1058 = vadd.f32 %v696, %v994
  %v1059 = vadd.f32 %v697, %v995
  %v1060 = vadd.f32 %v698, %v996
  %v1061 = vadd.f32 %v699, %v997
  %v1062 = vadd.f32 %v700, %v998
  %v1063 = vadd.f32 %v701, %v999
  %v1064 = vadd.f32 %v702, %v1000
  %v1065 = vadd.f32 %v703, %v1001
  %v1066 = vadd.f32 %v704, %v1002
  %v1067 = vadd.f32 %v705, %v1003
  %v1068 = vadd.f32 %v706, %v1004
  %v1069 = vadd.f32 %v707, %v1005
  %v1070 = vadd.f32 %v708, %v1006
  %v1071 = vadd.f32 %v709, %v1007
  %v1072 = vadd.f32 %v710, %v1008
  %v1073 = vadd.f32 %v711, %v1009
  %v1074 = vadd.f32 %v712, %v1010
  %v1075 = vadd.f32 %v713, %v1011
  %v1076 = vadd.f32 %v714, %v1012
  %v1077 = vadd.f32 %v715, %v1013
  %v1078 = vadd.f32 %v716, %v1014
  %v1079 = vadd.f32 %v717, %v1015
  %v1080 = vadd.f32 %v718, %v1016
  %v1081 = vpack.c.bf16 %v1018, %v1017
  %v1082 = vpack.c.bf16 %v1020, %v1019
  %v1083 = vpack.c.bf16 %v1022, %v1021
  %v1084 = vpack.c.bf16 %v1024, %v1023
  %v1085 = vpack.c.bf16 %v1026, %v1025
  %v1086 = vpack.c.bf16 %v1028, %v1027
  %v1087 = vpack.c.bf16 %v1030, %v1029
  %v1088 = vpack.c.bf16 %v1032, %v1031
  %v1089 = vpack.c.bf16 %v1034, %v1033
  %v1090 = vpack.c.bf16 %v1036, %v1035
  %v1091 = vpack.c.bf16 %v1038, %v1037
  %v1092 = vpack.c.bf16 %v1040, %v1039
  %v1093 = vpack.c.bf16 %v1042, %v1041
  %v1094 = vpack.c.bf16 %v1044, %v1043
  %v1095 = vpack.c.bf16 %v1046, %v1045
  %v1096 = vpack.c.bf16 %v1048, %v1047
  %v1097 = vpack.c.bf16 %v1050, %v1049
  %v1098 = vpack.c.bf16 %v1052, %v1051
  %v1099 = vpack.c.bf16 %v1054, %v1053
  %v1100 = vpack.c.bf16 %v1056, %v1055
  %v1101 = vpack.c.bf16 %v1058, %v1057
  %v1102 = vpack.c.bf16 %v1060, %v1059
  %v1103 = vpack.c.bf16 %v1062, %v1061
  %v1104 = vpack.c.bf16 %v1064, %v1063
  %v1105 = vpack.c.bf16 %v1066, %v1065
  %v1106 = vpack.c.bf16 %v1068, %v1067
  %v1107 = vpack.c.bf16 %v1070, %v1069
  %v1108 = vpack.c.bf16 %v1072, %v1071
  %v1109 = vpack.c.bf16 %v1074, %v1073
  %v1110 = vpack.c.bf16 %v1076, %v1075
  %v1111 = vpack.c.bf16 %v1078, %v1077
  %v1112 = vpack.c.bf16 %v1080, %v1079
  %v1113 = vld [vmem:[%s2] sm:$0xff]
  %v1114 = vld [vmem:[%s2 + $0x8] sm:$0xff]
  %v1115 = vld [vmem:[%s2 + $0x10] sm:$0xff]
  %v1116 = vld [vmem:[%s2 + $0x18] sm:$0xff]
  %v1117 = vld [vmem:[%s2 + $0x20] sm:$0xff]
  %v1118 = vld [vmem:[%s2 + $0x28] sm:$0xff]
  %v1119 = vld [vmem:[%s2 + $0x30] sm:$0xff]
  %v1120 = vld [vmem:[%s2 + $0x38] sm:$0xff]
  %v1121 = vld [vmem:[%s2 + $0x40] sm:$0xff]
  %v1122 = vld [vmem:[%s2 + $0x48] sm:$0xff]
  %v1123 = vld [vmem:[%s2 + $0x50] sm:$0xff]
  %v1124 = vld [vmem:[%s2 + $0x58] sm:$0xff]
  %v1125 = vld [vmem:[%s2 + $0x60] sm:$0xff]
  %v1126 = vld [vmem:[%s2 + $0x68] sm:$0xff]
  %v1127 = vld [vmem:[%s2 + $0x70] sm:$0xff]
  %v1128 = vld [vmem:[%s2 + $0x78] sm:$0xff]
  %v1129 = vld [vmem:[%s2 + $0x80] sm:$0xff]
  %v1130 = vld [vmem:[%s2 + $0x88] sm:$0xff]
  %v1131 = vld [vmem:[%s2 + $0x90] sm:$0xff]
  %v1132 = vld [vmem:[%s2 + $0x98] sm:$0xff]
  %v1133 = vld [vmem:[%s2 + $0xa0] sm:$0xff]
  %v1134 = vld [vmem:[%s2 + $0xa8] sm:$0xff]
  %v1135 = vld [vmem:[%s2 + $0xb0] sm:$0xff]
  %v1136 = vld [vmem:[%s2 + $0xb8] sm:$0xff]
  %v1137 = vld [vmem:[%s2 + $0xc0] sm:$0xff]
  %v1138 = vld [vmem:[%s2 + $0xc8] sm:$0xff]
  %v1139 = vld [vmem:[%s2 + $0xd0] sm:$0xff]
  %v1140 = vld [vmem:[%s2 + $0xd8] sm:$0xff]
  %v1141 = vld [vmem:[%s2 + $0xe0] sm:$0xff]
  %v1142 = vld [vmem:[%s2 + $0xe8] sm:$0xff]
  %v1143 = vld [vmem:[%s2 + $0xf0] sm:$0xff]
  %v1144 = vld [vmem:[%s2 + $0xf8] sm:$0xff]
  %v1145 = vpack.c.bf16 %v1114, %v1113
  %v1146 = vpack.c.bf16 %v1116, %v1115
  %v1147 = vpack.c.bf16 %v1118, %v1117
  %v1148 = vpack.c.bf16 %v1120, %v1119
  %v1149 = vpack.c.bf16 %v1122, %v1121
  %v1150 = vpack.c.bf16 %v1124, %v1123
  %v1151 = vpack.c.bf16 %v1126, %v1125
  %v1152 = vpack.c.bf16 %v1128, %v1127
  %v1153 = vpack.c.bf16 %v1130, %v1129
  %v1154 = vpack.c.bf16 %v1132, %v1131
  %v1155 = vpack.c.bf16 %v1134, %v1133
  %v1156 = vpack.c.bf16 %v1136, %v1135
  %v1157 = vpack.c.bf16 %v1138, %v1137
  %v1158 = vpack.c.bf16 %v1140, %v1139
  %v1159 = vpack.c.bf16 %v1142, %v1141
  %v1160 = vpack.c.bf16 %v1144, %v1143
  %v1161 = vld [vmem:[%s3] sm:$0x1]
  %v1163 = vperm.slane %v1161, 0
  %v1197 = vunpack.c.l.b16 %v1081
  %v1198 = vunpack.c.h.b16 %v1081
  %v1199 = vunpack.c.l.b16 %v1082
  %v1200 = vunpack.c.h.b16 %v1082
  %v1201 = vunpack.c.l.b16 %v1083
  %v1202 = vunpack.c.h.b16 %v1083
  %v1203 = vunpack.c.l.b16 %v1084
  %v1204 = vunpack.c.h.b16 %v1084
  %v1205 = vunpack.c.l.b16 %v1085
  %v1206 = vunpack.c.h.b16 %v1085
  %v1207 = vunpack.c.l.b16 %v1086
  %v1208 = vunpack.c.h.b16 %v1086
  %v1209 = vunpack.c.l.b16 %v1087
  %v1210 = vunpack.c.h.b16 %v1087
  %v1211 = vunpack.c.l.b16 %v1088
  %v1212 = vunpack.c.h.b16 %v1088
  %v1213 = vunpack.c.l.b16 %v1089
  %v1214 = vunpack.c.h.b16 %v1089
  %v1215 = vunpack.c.l.b16 %v1090
  %v1216 = vunpack.c.h.b16 %v1090
  %v1217 = vunpack.c.l.b16 %v1091
  %v1218 = vunpack.c.h.b16 %v1091
  %v1219 = vunpack.c.l.b16 %v1092
  %v1220 = vunpack.c.h.b16 %v1092
  %v1221 = vunpack.c.l.b16 %v1093
  %v1222 = vunpack.c.h.b16 %v1093
  %v1223 = vunpack.c.l.b16 %v1094
  %v1224 = vunpack.c.h.b16 %v1094
  %v1225 = vunpack.c.l.b16 %v1095
  %v1226 = vunpack.c.h.b16 %v1095
  %v1227 = vunpack.c.l.b16 %v1096
  %v1228 = vunpack.c.h.b16 %v1096
  %v1229 = vunpack.c.l.b16 %v1097
  %v1230 = vunpack.c.h.b16 %v1097
  %v1231 = vunpack.c.l.b16 %v1098
  %v1232 = vunpack.c.h.b16 %v1098
  %v1233 = vunpack.c.l.b16 %v1099
  %v1234 = vunpack.c.h.b16 %v1099
  %v1235 = vunpack.c.l.b16 %v1100
  %v1236 = vunpack.c.h.b16 %v1100
  %v1237 = vunpack.c.l.b16 %v1101
  %v1238 = vunpack.c.h.b16 %v1101
  %v1239 = vunpack.c.l.b16 %v1102
  %v1240 = vunpack.c.h.b16 %v1102
  %v1241 = vunpack.c.l.b16 %v1103
  %v1242 = vunpack.c.h.b16 %v1103
  %v1243 = vunpack.c.l.b16 %v1104
  %v1244 = vunpack.c.h.b16 %v1104
  %v1245 = vunpack.c.l.b16 %v1105
  %v1246 = vunpack.c.h.b16 %v1105
  %v1247 = vunpack.c.l.b16 %v1106
  %v1248 = vunpack.c.h.b16 %v1106
  %v1249 = vunpack.c.l.b16 %v1107
  %v1250 = vunpack.c.h.b16 %v1107
  %v1251 = vunpack.c.l.b16 %v1108
  %v1252 = vunpack.c.h.b16 %v1108
  %v1253 = vunpack.c.l.b16 %v1109
  %v1254 = vunpack.c.h.b16 %v1109
  %v1255 = vunpack.c.l.b16 %v1110
  %v1256 = vunpack.c.h.b16 %v1110
  %v1257 = vunpack.c.l.b16 %v1111
  %v1258 = vunpack.c.h.b16 %v1111
  %v1259 = vunpack.c.l.b16 %v1112
  %v1260 = vunpack.c.h.b16 %v1112
  %1261 = vset.pattern.permute.xlu0 0
  %1262 = vperm.xlu0 %1261, %v1197
  %v1263 = vpop.permute.xlu0 %1262
  %1264 = vset.pattern.permute.xlu0 0
  %1265 = vperm.xlu0 %1264, %v1198
  %v1266 = vpop.permute.xlu0 %1265
  %1267 = vset.pattern.permute.xlu0 0
  %1268 = vperm.xlu0 %1267, %v1199
  %v1269 = vpop.permute.xlu0 %1268
  %1270 = vset.pattern.permute.xlu0 0
  %1271 = vperm.xlu0 %1270, %v1200
  %v1272 = vpop.permute.xlu0 %1271
  %1273 = vset.pattern.permute.xlu0 0
  %1274 = vperm.xlu0 %1273, %v1201
  %v1275 = vpop.permute.xlu0 %1274
  %1276 = vset.pattern.permute.xlu0 0
  %1277 = vperm.xlu0 %1276, %v1202
  %v1278 = vpop.permute.xlu0 %1277
  %1279 = vset.pattern.permute.xlu0 0
  %1280 = vperm.xlu0 %1279, %v1203
  %v1281 = vpop.permute.xlu0 %1280
  %1282 = vset.pattern.permute.xlu0 0
  %1283 = vperm.xlu0 %1282, %v1204
  %v1284 = vpop.permute.xlu0 %1283
  %1285 = vset.pattern.permute.xlu0 0
  %1286 = vperm.xlu0 %1285, %v1205
  %v1287 = vpop.permute.xlu0 %1286
  %1288 = vset.pattern.permute.xlu0 0
  %1289 = vperm.xlu0 %1288, %v1206
  %v1290 = vpop.permute.xlu0 %1289
  %1291 = vset.pattern.permute.xlu0 0
  %1292 = vperm.xlu0 %1291, %v1207
  %v1293 = vpop.permute.xlu0 %1292
  %1294 = vset.pattern.permute.xlu0 0
  %1295 = vperm.xlu0 %1294, %v1208
  %v1296 = vpop.permute.xlu0 %1295
  %1297 = vset.pattern.permute.xlu0 0
  %1298 = vperm.xlu0 %1297, %v1209
  %v1299 = vpop.permute.xlu0 %1298
  %1300 = vset.pattern.permute.xlu0 0
  %1301 = vperm.xlu0 %1300, %v1210
  %v1302 = vpop.permute.xlu0 %1301
  %1303 = vset.pattern.permute.xlu0 0
  %1304 = vperm.xlu0 %1303, %v1211
  %v1305 = vpop.permute.xlu0 %1304
  %1306 = vset.pattern.permute.xlu0 0
  %1307 = vperm.xlu0 %1306, %v1212
  %v1308 = vpop.permute.xlu0 %1307
  %1309 = vset.pattern.permute.xlu0 0
  %1310 = vperm.xlu0 %1309, %v1213
  %v1311 = vpop.permute.xlu0 %1310
  %1312 = vset.pattern.permute.xlu0 0
  %1313 = vperm.xlu0 %1312, %v1214
  %v1314 = vpop.permute.xlu0 %1313
  %1315 = vset.pattern.permute.xlu0 0
  %1316 = vperm.xlu0 %1315, %v1215
  %v1317 = vpop.permute.xlu0 %1316
  %1318 = vset.pattern.permute.xlu0 0
  %1319 = vperm.xlu0 %1318, %v1216
  %v1320 = vpop.permute.xlu0 %1319
  %1321 = vset.pattern.permute.xlu0 0
  %1322 = vperm.xlu0 %1321, %v1217
  %v1323 = vpop.permute.xlu0 %1322
  %1324 = vset.pattern.permute.xlu0 0
  %1325 = vperm.xlu0 %1324, %v1218
  %v1326 = vpop.permute.xlu0 %1325
  %1327 = vset.pattern.permute.xlu0 0
  %1328 = vperm.xlu0 %1327, %v1219
  %v1329 = vpop.permute.xlu0 %1328
  %1330 = vset.pattern.permute.xlu0 0
  %1331 = vperm.xlu0 %1330, %v1220
  %v1332 = vpop.permute.xlu0 %1331
  %1333 = vset.pattern.permute.xlu0 0
  %1334 = vperm.xlu0 %1333, %v1221
  %v1335 = vpop.permute.xlu0 %1334
  %1336 = vset.pattern.permute.xlu0 0
  %1337 = vperm.xlu0 %1336, %v1222
  %v1338 = vpop.permute.xlu0 %1337
  %1339 = vset.pattern.permute.xlu0 0
  %1340 = vperm.xlu0 %1339, %v1223
  %v1341 = vpop.permute.xlu0 %1340
  %1342 = vset.pattern.permute.xlu0 0
  %1343 = vperm.xlu0 %1342, %v1224
  %v1344 = vpop.permute.xlu0 %1343
  %1345 = vset.pattern.permute.xlu0 0
  %1346 = vperm.xlu0 %1345, %v1225
  %v1347 = vpop.permute.xlu0 %1346
  %1348 = vset.pattern.permute.xlu0 0
  %1349 = vperm.xlu0 %1348, %v1226
  %v1350 = vpop.permute.xlu0 %1349
  %1351 = vset.pattern.permute.xlu0 0
  %1352 = vperm.xlu0 %1351, %v1227
  %v1353 = vpop.permute.xlu0 %1352
  %1354 = vset.pattern.permute.xlu0 0
  %1355 = vperm.xlu0 %1354, %v1228
  %v1356 = vpop.permute.xlu0 %1355
  %1357 = vset.pattern.permute.xlu0 0
  %1358 = vperm.xlu0 %1357, %v1229
  %v1359 = vpop.permute.xlu0 %1358
  %1360 = vset.pattern.permute.xlu0 0
  %1361 = vperm.xlu0 %1360, %v1230
  %v1362 = vpop.permute.xlu0 %1361
  %1363 = vset.pattern.permute.xlu0 0
  %1364 = vperm.xlu0 %1363, %v1231
  %v1365 = vpop.permute.xlu0 %1364
  %1366 = vset.pattern.permute.xlu0 0
  %1367 = vperm.xlu0 %1366, %v1232
  %v1368 = vpop.permute.xlu0 %1367
  %1369 = vset.pattern.permute.xlu0 0
  %1370 = vperm.xlu0 %1369, %v1233
  %v1371 = vpop.permute.xlu0 %1370
  %1372 = vset.pattern.permute.xlu0 0
  %1373 = vperm.xlu0 %1372, %v1234
  %v1374 = vpop.permute.xlu0 %1373
  %1375 = vset.pattern.permute.xlu0 0
  %1376 = vperm.xlu0 %1375, %v1235
  %v1377 = vpop.permute.xlu0 %1376
  %1378 = vset.pattern.permute.xlu0 0
  %1379 = vperm.xlu0 %1378, %v1236
  %v1380 = vpop.permute.xlu0 %1379
  %1381 = vset.pattern.permute.xlu0 0
  %1382 = vperm.xlu0 %1381, %v1237
  %v1383 = vpop.permute.xlu0 %1382
  %1384 = vset.pattern.permute.xlu0 0
  %1385 = vperm.xlu0 %1384, %v1238
  %v1386 = vpop.permute.xlu0 %1385
  %1387 = vset.pattern.permute.xlu0 0
  %1388 = vperm.xlu0 %1387, %v1239
  %v1389 = vpop.permute.xlu0 %1388
  %1390 = vset.pattern.permute.xlu0 0
  %1391 = vperm.xlu0 %1390, %v1240
  %v1392 = vpop.permute.xlu0 %1391
  %1393 = vset.pattern.permute.xlu0 0
  %1394 = vperm.xlu0 %1393, %v1241
  %v1395 = vpop.permute.xlu0 %1394
  %1396 = vset.pattern.permute.xlu0 0
  %1397 = vperm.xlu0 %1396, %v1242
  %v1398 = vpop.permute.xlu0 %1397
  %1399 = vset.pattern.permute.xlu0 0
  %1400 = vperm.xlu0 %1399, %v1243
  %v1401 = vpop.permute.xlu0 %1400
  %1402 = vset.pattern.permute.xlu0 0
  %1403 = vperm.xlu0 %1402, %v1244
  %v1404 = vpop.permute.xlu0 %1403
  %1405 = vset.pattern.permute.xlu0 0
  %1406 = vperm.xlu0 %1405, %v1245
  %v1407 = vpop.permute.xlu0 %1406
  %1408 = vset.pattern.permute.xlu0 0
  %1409 = vperm.xlu0 %1408, %v1246
  %v1410 = vpop.permute.xlu0 %1409
  %1411 = vset.pattern.permute.xlu0 0
  %1412 = vperm.xlu0 %1411, %v1247
  %v1413 = vpop.permute.xlu0 %1412
  %1414 = vset.pattern.permute.xlu0 0
  %1415 = vperm.xlu0 %1414, %v1248
  %v1416 = vpop.permute.xlu0 %1415
  %1417 = vset.pattern.permute.xlu0 0
  %1418 = vperm.xlu0 %1417, %v1249
  %v1419 = vpop.permute.xlu0 %1418
  %1420 = vset.pattern.permute.xlu0 0
  %1421 = vperm.xlu0 %1420, %v1250
  %v1422 = vpop.permute.xlu0 %1421
  %1423 = vset.pattern.permute.xlu0 0
  %1424 = vperm.xlu0 %1423, %v1251
  %v1425 = vpop.permute.xlu0 %1424
  %1426 = vset.pattern.permute.xlu0 0
  %1427 = vperm.xlu0 %1426, %v1252
  %v1428 = vpop.permute.xlu0 %1427
  %1429 = vset.pattern.permute.xlu0 0
  %1430 = vperm.xlu0 %1429, %v1253
  %v1431 = vpop.permute.xlu0 %1430
  %1432 = vset.pattern.permute.xlu0 0
  %1433 = vperm.xlu0 %1432, %v1254
  %v1434 = vpop.permute.xlu0 %1433
  %1435 = vset.pattern.permute.xlu0 0
  %1436 = vperm.xlu0 %1435, %v1255
  %v1437 = vpop.permute.xlu0 %1436
  %1438 = vset.pattern.permute.xlu0 0
  %1439 = vperm.xlu0 %1438, %v1256
  %v1440 = vpop.permute.xlu0 %1439
  %1441 = vset.pattern.permute.xlu0 0
  %1442 = vperm.xlu0 %1441, %v1257
  %v1443 = vpop.permute.xlu0 %1442
  %1444 = vset.pattern.permute.xlu0 0
  %1445 = vperm.xlu0 %1444, %v1258
  %v1446 = vpop.permute.xlu0 %1445
  %1447 = vset.pattern.permute.xlu0 0
  %1448 = vperm.xlu0 %1447, %v1259
  %v1449 = vpop.permute.xlu0 %1448
  %1450 = vset.pattern.permute.xlu0 0
  %1451 = vperm.xlu0 %1450, %v1260
  %v1452 = vpop.permute.xlu0 %1451
  %v1453 = vlaneseq
  %v1454 = vand.u32 %v1453, 127
  %v1455 = vperm.slane %v1263, %v1454
  %v1456 = vadd.s32 %v1454, 4294967288
  %v1457 = vperm.slane %v1266, %v1456
  %vm1458 = vcmask 130112
  %v1459 = vsel %vm1458, %v1457, %v1455
  %v1460 = vadd.s32 %v1454, 4294967280
  %v1461 = vperm.slane %v1269, %v1460
  %vm1462 = vcmask 195712
  %v1463 = vsel %vm1462, %v1461, %v1459
  %v1464 = vadd.s32 %v1454, 4294967272
  %v1465 = vperm.slane %v1272, %v1464
  %vm1466 = vcmask 261312
  %v1467 = vsel %vm1466, %v1465, %v1463
  %v1468 = vadd.s32 %v1454, 4294967264
  %v1469 = vperm.slane %v1275, %v1468
  %vm1470 = vcmask 326912
  %v1471 = vsel %vm1470, %v1469, %v1467
  %v1472 = vadd.s32 %v1454, 4294967256
  %v1473 = vperm.slane %v1278, %v1472
  %vm1474 = vcmask 392512
  %v1475 = vsel %vm1474, %v1473, %v1471
  %v1476 = vadd.s32 %v1454, 4294967248
  %v1477 = vperm.slane %v1281, %v1476
  %vm1478 = vcmask 458112
  %v1479 = vsel %vm1478, %v1477, %v1475
  %v1480 = vadd.s32 %v1454, 4294967240
  %v1481 = vperm.slane %v1284, %v1480
  %vm1482 = vcmask 523712
  %v1483 = vsel %vm1482, %v1481, %v1479
  %v1484 = vadd.s32 %v1454, 4294967232
  %v1485 = vperm.slane %v1287, %v1484
  %vm1486 = vcmask 589312
  %v1487 = vsel %vm1486, %v1485, %v1483
  %v1488 = vadd.s32 %v1454, 4294967224
  %v1489 = vperm.slane %v1290, %v1488
  %vm1490 = vcmask 654912
  %v1491 = vsel %vm1490, %v1489, %v1487
  %v1492 = vadd.s32 %v1454, 4294967216
  %v1493 = vperm.slane %v1293, %v1492
  %vm1494 = vcmask 720512
  %v1495 = vsel %vm1494, %v1493, %v1491
  %v1496 = vadd.s32 %v1454, 4294967208
  %v1497 = vperm.slane %v1296, %v1496
  %vm1498 = vcmask 786112
  %v1499 = vsel %vm1498, %v1497, %v1495
  %v1500 = vadd.s32 %v1454, 4294967200
  %v1501 = vperm.slane %v1299, %v1500
  %vm1502 = vcmask 851712
  %v1503 = vsel %vm1502, %v1501, %v1499
  %v1504 = vadd.s32 %v1454, 4294967192
  %v1505 = vperm.slane %v1302, %v1504
  %vm1506 = vcmask 917312
  %v1507 = vsel %vm1506, %v1505, %v1503
  %v1508 = vadd.s32 %v1454, 4294967184
  %v1509 = vperm.slane %v1305, %v1508
  %vm1510 = vcmask 982912
  %v1511 = vsel %vm1510, %v1509, %v1507
  %v1512 = vadd.s32 %v1454, 4294967176
  %v1513 = vperm.slane %v1308, %v1512
  %vm1514 = vcmask 1048512
  %v1515 = vsel %vm1514, %v1513, %v1511
  %v1516 = vperm.slane %v1311, %v1454
  %v1517 = vperm.slane %v1314, %v1456
  %v1518 = vsel %vm1458, %v1517, %v1516
  %v1519 = vperm.slane %v1317, %v1460
  %v1520 = vsel %vm1462, %v1519, %v1518
  %v1521 = vperm.slane %v1320, %v1464
  %v1522 = vsel %vm1466, %v1521, %v1520
  %v1523 = vperm.slane %v1323, %v1468
  %v1524 = vsel %vm1470, %v1523, %v1522
  %v1525 = vperm.slane %v1326, %v1472
  %v1526 = vsel %vm1474, %v1525, %v1524
  %v1527 = vperm.slane %v1329, %v1476
  %v1528 = vsel %vm1478, %v1527, %v1526
  %v1529 = vperm.slane %v1332, %v1480
  %v1530 = vsel %vm1482, %v1529, %v1528
  %v1531 = vperm.slane %v1335, %v1484
  %v1532 = vsel %vm1486, %v1531, %v1530
  %v1533 = vperm.slane %v1338, %v1488
  %v1534 = vsel %vm1490, %v1533, %v1532
  %v1535 = vperm.slane %v1341, %v1492
  %v1536 = vsel %vm1494, %v1535, %v1534
  %v1537 = vperm.slane %v1344, %v1496
  %v1538 = vsel %vm1498, %v1537, %v1536
  %v1539 = vperm.slane %v1347, %v1500
  %v1540 = vsel %vm1502, %v1539, %v1538
  %v1541 = vperm.slane %v1350, %v1504
  %v1542 = vsel %vm1506, %v1541, %v1540
  %v1543 = vperm.slane %v1353, %v1508
  %v1544 = vsel %vm1510, %v1543, %v1542
  %v1545 = vperm.slane %v1356, %v1512
  %v1546 = vsel %vm1514, %v1545, %v1544
  %v1547 = vperm.slane %v1359, %v1454
  %v1548 = vperm.slane %v1362, %v1456
  %v1549 = vsel %vm1458, %v1548, %v1547
  %v1550 = vperm.slane %v1365, %v1460
  %v1551 = vsel %vm1462, %v1550, %v1549
  %v1552 = vperm.slane %v1368, %v1464
  %v1553 = vsel %vm1466, %v1552, %v1551
  %v1554 = vperm.slane %v1371, %v1468
  %v1555 = vsel %vm1470, %v1554, %v1553
  %v1556 = vperm.slane %v1374, %v1472
  %v1557 = vsel %vm1474, %v1556, %v1555
  %v1558 = vperm.slane %v1377, %v1476
  %v1559 = vsel %vm1478, %v1558, %v1557
  %v1560 = vperm.slane %v1380, %v1480
  %v1561 = vsel %vm1482, %v1560, %v1559
  %v1562 = vperm.slane %v1383, %v1484
  %v1563 = vsel %vm1486, %v1562, %v1561
  %v1564 = vperm.slane %v1386, %v1488
  %v1565 = vsel %vm1490, %v1564, %v1563
  %v1566 = vperm.slane %v1389, %v1492
  %v1567 = vsel %vm1494, %v1566, %v1565
  %v1568 = vperm.slane %v1392, %v1496
  %v1569 = vsel %vm1498, %v1568, %v1567
  %v1570 = vperm.slane %v1395, %v1500
  %v1571 = vsel %vm1502, %v1570, %v1569
  %v1572 = vperm.slane %v1398, %v1504
  %v1573 = vsel %vm1506, %v1572, %v1571
  %v1574 = vperm.slane %v1401, %v1508
  %v1575 = vsel %vm1510, %v1574, %v1573
  %v1576 = vperm.slane %v1404, %v1512
  %v1577 = vsel %vm1514, %v1576, %v1575
  %v1578 = vperm.slane %v1407, %v1454
  %v1579 = vperm.slane %v1410, %v1456
  %v1580 = vsel %vm1458, %v1579, %v1578
  %v1581 = vperm.slane %v1413, %v1460
  %v1582 = vsel %vm1462, %v1581, %v1580
  %v1583 = vperm.slane %v1416, %v1464
  %v1584 = vsel %vm1466, %v1583, %v1582
  %v1585 = vperm.slane %v1419, %v1468
  %v1586 = vsel %vm1470, %v1585, %v1584
  %v1587 = vperm.slane %v1422, %v1472
  %v1588 = vsel %vm1474, %v1587, %v1586
  %v1589 = vperm.slane %v1425, %v1476
  %v1590 = vsel %vm1478, %v1589, %v1588
  %v1591 = vperm.slane %v1428, %v1480
  %v1592 = vsel %vm1482, %v1591, %v1590
  %v1593 = vperm.slane %v1431, %v1484
  %v1594 = vsel %vm1486, %v1593, %v1592
  %v1595 = vperm.slane %v1434, %v1488
  %v1596 = vsel %vm1490, %v1595, %v1594
  %v1597 = vperm.slane %v1437, %v1492
  %v1598 = vsel %vm1494, %v1597, %v1596
  %v1599 = vperm.slane %v1440, %v1496
  %v1600 = vsel %vm1498, %v1599, %v1598
  %v1601 = vperm.slane %v1443, %v1500
  %v1602 = vsel %vm1502, %v1601, %v1600
  %v1603 = vperm.slane %v1446, %v1504
  %v1604 = vsel %vm1506, %v1603, %v1602
  %v1605 = vperm.slane %v1449, %v1508
  %v1606 = vsel %vm1510, %v1605, %v1604
  %v1607 = vperm.slane %v1452, %v1512
  %v1608 = vsel %vm1514, %v1607, %v1606
  %vm1609 = vcmask 1041409
  %v1610 = vsel %vm1609, %v1577, %v1515
  %v1611 = vsel %vm1609, %v1608, %v1546
  %v1612 = vpack.c.b16 %v1610, %v1610
  %v1613 = vpack.c.b16 %v1611, %v1611
  %1616 = vmatpush.bf16.msra.mxu0 %v1152
  %1617 = vmatpush.bf16.msra.mxu0 %v1151
  %1618 = vmatpush.bf16.msra.mxu0 %v1150
  %1619 = vmatpush.bf16.msra.mxu0 %v1149
  %1620 = vmatpush.bf16.msra.mxu0 %v1148
  %1621 = vmatpush.bf16.msra.mxu0 %v1147
  %1622 = vmatpush.bf16.msra.mxu0 %v1146
  %1623 = vmatpush.bf16.msra.mxu0 %v1145
  %1624 = vmatmul.bf16.gmra.mxu0 %v1612
  %v1625 = vpop.f32.mrf.mxu0
  %v1626 = vadd.f32 %v1163, %v1625
  %v1627 = vpop.f32.mrf.mxu0
  %1628 = vdwg.mxu0
  %1629 = vmatpush.bf16.msra.mxu0 %v1160
  %1630 = vmatpush.bf16.msra.mxu0 %v1159
  %1631 = vmatpush.bf16.msra.mxu0 %v1158
  %1632 = vmatpush.bf16.msra.mxu0 %v1157
  %1633 = vmatpush.bf16.msra.mxu0 %v1156
  %1634 = vmatpush.bf16.msra.mxu0 %v1155
  %1635 = vmatpush.bf16.msra.mxu0 %v1154
  %1636 = vmatpush.bf16.msra.mxu0 %v1153
  %1637 = vmatmul.bf16.gmra.mxu0 %v1613
  %v1638 = vpop.f32.mrf.mxu0
  %v1639 = vadd.f32 %v1626, %v1638
  %v1640 = vpop.f32.mrf.mxu0
  %1641 = vdwg.mxu0
  %v1642 = vmax.f32 %v1639, 0.0
  %v1643 = vpack.c.bf16 %v1642, %v1642
  %v1644 = vld [vmem:[%s4] sm:$0xff]
  %v1645 = vld [vmem:[%s4 + $0x8] sm:$0xff]
  %v1646 = vld [vmem:[%s4 + $0x10] sm:$0xff]
  %v1647 = vld [vmem:[%s4 + $0x18] sm:$0xff]
  %v1648 = vld [vmem:[%s4 + $0x20] sm:$0xff]
  %v1649 = vld [vmem:[%s4 + $0x28] sm:$0xff]
  %v1650 = vld [vmem:[%s4 + $0x30] sm:$0xff]
  %v1651 = vld [vmem:[%s4 + $0x38] sm:$0xff]
  %v1652 = vld [vmem:[%s4 + $0x40] sm:$0xff]
  %v1653 = vld [vmem:[%s4 + $0x48] sm:$0xff]
  %v1654 = vld [vmem:[%s4 + $0x50] sm:$0xff]
  %v1655 = vld [vmem:[%s4 + $0x58] sm:$0xff]
  %v1656 = vld [vmem:[%s4 + $0x60] sm:$0xff]
  %v1657 = vld [vmem:[%s4 + $0x68] sm:$0xff]
  %v1658 = vld [vmem:[%s4 + $0x70] sm:$0xff]
  %v1659 = vld [vmem:[%s4 + $0x78] sm:$0xff]
  %v1660 = vpack.c.bf16 %v1645, %v1644
  %v1661 = vpack.c.bf16 %v1647, %v1646
  %v1662 = vpack.c.bf16 %v1649, %v1648
  %v1663 = vpack.c.bf16 %v1651, %v1650
  %v1664 = vpack.c.bf16 %v1653, %v1652
  %v1665 = vpack.c.bf16 %v1655, %v1654
  %v1666 = vpack.c.bf16 %v1657, %v1656
  %v1667 = vpack.c.bf16 %v1659, %v1658
  %v1668 = vld [vmem:[%s5] sm:$0x1]
  %v1670 = vperm.slane %v1668, 0
  %1672 = vmatpush.bf16.msra.mxu0 %v1667
  %1673 = vmatpush.bf16.msra.mxu0 %v1666
  %1674 = vmatpush.bf16.msra.mxu0 %v1665
  %1675 = vmatpush.bf16.msra.mxu0 %v1664
  %1676 = vmatpush.bf16.msra.mxu0 %v1663
  %1677 = vmatpush.bf16.msra.mxu0 %v1662
  %1678 = vmatpush.bf16.msra.mxu0 %v1661
  %1679 = vmatpush.bf16.msra.mxu0 %v1660
  %1680 = vmatmul.bf16.gmra.mxu0 %v1643
  %v1681 = vpop.f32.mrf.mxu0
  %v1682 = vadd.f32 %v1670, %v1681
  %v1683 = vpop.f32.mrf.mxu0
  %1684 = vdwg.mxu0
  %v1685 = vmax.f32 %v1682, 0.0
  %v1686 = vpack.c.bf16 %v1685, %v1685
  %v1687 = vld [vmem:[%s6] sm:$0xff]
  %v1688 = vld [vmem:[%s6 + $0x8] sm:$0xff]
  %v1689 = vld [vmem:[%s6 + $0x10] sm:$0xff]
  %v1690 = vld [vmem:[%s6 + $0x18] sm:$0xff]
  %v1691 = vld [vmem:[%s6 + $0x20] sm:$0xff]
  %v1692 = vld [vmem:[%s6 + $0x28] sm:$0xff]
  %v1693 = vld [vmem:[%s6 + $0x30] sm:$0xff]
  %v1694 = vld [vmem:[%s6 + $0x38] sm:$0xff]
  %v1695 = vld [vmem:[%s6 + $0x40] sm:$0xff]
  %v1696 = vld [vmem:[%s6 + $0x48] sm:$0xff]
  %v1697 = vld [vmem:[%s6 + $0x50] sm:$0xff]
  %v1698 = vld [vmem:[%s6 + $0x58] sm:$0xff]
  %v1699 = vld [vmem:[%s6 + $0x60] sm:$0xff]
  %v1700 = vld [vmem:[%s6 + $0x68] sm:$0xff]
  %v1701 = vld [vmem:[%s6 + $0x70] sm:$0xff]
  %v1702 = vld [vmem:[%s6 + $0x78] sm:$0xff]
  %v1703 = vpack.c.bf16 %v1688, %v1687
  %v1704 = vpack.c.bf16 %v1690, %v1689
  %v1705 = vpack.c.bf16 %v1692, %v1691
  %v1706 = vpack.c.bf16 %v1694, %v1693
  %v1707 = vpack.c.bf16 %v1696, %v1695
  %v1708 = vpack.c.bf16 %v1698, %v1697
  %v1709 = vpack.c.bf16 %v1700, %v1699
  %v1710 = vpack.c.bf16 %v1702, %v1701
  %v1711 = vld [vmem:[%s7] sm:$0x1]
  %v1713 = vperm.slane %v1711, 0
  %1715 = vmatpush.bf16.msra.mxu0 %v1710
  %1716 = vmatpush.bf16.msra.mxu0 %v1709
  %1717 = vmatpush.bf16.msra.mxu0 %v1708
  %1718 = vmatpush.bf16.msra.mxu0 %v1707
  %1719 = vmatpush.bf16.msra.mxu0 %v1706
  %1720 = vmatpush.bf16.msra.mxu0 %v1705
  %1721 = vmatpush.bf16.msra.mxu0 %v1704
  %1722 = vmatpush.bf16.msra.mxu0 %v1703
  %1723 = vmatmul.bf16.gmra.mxu0 %v1686
  %v1724 = vpop.f32.mrf.mxu0
  %v1725 = vadd.f32 %v1713, %v1724
  %v1726 = vpop.f32.mrf.mxu0
  %1727 = vdwg.mxu0
  %1728 = vst [vmem:[%s8] sm:$0x3] %v1725
  // Predicated region
  $region34: #{moco_forward.16} parent=0 // pred_check
    _
  $region35: #{moco_forward.16} parent=0 // pred_check_branch
    %1730 = sbr.rel (0) target = $region37
  $region36: #{moco_forward.16} parent=0 // pred_region
    _
  $region37: #{moco_forward.16} parent=0 // pred_fallthru
    _
  // Predicated region
  $region38: #{moco_forward.16} parent=0 // pred_check
    _
  $region39: #{moco_forward.16} parent=0 // pred_check_branch
    %1732 = sbr.rel (0) target = $region41
  $region40: #{moco_forward.16} parent=0 // pred_region
    _
  $region41: #{moco_forward.16} parent=0 // pred_fallthru
    _

// kernel: moco_forward.21
$region0: #{moco_forward.21}
  #allocation0 [shape = 'u32[]', space=smem, size = 0x4, offset = 0x4, fixed_abs, tag = 'smem constant byte address 0x4 - core index']
  #allocation1 [shape = 'u32[72,128]{1,0:T(1,128)}', space=vmem, size = 0x9000, scoped, tag = 'internal scratch']
  #allocation2 [shape = 'bf16[8,128]{1,0:T(8,128)(2,1)}', space=vmem, size = 0x800, scoped, tag = 'scratch operand']
  %s0 = inlined_call_operand.vmem [shape: f32[8,128], index: 0, kind: input, shape index: {}]
  %s1 = inlined_call_operand.vmem [shape: f32[8,128], index: 1, kind: input, shape index: {}]
  %s2 = inlined_call_operand.vmem [shape: bf16[128,1024], index: 2, kind: input, shape index: {}]
  %s3 = inlined_call_operand.vmem [shape: f32[8,1], index: 3, kind: output, shape index: {0}]
  %s4 = inlined_call_operand.vmem [shape: f32[8,128], index: 4, kind: output, shape index: {1}]
  %s5 = inlined_call_operand.vmem [shape: f32[8,1024], index: 5, kind: output, shape index: {2}]
  %6 = xla_tuple %s3, %s4, %s5
  %s7 = sld [smem:[#allocation0]]
  $region88: #{moco_forward.21} parent=0
    _
  %s9 = ssub.s32 1, %s7
  %s10 = scalar_select 0, %s9, %s7
  $region1: #{moco_forward.21} parent=0
    #allocation3 [shape = 'u8[262144]{0}', space=vmem, size = 0x40000, scoped, tag = 'input window, operand 2']
    loop: start=0, step=1, limit=4
    $region2: #{moco_forward.21} parent=1 // loop_pre_header
      _
    $region3: #{moco_forward.21} parent=1 // loop_header
      %s12 = sphi 0, %s16
      %p13 = scmp.ge.s32.totalorder %s12, 4
      %s20 = sphi 0, %s20
      %s22 = sphi 0, %s20
      %s23 = sphi 0, %s22
      %s37 = sphi 0, %s23
      %s41 = sphi 0, %s41
      %s43 = sphi 0, %s41
      %s44 = sphi 0, %s43
      %s58 = sphi 0, %s44
      %s64 = sphi 0, %s66
      %s67 = sphi 0, %s64
      %s68 = sphi 0, %s67
      %s84 = sphi 0, %s68
      %s88 = sphi 0, %s88
      %s90 = sphi 0, %s88
      %s91 = sphi 0, %s90
      %s105 = sphi 0, %s91
      %s109 = sphi 0, %s109
      %s111 = sphi 0, %s109
      %s112 = sphi 0, %s111
      %s126 = sphi 0, %s112
      %s132 = sphi 0, %s134
      %s135 = sphi 0, %s132
      %s136 = sphi 0, %s135
      %s152 = sphi 0, %s136
    $region4: #{moco_forward.21} parent=1 // loop_header_branch
      %15 = sbr.rel (%p13) target = $region8
    $region5: #{moco_forward.21} parent=1 // loop_body
      %s17 = ssub.s32 %s12, 1
      %s18 = ssub.s32 %s12, 2
      %s19 = sadd.s32 %s12, 1
      %s21 = sadd.s32 %s20, 1
      %p24 = scmp.eq.s32.totalorder %s12, 1
      %p25 = scmp.ne.s32.totalorder %s20, %s22
      %p26 = scmp.eq.s32.totalorder %s12, 0
      %p27 = por %p25, %p26
      %p28 = scmp.ne.s32.totalorder %s20, %s22
      %p29 = scmp.eq.s32.totalorder %s17, 1
      %p30 = por %p28, %p29
      %p31 = scmp.ne.s32.totalorder %s22, %s23
      %p32 = scmp.eq.s32.totalorder %s17, 0
      %p33 = por %p31, %p32
      %p34 = scmp.ne.s32.totalorder %s22, %s23
      %p35 = scmp.eq.s32.totalorder %s18, 1
      %p36 = por %p34, %p35
      %p38 = scmp.ne.s32.totalorder %s23, %s37
      %p39 = scmp.eq.s32.totalorder %s18, 0
      %p40 = por %p38, %p39
      %s42 = sadd.s32 %s41, 1
      %p45 = scmp.eq.s32.totalorder %s12, 1
      %p46 = scmp.ne.s32.totalorder %s41, %s43
      %p47 = scmp.eq.s32.totalorder %s12, 0
      %p48 = por %p46, %p47
      %p49 = scmp.ne.s32.totalorder %s41, %s43
      %p50 = scmp.eq.s32.totalorder %s17, 1
      %p51 = por %p49, %p50
      %p52 = scmp.ne.s32.totalorder %s43, %s44
      %p53 = scmp.eq.s32.totalorder %s17, 0
      %p54 = por %p52, %p53
      %p55 = scmp.ne.s32.totalorder %s43, %s44
      %p56 = scmp.eq.s32.totalorder %s18, 1
      %p57 = por %p55, %p56
      %p59 = scmp.ne.s32.totalorder %s44, %s58
      %p60 = scmp.eq.s32.totalorder %s18, 0
      %p61 = por %p59, %p60
      %s62 = ssub.s32 %s12, %s19
      %p63 = scmp.eq.s32.totalorder %s62, 0
      %s65 = sadd.s32 %s64, 1
      %s66 = scalar_select %p63, %s64, %s65
      %p69 = pneg %p63
      %p70 = scmp.eq.s32.totalorder %s12, 1
      %p71 = por %p69, %p70
      %p72 = scmp.ne.s32.totalorder %s64, %s67
      %p73 = scmp.eq.s32.totalorder %s12, 0
      %p74 = por %p72, %p73
      %p75 = scmp.ne.s32.totalorder %s64, %s67
      %p76 = scmp.eq.s32.totalorder %s17, 1
      %p77 = por %p75, %p76
      %p78 = scmp.ne.s32.totalorder %s67, %s68
      %p79 = scmp.eq.s32.totalorder %s17, 0
      %p80 = por %p78, %p79
      %p81 = scmp.ne.s32.totalorder %s67, %s68
      %p82 = scmp.eq.s32.totalorder %s18, 1
      %p83 = por %p81, %p82
      %p85 = scmp.ne.s32.totalorder %s68, %s84
      %p86 = scmp.eq.s32.totalorder %s18, 0
      %p87 = por %p85, %p86
      %s89 = sadd.s32 %s88, 1
      %p92 = scmp.eq.s32.totalorder %s12, 1
      %p93 = scmp.ne.s32.totalorder %s88, %s90
      %p94 = scmp.eq.s32.totalorder %s12, 0
      %p95 = por %p93, %p94
      %p96 = scmp.ne.s32.totalorder %s88, %s90
      %p97 = scmp.eq.s32.totalorder %s17, 1
      %p98 = por %p96, %p97
      %p99 = scmp.ne.s32.totalorder %s90, %s91
      %p100 = scmp.eq.s32.totalorder %s17, 0
      %p101 = por %p99, %p100
      %p102 = scmp.ne.s32.totalorder %s90, %s91
      %p103 = scmp.eq.s32.totalorder %s18, 1
      %p104 = por %p102, %p103
      %p106 = scmp.ne.s32.totalorder %s91, %s105
      %p107 = scmp.eq.s32.totalorder %s18, 0
      %p108 = por %p106, %p107
      %s110 = sadd.s32 %s109, 1
      %p113 = scmp.eq.s32.totalorder %s12, 1
      %p114 = scmp.ne.s32.totalorder %s109, %s111
      %p115 = scmp.eq.s32.totalorder %s12, 0
      %p116 = por %p114, %p115
      %p117 = scmp.ne.s32.totalorder %s109, %s111
      %p118 = scmp.eq.s32.totalorder %s17, 1
      %p119 = por %p117, %p118
      %p120 = scmp.ne.s32.totalorder %s111, %s112
      %p121 = scmp.eq.s32.totalorder %s17, 0
      %p122 = por %p120, %p121
      %p123 = scmp.ne.s32.totalorder %s111, %s112
      %p124 = scmp.eq.s32.totalorder %s18, 1
      %p125 = por %p123, %p124
      %p127 = scmp.ne.s32.totalorder %s112, %s126
      %p128 = scmp.eq.s32.totalorder %s18, 0
      %p129 = por %p127, %p128
      %s130 = ssub.s32 %s12, %s19
      %p131 = scmp.eq.s32.totalorder %s130, 0
      %s133 = sadd.s32 %s132, 1
      %s134 = scalar_select %p131, %s132, %s133
      %p137 = pneg %p131
      %p138 = scmp.eq.s32.totalorder %s12, 1
      %p139 = por %p137, %p138
      %p140 = scmp.ne.s32.totalorder %s132, %s135
      %p141 = scmp.eq.s32.totalorder %s12, 0
      %p142 = por %p140, %p141
      %p143 = scmp.ne.s32.totalorder %s132, %s135
      %p144 = scmp.eq.s32.totalorder %s17, 1
      %p145 = por %p143, %p144
      %p146 = scmp.ne.s32.totalorder %s135, %s136
      %p147 = scmp.eq.s32.totalorder %s17, 0
      %p148 = por %p146, %p147
      %p149 = scmp.ne.s32.totalorder %s135, %s136
      %p150 = scmp.eq.s32.totalorder %s18, 1
      %p151 = por %p149, %p150
      %p153 = scmp.ne.s32.totalorder %s136, %s152
      %p154 = scmp.eq.s32.totalorder %s18, 0
      %p155 = por %p153, %p154
      %p156 = scmp.le.s32.totalorder 1, %s12
      %p157 = scmp.lt.s32.totalorder %s12, 3
      %p158 = pnand %p156, %p157
      %p159 = pneg %p158
      // Predicated region
      $region9: #{moco_forward.21} parent=5 // pred_check
        _
      $region10: #{moco_forward.21} parent=5 // pred_check_branch
        %161 = sbr.rel (%p158) target = $region12
      $region11: #{moco_forward.21} parent=5 // pred_region
        %s162 = ssub.s32 %s12, 1
        // Predicated region
        $region13: #{moco_forward.21} parent=11 // pred_check
          %p163 = pneg %p33
        $region14: #{moco_forward.21} parent=11 // pred_check_branch
          %165 = sbr.rel (%p163) target = $region16
        $region15: #{moco_forward.21} parent=11 // pred_region
          _
        $region16: #{moco_forward.21} parent=11 // pred_fallthru
          _
        // Predicated region
        $region17: #{moco_forward.21} parent=11 // pred_check
          %p166 = pneg %p54
        $region18: #{moco_forward.21} parent=11 // pred_check_branch
          %168 = sbr.rel (%p166) target = $region20
        $region19: #{moco_forward.21} parent=11 // pred_region
          _
        $region20: #{moco_forward.21} parent=11 // pred_fallthru
          _
      $region12: #{moco_forward.21} parent=5 // pred_fallthru
        _
      %p169 = scmp.lt.s32.totalorder %s12, 2
      // Predicated region
      $region21: #{moco_forward.21} parent=5 // pred_check
        %p170 = pneg %p169
      $region22: #{moco_forward.21} parent=5 // pred_check_branch
        %172 = sbr.rel (%p170) target = $region24
      $region23: #{moco_forward.21} parent=5 // pred_region
        // Predicated region
        $region25: #{moco_forward.21} parent=23 // pred_check
          %p173 = pneg %p74
        $region26: #{moco_forward.21} parent=23 // pred_check_branch
          %175 = sbr.rel (%p173) target = $region28
        $region27: #{moco_forward.21} parent=23 // pred_region
          %s176 = sand.u32 %s64, 1
          %s177 = sand.u32 %s64, 1
          %s178 = smul.addr %s177, 256
          %s179 = scalar_lea.vmem [#allocation3], %s178
          %s180 = smul.u32 4, %s12
          %s181 = smul.addr %s180, 4
          %s182 = scalar_lea.vmem %s2, %s181
          // Predicated region
          $region29: #{moco_forward.21} parent=27 // pred_check
            _
          $region30: #{moco_forward.21} parent=27 // pred_check_branch
            %184 = sbr.rel (0) target = $region32
          $region31: #{moco_forward.21} parent=27 // pred_region
            // Predicated region
            $region33: #{moco_forward.21} parent=31 // pred_check
              _
            $region34: #{moco_forward.21} parent=31 // pred_check_branch
              %186 = sbr.rel (0) target = $region36
            $region35: #{moco_forward.21} parent=31 // pred_region
              loop: start=0, step=1, limit=1
              $region37: #{moco_forward.21} parent=35 // loop_pre_header
                _
              $region38: #{moco_forward.21} parent=35 // loop_header
                %s188 = sphi 0, %s192
                %p189 = scmp.ge.s32.totalorder %s188, 1
                %s193 = sphi %s182, %s182
                %s194 = sphi %s179, %s179
              $region39: #{moco_forward.21} parent=35 // loop_header_branch
                %191 = sbr.rel (%p189) target = $region43
              $region40: #{moco_forward.21} parent=35 // loop_body
                %v195 = vld [vmem:[%s193] sm:$0xff]
                %196 = vst [vmem:[%s194] sm:$0xff] %v195
                %v197 = vld [vmem:[%s193 + $0x8] sm:$0xff]
                %198 = vst [vmem:[%s194 + $0x8] sm:$0xff] %v197
                %v199 = vld [vmem:[%s193 + $0x20] sm:$0xff]
                %200 = vst [vmem:[%s194 + $0x10] sm:$0xff] %v199
                %v201 = vld [vmem:[%s193 + $0x28] sm:$0xff]
                %202 = vst [vmem:[%s194 + $0x18] sm:$0xff] %v201
                %v203 = vld [vmem:[%s193 + $0x40] sm:$0xff]
                %204 = vst [vmem:[%s194 + $0x20] sm:$0xff] %v203
                %v205 = vld [vmem:[%s193 + $0x48] sm:$0xff]
                %206 = vst [vmem:[%s194 + $0x28] sm:$0xff] %v205
                %v207 = vld [vmem:[%s193 + $0x60] sm:$0xff]
                %208 = vst [vmem:[%s194 + $0x30] sm:$0xff] %v207
                %v209 = vld [vmem:[%s193 + $0x68] sm:$0xff]
                %210 = vst [vmem:[%s194 + $0x38] sm:$0xff] %v209
                %v211 = vld [vmem:[%s193 + $0x80] sm:$0xff]
                %212 = vst [vmem:[%s194 + $0x40] sm:$0xff] %v211
                %v213 = vld [vmem:[%s193 + $0x88] sm:$0xff]
                %214 = vst [vmem:[%s194 + $0x48] sm:$0xff] %v213
                %v215 = vld [vmem:[%s193 + $0xa0] sm:$0xff]
                %216 = vst [vmem:[%s194 + $0x50] sm:$0xff] %v215
                %v217 = vld [vmem:[%s193 + $0xa8] sm:$0xff]
                %218 = vst [vmem:[%s194 + $0x58] sm:$0xff] %v217
                %v219 = vld [vmem:[%s193 + $0xc0] sm:$0xff]
                %220 = vst [vmem:[%s194 + $0x60] sm:$0xff] %v219
                %v221 = vld [vmem:[%s193 + $0xc8] sm:$0xff]
                %222 = vst [vmem:[%s194 + $0x68] sm:$0xff] %v221
                %v223 = vld [vmem:[%s193 + $0xe0] sm:$0xff]
                %224 = vst [vmem:[%s194 + $0x70] sm:$0xff] %v223
                %v225 = vld [vmem:[%s193 + $0xe8] sm:$0xff]
                %226 = vst [vmem:[%s194 + $0x78] sm:$0xff] %v225
                %v227 = vld [vmem:[%s193 + $0x100] sm:$0xff]
                %228 = vst [vmem:[%s194 + $0x80] sm:$0xff] %v227
                %v229 = vld [vmem:[%s193 + $0x108] sm:$0xff]
                %230 = vst [vmem:[%s194 + $0x88] sm:$0xff] %v229
                %v231 = vld [vmem:[%s193 + $0x120] sm:$0xff]
                %232 = vst [vmem:[%s194 + $0x90] sm:$0xff] %v231
                %v233 = vld [vmem:[%s193 + $0x128] sm:$0xff]
                %234 = vst [vmem:[%s194 + $0x98] sm:$0xff] %v233
                %v235 = vld [vmem:[%s193 + $0x140] sm:$0xff]
                %236 = vst [vmem:[%s194 + $0xa0] sm:$0xff] %v235
                %v237 = vld [vmem:[%s193 + $0x148] sm:$0xff]
                %238 = vst [vmem:[%s194 + $0xa8] sm:$0xff] %v237
                %v239 = vld [vmem:[%s193 + $0x160] sm:$0xff]
                %240 = vst [vmem:[%s194 + $0xb0] sm:$0xff] %v239
                %v241 = vld [vmem:[%s193 + $0x168] sm:$0xff]
                %242 = vst [vmem:[%s194 + $0xb8] sm:$0xff] %v241
                %v243 = vld [vmem:[%s193 + $0x180] sm:$0xff]
                %244 = vst [vmem:[%s194 + $0xc0] sm:$0xff] %v243
                %v245 = vld [vmem:[%s193 + $0x188] sm:$0xff]
                %246 = vst [vmem:[%s194 + $0xc8] sm:$0xff] %v245
                %v247 = vld [vmem:[%s193 + $0x1a0] sm:$0xff]
                %248 = vst [vmem:[%s194 + $0xd0] sm:$0xff] %v247
                %v249 = vld [vmem:[%s193 + $0x1a8] sm:$0xff]
                %250 = vst [vmem:[%s194 + $0xd8] sm:$0xff] %v249
                %v251 = vld [vmem:[%s193 + $0x1c0] sm:$0xff]
                %252 = vst [vmem:[%s194 + $0xe0] sm:$0xff] %v251
                %v253 = vld [vmem:[%s193 + $0x1c8] sm:$0xff]
                %254 = vst [vmem:[%s194 + $0xe8] sm:$0xff] %v253
                %v255 = vld [vmem:[%s193 + $0x1e0] sm:$0xff]
                %256 = vst [vmem:[%s194 + $0xf0] sm:$0xff] %v255
                %v257 = vld [vmem:[%s193 + $0x1e8] sm:$0xff]
                %258 = vst [vmem:[%s194 + $0xf8] sm:$0xff] %v257
              $region41: #{moco_forward.21} parent=35 // loop_footer
                %s192 = sadd.s32 1, %s188
              $region42: #{moco_forward.21} parent=35 // loop_footer_branch
                %187 = sbr.rel target = $region38
              $region43: #{moco_forward.21} parent=35 // loop_exit
                _
            $region36: #{moco_forward.21} parent=31 // pred_fallthru
              _
            // Predicated region
            $region44: #{moco_forward.21} parent=31 // pred_check
              _
            $region45: #{moco_forward.21} parent=31 // pred_check_branch
              %260 = sbr.rel target = $region47
            $region46: #{moco_forward.21} parent=31 // pred_region
              _
            $region47: #{moco_forward.21} parent=31 // pred_fallthru
              _
          $region32: #{moco_forward.21} parent=27 // pred_fallthru
            _
          %261 = vnop
        $region28: #{moco_forward.21} parent=23 // pred_fallthru
          _
      $region24: #{moco_forward.21} parent=5 // pred_fallthru
        _
      %p262 = scmp.le.s32.totalorder 1, %s12
      %p263 = scmp.lt.s32.totalorder %s12, 3
      %p264 = pnand %p262, %p263
      %p265 = pneg %p264
      // Predicated region
      $region48: #{moco_forward.21} parent=5 // pred_check
        _
      $region49: #{moco_forward.21} parent=5 // pred_check_branch
        %267 = sbr.rel (%p264) target = $region51
      $region50: #{moco_forward.21} parent=5 // pred_region
        %s268 = ssub.s32 %s12, 1
        %s269 = sand.u32 %s67, 1
        %s270 = sand.u32 %s67, 1
        %s271 = smul.addr %s270, 256
        %s272 = scalar_lea.vmem [#allocation3], %s271
        // Predicated region
        $region52: #{moco_forward.21} parent=50 // pred_check
          %p273 = pneg %p80
        $region53: #{moco_forward.21} parent=50 // pred_check_branch
          %275 = sbr.rel (%p273) target = $region55
        $region54: #{moco_forward.21} parent=50 // pred_region
          _
        $region55: #{moco_forward.21} parent=50 // pred_fallthru
          _
        %p276 = pneg %p33
        %p277 = pneg %p30
        %p278 = pneg %p54
        %p279 = pneg %p51
        %s280 = sand.u32 %s67, 1
        %s281 = sand.u32 %s67, 1
        %s282 = smul.addr %s281, 256
        %s283 = scalar_lea.vmem [#allocation3], %s282
        %p284 = pneg %p80
        %p285 = pneg %p77
        %p286 = pneg %p101
        %p287 = pneg %p98
        %p288 = pneg %p122
        %p289 = pneg %p119
        %p290 = pneg %p148
        %p291 = pneg %p145
        %s292 = smul.u32 4, %s17
        %p293 = scmp.lt.s32.totalorder %s292, 7
        %s294 = scalar_select %p293, %s292, 7
        %s295 = smul.addr %s294, 8
        %s296 = scalar_lea.vmem %s5, %s295
        %s297 = smul.u32 4, %s17
        %s298 = smul.u32 4, %s17
        %p299 = scmp.lt.s32.totalorder %s298, 7
        %s300 = scalar_select %p299, %s298, 7
        %s301 = smul.addr %s300, 8
        %s302 = scalar_lea.vmem %s5, %s301
        %s303 = smul.u32 4, %s17
        %p304 = scmp.eq.s32.totalorder %s17, 0
        // Predicated region
        $region56: #{moco_forward.21} parent=50 // pred_check
          %p305 = pneg %p304
        $region57: #{moco_forward.21} parent=50 // pred_check_branch
          %307 = sbr.rel (%p305) target = $region59
        $region58: #{moco_forward.21} parent=50 // pred_region
          %v308 = vld [vmem:[%s0] sm:$0xff]
          %v309 = vld [vmem:[%s1] sm:$0xff]
          %v310 = vmul.f32 %v308, %v308
          %311 = vadd.xlane.f32.xlu0 %v310
          %v312 = vpop.xlane.xlu0 %311
          %v313 = vmax.f32 %v312, 1e-24
          %v314 = vrsqrt.pop %v313
          %v315 = vmul.f32 %v314, %v313
          %v316 = vmul.f32 %v315, %v314
          %v317 = vmul.f32 0.5, %v316
          %v318 = vsub.f32 1.5, %v317
          %v319 = vmul.f32 %v314, %v318
          %vm320 = vweird.f32 %v313
          %vm321 = vweird.f32 %v314
          %vm322 = vmor %vm320, %vm321
          %v323 = vsel %vm322, %v314, %v319
          %v324 = vmul.f32 %v308, %v323
          %v325 = vmul.f32 %v309, %v309
          %326 = vadd.xlane.f32.xlu0 %v325
          %v327 = vpop.xlane.xlu0 %326
          %v328 = vmax.f32 %v327, 1e-24
          %v329 = vrsqrt.pop %v328
          %v330 = vmul.f32 %v329, %v328
          %v331 = vmul.f32 %v330, %v329
          %v332 = vmul.f32 0.5, %v331
          %v333 = vsub.f32 1.5, %v332
          %v334 = vmul.f32 %v329, %v333
          %vm335 = vweird.f32 %v328
          %vm336 = vweird.f32 %v329
          %vm337 = vmor %vm335, %vm336
          %v338 = vsel %vm337, %v329, %v334
          %v339 = vmul.f32 %v309, %v338
          %v340 = vmul.f32 %v324, 14.285714
          %v341 = vmul.f32 %v340, %v339
          %342 = vadd.xlane.f32.xlu0 %v341
          %v343 = vpop.xlane.xlu0 %342
          %vm344 = vcmask 7168
          %345 = vst.msk [vmem:[%s3] sm:$0xff] %vm344, %v343
          %346 = vst [vmem:[%s4] sm:$0xff] %v339
          %v347 = vpack.c.bf16 %v340, %v340
          %348 = vst [vmem:[#allocation2] sm:$0xf] %v347
        $region59: #{moco_forward.21} parent=50 // pred_fallthru
          _
        %v349 = vld [vmem:[#allocation2] sm:$0xf]
        %v350 = vld [vmem:[%s272] sm:$0xff]
        %v351 = vld [vmem:[%s272 + $0x8] sm:$0xff]
        %v352 = vld [vmem:[%s272 + $0x10] sm:$0xff]
        %v353 = vld [vmem:[%s272 + $0x18] sm:$0xff]
        %v354 = vld [vmem:[%s272 + $0x20] sm:$0xff]
        %v355 = vld [vmem:[%s272 + $0x28] sm:$0xff]
        %v356 = vld [vmem:[%s272 + $0x30] sm:$0xff]
        %v357 = vld [vmem:[%s272 + $0x38] sm:$0xff]
        %v358 = vld [vmem:[%s272 + $0x40] sm:$0xff]
        %v359 = vld [vmem:[%s272 + $0x48] sm:$0xff]
        %v360 = vld [vmem:[%s272 + $0x50] sm:$0xff]
        %v361 = vld [vmem:[%s272 + $0x58] sm:$0xff]
        %v362 = vld [vmem:[%s272 + $0x60] sm:$0xff]
        %v363 = vld [vmem:[%s272 + $0x68] sm:$0xff]
        %v364 = vld [vmem:[%s272 + $0x70] sm:$0xff]
        %v365 = vld [vmem:[%s272 + $0x78] sm:$0xff]
        %v366 = vld [vmem:[%s272 + $0x80] sm:$0xff]
        %v367 = vld [vmem:[%s272 + $0x88] sm:$0xff]
        %v368 = vld [vmem:[%s272 + $0x90] sm:$0xff]
        %v369 = vld [vmem:[%s272 + $0x98] sm:$0xff]
        %v370 = vld [vmem:[%s272 + $0xa0] sm:$0xff]
        %v371 = vld [vmem:[%s272 + $0xa8] sm:$0xff]
        %v372 = vld [vmem:[%s272 + $0xb0] sm:$0xff]
        %v373 = vld [vmem:[%s272 + $0xb8] sm:$0xff]
        %v374 = vld [vmem:[%s272 + $0xc0] sm:$0xff]
        %v375 = vld [vmem:[%s272 + $0xc8] sm:$0xff]
        %v376 = vld [vmem:[%s272 + $0xd0] sm:$0xff]
        %v377 = vld [vmem:[%s272 + $0xd8] sm:$0xff]
        %v378 = vld [vmem:[%s272 + $0xe0] sm:$0xff]
        %v379 = vld [vmem:[%s272 + $0xe8] sm:$0xff]
        %v380 = vld [vmem:[%s272 + $0xf0] sm:$0xff]
        %v381 = vld [vmem:[%s272 + $0xf8] sm:$0xff]
        %v414 = vunpack.c.l.b16 %v350
        %v415 = vunpack.c.h.b16 %v350
        %v416 = vunpack.c.l.b16 %v351
        %v417 = vunpack.c.h.b16 %v351
        %v418 = vunpack.c.l.b16 %v352
        %v419 = vunpack.c.h.b16 %v352
        %v420 = vunpack.c.l.b16 %v353
        %v421 = vunpack.c.h.b16 %v353
        %v422 = vunpack.c.l.b16 %v354
        %v423 = vunpack.c.h.b16 %v354
        %v424 = vunpack.c.l.b16 %v355
        %v425 = vunpack.c.h.b16 %v355
        %v426 = vunpack.c.l.b16 %v356
        %v427 = vunpack.c.h.b16 %v356
        %v428 = vunpack.c.l.b16 %v357
        %v429 = vunpack.c.h.b16 %v357
        %v430 = vunpack.c.l.b16 %v358
        %v431 = vunpack.c.h.b16 %v358
        %v432 = vunpack.c.l.b16 %v359
        %v433 = vunpack.c.h.b16 %v359
        %v434 = vunpack.c.l.b16 %v360
        %v435 = vunpack.c.h.b16 %v360
        %v436 = vunpack.c.l.b16 %v361
        %v437 = vunpack.c.h.b16 %v361
        %v438 = vunpack.c.l.b16 %v362
        %v439 = vunpack.c.h.b16 %v362
        %v440 = vunpack.c.l.b16 %v363
        %v441 = vunpack.c.h.b16 %v363
        %v442 = vunpack.c.l.b16 %v364
        %v443 = vunpack.c.h.b16 %v364
        %v444 = vunpack.c.l.b16 %v365
        %v445 = vunpack.c.h.b16 %v365
        %v446 = vunpack.c.l.b16 %v366
        %v447 = vunpack.c.h.b16 %v366
        %v448 = vunpack.c.l.b16 %v367
        %v449 = vunpack.c.h.b16 %v367
        %v450 = vunpack.c.l.b16 %v368
        %v451 = vunpack.c.h.b16 %v368
        %v452 = vunpack.c.l.b16 %v369
        %v453 = vunpack.c.h.b16 %v369
        %v454 = vunpack.c.l.b16 %v370
        %v455 = vunpack.c.h.b16 %v370
        %v456 = vunpack.c.l.b16 %v371
        %v457 = vunpack.c.h.b16 %v371
        %v458 = vunpack.c.l.b16 %v372
        %v459 = vunpack.c.h.b16 %v372
        %v460 = vunpack.c.l.b16 %v373
        %v461 = vunpack.c.h.b16 %v373
        %v462 = vunpack.c.l.b16 %v374
        %v463 = vunpack.c.h.b16 %v374
        %v464 = vunpack.c.l.b16 %v375
        %v465 = vunpack.c.h.b16 %v375
        %v466 = vunpack.c.l.b16 %v376
        %v467 = vunpack.c.h.b16 %v376
        %v468 = vunpack.c.l.b16 %v377
        %v469 = vunpack.c.h.b16 %v377
        %v470 = vunpack.c.l.b16 %v378
        %v471 = vunpack.c.h.b16 %v378
        %v472 = vunpack.c.l.b16 %v379
        %v473 = vunpack.c.h.b16 %v379
        %v474 = vunpack.c.l.b16 %v380
        %v475 = vunpack.c.h.b16 %v380
        %v476 = vunpack.c.l.b16 %v381
        %v477 = vunpack.c.h.b16 %v381
        %v478 = vpack.c.b16 %v418, %v414
        %v479 = vpack.c.b16 %v419, %v415
        %v480 = vpack.c.b16 %v420, %v416
        %v481 = vpack.c.b16 %v421, %v417
        %v482 = vpack.c.b16 %v426, %v422
        %v483 = vpack.c.b16 %v427, %v423
        %v484 = vpack.c.b16 %v428, %v424
        %v485 = vpack.c.b16 %v429, %v425
        %v486 = vpack.c.b16 %v434, %v430
        %v487 = vpack.c.b16 %v435, %v431
        %v488 = vpack.c.b16 %v436, %v432
        %v489 = vpack.c.b16 %v437, %v433
        %v490 = vpack.c.b16 %v442, %v438
        %v491 = vpack.c.b16 %v443, %v439
        %v492 = vpack.c.b16 %v444, %v440
        %v493 = vpack.c.b16 %v445, %v441
        %v494 = vpack.c.b16 %v450, %v446
        %v495 = vpack.c.b16 %v451, %v447
        %v496 = vpack.c.b16 %v452, %v448
        %v497 = vpack.c.b16 %v453, %v449
        %v498 = vpack.c.b16 %v458, %v454
        %v499 = vpack.c.b16 %v459, %v455
        %v500 = vpack.c.b16 %v460, %v456
        %v501 = vpack.c.b16 %v461, %v457
        %v502 = vpack.c.b16 %v466, %v462
        %v503 = vpack.c.b16 %v467, %v463
        %v504 = vpack.c.b16 %v468, %v464
        %v505 = vpack.c.b16 %v469, %v465
        %v506 = vpack.c.b16 %v474, %v470
        %v507 = vpack.c.b16 %v475, %v471
        %v508 = vpack.c.b16 %v476, %v472
        %v509 = vpack.c.b16 %v477, %v473
        %542 = vmatpush.bf16.msra.mxu0 %v506
        %543 = vmatpush.bf16.msra.mxu0 %v502
        %544 = vmatpush.bf16.msra.mxu0 %v498
        %545 = vmatpush.bf16.msra.mxu0 %v494
        %546 = vmatpush.bf16.msra.mxu0 %v490
        %547 = vmatpush.bf16.msra.mxu0 %v486
        %548 = vmatpush.bf16.msra.mxu0 %v482
        %549 = vmatpush.bf16.msra.mxu0 %v478
        %550 = vmatmul.bf16.gmra.mxu0 %v349
        %v551 = vpop.f32.mrf.mxu0
        %v552 = vadd.f32 0.0, %v551
        %v553 = vpop.f32.mrf.mxu0
        %554 = vdwg.mxu0
        %555 = vmatpush.bf16.msra.mxu0 %v507
        %556 = vmatpush.bf16.msra.mxu0 %v503
        %557 = vmatpush.bf16.msra.mxu0 %v499
        %558 = vmatpush.bf16.msra.mxu0 %v495
        %559 = vmatpush.bf16.msra.mxu0 %v491
        %560 = vmatpush.bf16.msra.mxu0 %v487
        %561 = vmatpush.bf16.msra.mxu0 %v483
        %562 = vmatpush.bf16.msra.mxu0 %v479
        %563 = vmatmul.bf16.gmra.mxu0 %v349
        %v564 = vpop.f32.mrf.mxu0
        %v565 = vadd.f32 0.0, %v564
        %v566 = vpop.f32.mrf.mxu0
        %567 = vdwg.mxu0
        %568 = vmatpush.bf16.msra.mxu0 %v508
        %569 = vmatpush.bf16.msra.mxu0 %v504
        %570 = vmatpush.bf16.msra.mxu0 %v500
        %571 = vmatpush.bf16.msra.mxu0 %v496
        %572 = vmatpush.bf16.msra.mxu0 %v492
        %573 = vmatpush.bf16.msra.mxu0 %v488
        %574 = vmatpush.bf16.msra.mxu0 %v484
        %575 = vmatpush.bf16.msra.mxu0 %v480
        %576 = vmatmul.bf16.gmra.mxu0 %v349
        %v577 = vpop.f32.mrf.mxu0
        %v578 = vadd.f32 0.0, %v577
        %v579 = vpop.f32.mrf.mxu0
        %580 = vdwg.mxu0
        %581 = vmatpush.bf16.msra.mxu0 %v509
        %582 = vmatpush.bf16.msra.mxu0 %v505
        %583 = vmatpush.bf16.msra.mxu0 %v501
        %584 = vmatpush.bf16.msra.mxu0 %v497
        %585 = vmatpush.bf16.msra.mxu0 %v493
        %586 = vmatpush.bf16.msra.mxu0 %v489
        %587 = vmatpush.bf16.msra.mxu0 %v485
        %588 = vmatpush.bf16.msra.mxu0 %v481
        %589 = vmatmul.bf16.gmra.mxu0 %v349
        %v590 = vpop.f32.mrf.mxu0
        %v591 = vadd.f32 0.0, %v590
        %v592 = vpop.f32.mrf.mxu0
        %593 = vdwg.mxu0
        %594 = vst [vmem:[%s302] sm:$0xff] %v552
        %595 = vst [vmem:[%s302 + $0x8] sm:$0xff] %v565
        %596 = vst [vmem:[%s302 + $0x10] sm:$0xff] %v578
        %597 = vst [vmem:[%s302 + $0x18] sm:$0xff] %v591
        %s598 = smul.u32 4, %s17
        %p599 = scmp.lt.s32.totalorder %s598, 7
        %s600 = scalar_select %p599, %s598, 7
        %s601 = smul.addr %s600, 8
        %s602 = scalar_lea.vmem %s5, %s601
        // Predicated region
        $region60: #{moco_forward.21} parent=50 // pred_check
          %p603 = pneg %p98
        $region61: #{moco_forward.21} parent=50 // pred_check_branch
          %605 = sbr.rel (%p603) target = $region63
        $region62: #{moco_forward.21} parent=50 // pred_region
          _
        $region63: #{moco_forward.21} parent=50 // pred_fallthru
          _
        // Predicated region
        $region64: #{moco_forward.21} parent=50 // pred_check
          %p606 = pneg %p119
        $region65: #{moco_forward.21} parent=50 // pred_check_branch
          %608 = sbr.rel (%p606) target = $region67
        $region66: #{moco_forward.21} parent=50 // pred_region
          _
        $region67: #{moco_forward.21} parent=50 // pred_fallthru
          _
        // Predicated region
        $region68: #{moco_forward.21} parent=50 // pred_check
          %p609 = pneg %p145
        $region69: #{moco_forward.21} parent=50 // pred_check_branch
          %611 = sbr.rel (%p609) target = $region71
        $region70: #{moco_forward.21} parent=50 // pred_region
          %s612 = smul.u32 4, %s17
        $region71: #{moco_forward.21} parent=50 // pred_fallthru
          _
        // Predicated region
        $region72: #{moco_forward.21} parent=50 // pred_check
          %p613 = pneg %p98
        $region73: #{moco_forward.21} parent=50 // pred_check_branch
          %615 = sbr.rel (%p613) target = $region75
        $region74: #{moco_forward.21} parent=50 // pred_region
          _
        $region75: #{moco_forward.21} parent=50 // pred_fallthru
          _
        // Predicated region
        $region76: #{moco_forward.21} parent=50 // pred_check
          %p616 = pneg %p119
        $region77: #{moco_forward.21} parent=50 // pred_check_branch
          %618 = sbr.rel (%p616) target = $region79
        $region78: #{moco_forward.21} parent=50 // pred_region
          _
        $region79: #{moco_forward.21} parent=50 // pred_fallthru
          _
      $region51: #{moco_forward.21} parent=5 // pred_fallthru
        _
      %p619 = scmp.le.s32.totalorder 2, %s12
      // Predicated region
      $region80: #{moco_forward.21} parent=5 // pred_check
        %p620 = pneg %p619
      $region81: #{moco_forward.21} parent=5 // pred_check_branch
        %622 = sbr.rel (%p620) target = $region83
      $region82: #{moco_forward.21} parent=5 // pred_region
        %s623 = ssub.s32 %s12, 2
        // Predicated region
        $region84: #{moco_forward.21} parent=82 // pred_check
          %p624 = pneg %p151
        $region85: #{moco_forward.21} parent=82 // pred_check_branch
          %626 = sbr.rel (%p624) target = $region87
        $region86: #{moco_forward.21} parent=82 // pred_region
          %s627 = smul.u32 4, %s18
          %p628 = scmp.lt.s32.totalorder %s627, 7
          %s629 = scalar_select %p628, %s627, 7
          %s630 = smul.addr %s629, 8
          %s631 = scalar_lea.vmem %s5, %s630
        $region87: #{moco_forward.21} parent=82 // pred_fallthru
          _
      $region83: #{moco_forward.21} parent=5 // pred_fallthru
        _
    $region6: #{moco_forward.21} parent=1 // loop_footer
      %s16 = sadd.s32 1, %s12
    $region7: #{moco_forward.21} parent=1 // loop_footer_branch
      %11 = sbr.rel target = $region3
    $region8: #{moco_forward.21} parent=1 // loop_exit
      _

</llo_original>
